<compile_context>
chip_gen: v7x
topology: tpu7x:2x2x1
jax: 0.10.0
libtpu: 0.0.40
codegen_flags: <defaults>
</compile_context>

<pallas_src>
import math

import jax
import jax.numpy as jnp
from jax import lax
from jax.experimental import pallas as pl
from jax.experimental.pallas import tpu as pltpu


# ---------------------------------------------------------------------------
# Config (small shapes, consistent with the PyTorch module)
# ---------------------------------------------------------------------------
IMAGE_SIZE = 8
CONV_DIM = 8
C_DIM = 5
REPEAT_NUM = 2
IN_CH = 15
BATCH = 2
LRELU_SLOPE = 0.01


def _cpad(c, w):
    """Smallest padded channel count >= c such that w * cpad is a multiple of 128."""
    u = 128 // math.gcd(w, 128)
    return ((c + u - 1) // u) * u


def _round8(x):
    return ((x + 7) // 8) * 8


def _layer_descs(image_size=IMAGE_SIZE, conv_dim=CONV_DIM, c_dim=C_DIM,
                 repeat_num=REPEAT_NUM, in_ch=IN_CH):
    """Static per-layer descriptors driving the fused kernel."""
    descs = []
    s_in = image_size
    cin, cout = in_ch, conv_dim
    cp_in = _cpad(in_ch, image_size)
    for _ in range(repeat_num):
        s_out = s_in // 2
        cp_out = _cpad(cout, s_out)
        descs.append(dict(kind="main", k=4, stride=2, pad=1, s_in=s_in, s_out=s_out,
                          cin=cin, cout=cout, cp_in=cp_in, cp_out=cp_out,
                          relu=True, bias=True))
        cin, cout, cp_in, s_in = cout, cout * 2, cp_out, s_out
    sf = s_in
    descs.append(dict(kind="src", k=3, stride=1, pad=1, s_in=sf, s_out=sf,
                      cin=cin, cout=1, cp_in=cp_in, cp_out=_cpad(1, sf),
                      relu=False, bias=False))
    descs.append(dict(kind="cls", k=sf, stride=1, pad=0, s_in=sf, s_out=1,
                      cin=cin, cout=c_dim, cp_in=cp_in, cp_out=_cpad(c_dim, 1),
                      relu=False, bias=False))
    return descs


def _buffer_geoms(descs):
    """Geometry of the VMEM-resident activation buffers 0..n_main.

    Buffer i holds the (D/H zero padded) input of main layer i; buffer n_main
    holds the padded output of the last main layer (read by BOTH heads).
    Rows = n * pitch**2 (pitch rounded up to a multiple of 8, review item 6);
    lanes = W * Cpad (W taps / W padding live in the banded weights).
    """
    n_main = sum(1 for d in descs if d["kind"] == "main")
    geoms = []
    for i in range(n_main):
        d = descs[i]
        geoms.append(dict(s=d["s_in"], pad=d["pad"], cp=d["cp_in"],
                          lanes=d["s_in"] * d["cp_in"],
                          pitch=_round8(d["s_in"] + 2 * d["pad"])))
    d_src = descs[n_main]
    geoms.append(dict(s=d_src["s_in"], pad=d_src["pad"], cp=d_src["cp_in"],
                      lanes=d_src["s_in"] * d_src["cp_in"],
                      pitch=_round8(d_src["s_in"] + 2 * d_src["pad"])))
    return geoms


# ---------------------------------------------------------------------------
# Fused Pallas kernel (single invocation, everything VMEM-resident)
# ---------------------------------------------------------------------------
def _make_fused_kernel(descs, geoms, n_batch):
    n_main = sum(1 for d in descs if d["kind"] == "main")

    def kernel(*refs):
        # ref order: [a0, (w_l, bias_l?)*layers, out_src, out_cls,
        #             act_buf_1..n_main, lhs_buf_0..n_layers-1]
        a0_ref = refs[0]
        idx = 1
        w_refs, b_refs = [], []
        for d in descs:
            w_refs.append(refs[idx]); idx += 1
            if d["bias"]:
                b_refs.append(refs[idx]); idx += 1
            else:
                b_refs.append(None)
        src_ref = refs[idx]
        cls_ref = refs[idx + 1]
        scratch = list(refs[idx + 2:])
        act_bufs = [a0_ref] + scratch[:n_main]      # activation buffers 0..n_main
        lhs_bufs = scratch[n_main:]                 # per-layer gathered-LHS (bf16)

        # --- zero ONLY the rows taps may read (interior rows get overwritten by
        #     the producing layer's scatter); LHS scratches are fully written.
        for bi in range(1, n_main + 1):
            g = geoms[bi]
            P = g["pitch"]
            V = g["s"] + 2 * g["pad"]               # readable padded D extent
            buf = act_bufs[bi]
            for n in range(n_batch):
                buf[pl.ds(n * P * P, V * P), :] = jnp.zeros(
                    (V * P, g["lanes"]), buf.dtype)

        def run_layer(li, d, gin, a_ref):
            """Gather all taps -> ONE big GEMM -> bias + LeakyReLU (f32).

            Returns the (M, lanes_out) f32 result; rows ordered (n, do, ho)."""
            k, st = d["k"], d["stride"]
            P, lanes_in = gin["pitch"], gin["lanes"]
            off = gin["pad"] - d["pad"]             # buffer padding vs conv padding
            do_n = ho_n = d["s_out"]
            M = n_batch * do_n * ho_n
            lhs = lhs_bufs[li]

            # Fully unrolled static gather: per (n, do) row-group, per (kd, kh)
            # tap, copy ho_n input rows into the LHS column block of that tap.
            for n in range(n_batch):
                for do in range(do_n):
                    m0 = (n * do_n + do) * ho_n
                    for kd in range(k):
                        base = (n * P + st * do + kd + off) * P + off
                        for kh in range(k):
                            c0 = (kd * k + kh) * lanes_in
                            if st == 1:
                                src = a_ref[pl.ds(base + kh, ho_n), :]
                            else:
                                src = a_ref[pl.ds(base + kh, ho_n, stride=st), :]
                            lhs[pl.ds(m0, ho_n), pl.ds(c0, lanes_in)] = (
                                src.astype(lhs.dtype))

            # One GEMM per layer: every 128x128 weight tile pushed once,
            # K = k*k*lanes_in streamed with internal f32 accumulation.
            acc = jnp.dot(lhs[pl.ds(0, M), :], w_refs[li][...],
                          preferred_element_type=jnp.float32)
            if b_refs[li] is not None:
                acc = acc + b_refs[li][...]
            if d["relu"]:
                acc = jnp.where(acc >= 0.0, acc, LRELU_SLOPE * acc)
            return acc

        # Main chain: scatter each layer's (n, do, ho)-ordered rows into the
        # interior of the next padded activation buffer.
        for li in range(n_main):
            d = descs[li]
            acc = run_layer(li, d, geoms[li], act_bufs[li])
            gout = geoms[li + 1]
            Pn, pn = gout["pitch"], gout["pad"]
            do_n = ho_n = d["s_out"]
            dst = act_bufs[li + 1]
            for n in range(n_batch):
                for do in range(do_n):
                    m0 = (n * do_n + do) * ho_n
                    r0 = (n * Pn + pn + do) * Pn + pn
                    dst[pl.ds(r0, ho_n), :] = acc[m0:m0 + ho_n, :].astype(dst.dtype)

        # Heads: both read buffer n_main (cls reads its interior via `off`);
        # outputs are lane-dense and already in (n, do, ho) row order.
        d_src, d_cls = descs[n_main], descs[n_main + 1]
        src_ref[...] = run_layer(n_main, d_src, geoms[n_main], act_bufs[n_main])
        cls_ref[...] = run_layer(n_main + 1, d_cls, geoms[n_main], act_bufs[n_main])

    return kernel


# ---------------------------------------------------------------------------
# Host-side (one-time) packing of inputs / parameters
# ---------------------------------------------------------------------------
def _pack_input(x, cp_in, pad, pitch):
    n, c, d, h, w = x.shape
    xt = jnp.transpose(x, (0, 2, 3, 4, 1))                             # NDHWC
    xt = jnp.pad(xt, ((0, 0),
                      (pad, pitch - d - pad),
                      (pad, pitch - h - pad),
                      (0, 0),
                      (0, cp_in - c)))
    return xt.reshape(n * pitch * pitch, w * cp_in).astype(jnp.float32)


def _make_banded_weight(w, *, stride, pad, w_in, w_out, cp_in, cp_out):
    """Torch (Cout,Cin,k,k,k) conv weight -> (k*k*w_in*cp_in, w_out*cp_out) bf16
    block-banded GEMM weight (W taps and W padding folded into the band; row
    blocks ordered (kd, kh) to match the gathered LHS column blocks)."""
    cout, cin, k = int(w.shape[0]), int(w.shape[1]), int(w.shape[2])
    bw = jnp.zeros((k, k, w_in, cp_in, w_out, cp_out), jnp.float32)
    for wo in range(w_out):
        for kw in range(k):
            wi = stride * wo + kw - pad
            if 0 <= wi < w_in:
                blk = jnp.transpose(w[:, :, :, :, kw], (2, 3, 1, 0))   # (kd,kh,ci,co)
                bw = bw.at[:, :, wi, :cin, wo, :cout].set(blk)
    return bw.reshape(k * k * w_in * cp_in, w_out * cp_out).astype(jnp.bfloat16)


def _pack_bias(b, w_out, cp_out):
    cout = b.shape[0]
    row = jnp.zeros((w_out, cp_out), jnp.float32)
    row = row.at[:, :cout].set(jnp.broadcast_to(b, (w_out, cout)))
    return row.reshape(1, w_out * cp_out)


def pack_discriminator_params(params, descs):
    """One-time conversion of PyTorch-layout Conv3d weights into kernel operands."""
    per_layer_w = list(params["main"]) + [(params["conv1_w"], None),
                                          (params["conv2_w"], None)]
    ops = []
    for d, (w, b) in zip(descs, per_layer_w):
        ops.append(_make_banded_weight(w, stride=d["stride"], pad=d["pad"],
                                       w_in=d["s_in"], w_out=d["s_out"],
                                       cp_in=d["cp_in"], cp_out=d["cp_out"]))
        if d["bias"]:
            ops.append(_pack_bias(b, d["s_out"], d["cp_out"]))
    return ops


# ---------------------------------------------------------------------------
# Build the fused pallas_call and the end-to-end forward
# ---------------------------------------------------------------------------
def build_discriminator_forward(descs=None, n_batch=BATCH, c_dim=C_DIM):
    if descs is None:
        descs = _layer_descs()
    geoms = _buffer_geoms(descs)
    n_main = sum(1 for d in descs if d["kind"] == "main")
    d0, d_src, d_cls = descs[0], descs[n_main], descs[n_main + 1]
    g0 = geoms[0]

    # input / parameter operand shapes
    a0_shape = (n_batch * g0["pitch"] ** 2, g0["lanes"])
    in_shapes = [a0_shape]
    for d in descs:
        in_shapes.append((d["k"] ** 2 * d["s_in"] * d["cp_in"],
                          d["s_out"] * d["cp_out"]))
        if d["bias"]:
            in_shapes.append((1, d["s_out"] * d["cp_out"]))

    src_shape = (n_batch * d_src["s_out"] ** 2, d_src["s_out"] * d_src["cp_out"])
    cls_shape = (n_batch * d_cls["s_out"] ** 2, d_cls["s_out"] * d_cls["cp_out"])

    # scratch: padded activation buffers 1..n_main (f32) + per-layer bf16 LHS
    scratch_shapes = []
    for i in range(1, n_main + 1):
        g = geoms[i]
        scratch_shapes.append(
            pltpu.VMEM((n_batch * g["pitch"] ** 2, g["lanes"]), jnp.float32))
    for li, d in enumerate(descs):
        gin = geoms[min(li, n_main)]
        M = n_batch * d["s_out"] ** 2
        K = d["k"] ** 2 * gin["lanes"]
        scratch_shapes.append(pltpu.VMEM((max(M, 8), K), jnp.bfloat16))

    def _full_spec(shape):
        nd = len(shape)
        return pl.BlockSpec(shape, lambda i, _nd=nd: (0,) * _nd)

    call = pl.pallas_call(
        _make_fused_kernel(descs, geoms, n_batch),
        out_shape=(jax.ShapeDtypeStruct(src_shape, jnp.float32),
                   jax.ShapeDtypeStruct(cls_shape, jnp.float32)),
        grid=(1,),
        in_specs=[_full_spec(s) for s in in_shapes],
        out_specs=(_full_spec(src_shape), _full_spec(cls_shape)),
        scratch_shapes=scratch_shapes,
        compiler_params=pltpu.CompilerParams(dimension_semantics=("arbitrary",)),
    )

    def forward(packed_ops, x):
        a0 = _pack_input(x, d0["cp_in"], d0["pad"], g0["pitch"])
        src_raw, cls_raw = call(a0, *packed_ops)
        sf = d_src["s_out"]
        src = src_raw.reshape(n_batch, sf, sf, sf, d_src["cp_out"])[..., :1]
        out_src = jnp.transpose(src, (0, 4, 1, 2, 3))          # -> NCDHW
        out_cls = cls_raw[:, :c_dim]
        return out_src, out_cls

    return jax.jit(forward), descs


# ---------------------------------------------------------------------------
# Parameter init (PyTorch-like) and plain-XLA reference for sanity checking
# ---------------------------------------------------------------------------
def make_discriminator_params(key, image_size=IMAGE_SIZE, conv_dim=CONV_DIM,
                              c_dim=C_DIM, repeat_num=REPEAT_NUM, in_ch=IN_CH):
    params = {"main": []}
    curr, out = in_ch, conv_dim
    for _ in range(repeat_num):
        key, kw_, kb_ = jax.random.split(key, 3)
        fan_in = curr * 4 * 4 * 4
        bound = 1.0 / float(math.sqrt(fan_in))
        w = jax.random.uniform(kw_, (out, curr, 4, 4, 4), jnp.float32, -bound, bound)
        b = jax.random.uniform(kb_, (out,), jnp.float32, -bound, bound)
        params["main"].append((w, b))
        curr, out = out, out * 2
    k_last = image_size // (2 ** repeat_num)
    key, k1, k2 = jax.random.split(key, 3)
    params["conv1_w"] = jax.random.uniform(k1, (1, curr, 3, 3, 3), jnp.float32, -0.05, 0.05)
    params["conv2_w"] = jax.random.uniform(
        k2, (c_dim, curr, k_last, k_last, k_last), jnp.float32, -0.05, 0.05)
    return params


def _ref_conv3d(x, w, b, stride, pad):
    out = lax.conv_general_dilated(
        x, w, window_strides=(stride,) * 3, padding=[(pad, pad)] * 3,
        dimension_numbers=("NCDHW", "OIDHW", "NCDHW"))
    return out + b.reshape(1, -1, 1, 1, 1)


def _ref_forward(params, x):
    h = x
    for (w, b) in params["main"]:
        h = _ref_conv3d(h, w, b, 2, 1)
        h = jnp.where(h >= 0.0, h, LRELU_SLOPE * h)
    out_src = _ref_conv3d(h, params["conv1_w"], jnp.zeros((1,), jnp.float32), 1, 1)
    out_cls = _ref_conv3d(h, params["conv2_w"],
                          jnp.zeros((params["conv2_w"].shape[0],), jnp.float32), 1, 0)
    return out_src, out_cls.reshape(out_cls.shape[0], out_cls.shape[1])


# ---------------------------------------------------------------------------
if __name__ == "__main__":
    key = jax.random.PRNGKey(0)
    key, kx = jax.random.split(key)

    params = make_discriminator_params(key)
    x = jax.random.normal(kx, (BATCH, IN_CH, IMAGE_SIZE, IMAGE_SIZE, IMAGE_SIZE),
                          jnp.float32)

    forward, descs = build_discriminator_forward()
    packed = pack_discriminator_params(params, descs)

    out_src, out_cls = forward(packed, x)
    jax.block_until_ready((out_src, out_cls))

    sf = IMAGE_SIZE // (2 ** REPEAT_NUM)
    assert out_src.shape == (BATCH, 1, sf, sf, sf)
    assert out_cls.shape == (BATCH, C_DIM)

    # sanity check against plain-XLA conv reference (bf16 MXU operands ->
    # loosened tolerance)
    ref_src, ref_cls = _ref_forward(params, x)
    assert jnp.allclose(out_src, ref_src, atol=2e-2, rtol=2e-2), \
        float(jnp.max(jnp.abs(out_src - ref_src)))
    assert jnp.allclose(out_cls, ref_cls, atol=2e-2, rtol=2e-2), \
        float(jnp.max(jnp.abs(out_cls - ref_cls)))

    print("KERNEL_OK")
</pallas_src>

<mosaic_0001>
module attributes {stable_mosaic.version = 11 : i64} {
  func.func @kernel(%arg0: i32, %arg1: memref<512x128xf32, #tpu.memory_space<vmem>>, %arg2: memref<2048x128xbf16, #tpu.memory_space<vmem>>, %arg3: memref<1x128xf32, #tpu.memory_space<vmem>>, %arg4: memref<2048x128xbf16, #tpu.memory_space<vmem>>, %arg5: memref<1x128xf32, #tpu.memory_space<vmem>>, %arg6: memref<1152x128xbf16, #tpu.memory_space<vmem>>, %arg7: memref<512x128xbf16, #tpu.memory_space<vmem>>, %arg8: memref<8x128xf32, #tpu.memory_space<vmem>>, %arg9: memref<2x128xf32, #tpu.memory_space<vmem>>, %arg10: memref<128x128xf32, #tpu.memory_space<vmem>>, %arg11: memref<128x128xf32, #tpu.memory_space<vmem>>, %arg12: memref<32x2048xbf16, #tpu.memory_space<vmem>>, %arg13: memref<8x2048xbf16, #tpu.memory_space<vmem>>, %arg14: memref<8x1152xbf16, #tpu.memory_space<vmem>>, %arg15: memref<8x512xbf16, #tpu.memory_space<vmem>>) attributes {dimension_semantics = [#tpu.dimension_semantics<arbitrary>], iteration_bounds = array<i64: 1>, scalar_prefetch = 0 : i64, scratch_operands = 6 : i64, tpu.core_type = #tpu.core_type<tc>, window_params = [{pipeline_mode = #tpu.pipeline_mode<synchronous>, transform_indices = @transform_0, window_bounds = array<i64: 512, 128>}, {pipeline_mode = #tpu.pipeline_mode<synchronous>, transform_indices = @transform_1, window_bounds = array<i64: 2048, 128>}, {pipeline_mode = #tpu.pipeline_mode<synchronous>, transform_indices = @transform_2, window_bounds = array<i64: 1, 128>}, {pipeline_mode = #tpu.pipeline_mode<synchronous>, transform_indices = @transform_3, window_bounds = array<i64: 2048, 128>}, {pipeline_mode = #tpu.pipeline_mode<synchronous>, transform_indices = @transform_4, window_bounds = array<i64: 1, 128>}, {pipeline_mode = #tpu.pipeline_mode<synchronous>, transform_indices = @transform_5, window_bounds = array<i64: 1152, 128>}, {pipeline_mode = #tpu.pipeline_mode<synchronous>, transform_indices = @transform_6, window_bounds = array<i64: 512, 128>}, {pipeline_mode = #tpu.pipeline_mode<synchronous>, transform_indices = @transform_7, window_bounds = array<i64: 8, 128>}, {pipeline_mode = #tpu.pipeline_mode<synchronous>, transform_indices = @transform_8, window_bounds = array<i64: 2, 128>}]} {
    %cst = arith.constant 0.000000e+00 : f32
    %0 = vector.broadcast %cst : f32 to vector<48x128xf32>
    %c0 = arith.constant 0 : index
    %c0_0 = arith.constant 0 : index
    %1 = vector.load %arg10[%c0, %c0_0] : memref<128x128xf32, #tpu.memory_space<vmem>>, vector<48x128xf32>
    tpu.vector_store %arg10[%c0, %c0_0], %0 {strides = array<i32>} : memref<128x128xf32, #tpu.memory_space<vmem>>, vector<48x128xf32>,
    %cst_1 = arith.constant 0.000000e+00 : f32
    %2 = vector.broadcast %cst_1 : f32 to vector<48x128xf32>
    %c64 = arith.constant 64 : index
    %c0_2 = arith.constant 0 : index
    %3 = vector.load %arg10[%c64, %c0_2] : memref<128x128xf32, #tpu.memory_space<vmem>>, vector<48x128xf32>
    tpu.vector_store %arg10[%c64, %c0_2], %2 {strides = array<i32>} : memref<128x128xf32, #tpu.memory_space<vmem>>, vector<48x128xf32>,
    %cst_3 = arith.constant 0.000000e+00 : f32
    %4 = vector.broadcast %cst_3 : f32 to vector<32x128xf32>
    %c0_4 = arith.constant 0 : index
    %c0_5 = arith.constant 0 : index
    %5 = vector.load %arg11[%c0_4, %c0_5] : memref<128x128xf32, #tpu.memory_space<vmem>>, vector<32x128xf32>
    tpu.vector_store %arg11[%c0_4, %c0_5], %4 {strides = array<i32>} : memref<128x128xf32, #tpu.memory_space<vmem>>, vector<32x128xf32>,
    %cst_6 = arith.constant 0.000000e+00 : f32
    %6 = vector.broadcast %cst_6 : f32 to vector<32x128xf32>
    %c64_7 = arith.constant 64 : index
    %c0_8 = arith.constant 0 : index
    %7 = vector.load %arg11[%c64_7, %c0_8] : memref<128x128xf32, #tpu.memory_space<vmem>>, vector<32x128xf32>
    tpu.vector_store %arg11[%c64_7, %c0_8], %6 {strides = array<i32>} : memref<128x128xf32, #tpu.memory_space<vmem>>, vector<32x128xf32>,
    %c0_9 = arith.constant 0 : index
    %c0_10 = arith.constant 0 : index
    %8 = tpu.strided_load %arg1[%c0_9, %c0_10] {strides = array<i32: 2, 1>} : memref<512x128xf32, #tpu.memory_space<vmem>>, vector<4x128xf32>
    %9 = arith.truncf %8 : vector<4x128xf32> to vector<4x128xbf16>
    %c0_11 = arith.constant 0 : index
    %c0_12 = arith.constant 0 : index
    %10 = vector.load %arg12[%c0_11, %c0_12] : memref<32x2048xbf16, #tpu.memory_space<vmem>>, vector<4x128xbf16>
    tpu.vector_store %arg12[%c0_11, %c0_12], %9 {strides = array<i32>} : memref<32x2048xbf16, #tpu.memory_space<vmem>>, vector<4x128xbf16>,
    %c1 = arith.constant 1 : index
    %c0_13 = arith.constant 0 : index
    %11 = tpu.strided_load %arg1[%c1, %c0_13] {strides = array<i32: 2, 1>} : memref<512x128xf32, #tpu.memory_space<vmem>>, vector<4x128xf32>
    %12 = arith.truncf %11 : vector<4x128xf32> to vector<4x128xbf16>
    %c0_14 = arith.constant 0 : index
    %c128 = arith.constant 128 : index
    %13 = vector.load %arg12[%c0_14, %c128] : memref<32x2048xbf16, #tpu.memory_space<vmem>>, vector<4x128xbf16>
    tpu.vector_store %arg12[%c0_14, %c128], %12 {strides = array<i32>} : memref<32x2048xbf16, #tpu.memory_space<vmem>>, vector<4x128xbf16>,
    %c2 = arith.constant 2 : index
    %c0_15 = arith.constant 0 : index
    %14 = tpu.strided_load %arg1[%c2, %c0_15] {strides = array<i32: 2, 1>} : memref<512x128xf32, #tpu.memory_space<vmem>>, vector<4x128xf32>
    %15 = arith.truncf %14 : vector<4x128xf32> to vector<4x128xbf16>
    %c0_16 = arith.constant 0 : index
    %c256 = arith.constant 256 : index
    %16 = vector.load %arg12[%c0_16, %c256] : memref<32x2048xbf16, #tpu.memory_space<vmem>>, vector<4x128xbf16>
    tpu.vector_store %arg12[%c0_16, %c256], %15 {strides = array<i32>} : memref<32x2048xbf16, #tpu.memory_space<vmem>>, vector<4x128xbf16>,
    %c3 = arith.constant 3 : index
    %c0_17 = arith.constant 0 : index
    %17 = tpu.strided_load %arg1[%c3, %c0_17] {strides = array<i32: 2, 1>} : memref<512x128xf32, #tpu.memory_space<vmem>>, vector<4x128xf32>
    %18 = arith.truncf %17 : vector<4x128xf32> to vector<4x128xbf16>
    %c0_18 = arith.constant 0 : index
    %c384 = arith.constant 384 : index
    %19 = vector.load %arg12[%c0_18, %c384] : memref<32x2048xbf16, #tpu.memory_space<vmem>>, vector<4x128xbf16>
    tpu.vector_store %arg12[%c0_18, %c384], %18 {strides = array<i32>} : memref<32x2048xbf16, #tpu.memory_space<vmem>>, vector<4x128xbf16>,
    %c16 = arith.constant 16 : index
    %c0_19 = arith.constant 0 : index
    %20 = tpu.strided_load %arg1[%c16, %c0_19] {strides = array<i32: 2, 1>} : memref<512x128xf32, #tpu.memory_space<vmem>>, vector<4x128xf32>
    %21 = arith.truncf %20 : vector<4x128xf32> to vector<4x128xbf16>
    %c0_20 = arith.constant 0 : index
    %c512 = arith.constant 512 : index
    %22 = vector.load %arg12[%c0_20, %c512] : memref<32x2048xbf16, #tpu.memory_space<vmem>>, vector<4x128xbf16>
    tpu.vector_store %arg12[%c0_20, %c512], %21 {strides = array<i32>} : memref<32x2048xbf16, #tpu.memory_space<vmem>>, vector<4x128xbf16>,
    %c17 = arith.constant 17 : index
    %c0_21 = arith.constant 0 : index
    %23 = tpu.strided_load %arg1[%c17, %c0_21] {strides = array<i32: 2, 1>} : memref<512x128xf32, #tpu.memory_space<vmem>>, vector<4x128xf32>
    %24 = arith.truncf %23 : vector<4x128xf32> to vector<4x128xbf16>
    %c0_22 = arith.constant 0 : index
    %c640 = arith.constant 640 : index
    %25 = vector.load %arg12[%c0_22, %c640] : memref<32x2048xbf16, #tpu.memory_space<vmem>>, vector<4x128xbf16>
    tpu.vector_store %arg12[%c0_22, %c640], %24 {strides = array<i32>} : memref<32x2048xbf16, #tpu.memory_space<vmem>>, vector<4x128xbf16>,
    %c18 = arith.constant 18 : index
    %c0_23 = arith.constant 0 : index
    %26 = tpu.strided_load %arg1[%c18, %c0_23] {strides = array<i32: 2, 1>} : memref<512x128xf32, #tpu.memory_space<vmem>>, vector<4x128xf32>
    %27 = arith.truncf %26 : vector<4x128xf32> to vector<4x128xbf16>
    %c0_24 = arith.constant 0 : index
    %c768 = arith.constant 768 : index
    %28 = vector.load %arg12[%c0_24, %c768] : memref<32x2048xbf16, #tpu.memory_space<vmem>>, vector<4x128xbf16>
    tpu.vector_store %arg12[%c0_24, %c768], %27 {strides = array<i32>} : memref<32x2048xbf16, #tpu.memory_space<vmem>>, vector<4x128xbf16>,
    %c19 = arith.constant 19 : index
    %c0_25 = arith.constant 0 : index
    %29 = tpu.strided_load %arg1[%c19, %c0_25] {strides = array<i32: 2, 1>} : memref<512x128xf32, #tpu.memory_space<vmem>>, vector<4x128xf32>
    %30 = arith.truncf %29 : vector<4x128xf32> to vector<4x128xbf16>
    %c0_26 = arith.constant 0 : index
    %c896 = arith.constant 896 : index
    %31 = vector.load %arg12[%c0_26, %c896] : memref<32x2048xbf16, #tpu.memory_space<vmem>>, vector<4x128xbf16>
    tpu.vector_store %arg12[%c0_26, %c896], %30 {strides = array<i32>} : memref<32x2048xbf16, #tpu.memory_space<vmem>>, vector<4x128xbf16>,
    %c32 = arith.constant 32 : index
    %c0_27 = arith.constant 0 : index
    %32 = tpu.strided_load %arg1[%c32, %c0_27] {strides = array<i32: 2, 1>} : memref<512x128xf32, #tpu.memory_space<vmem>>, vector<4x128xf32>
    %33 = arith.truncf %32 : vector<4x128xf32> to vector<4x128xbf16>
    %c0_28 = arith.constant 0 : index
    %c1024 = arith.constant 1024 : index
    %34 = vector.load %arg12[%c0_28, %c1024] : memref<32x2048xbf16, #tpu.memory_space<vmem>>, vector<4x128xbf16>
    tpu.vector_store %arg12[%c0_28, %c1024], %33 {strides = array<i32>} : memref<32x2048xbf16, #tpu.memory_space<vmem>>, vector<4x128xbf16>,
    %c33 = arith.constant 33 : index
    %c0_29 = arith.constant 0 : index
    %35 = tpu.strided_load %arg1[%c33, %c0_29] {strides = array<i32: 2, 1>} : memref<512x128xf32, #tpu.memory_space<vmem>>, vector<4x128xf32>
    %36 = arith.truncf %35 : vector<4x128xf32> to vector<4x128xbf16>
    %c0_30 = arith.constant 0 : index
    %c1152 = arith.constant 1152 : index
    %37 = vector.load %arg12[%c0_30, %c1152] : memref<32x2048xbf16, #tpu.memory_space<vmem>>, vector<4x128xbf16>
    tpu.vector_store %arg12[%c0_30, %c1152], %36 {strides = array<i32>} : memref<32x2048xbf16, #tpu.memory_space<vmem>>, vector<4x128xbf16>,
    %c34 = arith.constant 34 : index
    %c0_31 = arith.constant 0 : index
    %38 = tpu.strided_load %arg1[%c34, %c0_31] {strides = array<i32: 2, 1>} : memref<512x128xf32, #tpu.memory_space<vmem>>, vector<4x128xf32>
    %39 = arith.truncf %38 : vector<4x128xf32> to vector<4x128xbf16>
    %c0_32 = arith.constant 0 : index
    %c1280 = arith.constant 1280 : index
    %40 = vector.load %arg12[%c0_32, %c1280] : memref<32x2048xbf16, #tpu.memory_space<vmem>>, vector<4x128xbf16>
    tpu.vector_store %arg12[%c0_32, %c1280], %39 {strides = array<i32>} : memref<32x2048xbf16, #tpu.memory_space<vmem>>, vector<4x128xbf16>,
    %c35 = arith.constant 35 : index
    %c0_33 = arith.constant 0 : index
    %41 = tpu.strided_load %arg1[%c35, %c0_33] {strides = array<i32: 2, 1>} : memref<512x128xf32, #tpu.memory_space<vmem>>, vector<4x128xf32>
    %42 = arith.truncf %41 : vector<4x128xf32> to vector<4x128xbf16>
    %c0_34 = arith.constant 0 : index
    %c1408 = arith.constant 1408 : index
    %43 = vector.load %arg12[%c0_34, %c1408] : memref<32x2048xbf16, #tpu.memory_space<vmem>>, vector<4x128xbf16>
    tpu.vector_store %arg12[%c0_34, %c1408], %42 {strides = array<i32>} : memref<32x2048xbf16, #tpu.memory_space<vmem>>, vector<4x128xbf16>,
    %c48 = arith.constant 48 : index
    %c0_35 = arith.constant 0 : index
    %44 = tpu.strided_load %arg1[%c48, %c0_35] {strides = array<i32: 2, 1>} : memref<512x128xf32, #tpu.memory_space<vmem>>, vector<4x128xf32>
    %45 = arith.truncf %44 : vector<4x128xf32> to vector<4x128xbf16>
    %c0_36 = arith.constant 0 : index
    %c1536 = arith.constant 1536 : index
    %46 = vector.load %arg12[%c0_36, %c1536] : memref<32x2048xbf16, #tpu.memory_space<vmem>>, vector<4x128xbf16>
    tpu.vector_store %arg12[%c0_36, %c1536], %45 {strides = array<i32>} : memref<32x2048xbf16, #tpu.memory_space<vmem>>, vector<4x128xbf16>,
    %c49 = arith.constant 49 : index
    %c0_37 = arith.constant 0 : index
    %47 = tpu.strided_load %arg1[%c49, %c0_37] {strides = array<i32: 2, 1>} : memref<512x128xf32, #tpu.memory_space<vmem>>, vector<4x128xf32>
    %48 = arith.truncf %47 : vector<4x128xf32> to vector<4x128xbf16>
    %c0_38 = arith.constant 0 : index
    %c1664 = arith.constant 1664 : index
    %49 = vector.load %arg12[%c0_38, %c1664] : memref<32x2048xbf16, #tpu.memory_space<vmem>>, vector<4x128xbf16>
    tpu.vector_store %arg12[%c0_38, %c1664], %48 {strides = array<i32>} : memref<32x2048xbf16, #tpu.memory_space<vmem>>, vector<4x128xbf16>,
    %c50 = arith.constant 50 : index
    %c0_39 = arith.constant 0 : index
    %50 = tpu.strided_load %arg1[%c50, %c0_39] {strides = array<i32: 2, 1>} : memref<512x128xf32, #tpu.memory_space<vmem>>, vector<4x128xf32>
    %51 = arith.truncf %50 : vector<4x128xf32> to vector<4x128xbf16>
    %c0_40 = arith.constant 0 : index
    %c1792 = arith.constant 1792 : index
    %52 = vector.load %arg12[%c0_40, %c1792] : memref<32x2048xbf16, #tpu.memory_space<vmem>>, vector<4x128xbf16>
    tpu.vector_store %arg12[%c0_40, %c1792], %51 {strides = array<i32>} : memref<32x2048xbf16, #tpu.memory_space<vmem>>, vector<4x128xbf16>,
    %c51 = arith.constant 51 : index
    %c0_41 = arith.constant 0 : index
    %53 = tpu.strided_load %arg1[%c51, %c0_41] {strides = array<i32: 2, 1>} : memref<512x128xf32, #tpu.memory_space<vmem>>, vector<4x128xf32>
    %54 = arith.truncf %53 : vector<4x128xf32> to vector<4x128xbf16>
    %c0_42 = arith.constant 0 : index
    %c1920 = arith.constant 1920 : index
    %55 = vector.load %arg12[%c0_42, %c1920] : memref<32x2048xbf16, #tpu.memory_space<vmem>>, vector<4x128xbf16>
    tpu.vector_store %arg12[%c0_42, %c1920], %54 {strides = array<i32>} : memref<32x2048xbf16, #tpu.memory_space<vmem>>, vector<4x128xbf16>,
    %c32_43 = arith.constant 32 : index
    %c0_44 = arith.constant 0 : index
    %56 = tpu.strided_load %arg1[%c32_43, %c0_44] {strides = array<i32: 2, 1>} : memref<512x128xf32, #tpu.memory_space<vmem>>, vector<4x128xf32>
    %57 = arith.truncf %56 : vector<4x128xf32> to vector<4x128xbf16>
    %c4 = arith.constant 4 : index
    %c0_45 = arith.constant 0 : index
    %58 = vector.load %arg12[%c4, %c0_45] : memref<32x2048xbf16, #tpu.memory_space<vmem>>, vector<4x128xbf16>
    tpu.vector_store %arg12[%c4, %c0_45], %57 {strides = array<i32>} : memref<32x2048xbf16, #tpu.memory_space<vmem>>, vector<4x128xbf16>,
    %c33_46 = arith.constant 33 : index
    %c0_47 = arith.constant 0 : index
    %59 = tpu.strided_load %arg1[%c33_46, %c0_47] {strides = array<i32: 2, 1>} : memref<512x128xf32, #tpu.memory_space<vmem>>, vector<4x128xf32>
    %60 = arith.truncf %59 : vector<4x128xf32> to vector<4x128xbf16>
    %c4_48 = arith.constant 4 : index
    %c128_49 = arith.constant 128 : index
    %61 = vector.load %arg12[%c4_48, %c128_49] : memref<32x2048xbf16, #tpu.memory_space<vmem>>, vector<4x128xbf16>
    tpu.vector_store %arg12[%c4_48, %c128_49], %60 {strides = array<i32>} : memref<32x2048xbf16, #tpu.memory_space<vmem>>, vector<4x128xbf16>,
    %c34_50 = arith.constant 34 : index
    %c0_51 = arith.constant 0 : index
    %62 = tpu.strided_load %arg1[%c34_50, %c0_51] {strides = array<i32: 2, 1>} : memref<512x128xf32, #tpu.memory_space<vmem>>, vector<4x128xf32>
    %63 = arith.truncf %62 : vector<4x128xf32> to vector<4x128xbf16>
    %c4_52 = arith.constant 4 : index
    %c256_53 = arith.constant 256 : index
    %64 = vector.load %arg12[%c4_52, %c256_53] : memref<32x2048xbf16, #tpu.memory_space<vmem>>, vector<4x128xbf16>
    tpu.vector_store %arg12[%c4_52, %c256_53], %63 {strides = array<i32>} : memref<32x2048xbf16, #tpu.memory_space<vmem>>, vector<4x128xbf16>,
    %c35_54 = arith.constant 35 : index
    %c0_55 = arith.constant 0 : index
    %65 = tpu.strided_load %arg1[%c35_54, %c0_55] {strides = array<i32: 2, 1>} : memref<512x128xf32, #tpu.memory_space<vmem>>, vector<4x128xf32>
    %66 = arith.truncf %65 : vector<4x128xf32> to vector<4x128xbf16>
    %c4_56 = arith.constant 4 : index
    %c384_57 = arith.constant 384 : index
    %67 = vector.load %arg12[%c4_56, %c384_57] : memref<32x2048xbf16, #tpu.memory_space<vmem>>, vector<4x128xbf16>
    tpu.vector_store %arg12[%c4_56, %c384_57], %66 {strides = array<i32>} : memref<32x2048xbf16, #tpu.memory_space<vmem>>, vector<4x128xbf16>,
    %c48_58 = arith.constant 48 : index
    %c0_59 = arith.constant 0 : index
    %68 = tpu.strided_load %arg1[%c48_58, %c0_59] {strides = array<i32: 2, 1>} : memref<512x128xf32, #tpu.memory_space<vmem>>, vector<4x128xf32>
    %69 = arith.truncf %68 : vector<4x128xf32> to vector<4x128xbf16>
    %c4_60 = arith.constant 4 : index
    %c512_61 = arith.constant 512 : index
    %70 = vector.load %arg12[%c4_60, %c512_61] : memref<32x2048xbf16, #tpu.memory_space<vmem>>, vector<4x128xbf16>
    tpu.vector_store %arg12[%c4_60, %c512_61], %69 {strides = array<i32>} : memref<32x2048xbf16, #tpu.memory_space<vmem>>, vector<4x128xbf16>,
    %c49_62 = arith.constant 49 : index
    %c0_63 = arith.constant 0 : index
    %71 = tpu.strided_load %arg1[%c49_62, %c0_63] {strides = array<i32: 2, 1>} : memref<512x128xf32, #tpu.memory_space<vmem>>, vector<4x128xf32>
    %72 = arith.truncf %71 : vector<4x128xf32> to vector<4x128xbf16>
    %c4_64 = arith.constant 4 : index
    %c640_65 = arith.constant 640 : index
    %73 = vector.load %arg12[%c4_64, %c640_65] : memref<32x2048xbf16, #tpu.memory_space<vmem>>, vector<4x128xbf16>
    tpu.vector_store %arg12[%c4_64, %c640_65], %72 {strides = array<i32>} : memref<32x2048xbf16, #tpu.memory_space<vmem>>, vector<4x128xbf16>,
    %c50_66 = arith.constant 50 : index
    %c0_67 = arith.constant 0 : index
    %74 = tpu.strided_load %arg1[%c50_66, %c0_67] {strides = array<i32: 2, 1>} : memref<512x128xf32, #tpu.memory_space<vmem>>, vector<4x128xf32>
    %75 = arith.truncf %74 : vector<4x128xf32> to vector<4x128xbf16>
    %c4_68 = arith.constant 4 : index
    %c768_69 = arith.constant 768 : index
    %76 = vector.load %arg12[%c4_68, %c768_69] : memref<32x2048xbf16, #tpu.memory_space<vmem>>, vector<4x128xbf16>
    tpu.vector_store %arg12[%c4_68, %c768_69], %75 {strides = array<i32>} : memref<32x2048xbf16, #tpu.memory_space<vmem>>, vector<4x128xbf16>,
    %c51_70 = arith.constant 51 : index
    %c0_71 = arith.constant 0 : index
    %77 = tpu.strided_load %arg1[%c51_70, %c0_71] {strides = array<i32: 2, 1>} : memref<512x128xf32, #tpu.memory_space<vmem>>, vector<4x128xf32>
    %78 = arith.truncf %77 : vector<4x128xf32> to vector<4x128xbf16>
    %c4_72 = arith.constant 4 : index
    %c896_73 = arith.constant 896 : index
    %79 = vector.load %arg12[%c4_72, %c896_73] : memref<32x2048xbf16, #tpu.memory_space<vmem>>, vector<4x128xbf16>
    tpu.vector_store %arg12[%c4_72, %c896_73], %78 {strides = array<i32>} : memref<32x2048xbf16, #tpu.memory_space<vmem>>, vector<4x128xbf16>,
    %c64_74 = arith.constant 64 : index
    %c0_75 = arith.constant 0 : index
    %80 = tpu.strided_load %arg1[%c64_74, %c0_75] {strides = array<i32: 2, 1>} : memref<512x128xf32, #tpu.memory_space<vmem>>, vector<4x128xf32>
    %81 = arith.truncf %80 : vector<4x128xf32> to vector<4x128xbf16>
    %c4_76 = arith.constant 4 : index
    %c1024_77 = arith.constant 1024 : index
    %82 = vector.load %arg12[%c4_76, %c1024_77] : memref<32x2048xbf16, #tpu.memory_space<vmem>>, vector<4x128xbf16>
    tpu.vector_store %arg12[%c4_76, %c1024_77], %81 {strides = array<i32>} : memref<32x2048xbf16, #tpu.memory_space<vmem>>, vector<4x128xbf16>,
    %c65 = arith.constant 65 : index
    %c0_78 = arith.constant 0 : index
    %83 = tpu.strided_load %arg1[%c65, %c0_78] {strides = array<i32: 2, 1>} : memref<512x128xf32, #tpu.memory_space<vmem>>, vector<4x128xf32>
    %84 = arith.truncf %83 : vector<4x128xf32> to vector<4x128xbf16>
    %c4_79 = arith.constant 4 : index
    %c1152_80 = arith.constant 1152 : index
    %85 = vector.load %arg12[%c4_79, %c1152_80] : memref<32x2048xbf16, #tpu.memory_space<vmem>>, vector<4x128xbf16>
    tpu.vector_store %arg12[%c4_79, %c1152_80], %84 {strides = array<i32>} : memref<32x2048xbf16, #tpu.memory_space<vmem>>, vector<4x128xbf16>,
    %c66 = arith.constant 66 : index
    %c0_81 = arith.constant 0 : index
    %86 = tpu.strided_load %arg1[%c66, %c0_81] {strides = array<i32: 2, 1>} : memref<512x128xf32, #tpu.memory_space<vmem>>, vector<4x128xf32>
    %87 = arith.truncf %86 : vector<4x128xf32> to vector<4x128xbf16>
    %c4_82 = arith.constant 4 : index
    %c1280_83 = arith.constant 1280 : index
    %88 = vector.load %arg12[%c4_82, %c1280_83] : memref<32x2048xbf16, #tpu.memory_space<vmem>>, vector<4x128xbf16>
    tpu.vector_store %arg12[%c4_82, %c1280_83], %87 {strides = array<i32>} : memref<32x2048xbf16, #tpu.memory_space<vmem>>, vector<4x128xbf16>,
    %c67 = arith.constant 67 : index
    %c0_84 = arith.constant 0 : index
    %89 = tpu.strided_load %arg1[%c67, %c0_84] {strides = array<i32: 2, 1>} : memref<512x128xf32, #tpu.memory_space<vmem>>, vector<4x128xf32>
    %90 = arith.truncf %89 : vector<4x128xf32> to vector<4x128xbf16>
    %c4_85 = arith.constant 4 : index
    %c1408_86 = arith.constant 1408 : index
    %91 = vector.load %arg12[%c4_85, %c1408_86] : memref<32x2048xbf16, #tpu.memory_space<vmem>>, vector<4x128xbf16>
    tpu.vector_store %arg12[%c4_85, %c1408_86], %90 {strides = array<i32>} : memref<32x2048xbf16, #tpu.memory_space<vmem>>, vector<4x128xbf16>,
    %c80 = arith.constant 80 : index
    %c0_87 = arith.constant 0 : index
    %92 = tpu.strided_load %arg1[%c80, %c0_87] {strides = array<i32: 2, 1>} : memref<512x128xf32, #tpu.memory_space<vmem>>, vector<4x128xf32>
    %93 = arith.truncf %92 : vector<4x128xf32> to vector<4x128xbf16>
    %c4_88 = arith.constant 4 : index
    %c1536_89 = arith.constant 1536 : index
    %94 = vector.load %arg12[%c4_88, %c1536_89] : memref<32x2048xbf16, #tpu.memory_space<vmem>>, vector<4x128xbf16>
    tpu.vector_store %arg12[%c4_88, %c1536_89], %93 {strides = array<i32>} : memref<32x2048xbf16, #tpu.memory_space<vmem>>, vector<4x128xbf16>,
    %c81 = arith.constant 81 : index
    %c0_90 = arith.constant 0 : index
    %95 = tpu.strided_load %arg1[%c81, %c0_90] {strides = array<i32: 2, 1>} : memref<512x128xf32, #tpu.memory_space<vmem>>, vector<4x128xf32>
    %96 = arith.truncf %95 : vector<4x128xf32> to vector<4x128xbf16>
    %c4_91 = arith.constant 4 : index
    %c1664_92 = arith.constant 1664 : index
    %97 = vector.load %arg12[%c4_91, %c1664_92] : memref<32x2048xbf16, #tpu.memory_space<vmem>>, vector<4x128xbf16>
    tpu.vector_store %arg12[%c4_91, %c1664_92], %96 {strides = array<i32>} : memref<32x2048xbf16, #tpu.memory_space<vmem>>, vector<4x128xbf16>,
    %c82 = arith.constant 82 : index
    %c0_93 = arith.constant 0 : index
    %98 = tpu.strided_load %arg1[%c82, %c0_93] {strides = array<i32: 2, 1>} : memref<512x128xf32, #tpu.memory_space<vmem>>, vector<4x128xf32>
    %99 = arith.truncf %98 : vector<4x128xf32> to vector<4x128xbf16>
    %c4_94 = arith.constant 4 : index
    %c1792_95 = arith.constant 1792 : index
    %100 = vector.load %arg12[%c4_94, %c1792_95] : memref<32x2048xbf16, #tpu.memory_space<vmem>>, vector<4x128xbf16>
    tpu.vector_store %arg12[%c4_94, %c1792_95], %99 {strides = array<i32>} : memref<32x2048xbf16, #tpu.memory_space<vmem>>, vector<4x128xbf16>,
    %c83 = arith.constant 83 : index
    %c0_96 = arith.constant 0 : index
    %101 = tpu.strided_load %arg1[%c83, %c0_96] {strides = array<i32: 2, 1>} : memref<512x128xf32, #tpu.memory_space<vmem>>, vector<4x128xf32>
    %102 = arith.truncf %101 : vector<4x128xf32> to vector<4x128xbf16>
    %c4_97 = arith.constant 4 : index
    %c1920_98 = arith.constant 1920 : index
    %103 = vector.load %arg12[%c4_97, %c1920_98] : memref<32x2048xbf16, #tpu.memory_space<vmem>>, vector<4x128xbf16>
    tpu.vector_store %arg12[%c4_97, %c1920_98], %102 {strides = array<i32>} : memref<32x2048xbf16, #tpu.memory_space<vmem>>, vector<4x128xbf16>,
    %c64_99 = arith.constant 64 : index
    %c0_100 = arith.constant 0 : index
    %104 = tpu.strided_load %arg1[%c64_99, %c0_100] {strides = array<i32: 2, 1>} : memref<512x128xf32, #tpu.memory_space<vmem>>, vector<4x128xf32>
    %105 = arith.truncf %104 : vector<4x128xf32> to vector<4x128xbf16>
    %c8 = arith.constant 8 : index
    %c0_101 = arith.constant 0 : index
    %106 = vector.load %arg12[%c8, %c0_101] : memref<32x2048xbf16, #tpu.memory_space<vmem>>, vector<4x128xbf16>
    tpu.vector_store %arg12[%c8, %c0_101], %105 {strides = array<i32>} : memref<32x2048xbf16, #tpu.memory_space<vmem>>, vector<4x128xbf16>,
    %c65_102 = arith.constant 65 : index
    %c0_103 = arith.constant 0 : index
    %107 = tpu.strided_load %arg1[%c65_102, %c0_103] {strides = array<i32: 2, 1>} : memref<512x128xf32, #tpu.memory_space<vmem>>, vector<4x128xf32>
    %108 = arith.truncf %107 : vector<4x128xf32> to vector<4x128xbf16>
    %c8_104 = arith.constant 8 : index
    %c128_105 = arith.constant 128 : index
    %109 = vector.load %arg12[%c8_104, %c128_105] : memref<32x2048xbf16, #tpu.memory_space<vmem>>, vector<4x128xbf16>
    tpu.vector_store %arg12[%c8_104, %c128_105], %108 {strides = array<i32>} : memref<32x2048xbf16, #tpu.memory_space<vmem>>, vector<4x128xbf16>,
    %c66_106 = arith.constant 66 : index
    %c0_107 = arith.constant 0 : index
    %110 = tpu.strided_load %arg1[%c66_106, %c0_107] {strides = array<i32: 2, 1>} : memref<512x128xf32, #tpu.memory_space<vmem>>, vector<4x128xf32>
    %111 = arith.truncf %110 : vector<4x128xf32> to vector<4x128xbf16>
    %c8_108 = arith.constant 8 : index
    %c256_109 = arith.constant 256 : index
    %112 = vector.load %arg12[%c8_108, %c256_109] : memref<32x2048xbf16, #tpu.memory_space<vmem>>, vector<4x128xbf16>
    tpu.vector_store %arg12[%c8_108, %c256_109], %111 {strides = array<i32>} : memref<32x2048xbf16, #tpu.memory_space<vmem>>, vector<4x128xbf16>,
    %c67_110 = arith.constant 67 : index
    %c0_111 = arith.constant 0 : index
    %113 = tpu.strided_load %arg1[%c67_110, %c0_111] {strides = array<i32: 2, 1>} : memref<512x128xf32, #tpu.memory_space<vmem>>, vector<4x128xf32>
    %114 = arith.truncf %113 : vector<4x128xf32> to vector<4x128xbf16>
    %c8_112 = arith.constant 8 : index
    %c384_113 = arith.constant 384 : index
    %115 = vector.load %arg12[%c8_112, %c384_113] : memref<32x2048xbf16, #tpu.memory_space<vmem>>, vector<4x128xbf16>
    tpu.vector_store %arg12[%c8_112, %c384_113], %114 {strides = array<i32>} : memref<32x2048xbf16, #tpu.memory_space<vmem>>, vector<4x128xbf16>,
    %c80_114 = arith.constant 80 : index
    %c0_115 = arith.constant 0 : index
    %116 = tpu.strided_load %arg1[%c80_114, %c0_115] {strides = array<i32: 2, 1>} : memref<512x128xf32, #tpu.memory_space<vmem>>, vector<4x128xf32>
    %117 = arith.truncf %116 : vector<4x128xf32> to vector<4x128xbf16>
    %c8_116 = arith.constant 8 : index
    %c512_117 = arith.constant 512 : index
    %118 = vector.load %arg12[%c8_116, %c512_117] : memref<32x2048xbf16, #tpu.memory_space<vmem>>, vector<4x128xbf16>
    tpu.vector_store %arg12[%c8_116, %c512_117], %117 {strides = array<i32>} : memref<32x2048xbf16, #tpu.memory_space<vmem>>, vector<4x128xbf16>,
    %c81_118 = arith.constant 81 : index
    %c0_119 = arith.constant 0 : index
    %119 = tpu.strided_load %arg1[%c81_118, %c0_119] {strides = array<i32: 2, 1>} : memref<512x128xf32, #tpu.memory_space<vmem>>, vector<4x128xf32>
    %120 = arith.truncf %119 : vector<4x128xf32> to vector<4x128xbf16>
    %c8_120 = arith.constant 8 : index
    %c640_121 = arith.constant 640 : index
    %121 = vector.load %arg12[%c8_120, %c640_121] : memref<32x2048xbf16, #tpu.memory_space<vmem>>, vector<4x128xbf16>
    tpu.vector_store %arg12[%c8_120, %c640_121], %120 {strides = array<i32>} : memref<32x2048xbf16, #tpu.memory_space<vmem>>, vector<4x128xbf16>,
    %c82_122 = arith.constant 82 : index
    %c0_123 = arith.constant 0 : index
    %122 = tpu.strided_load %arg1[%c82_122, %c0_123] {strides = array<i32: 2, 1>} : memref<512x128xf32, #tpu.memory_space<vmem>>, vector<4x128xf32>
    %123 = arith.truncf %122 : vector<4x128xf32> to vector<4x128xbf16>
    %c8_124 = arith.constant 8 : index
    %c768_125 = arith.constant 768 : index
    %124 = vector.load %arg12[%c8_124, %c768_125] : memref<32x2048xbf16, #tpu.memory_space<vmem>>, vector<4x128xbf16>
    tpu.vector_store %arg12[%c8_124, %c768_125], %123 {strides = array<i32>} : memref<32x2048xbf16, #tpu.memory_space<vmem>>, vector<4x128xbf16>,
    %c83_126 = arith.constant 83 : index
    %c0_127 = arith.constant 0 : index
    %125 = tpu.strided_load %arg1[%c83_126, %c0_127] {strides = array<i32: 2, 1>} : memref<512x128xf32, #tpu.memory_space<vmem>>, vector<4x128xf32>
    %126 = arith.truncf %125 : vector<4x128xf32> to vector<4x128xbf16>
    %c8_128 = arith.constant 8 : index
    %c896_129 = arith.constant 896 : index
    %127 = vector.load %arg12[%c8_128, %c896_129] : memref<32x2048xbf16, #tpu.memory_space<vmem>>, vector<4x128xbf16>
    tpu.vector_store %arg12[%c8_128, %c896_129], %126 {strides = array<i32>} : memref<32x2048xbf16, #tpu.memory_space<vmem>>, vector<4x128xbf16>,
    %c96 = arith.constant 96 : index
    %c0_130 = arith.constant 0 : index
    %128 = tpu.strided_load %arg1[%c96, %c0_130] {strides = array<i32: 2, 1>} : memref<512x128xf32, #tpu.memory_space<vmem>>, vector<4x128xf32>
    %129 = arith.truncf %128 : vector<4x128xf32> to vector<4x128xbf16>
    %c8_131 = arith.constant 8 : index
    %c1024_132 = arith.constant 1024 : index
    %130 = vector.load %arg12[%c8_131, %c1024_132] : memref<32x2048xbf16, #tpu.memory_space<vmem>>, vector<4x128xbf16>
    tpu.vector_store %arg12[%c8_131, %c1024_132], %129 {strides = array<i32>} : memref<32x2048xbf16, #tpu.memory_space<vmem>>, vector<4x128xbf16>,
    %c97 = arith.constant 97 : index
    %c0_133 = arith.constant 0 : index
    %131 = tpu.strided_load %arg1[%c97, %c0_133] {strides = array<i32: 2, 1>} : memref<512x128xf32, #tpu.memory_space<vmem>>, vector<4x128xf32>
    %132 = arith.truncf %131 : vector<4x128xf32> to vector<4x128xbf16>
    %c8_134 = arith.constant 8 : index
    %c1152_135 = arith.constant 1152 : index
    %133 = vector.load %arg12[%c8_134, %c1152_135] : memref<32x2048xbf16, #tpu.memory_space<vmem>>, vector<4x128xbf16>
    tpu.vector_store %arg12[%c8_134, %c1152_135], %132 {strides = array<i32>} : memref<32x2048xbf16, #tpu.memory_space<vmem>>, vector<4x128xbf16>,
    %c98 = arith.constant 98 : index
    %c0_136 = arith.constant 0 : index
    %134 = tpu.strided_load %arg1[%c98, %c0_136] {strides = array<i32: 2, 1>} : memref<512x128xf32, #tpu.memory_space<vmem>>, vector<4x128xf32>
    %135 = arith.truncf %134 : vector<4x128xf32> to vector<4x128xbf16>
    %c8_137 = arith.constant 8 : index
    %c1280_138 = arith.constant 1280 : index
    %136 = vector.load %arg12[%c8_137, %c1280_138] : memref<32x2048xbf16, #tpu.memory_space<vmem>>, vector<4x128xbf16>
    tpu.vector_store %arg12[%c8_137, %c1280_138], %135 {strides = array<i32>} : memref<32x2048xbf16, #tpu.memory_space<vmem>>, vector<4x128xbf16>,
    %c99 = arith.constant 99 : index
    %c0_139 = arith.constant 0 : index
    %137 = tpu.strided_load %arg1[%c99, %c0_139] {strides = array<i32: 2, 1>} : memref<512x128xf32, #tpu.memory_space<vmem>>, vector<4x128xf32>
    %138 = arith.truncf %137 : vector<4x128xf32> to vector<4x128xbf16>
    %c8_140 = arith.constant 8 : index
    %c1408_141 = arith.constant 1408 : index
    %139 = vector.load %arg12[%c8_140, %c1408_141] : memref<32x2048xbf16, #tpu.memory_space<vmem>>, vector<4x128xbf16>
    tpu.vector_store %arg12[%c8_140, %c1408_141], %138 {strides = array<i32>} : memref<32x2048xbf16, #tpu.memory_space<vmem>>, vector<4x128xbf16>,
    %c112 = arith.constant 112 : index
    %c0_142 = arith.constant 0 : index
    %140 = tpu.strided_load %arg1[%c112, %c0_142] {strides = array<i32: 2, 1>} : memref<512x128xf32, #tpu.memory_space<vmem>>, vector<4x128xf32>
    %141 = arith.truncf %140 : vector<4x128xf32> to vector<4x128xbf16>
    %c8_143 = arith.constant 8 : index
    %c1536_144 = arith.constant 1536 : index
    %142 = vector.load %arg12[%c8_143, %c1536_144] : memref<32x2048xbf16, #tpu.memory_space<vmem>>, vector<4x128xbf16>
    tpu.vector_store %arg12[%c8_143, %c1536_144], %141 {strides = array<i32>} : memref<32x2048xbf16, #tpu.memory_space<vmem>>, vector<4x128xbf16>,
    %c113 = arith.constant 113 : index
    %c0_145 = arith.constant 0 : index
    %143 = tpu.strided_load %arg1[%c113, %c0_145] {strides = array<i32: 2, 1>} : memref<512x128xf32, #tpu.memory_space<vmem>>, vector<4x128xf32>
    %144 = arith.truncf %143 : vector<4x128xf32> to vector<4x128xbf16>
    %c8_146 = arith.constant 8 : index
    %c1664_147 = arith.constant 1664 : index
    %145 = vector.load %arg12[%c8_146, %c1664_147] : memref<32x2048xbf16, #tpu.memory_space<vmem>>, vector<4x128xbf16>
    tpu.vector_store %arg12[%c8_146, %c1664_147], %144 {strides = array<i32>} : memref<32x2048xbf16, #tpu.memory_space<vmem>>, vector<4x128xbf16>,
    %c114 = arith.constant 114 : index
    %c0_148 = arith.constant 0 : index
    %146 = tpu.strided_load %arg1[%c114, %c0_148] {strides = array<i32: 2, 1>} : memref<512x128xf32, #tpu.memory_space<vmem>>, vector<4x128xf32>
    %147 = arith.truncf %146 : vector<4x128xf32> to vector<4x128xbf16>
    %c8_149 = arith.constant 8 : index
    %c1792_150 = arith.constant 1792 : index
    %148 = vector.load %arg12[%c8_149, %c1792_150] : memref<32x2048xbf16, #tpu.memory_space<vmem>>, vector<4x128xbf16>
    tpu.vector_store %arg12[%c8_149, %c1792_150], %147 {strides = array<i32>} : memref<32x2048xbf16, #tpu.memory_space<vmem>>, vector<4x128xbf16>,
    %c115 = arith.constant 115 : index
    %c0_151 = arith.constant 0 : index
    %149 = tpu.strided_load %arg1[%c115, %c0_151] {strides = array<i32: 2, 1>} : memref<512x128xf32, #tpu.memory_space<vmem>>, vector<4x128xf32>
    %150 = arith.truncf %149 : vector<4x128xf32> to vector<4x128xbf16>
    %c8_152 = arith.constant 8 : index
    %c1920_153 = arith.constant 1920 : index
    %151 = vector.load %arg12[%c8_152, %c1920_153] : memref<32x2048xbf16, #tpu.memory_space<vmem>>, vector<4x128xbf16>
    tpu.vector_store %arg12[%c8_152, %c1920_153], %150 {strides = array<i32>} : memref<32x2048xbf16, #tpu.memory_space<vmem>>, vector<4x128xbf16>,
    %c96_154 = arith.constant 96 : index
    %c0_155 = arith.constant 0 : index
    %152 = tpu.strided_load %arg1[%c96_154, %c0_155] {strides = array<i32: 2, 1>} : memref<512x128xf32, #tpu.memory_space<vmem>>, vector<4x128xf32>
    %153 = arith.truncf %152 : vector<4x128xf32> to vector<4x128xbf16>
    %c12 = arith.constant 12 : index
    %c0_156 = arith.constant 0 : index
    %154 = vector.load %arg12[%c12, %c0_156] : memref<32x2048xbf16, #tpu.memory_space<vmem>>, vector<4x128xbf16>
    tpu.vector_store %arg12[%c12, %c0_156], %153 {strides = array<i32>} : memref<32x2048xbf16, #tpu.memory_space<vmem>>, vector<4x128xbf16>,
    %c97_157 = arith.constant 97 : index
    %c0_158 = arith.constant 0 : index
    %155 = tpu.strided_load %arg1[%c97_157, %c0_158] {strides = array<i32: 2, 1>} : memref<512x128xf32, #tpu.memory_space<vmem>>, vector<4x128xf32>
    %156 = arith.truncf %155 : vector<4x128xf32> to vector<4x128xbf16>
    %c12_159 = arith.constant 12 : index
    %c128_160 = arith.constant 128 : index
    %157 = vector.load %arg12[%c12_159, %c128_160] : memref<32x2048xbf16, #tpu.memory_space<vmem>>, vector<4x128xbf16>
    tpu.vector_store %arg12[%c12_159, %c128_160], %156 {strides = array<i32>} : memref<32x2048xbf16, #tpu.memory_space<vmem>>, vector<4x128xbf16>,
    %c98_161 = arith.constant 98 : index
    %c0_162 = arith.constant 0 : index
    %158 = tpu.strided_load %arg1[%c98_161, %c0_162] {strides = array<i32: 2, 1>} : memref<512x128xf32, #tpu.memory_space<vmem>>, vector<4x128xf32>
    %159 = arith.truncf %158 : vector<4x128xf32> to vector<4x128xbf16>
    %c12_163 = arith.constant 12 : index
    %c256_164 = arith.constant 256 : index
    %160 = vector.load %arg12[%c12_163, %c256_164] : memref<32x2048xbf16, #tpu.memory_space<vmem>>, vector<4x128xbf16>
    tpu.vector_store %arg12[%c12_163, %c256_164], %159 {strides = array<i32>} : memref<32x2048xbf16, #tpu.memory_space<vmem>>, vector<4x128xbf16>,
    %c99_165 = arith.constant 99 : index
    %c0_166 = arith.constant 0 : index
    %161 = tpu.strided_load %arg1[%c99_165, %c0_166] {strides = array<i32: 2, 1>} : memref<512x128xf32, #tpu.memory_space<vmem>>, vector<4x128xf32>
    %162 = arith.truncf %161 : vector<4x128xf32> to vector<4x128xbf16>
    %c12_167 = arith.constant 12 : index
    %c384_168 = arith.constant 384 : index
    %163 = vector.load %arg12[%c12_167, %c384_168] : memref<32x2048xbf16, #tpu.memory_space<vmem>>, vector<4x128xbf16>
    tpu.vector_store %arg12[%c12_167, %c384_168], %162 {strides = array<i32>} : memref<32x2048xbf16, #tpu.memory_space<vmem>>, vector<4x128xbf16>,
    %c112_169 = arith.constant 112 : index
    %c0_170 = arith.constant 0 : index
    %164 = tpu.strided_load %arg1[%c112_169, %c0_170] {strides = array<i32: 2, 1>} : memref<512x128xf32, #tpu.memory_space<vmem>>, vector<4x128xf32>
    %165 = arith.truncf %164 : vector<4x128xf32> to vector<4x128xbf16>
    %c12_171 = arith.constant 12 : index
    %c512_172 = arith.constant 512 : index
    %166 = vector.load %arg12[%c12_171, %c512_172] : memref<32x2048xbf16, #tpu.memory_space<vmem>>, vector<4x128xbf16>
    tpu.vector_store %arg12[%c12_171, %c512_172], %165 {strides = array<i32>} : memref<32x2048xbf16, #tpu.memory_space<vmem>>, vector<4x128xbf16>,
    %c113_173 = arith.constant 113 : index
    %c0_174 = arith.constant 0 : index
    %167 = tpu.strided_load %arg1[%c113_173, %c0_174] {strides = array<i32: 2, 1>} : memref<512x128xf32, #tpu.memory_space<vmem>>, vector<4x128xf32>
    %168 = arith.truncf %167 : vector<4x128xf32> to vector<4x128xbf16>
    %c12_175 = arith.constant 12 : index
    %c640_176 = arith.constant 640 : index
    %169 = vector.load %arg12[%c12_175, %c640_176] : memref<32x2048xbf16, #tpu.memory_space<vmem>>, vector<4x128xbf16>
    tpu.vector_store %arg12[%c12_175, %c640_176], %168 {strides = array<i32>} : memref<32x2048xbf16, #tpu.memory_space<vmem>>, vector<4x128xbf16>,
    %c114_177 = arith.constant 114 : index
    %c0_178 = arith.constant 0 : index
    %170 = tpu.strided_load %arg1[%c114_177, %c0_178] {strides = array<i32: 2, 1>} : memref<512x128xf32, #tpu.memory_space<vmem>>, vector<4x128xf32>
    %171 = arith.truncf %170 : vector<4x128xf32> to vector<4x128xbf16>
    %c12_179 = arith.constant 12 : index
    %c768_180 = arith.constant 768 : index
    %172 = vector.load %arg12[%c12_179, %c768_180] : memref<32x2048xbf16, #tpu.memory_space<vmem>>, vector<4x128xbf16>
    tpu.vector_store %arg12[%c12_179, %c768_180], %171 {strides = array<i32>} : memref<32x2048xbf16, #tpu.memory_space<vmem>>, vector<4x128xbf16>,
    %c115_181 = arith.constant 115 : index
    %c0_182 = arith.constant 0 : index
    %173 = tpu.strided_load %arg1[%c115_181, %c0_182] {strides = array<i32: 2, 1>} : memref<512x128xf32, #tpu.memory_space<vmem>>, vector<4x128xf32>
    %174 = arith.truncf %173 : vector<4x128xf32> to vector<4x128xbf16>
    %c12_183 = arith.constant 12 : index
    %c896_184 = arith.constant 896 : index
    %175 = vector.load %arg12[%c12_183, %c896_184] : memref<32x2048xbf16, #tpu.memory_space<vmem>>, vector<4x128xbf16>
    tpu.vector_store %arg12[%c12_183, %c896_184], %174 {strides = array<i32>} : memref<32x2048xbf16, #tpu.memory_space<vmem>>, vector<4x128xbf16>,
    %c128_185 = arith.constant 128 : index
    %c0_186 = arith.constant 0 : index
    %176 = tpu.strided_load %arg1[%c128_185, %c0_186] {strides = array<i32: 2, 1>} : memref<512x128xf32, #tpu.memory_space<vmem>>, vector<4x128xf32>
    %177 = arith.truncf %176 : vector<4x128xf32> to vector<4x128xbf16>
    %c12_187 = arith.constant 12 : index
    %c1024_188 = arith.constant 1024 : index
    %178 = vector.load %arg12[%c12_187, %c1024_188] : memref<32x2048xbf16, #tpu.memory_space<vmem>>, vector<4x128xbf16>
    tpu.vector_store %arg12[%c12_187, %c1024_188], %177 {strides = array<i32>} : memref<32x2048xbf16, #tpu.memory_space<vmem>>, vector<4x128xbf16>,
    %c129 = arith.constant 129 : index
    %c0_189 = arith.constant 0 : index
    %179 = tpu.strided_load %arg1[%c129, %c0_189] {strides = array<i32: 2, 1>} : memref<512x128xf32, #tpu.memory_space<vmem>>, vector<4x128xf32>
    %180 = arith.truncf %179 : vector<4x128xf32> to vector<4x128xbf16>
    %c12_190 = arith.constant 12 : index
    %c1152_191 = arith.constant 1152 : index
    %181 = vector.load %arg12[%c12_190, %c1152_191] : memref<32x2048xbf16, #tpu.memory_space<vmem>>, vector<4x128xbf16>
    tpu.vector_store %arg12[%c12_190, %c1152_191], %180 {strides = array<i32>} : memref<32x2048xbf16, #tpu.memory_space<vmem>>, vector<4x128xbf16>,
    %c130 = arith.constant 130 : index
    %c0_192 = arith.constant 0 : index
    %182 = tpu.strided_load %arg1[%c130, %c0_192] {strides = array<i32: 2, 1>} : memref<512x128xf32, #tpu.memory_space<vmem>>, vector<4x128xf32>
    %183 = arith.truncf %182 : vector<4x128xf32> to vector<4x128xbf16>
    %c12_193 = arith.constant 12 : index
    %c1280_194 = arith.constant 1280 : index
    %184 = vector.load %arg12[%c12_193, %c1280_194] : memref<32x2048xbf16, #tpu.memory_space<vmem>>, vector<4x128xbf16>
    tpu.vector_store %arg12[%c12_193, %c1280_194], %183 {strides = array<i32>} : memref<32x2048xbf16, #tpu.memory_space<vmem>>, vector<4x128xbf16>,
    %c131 = arith.constant 131 : index
    %c0_195 = arith.constant 0 : index
    %185 = tpu.strided_load %arg1[%c131, %c0_195] {strides = array<i32: 2, 1>} : memref<512x128xf32, #tpu.memory_space<vmem>>, vector<4x128xf32>
    %186 = arith.truncf %185 : vector<4x128xf32> to vector<4x128xbf16>
    %c12_196 = arith.constant 12 : index
    %c1408_197 = arith.constant 1408 : index
    %187 = vector.load %arg12[%c12_196, %c1408_197] : memref<32x2048xbf16, #tpu.memory_space<vmem>>, vector<4x128xbf16>
    tpu.vector_store %arg12[%c12_196, %c1408_197], %186 {strides = array<i32>} : memref<32x2048xbf16, #tpu.memory_space<vmem>>, vector<4x128xbf16>,
    %c144 = arith.constant 144 : index
    %c0_198 = arith.constant 0 : index
    %188 = tpu.strided_load %arg1[%c144, %c0_198] {strides = array<i32: 2, 1>} : memref<512x128xf32, #tpu.memory_space<vmem>>, vector<4x128xf32>
    %189 = arith.truncf %188 : vector<4x128xf32> to vector<4x128xbf16>
    %c12_199 = arith.constant 12 : index
    %c1536_200 = arith.constant 1536 : index
    %190 = vector.load %arg12[%c12_199, %c1536_200] : memref<32x2048xbf16, #tpu.memory_space<vmem>>, vector<4x128xbf16>
    tpu.vector_store %arg12[%c12_199, %c1536_200], %189 {strides = array<i32>} : memref<32x2048xbf16, #tpu.memory_space<vmem>>, vector<4x128xbf16>,
    %c145 = arith.constant 145 : index
    %c0_201 = arith.constant 0 : index
    %191 = tpu.strided_load %arg1[%c145, %c0_201] {strides = array<i32: 2, 1>} : memref<512x128xf32, #tpu.memory_space<vmem>>, vector<4x128xf32>
    %192 = arith.truncf %191 : vector<4x128xf32> to vector<4x128xbf16>
    %c12_202 = arith.constant 12 : index
    %c1664_203 = arith.constant 1664 : index
    %193 = vector.load %arg12[%c12_202, %c1664_203] : memref<32x2048xbf16, #tpu.memory_space<vmem>>, vector<4x128xbf16>
    tpu.vector_store %arg12[%c12_202, %c1664_203], %192 {strides = array<i32>} : memref<32x2048xbf16, #tpu.memory_space<vmem>>, vector<4x128xbf16>,
    %c146 = arith.constant 146 : index
    %c0_204 = arith.constant 0 : index
    %194 = tpu.strided_load %arg1[%c146, %c0_204] {strides = array<i32: 2, 1>} : memref<512x128xf32, #tpu.memory_space<vmem>>, vector<4x128xf32>
    %195 = arith.truncf %194 : vector<4x128xf32> to vector<4x128xbf16>
    %c12_205 = arith.constant 12 : index
    %c1792_206 = arith.constant 1792 : index
    %196 = vector.load %arg12[%c12_205, %c1792_206] : memref<32x2048xbf16, #tpu.memory_space<vmem>>, vector<4x128xbf16>
    tpu.vector_store %arg12[%c12_205, %c1792_206], %195 {strides = array<i32>} : memref<32x2048xbf16, #tpu.memory_space<vmem>>, vector<4x128xbf16>,
    %c147 = arith.constant 147 : index
    %c0_207 = arith.constant 0 : index
    %197 = tpu.strided_load %arg1[%c147, %c0_207] {strides = array<i32: 2, 1>} : memref<512x128xf32, #tpu.memory_space<vmem>>, vector<4x128xf32>
    %198 = arith.truncf %197 : vector<4x128xf32> to vector<4x128xbf16>
    %c12_208 = arith.constant 12 : index
    %c1920_209 = arith.constant 1920 : index
    %199 = vector.load %arg12[%c12_208, %c1920_209] : memref<32x2048xbf16, #tpu.memory_space<vmem>>, vector<4x128xbf16>
    tpu.vector_store %arg12[%c12_208, %c1920_209], %198 {strides = array<i32>} : memref<32x2048xbf16, #tpu.memory_space<vmem>>, vector<4x128xbf16>,
    %c256_210 = arith.constant 256 : index
    %c0_211 = arith.constant 0 : index
    %200 = tpu.strided_load %arg1[%c256_210, %c0_211] {strides = array<i32: 2, 1>} : memref<512x128xf32, #tpu.memory_space<vmem>>, vector<4x128xf32>
    %201 = arith.truncf %200 : vector<4x128xf32> to vector<4x128xbf16>
    %c16_212 = arith.constant 16 : index
    %c0_213 = arith.constant 0 : index
    %202 = vector.load %arg12[%c16_212, %c0_213] : memref<32x2048xbf16, #tpu.memory_space<vmem>>, vector<4x128xbf16>
    tpu.vector_store %arg12[%c16_212, %c0_213], %201 {strides = array<i32>} : memref<32x2048xbf16, #tpu.memory_space<vmem>>, vector<4x128xbf16>,
    %c257 = arith.constant 257 : index
    %c0_214 = arith.constant 0 : index
    %203 = tpu.strided_load %arg1[%c257, %c0_214] {strides = array<i32: 2, 1>} : memref<512x128xf32, #tpu.memory_space<vmem>>, vector<4x128xf32>
    %204 = arith.truncf %203 : vector<4x128xf32> to vector<4x128xbf16>
    %c16_215 = arith.constant 16 : index
    %c128_216 = arith.constant 128 : index
    %205 = vector.load %arg12[%c16_215, %c128_216] : memref<32x2048xbf16, #tpu.memory_space<vmem>>, vector<4x128xbf16>
    tpu.vector_store %arg12[%c16_215, %c128_216], %204 {strides = array<i32>} : memref<32x2048xbf16, #tpu.memory_space<vmem>>, vector<4x128xbf16>,
    %c258 = arith.constant 258 : index
    %c0_217 = arith.constant 0 : index
    %206 = tpu.strided_load %arg1[%c258, %c0_217] {strides = array<i32: 2, 1>} : memref<512x128xf32, #tpu.memory_space<vmem>>, vector<4x128xf32>
    %207 = arith.truncf %206 : vector<4x128xf32> to vector<4x128xbf16>
    %c16_218 = arith.constant 16 : index
    %c256_219 = arith.constant 256 : index
    %208 = vector.load %arg12[%c16_218, %c256_219] : memref<32x2048xbf16, #tpu.memory_space<vmem>>, vector<4x128xbf16>
    tpu.vector_store %arg12[%c16_218, %c256_219], %207 {strides = array<i32>} : memref<32x2048xbf16, #tpu.memory_space<vmem>>, vector<4x128xbf16>,
    %c259 = arith.constant 259 : index
    %c0_220 = arith.constant 0 : index
    %209 = tpu.strided_load %arg1[%c259, %c0_220] {strides = array<i32: 2, 1>} : memref<512x128xf32, #tpu.memory_space<vmem>>, vector<4x128xf32>
    %210 = arith.truncf %209 : vector<4x128xf32> to vector<4x128xbf16>
    %c16_221 = arith.constant 16 : index
    %c384_222 = arith.constant 384 : index
    %211 = vector.load %arg12[%c16_221, %c384_222] : memref<32x2048xbf16, #tpu.memory_space<vmem>>, vector<4x128xbf16>
    tpu.vector_store %arg12[%c16_221, %c384_222], %210 {strides = array<i32>} : memref<32x2048xbf16, #tpu.memory_space<vmem>>, vector<4x128xbf16>,
    %c272 = arith.constant 272 : index
    %c0_223 = arith.constant 0 : index
    %212 = tpu.strided_load %arg1[%c272, %c0_223] {strides = array<i32: 2, 1>} : memref<512x128xf32, #tpu.memory_space<vmem>>, vector<4x128xf32>
    %213 = arith.truncf %212 : vector<4x128xf32> to vector<4x128xbf16>
    %c16_224 = arith.constant 16 : index
    %c512_225 = arith.constant 512 : index
    %214 = vector.load %arg12[%c16_224, %c512_225] : memref<32x2048xbf16, #tpu.memory_space<vmem>>, vector<4x128xbf16>
    tpu.vector_store %arg12[%c16_224, %c512_225], %213 {strides = array<i32>} : memref<32x2048xbf16, #tpu.memory_space<vmem>>, vector<4x128xbf16>,
    %c273 = arith.constant 273 : index
    %c0_226 = arith.constant 0 : index
    %215 = tpu.strided_load %arg1[%c273, %c0_226] {strides = array<i32: 2, 1>} : memref<512x128xf32, #tpu.memory_space<vmem>>, vector<4x128xf32>
    %216 = arith.truncf %215 : vector<4x128xf32> to vector<4x128xbf16>
    %c16_227 = arith.constant 16 : index
    %c640_228 = arith.constant 640 : index
    %217 = vector.load %arg12[%c16_227, %c640_228] : memref<32x2048xbf16, #tpu.memory_space<vmem>>, vector<4x128xbf16>
    tpu.vector_store %arg12[%c16_227, %c640_228], %216 {strides = array<i32>} : memref<32x2048xbf16, #tpu.memory_space<vmem>>, vector<4x128xbf16>,
    %c274 = arith.constant 274 : index
    %c0_229 = arith.constant 0 : index
    %218 = tpu.strided_load %arg1[%c274, %c0_229] {strides = array<i32: 2, 1>} : memref<512x128xf32, #tpu.memory_space<vmem>>, vector<4x128xf32>
    %219 = arith.truncf %218 : vector<4x128xf32> to vector<4x128xbf16>
    %c16_230 = arith.constant 16 : index
    %c768_231 = arith.constant 768 : index
    %220 = vector.load %arg12[%c16_230, %c768_231] : memref<32x2048xbf16, #tpu.memory_space<vmem>>, vector<4x128xbf16>
    tpu.vector_store %arg12[%c16_230, %c768_231], %219 {strides = array<i32>} : memref<32x2048xbf16, #tpu.memory_space<vmem>>, vector<4x128xbf16>,
    %c275 = arith.constant 275 : index
    %c0_232 = arith.constant 0 : index
    %221 = tpu.strided_load %arg1[%c275, %c0_232] {strides = array<i32: 2, 1>} : memref<512x128xf32, #tpu.memory_space<vmem>>, vector<4x128xf32>
    %222 = arith.truncf %221 : vector<4x128xf32> to vector<4x128xbf16>
    %c16_233 = arith.constant 16 : index
    %c896_234 = arith.constant 896 : index
    %223 = vector.load %arg12[%c16_233, %c896_234] : memref<32x2048xbf16, #tpu.memory_space<vmem>>, vector<4x128xbf16>
    tpu.vector_store %arg12[%c16_233, %c896_234], %222 {strides = array<i32>} : memref<32x2048xbf16, #tpu.memory_space<vmem>>, vector<4x128xbf16>,
    %c288 = arith.constant 288 : index
    %c0_235 = arith.constant 0 : index
    %224 = tpu.strided_load %arg1[%c288, %c0_235] {strides = array<i32: 2, 1>} : memref<512x128xf32, #tpu.memory_space<vmem>>, vector<4x128xf32>
    %225 = arith.truncf %224 : vector<4x128xf32> to vector<4x128xbf16>
    %c16_236 = arith.constant 16 : index
    %c1024_237 = arith.constant 1024 : index
    %226 = vector.load %arg12[%c16_236, %c1024_237] : memref<32x2048xbf16, #tpu.memory_space<vmem>>, vector<4x128xbf16>
    tpu.vector_store %arg12[%c16_236, %c1024_237], %225 {strides = array<i32>} : memref<32x2048xbf16, #tpu.memory_space<vmem>>, vector<4x128xbf16>,
    %c289 = arith.constant 289 : index
    %c0_238 = arith.constant 0 : index
    %227 = tpu.strided_load %arg1[%c289, %c0_238] {strides = array<i32: 2, 1>} : memref<512x128xf32, #tpu.memory_space<vmem>>, vector<4x128xf32>
    %228 = arith.truncf %227 : vector<4x128xf32> to vector<4x128xbf16>
    %c16_239 = arith.constant 16 : index
    %c1152_240 = arith.constant 1152 : index
    %229 = vector.load %arg12[%c16_239, %c1152_240] : memref<32x2048xbf16, #tpu.memory_space<vmem>>, vector<4x128xbf16>
    tpu.vector_store %arg12[%c16_239, %c1152_240], %228 {strides = array<i32>} : memref<32x2048xbf16, #tpu.memory_space<vmem>>, vector<4x128xbf16>,
    %c290 = arith.constant 290 : index
    %c0_241 = arith.constant 0 : index
    %230 = tpu.strided_load %arg1[%c290, %c0_241] {strides = array<i32: 2, 1>} : memref<512x128xf32, #tpu.memory_space<vmem>>, vector<4x128xf32>
    %231 = arith.truncf %230 : vector<4x128xf32> to vector<4x128xbf16>
    %c16_242 = arith.constant 16 : index
    %c1280_243 = arith.constant 1280 : index
    %232 = vector.load %arg12[%c16_242, %c1280_243] : memref<32x2048xbf16, #tpu.memory_space<vmem>>, vector<4x128xbf16>
    tpu.vector_store %arg12[%c16_242, %c1280_243], %231 {strides = array<i32>} : memref<32x2048xbf16, #tpu.memory_space<vmem>>, vector<4x128xbf16>,
    %c291 = arith.constant 291 : index
    %c0_244 = arith.constant 0 : index
    %233 = tpu.strided_load %arg1[%c291, %c0_244] {strides = array<i32: 2, 1>} : memref<512x128xf32, #tpu.memory_space<vmem>>, vector<4x128xf32>
    %234 = arith.truncf %233 : vector<4x128xf32> to vector<4x128xbf16>
    %c16_245 = arith.constant 16 : index
    %c1408_246 = arith.constant 1408 : index
    %235 = vector.load %arg12[%c16_245, %c1408_246] : memref<32x2048xbf16, #tpu.memory_space<vmem>>, vector<4x128xbf16>
    tpu.vector_store %arg12[%c16_245, %c1408_246], %234 {strides = array<i32>} : memref<32x2048xbf16, #tpu.memory_space<vmem>>, vector<4x128xbf16>,
    %c304 = arith.constant 304 : index
    %c0_247 = arith.constant 0 : index
    %236 = tpu.strided_load %arg1[%c304, %c0_247] {strides = array<i32: 2, 1>} : memref<512x128xf32, #tpu.memory_space<vmem>>, vector<4x128xf32>
    %237 = arith.truncf %236 : vector<4x128xf32> to vector<4x128xbf16>
    %c16_248 = arith.constant 16 : index
    %c1536_249 = arith.constant 1536 : index
    %238 = vector.load %arg12[%c16_248, %c1536_249] : memref<32x2048xbf16, #tpu.memory_space<vmem>>, vector<4x128xbf16>
    tpu.vector_store %arg12[%c16_248, %c1536_249], %237 {strides = array<i32>} : memref<32x2048xbf16, #tpu.memory_space<vmem>>, vector<4x128xbf16>,
    %c305 = arith.constant 305 : index
    %c0_250 = arith.constant 0 : index
    %239 = tpu.strided_load %arg1[%c305, %c0_250] {strides = array<i32: 2, 1>} : memref<512x128xf32, #tpu.memory_space<vmem>>, vector<4x128xf32>
    %240 = arith.truncf %239 : vector<4x128xf32> to vector<4x128xbf16>
    %c16_251 = arith.constant 16 : index
    %c1664_252 = arith.constant 1664 : index
    %241 = vector.load %arg12[%c16_251, %c1664_252] : memref<32x2048xbf16, #tpu.memory_space<vmem>>, vector<4x128xbf16>
    tpu.vector_store %arg12[%c16_251, %c1664_252], %240 {strides = array<i32>} : memref<32x2048xbf16, #tpu.memory_space<vmem>>, vector<4x128xbf16>,
    %c306 = arith.constant 306 : index
    %c0_253 = arith.constant 0 : index
    %242 = tpu.strided_load %arg1[%c306, %c0_253] {strides = array<i32: 2, 1>} : memref<512x128xf32, #tpu.memory_space<vmem>>, vector<4x128xf32>
    %243 = arith.truncf %242 : vector<4x128xf32> to vector<4x128xbf16>
    %c16_254 = arith.constant 16 : index
    %c1792_255 = arith.constant 1792 : index
    %244 = vector.load %arg12[%c16_254, %c1792_255] : memref<32x2048xbf16, #tpu.memory_space<vmem>>, vector<4x128xbf16>
    tpu.vector_store %arg12[%c16_254, %c1792_255], %243 {strides = array<i32>} : memref<32x2048xbf16, #tpu.memory_space<vmem>>, vector<4x128xbf16>,
    %c307 = arith.constant 307 : index
    %c0_256 = arith.constant 0 : index
    %245 = tpu.strided_load %arg1[%c307, %c0_256] {strides = array<i32: 2, 1>} : memref<512x128xf32, #tpu.memory_space<vmem>>, vector<4x128xf32>
    %246 = arith.truncf %245 : vector<4x128xf32> to vector<4x128xbf16>
    %c16_257 = arith.constant 16 : index
    %c1920_258 = arith.constant 1920 : index
    %247 = vector.load %arg12[%c16_257, %c1920_258] : memref<32x2048xbf16, #tpu.memory_space<vmem>>, vector<4x128xbf16>
    tpu.vector_store %arg12[%c16_257, %c1920_258], %246 {strides = array<i32>} : memref<32x2048xbf16, #tpu.memory_space<vmem>>, vector<4x128xbf16>,
    %c288_259 = arith.constant 288 : index
    %c0_260 = arith.constant 0 : index
    %248 = tpu.strided_load %arg1[%c288_259, %c0_260] {strides = array<i32: 2, 1>} : memref<512x128xf32, #tpu.memory_space<vmem>>, vector<4x128xf32>
    %249 = arith.truncf %248 : vector<4x128xf32> to vector<4x128xbf16>
    %c20 = arith.constant 20 : index
    %c0_261 = arith.constant 0 : index
    %250 = vector.load %arg12[%c20, %c0_261] : memref<32x2048xbf16, #tpu.memory_space<vmem>>, vector<4x128xbf16>
    tpu.vector_store %arg12[%c20, %c0_261], %249 {strides = array<i32>} : memref<32x2048xbf16, #tpu.memory_space<vmem>>, vector<4x128xbf16>,
    %c289_262 = arith.constant 289 : index
    %c0_263 = arith.constant 0 : index
    %251 = tpu.strided_load %arg1[%c289_262, %c0_263] {strides = array<i32: 2, 1>} : memref<512x128xf32, #tpu.memory_space<vmem>>, vector<4x128xf32>
    %252 = arith.truncf %251 : vector<4x128xf32> to vector<4x128xbf16>
    %c20_264 = arith.constant 20 : index
    %c128_265 = arith.constant 128 : index
    %253 = vector.load %arg12[%c20_264, %c128_265] : memref<32x2048xbf16, #tpu.memory_space<vmem>>, vector<4x128xbf16>
    tpu.vector_store %arg12[%c20_264, %c128_265], %252 {strides = array<i32>} : memref<32x2048xbf16, #tpu.memory_space<vmem>>, vector<4x128xbf16>,
    %c290_266 = arith.constant 290 : index
    %c0_267 = arith.constant 0 : index
    %254 = tpu.strided_load %arg1[%c290_266, %c0_267] {strides = array<i32: 2, 1>} : memref<512x128xf32, #tpu.memory_space<vmem>>, vector<4x128xf32>
    %255 = arith.truncf %254 : vector<4x128xf32> to vector<4x128xbf16>
    %c20_268 = arith.constant 20 : index
    %c256_269 = arith.constant 256 : index
    %256 = vector.load %arg12[%c20_268, %c256_269] : memref<32x2048xbf16, #tpu.memory_space<vmem>>, vector<4x128xbf16>
    tpu.vector_store %arg12[%c20_268, %c256_269], %255 {strides = array<i32>} : memref<32x2048xbf16, #tpu.memory_space<vmem>>, vector<4x128xbf16>,
    %c291_270 = arith.constant 291 : index
    %c0_271 = arith.constant 0 : index
    %257 = tpu.strided_load %arg1[%c291_270, %c0_271] {strides = array<i32: 2, 1>} : memref<512x128xf32, #tpu.memory_space<vmem>>, vector<4x128xf32>
    %258 = arith.truncf %257 : vector<4x128xf32> to vector<4x128xbf16>
    %c20_272 = arith.constant 20 : index
    %c384_273 = arith.constant 384 : index
    %259 = vector.load %arg12[%c20_272, %c384_273] : memref<32x2048xbf16, #tpu.memory_space<vmem>>, vector<4x128xbf16>
    tpu.vector_store %arg12[%c20_272, %c384_273], %258 {strides = array<i32>} : memref<32x2048xbf16, #tpu.memory_space<vmem>>, vector<4x128xbf16>,
    %c304_274 = arith.constant 304 : index
    %c0_275 = arith.constant 0 : index
    %260 = tpu.strided_load %arg1[%c304_274, %c0_275] {strides = array<i32: 2, 1>} : memref<512x128xf32, #tpu.memory_space<vmem>>, vector<4x128xf32>
    %261 = arith.truncf %260 : vector<4x128xf32> to vector<4x128xbf16>
    %c20_276 = arith.constant 20 : index
    %c512_277 = arith.constant 512 : index
    %262 = vector.load %arg12[%c20_276, %c512_277] : memref<32x2048xbf16, #tpu.memory_space<vmem>>, vector<4x128xbf16>
    tpu.vector_store %arg12[%c20_276, %c512_277], %261 {strides = array<i32>} : memref<32x2048xbf16, #tpu.memory_space<vmem>>, vector<4x128xbf16>,
    %c305_278 = arith.constant 305 : index
    %c0_279 = arith.constant 0 : index
    %263 = tpu.strided_load %arg1[%c305_278, %c0_279] {strides = array<i32: 2, 1>} : memref<512x128xf32, #tpu.memory_space<vmem>>, vector<4x128xf32>
    %264 = arith.truncf %263 : vector<4x128xf32> to vector<4x128xbf16>
    %c20_280 = arith.constant 20 : index
    %c640_281 = arith.constant 640 : index
    %265 = vector.load %arg12[%c20_280, %c640_281] : memref<32x2048xbf16, #tpu.memory_space<vmem>>, vector<4x128xbf16>
    tpu.vector_store %arg12[%c20_280, %c640_281], %264 {strides = array<i32>} : memref<32x2048xbf16, #tpu.memory_space<vmem>>, vector<4x128xbf16>,
    %c306_282 = arith.constant 306 : index
    %c0_283 = arith.constant 0 : index
    %266 = tpu.strided_load %arg1[%c306_282, %c0_283] {strides = array<i32: 2, 1>} : memref<512x128xf32, #tpu.memory_space<vmem>>, vector<4x128xf32>
    %267 = arith.truncf %266 : vector<4x128xf32> to vector<4x128xbf16>
    %c20_284 = arith.constant 20 : index
    %c768_285 = arith.constant 768 : index
    %268 = vector.load %arg12[%c20_284, %c768_285] : memref<32x2048xbf16, #tpu.memory_space<vmem>>, vector<4x128xbf16>
    tpu.vector_store %arg12[%c20_284, %c768_285], %267 {strides = array<i32>} : memref<32x2048xbf16, #tpu.memory_space<vmem>>, vector<4x128xbf16>,
    %c307_286 = arith.constant 307 : index
    %c0_287 = arith.constant 0 : index
    %269 = tpu.strided_load %arg1[%c307_286, %c0_287] {strides = array<i32: 2, 1>} : memref<512x128xf32, #tpu.memory_space<vmem>>, vector<4x128xf32>
    %270 = arith.truncf %269 : vector<4x128xf32> to vector<4x128xbf16>
    %c20_288 = arith.constant 20 : index
    %c896_289 = arith.constant 896 : index
    %271 = vector.load %arg12[%c20_288, %c896_289] : memref<32x2048xbf16, #tpu.memory_space<vmem>>, vector<4x128xbf16>
    tpu.vector_store %arg12[%c20_288, %c896_289], %270 {strides = array<i32>} : memref<32x2048xbf16, #tpu.memory_space<vmem>>, vector<4x128xbf16>,
    %c320 = arith.constant 320 : index
    %c0_290 = arith.constant 0 : index
    %272 = tpu.strided_load %arg1[%c320, %c0_290] {strides = array<i32: 2, 1>} : memref<512x128xf32, #tpu.memory_space<vmem>>, vector<4x128xf32>
    %273 = arith.truncf %272 : vector<4x128xf32> to vector<4x128xbf16>
    %c20_291 = arith.constant 20 : index
    %c1024_292 = arith.constant 1024 : index
    %274 = vector.load %arg12[%c20_291, %c1024_292] : memref<32x2048xbf16, #tpu.memory_space<vmem>>, vector<4x128xbf16>
    tpu.vector_store %arg12[%c20_291, %c1024_292], %273 {strides = array<i32>} : memref<32x2048xbf16, #tpu.memory_space<vmem>>, vector<4x128xbf16>,
    %c321 = arith.constant 321 : index
    %c0_293 = arith.constant 0 : index
    %275 = tpu.strided_load %arg1[%c321, %c0_293] {strides = array<i32: 2, 1>} : memref<512x128xf32, #tpu.memory_space<vmem>>, vector<4x128xf32>
    %276 = arith.truncf %275 : vector<4x128xf32> to vector<4x128xbf16>
    %c20_294 = arith.constant 20 : index
    %c1152_295 = arith.constant 1152 : index
    %277 = vector.load %arg12[%c20_294, %c1152_295] : memref<32x2048xbf16, #tpu.memory_space<vmem>>, vector<4x128xbf16>
    tpu.vector_store %arg12[%c20_294, %c1152_295], %276 {strides = array<i32>} : memref<32x2048xbf16, #tpu.memory_space<vmem>>, vector<4x128xbf16>,
    %c322 = arith.constant 322 : index
    %c0_296 = arith.constant 0 : index
    %278 = tpu.strided_load %arg1[%c322, %c0_296] {strides = array<i32: 2, 1>} : memref<512x128xf32, #tpu.memory_space<vmem>>, vector<4x128xf32>
    %279 = arith.truncf %278 : vector<4x128xf32> to vector<4x128xbf16>
    %c20_297 = arith.constant 20 : index
    %c1280_298 = arith.constant 1280 : index
    %280 = vector.load %arg12[%c20_297, %c1280_298] : memref<32x2048xbf16, #tpu.memory_space<vmem>>, vector<4x128xbf16>
    tpu.vector_store %arg12[%c20_297, %c1280_298], %279 {strides = array<i32>} : memref<32x2048xbf16, #tpu.memory_space<vmem>>, vector<4x128xbf16>,
    %c323 = arith.constant 323 : index
    %c0_299 = arith.constant 0 : index
    %281 = tpu.strided_load %arg1[%c323, %c0_299] {strides = array<i32: 2, 1>} : memref<512x128xf32, #tpu.memory_space<vmem>>, vector<4x128xf32>
    %282 = arith.truncf %281 : vector<4x128xf32> to vector<4x128xbf16>
    %c20_300 = arith.constant 20 : index
    %c1408_301 = arith.constant 1408 : index
    %283 = vector.load %arg12[%c20_300, %c1408_301] : memref<32x2048xbf16, #tpu.memory_space<vmem>>, vector<4x128xbf16>
    tpu.vector_store %arg12[%c20_300, %c1408_301], %282 {strides = array<i32>} : memref<32x2048xbf16, #tpu.memory_space<vmem>>, vector<4x128xbf16>,
    %c336 = arith.constant 336 : index
    %c0_302 = arith.constant 0 : index
    %284 = tpu.strided_load %arg1[%c336, %c0_302] {strides = array<i32: 2, 1>} : memref<512x128xf32, #tpu.memory_space<vmem>>, vector<4x128xf32>
    %285 = arith.truncf %284 : vector<4x128xf32> to vector<4x128xbf16>
    %c20_303 = arith.constant 20 : index
    %c1536_304 = arith.constant 1536 : index
    %286 = vector.load %arg12[%c20_303, %c1536_304] : memref<32x2048xbf16, #tpu.memory_space<vmem>>, vector<4x128xbf16>
    tpu.vector_store %arg12[%c20_303, %c1536_304], %285 {strides = array<i32>} : memref<32x2048xbf16, #tpu.memory_space<vmem>>, vector<4x128xbf16>,
    %c337 = arith.constant 337 : index
    %c0_305 = arith.constant 0 : index
    %287 = tpu.strided_load %arg1[%c337, %c0_305] {strides = array<i32: 2, 1>} : memref<512x128xf32, #tpu.memory_space<vmem>>, vector<4x128xf32>
    %288 = arith.truncf %287 : vector<4x128xf32> to vector<4x128xbf16>
    %c20_306 = arith.constant 20 : index
    %c1664_307 = arith.constant 1664 : index
    %289 = vector.load %arg12[%c20_306, %c1664_307] : memref<32x2048xbf16, #tpu.memory_space<vmem>>, vector<4x128xbf16>
    tpu.vector_store %arg12[%c20_306, %c1664_307], %288 {strides = array<i32>} : memref<32x2048xbf16, #tpu.memory_space<vmem>>, vector<4x128xbf16>,
    %c338 = arith.constant 338 : index
    %c0_308 = arith.constant 0 : index
    %290 = tpu.strided_load %arg1[%c338, %c0_308] {strides = array<i32: 2, 1>} : memref<512x128xf32, #tpu.memory_space<vmem>>, vector<4x128xf32>
    %291 = arith.truncf %290 : vector<4x128xf32> to vector<4x128xbf16>
    %c20_309 = arith.constant 20 : index
    %c1792_310 = arith.constant 1792 : index
    %292 = vector.load %arg12[%c20_309, %c1792_310] : memref<32x2048xbf16, #tpu.memory_space<vmem>>, vector<4x128xbf16>
    tpu.vector_store %arg12[%c20_309, %c1792_310], %291 {strides = array<i32>} : memref<32x2048xbf16, #tpu.memory_space<vmem>>, vector<4x128xbf16>,
    %c339 = arith.constant 339 : index
    %c0_311 = arith.constant 0 : index
    %293 = tpu.strided_load %arg1[%c339, %c0_311] {strides = array<i32: 2, 1>} : memref<512x128xf32, #tpu.memory_space<vmem>>, vector<4x128xf32>
    %294 = arith.truncf %293 : vector<4x128xf32> to vector<4x128xbf16>
    %c20_312 = arith.constant 20 : index
    %c1920_313 = arith.constant 1920 : index
    %295 = vector.load %arg12[%c20_312, %c1920_313] : memref<32x2048xbf16, #tpu.memory_space<vmem>>, vector<4x128xbf16>
    tpu.vector_store %arg12[%c20_312, %c1920_313], %294 {strides = array<i32>} : memref<32x2048xbf16, #tpu.memory_space<vmem>>, vector<4x128xbf16>,
    %c320_314 = arith.constant 320 : index
    %c0_315 = arith.constant 0 : index
    %296 = tpu.strided_load %arg1[%c320_314, %c0_315] {strides = array<i32: 2, 1>} : memref<512x128xf32, #tpu.memory_space<vmem>>, vector<4x128xf32>
    %297 = arith.truncf %296 : vector<4x128xf32> to vector<4x128xbf16>
    %c24 = arith.constant 24 : index
    %c0_316 = arith.constant 0 : index
    %298 = vector.load %arg12[%c24, %c0_316] : memref<32x2048xbf16, #tpu.memory_space<vmem>>, vector<4x128xbf16>
    tpu.vector_store %arg12[%c24, %c0_316], %297 {strides = array<i32>} : memref<32x2048xbf16, #tpu.memory_space<vmem>>, vector<4x128xbf16>,
    %c321_317 = arith.constant 321 : index
    %c0_318 = arith.constant 0 : index
    %299 = tpu.strided_load %arg1[%c321_317, %c0_318] {strides = array<i32: 2, 1>} : memref<512x128xf32, #tpu.memory_space<vmem>>, vector<4x128xf32>
    %300 = arith.truncf %299 : vector<4x128xf32> to vector<4x128xbf16>
    %c24_319 = arith.constant 24 : index
    %c128_320 = arith.constant 128 : index
    %301 = vector.load %arg12[%c24_319, %c128_320] : memref<32x2048xbf16, #tpu.memory_space<vmem>>, vector<4x128xbf16>
    tpu.vector_store %arg12[%c24_319, %c128_320], %300 {strides = array<i32>} : memref<32x2048xbf16, #tpu.memory_space<vmem>>, vector<4x128xbf16>,
    %c322_321 = arith.constant 322 : index
    %c0_322 = arith.constant 0 : index
    %302 = tpu.strided_load %arg1[%c322_321, %c0_322] {strides = array<i32: 2, 1>} : memref<512x128xf32, #tpu.memory_space<vmem>>, vector<4x128xf32>
    %303 = arith.truncf %302 : vector<4x128xf32> to vector<4x128xbf16>
    %c24_323 = arith.constant 24 : index
    %c256_324 = arith.constant 256 : index
    %304 = vector.load %arg12[%c24_323, %c256_324] : memref<32x2048xbf16, #tpu.memory_space<vmem>>, vector<4x128xbf16>
    tpu.vector_store %arg12[%c24_323, %c256_324], %303 {strides = array<i32>} : memref<32x2048xbf16, #tpu.memory_space<vmem>>, vector<4x128xbf16>,
    %c323_325 = arith.constant 323 : index
    %c0_326 = arith.constant 0 : index
    %305 = tpu.strided_load %arg1[%c323_325, %c0_326] {strides = array<i32: 2, 1>} : memref<512x128xf32, #tpu.memory_space<vmem>>, vector<4x128xf32>
    %306 = arith.truncf %305 : vector<4x128xf32> to vector<4x128xbf16>
    %c24_327 = arith.constant 24 : index
    %c384_328 = arith.constant 384 : index
    %307 = vector.load %arg12[%c24_327, %c384_328] : memref<32x2048xbf16, #tpu.memory_space<vmem>>, vector<4x128xbf16>
    tpu.vector_store %arg12[%c24_327, %c384_328], %306 {strides = array<i32>} : memref<32x2048xbf16, #tpu.memory_space<vmem>>, vector<4x128xbf16>,
    %c336_329 = arith.constant 336 : index
    %c0_330 = arith.constant 0 : index
    %308 = tpu.strided_load %arg1[%c336_329, %c0_330] {strides = array<i32: 2, 1>} : memref<512x128xf32, #tpu.memory_space<vmem>>, vector<4x128xf32>
    %309 = arith.truncf %308 : vector<4x128xf32> to vector<4x128xbf16>
    %c24_331 = arith.constant 24 : index
    %c512_332 = arith.constant 512 : index
    %310 = vector.load %arg12[%c24_331, %c512_332] : memref<32x2048xbf16, #tpu.memory_space<vmem>>, vector<4x128xbf16>
    tpu.vector_store %arg12[%c24_331, %c512_332], %309 {strides = array<i32>} : memref<32x2048xbf16, #tpu.memory_space<vmem>>, vector<4x128xbf16>,
    %c337_333 = arith.constant 337 : index
    %c0_334 = arith.constant 0 : index
    %311 = tpu.strided_load %arg1[%c337_333, %c0_334] {strides = array<i32: 2, 1>} : memref<512x128xf32, #tpu.memory_space<vmem>>, vector<4x128xf32>
    %312 = arith.truncf %311 : vector<4x128xf32> to vector<4x128xbf16>
    %c24_335 = arith.constant 24 : index
    %c640_336 = arith.constant 640 : index
    %313 = vector.load %arg12[%c24_335, %c640_336] : memref<32x2048xbf16, #tpu.memory_space<vmem>>, vector<4x128xbf16>
    tpu.vector_store %arg12[%c24_335, %c640_336], %312 {strides = array<i32>} : memref<32x2048xbf16, #tpu.memory_space<vmem>>, vector<4x128xbf16>,
    %c338_337 = arith.constant 338 : index
    %c0_338 = arith.constant 0 : index
    %314 = tpu.strided_load %arg1[%c338_337, %c0_338] {strides = array<i32: 2, 1>} : memref<512x128xf32, #tpu.memory_space<vmem>>, vector<4x128xf32>
    %315 = arith.truncf %314 : vector<4x128xf32> to vector<4x128xbf16>
    %c24_339 = arith.constant 24 : index
    %c768_340 = arith.constant 768 : index
    %316 = vector.load %arg12[%c24_339, %c768_340] : memref<32x2048xbf16, #tpu.memory_space<vmem>>, vector<4x128xbf16>
    tpu.vector_store %arg12[%c24_339, %c768_340], %315 {strides = array<i32>} : memref<32x2048xbf16, #tpu.memory_space<vmem>>, vector<4x128xbf16>,
    %c339_341 = arith.constant 339 : index
    %c0_342 = arith.constant 0 : index
    %317 = tpu.strided_load %arg1[%c339_341, %c0_342] {strides = array<i32: 2, 1>} : memref<512x128xf32, #tpu.memory_space<vmem>>, vector<4x128xf32>
    %318 = arith.truncf %317 : vector<4x128xf32> to vector<4x128xbf16>
    %c24_343 = arith.constant 24 : index
    %c896_344 = arith.constant 896 : index
    %319 = vector.load %arg12[%c24_343, %c896_344] : memref<32x2048xbf16, #tpu.memory_space<vmem>>, vector<4x128xbf16>
    tpu.vector_store %arg12[%c24_343, %c896_344], %318 {strides = array<i32>} : memref<32x2048xbf16, #tpu.memory_space<vmem>>, vector<4x128xbf16>,
    %c352 = arith.constant 352 : index
    %c0_345 = arith.constant 0 : index
    %320 = tpu.strided_load %arg1[%c352, %c0_345] {strides = array<i32: 2, 1>} : memref<512x128xf32, #tpu.memory_space<vmem>>, vector<4x128xf32>
    %321 = arith.truncf %320 : vector<4x128xf32> to vector<4x128xbf16>
    %c24_346 = arith.constant 24 : index
    %c1024_347 = arith.constant 1024 : index
    %322 = vector.load %arg12[%c24_346, %c1024_347] : memref<32x2048xbf16, #tpu.memory_space<vmem>>, vector<4x128xbf16>
    tpu.vector_store %arg12[%c24_346, %c1024_347], %321 {strides = array<i32>} : memref<32x2048xbf16, #tpu.memory_space<vmem>>, vector<4x128xbf16>,
    %c353 = arith.constant 353 : index
    %c0_348 = arith.constant 0 : index
    %323 = tpu.strided_load %arg1[%c353, %c0_348] {strides = array<i32: 2, 1>} : memref<512x128xf32, #tpu.memory_space<vmem>>, vector<4x128xf32>
    %324 = arith.truncf %323 : vector<4x128xf32> to vector<4x128xbf16>
    %c24_349 = arith.constant 24 : index
    %c1152_350 = arith.constant 1152 : index
    %325 = vector.load %arg12[%c24_349, %c1152_350] : memref<32x2048xbf16, #tpu.memory_space<vmem>>, vector<4x128xbf16>
    tpu.vector_store %arg12[%c24_349, %c1152_350], %324 {strides = array<i32>} : memref<32x2048xbf16, #tpu.memory_space<vmem>>, vector<4x128xbf16>,
    %c354 = arith.constant 354 : index
    %c0_351 = arith.constant 0 : index
    %326 = tpu.strided_load %arg1[%c354, %c0_351] {strides = array<i32: 2, 1>} : memref<512x128xf32, #tpu.memory_space<vmem>>, vector<4x128xf32>
    %327 = arith.truncf %326 : vector<4x128xf32> to vector<4x128xbf16>
    %c24_352 = arith.constant 24 : index
    %c1280_353 = arith.constant 1280 : index
    %328 = vector.load %arg12[%c24_352, %c1280_353] : memref<32x2048xbf16, #tpu.memory_space<vmem>>, vector<4x128xbf16>
    tpu.vector_store %arg12[%c24_352, %c1280_353], %327 {strides = array<i32>} : memref<32x2048xbf16, #tpu.memory_space<vmem>>, vector<4x128xbf16>,
    %c355 = arith.constant 355 : index
    %c0_354 = arith.constant 0 : index
    %329 = tpu.strided_load %arg1[%c355, %c0_354] {strides = array<i32: 2, 1>} : memref<512x128xf32, #tpu.memory_space<vmem>>, vector<4x128xf32>
    %330 = arith.truncf %329 : vector<4x128xf32> to vector<4x128xbf16>
    %c24_355 = arith.constant 24 : index
    %c1408_356 = arith.constant 1408 : index
    %331 = vector.load %arg12[%c24_355, %c1408_356] : memref<32x2048xbf16, #tpu.memory_space<vmem>>, vector<4x128xbf16>
    tpu.vector_store %arg12[%c24_355, %c1408_356], %330 {strides = array<i32>} : memref<32x2048xbf16, #tpu.memory_space<vmem>>, vector<4x128xbf16>,
    %c368 = arith.constant 368 : index
    %c0_357 = arith.constant 0 : index
    %332 = tpu.strided_load %arg1[%c368, %c0_357] {strides = array<i32: 2, 1>} : memref<512x128xf32, #tpu.memory_space<vmem>>, vector<4x128xf32>
    %333 = arith.truncf %332 : vector<4x128xf32> to vector<4x128xbf16>
    %c24_358 = arith.constant 24 : index
    %c1536_359 = arith.constant 1536 : index
    %334 = vector.load %arg12[%c24_358, %c1536_359] : memref<32x2048xbf16, #tpu.memory_space<vmem>>, vector<4x128xbf16>
    tpu.vector_store %arg12[%c24_358, %c1536_359], %333 {strides = array<i32>} : memref<32x2048xbf16, #tpu.memory_space<vmem>>, vector<4x128xbf16>,
    %c369 = arith.constant 369 : index
    %c0_360 = arith.constant 0 : index
    %335 = tpu.strided_load %arg1[%c369, %c0_360] {strides = array<i32: 2, 1>} : memref<512x128xf32, #tpu.memory_space<vmem>>, vector<4x128xf32>
    %336 = arith.truncf %335 : vector<4x128xf32> to vector<4x128xbf16>
    %c24_361 = arith.constant 24 : index
    %c1664_362 = arith.constant 1664 : index
    %337 = vector.load %arg12[%c24_361, %c1664_362] : memref<32x2048xbf16, #tpu.memory_space<vmem>>, vector<4x128xbf16>
    tpu.vector_store %arg12[%c24_361, %c1664_362], %336 {strides = array<i32>} : memref<32x2048xbf16, #tpu.memory_space<vmem>>, vector<4x128xbf16>,
    %c370 = arith.constant 370 : index
    %c0_363 = arith.constant 0 : index
    %338 = tpu.strided_load %arg1[%c370, %c0_363] {strides = array<i32: 2, 1>} : memref<512x128xf32, #tpu.memory_space<vmem>>, vector<4x128xf32>
    %339 = arith.truncf %338 : vector<4x128xf32> to vector<4x128xbf16>
    %c24_364 = arith.constant 24 : index
    %c1792_365 = arith.constant 1792 : index
    %340 = vector.load %arg12[%c24_364, %c1792_365] : memref<32x2048xbf16, #tpu.memory_space<vmem>>, vector<4x128xbf16>
    tpu.vector_store %arg12[%c24_364, %c1792_365], %339 {strides = array<i32>} : memref<32x2048xbf16, #tpu.memory_space<vmem>>, vector<4x128xbf16>,
    %c371 = arith.constant 371 : index
    %c0_366 = arith.constant 0 : index
    %341 = tpu.strided_load %arg1[%c371, %c0_366] {strides = array<i32: 2, 1>} : memref<512x128xf32, #tpu.memory_space<vmem>>, vector<4x128xf32>
    %342 = arith.truncf %341 : vector<4x128xf32> to vector<4x128xbf16>
    %c24_367 = arith.constant 24 : index
    %c1920_368 = arith.constant 1920 : index
    %343 = vector.load %arg12[%c24_367, %c1920_368] : memref<32x2048xbf16, #tpu.memory_space<vmem>>, vector<4x128xbf16>
    tpu.vector_store %arg12[%c24_367, %c1920_368], %342 {strides = array<i32>} : memref<32x2048xbf16, #tpu.memory_space<vmem>>, vector<4x128xbf16>,
    %c352_369 = arith.constant 352 : index
    %c0_370 = arith.constant 0 : index
    %344 = tpu.strided_load %arg1[%c352_369, %c0_370] {strides = array<i32: 2, 1>} : memref<512x128xf32, #tpu.memory_space<vmem>>, vector<4x128xf32>
    %345 = arith.truncf %344 : vector<4x128xf32> to vector<4x128xbf16>
    %c28 = arith.constant 28 : index
    %c0_371 = arith.constant 0 : index
    %346 = vector.load %arg12[%c28, %c0_371] : memref<32x2048xbf16, #tpu.memory_space<vmem>>, vector<4x128xbf16>
    tpu.vector_store %arg12[%c28, %c0_371], %345 {strides = array<i32>} : memref<32x2048xbf16, #tpu.memory_space<vmem>>, vector<4x128xbf16>,
    %c353_372 = arith.constant 353 : index
    %c0_373 = arith.constant 0 : index
    %347 = tpu.strided_load %arg1[%c353_372, %c0_373] {strides = array<i32: 2, 1>} : memref<512x128xf32, #tpu.memory_space<vmem>>, vector<4x128xf32>
    %348 = arith.truncf %347 : vector<4x128xf32> to vector<4x128xbf16>
    %c28_374 = arith.constant 28 : index
    %c128_375 = arith.constant 128 : index
    %349 = vector.load %arg12[%c28_374, %c128_375] : memref<32x2048xbf16, #tpu.memory_space<vmem>>, vector<4x128xbf16>
    tpu.vector_store %arg12[%c28_374, %c128_375], %348 {strides = array<i32>} : memref<32x2048xbf16, #tpu.memory_space<vmem>>, vector<4x128xbf16>,
    %c354_376 = arith.constant 354 : index
    %c0_377 = arith.constant 0 : index
    %350 = tpu.strided_load %arg1[%c354_376, %c0_377] {strides = array<i32: 2, 1>} : memref<512x128xf32, #tpu.memory_space<vmem>>, vector<4x128xf32>
    %351 = arith.truncf %350 : vector<4x128xf32> to vector<4x128xbf16>
    %c28_378 = arith.constant 28 : index
    %c256_379 = arith.constant 256 : index
    %352 = vector.load %arg12[%c28_378, %c256_379] : memref<32x2048xbf16, #tpu.memory_space<vmem>>, vector<4x128xbf16>
    tpu.vector_store %arg12[%c28_378, %c256_379], %351 {strides = array<i32>} : memref<32x2048xbf16, #tpu.memory_space<vmem>>, vector<4x128xbf16>,
    %c355_380 = arith.constant 355 : index
    %c0_381 = arith.constant 0 : index
    %353 = tpu.strided_load %arg1[%c355_380, %c0_381] {strides = array<i32: 2, 1>} : memref<512x128xf32, #tpu.memory_space<vmem>>, vector<4x128xf32>
    %354 = arith.truncf %353 : vector<4x128xf32> to vector<4x128xbf16>
    %c28_382 = arith.constant 28 : index
    %c384_383 = arith.constant 384 : index
    %355 = vector.load %arg12[%c28_382, %c384_383] : memref<32x2048xbf16, #tpu.memory_space<vmem>>, vector<4x128xbf16>
    tpu.vector_store %arg12[%c28_382, %c384_383], %354 {strides = array<i32>} : memref<32x2048xbf16, #tpu.memory_space<vmem>>, vector<4x128xbf16>,
    %c368_384 = arith.constant 368 : index
    %c0_385 = arith.constant 0 : index
    %356 = tpu.strided_load %arg1[%c368_384, %c0_385] {strides = array<i32: 2, 1>} : memref<512x128xf32, #tpu.memory_space<vmem>>, vector<4x128xf32>
    %357 = arith.truncf %356 : vector<4x128xf32> to vector<4x128xbf16>
    %c28_386 = arith.constant 28 : index
    %c512_387 = arith.constant 512 : index
    %358 = vector.load %arg12[%c28_386, %c512_387] : memref<32x2048xbf16, #tpu.memory_space<vmem>>, vector<4x128xbf16>
    tpu.vector_store %arg12[%c28_386, %c512_387], %357 {strides = array<i32>} : memref<32x2048xbf16, #tpu.memory_space<vmem>>, vector<4x128xbf16>,
    %c369_388 = arith.constant 369 : index
    %c0_389 = arith.constant 0 : index
    %359 = tpu.strided_load %arg1[%c369_388, %c0_389] {strides = array<i32: 2, 1>} : memref<512x128xf32, #tpu.memory_space<vmem>>, vector<4x128xf32>
    %360 = arith.truncf %359 : vector<4x128xf32> to vector<4x128xbf16>
    %c28_390 = arith.constant 28 : index
    %c640_391 = arith.constant 640 : index
    %361 = vector.load %arg12[%c28_390, %c640_391] : memref<32x2048xbf16, #tpu.memory_space<vmem>>, vector<4x128xbf16>
    tpu.vector_store %arg12[%c28_390, %c640_391], %360 {strides = array<i32>} : memref<32x2048xbf16, #tpu.memory_space<vmem>>, vector<4x128xbf16>,
    %c370_392 = arith.constant 370 : index
    %c0_393 = arith.constant 0 : index
    %362 = tpu.strided_load %arg1[%c370_392, %c0_393] {strides = array<i32: 2, 1>} : memref<512x128xf32, #tpu.memory_space<vmem>>, vector<4x128xf32>
    %363 = arith.truncf %362 : vector<4x128xf32> to vector<4x128xbf16>
    %c28_394 = arith.constant 28 : index
    %c768_395 = arith.constant 768 : index
    %364 = vector.load %arg12[%c28_394, %c768_395] : memref<32x2048xbf16, #tpu.memory_space<vmem>>, vector<4x128xbf16>
    tpu.vector_store %arg12[%c28_394, %c768_395], %363 {strides = array<i32>} : memref<32x2048xbf16, #tpu.memory_space<vmem>>, vector<4x128xbf16>,
    %c371_396 = arith.constant 371 : index
    %c0_397 = arith.constant 0 : index
    %365 = tpu.strided_load %arg1[%c371_396, %c0_397] {strides = array<i32: 2, 1>} : memref<512x128xf32, #tpu.memory_space<vmem>>, vector<4x128xf32>
    %366 = arith.truncf %365 : vector<4x128xf32> to vector<4x128xbf16>
    %c28_398 = arith.constant 28 : index
    %c896_399 = arith.constant 896 : index
    %367 = vector.load %arg12[%c28_398, %c896_399] : memref<32x2048xbf16, #tpu.memory_space<vmem>>, vector<4x128xbf16>
    tpu.vector_store %arg12[%c28_398, %c896_399], %366 {strides = array<i32>} : memref<32x2048xbf16, #tpu.memory_space<vmem>>, vector<4x128xbf16>,
    %c384_400 = arith.constant 384 : index
    %c0_401 = arith.constant 0 : index
    %368 = tpu.strided_load %arg1[%c384_400, %c0_401] {strides = array<i32: 2, 1>} : memref<512x128xf32, #tpu.memory_space<vmem>>, vector<4x128xf32>
    %369 = arith.truncf %368 : vector<4x128xf32> to vector<4x128xbf16>
    %c28_402 = arith.constant 28 : index
    %c1024_403 = arith.constant 1024 : index
    %370 = vector.load %arg12[%c28_402, %c1024_403] : memref<32x2048xbf16, #tpu.memory_space<vmem>>, vector<4x128xbf16>
    tpu.vector_store %arg12[%c28_402, %c1024_403], %369 {strides = array<i32>} : memref<32x2048xbf16, #tpu.memory_space<vmem>>, vector<4x128xbf16>,
    %c385 = arith.constant 385 : index
    %c0_404 = arith.constant 0 : index
    %371 = tpu.strided_load %arg1[%c385, %c0_404] {strides = array<i32: 2, 1>} : memref<512x128xf32, #tpu.memory_space<vmem>>, vector<4x128xf32>
    %372 = arith.truncf %371 : vector<4x128xf32> to vector<4x128xbf16>
    %c28_405 = arith.constant 28 : index
    %c1152_406 = arith.constant 1152 : index
    %373 = vector.load %arg12[%c28_405, %c1152_406] : memref<32x2048xbf16, #tpu.memory_space<vmem>>, vector<4x128xbf16>
    tpu.vector_store %arg12[%c28_405, %c1152_406], %372 {strides = array<i32>} : memref<32x2048xbf16, #tpu.memory_space<vmem>>, vector<4x128xbf16>,
    %c386 = arith.constant 386 : index
    %c0_407 = arith.constant 0 : index
    %374 = tpu.strided_load %arg1[%c386, %c0_407] {strides = array<i32: 2, 1>} : memref<512x128xf32, #tpu.memory_space<vmem>>, vector<4x128xf32>
    %375 = arith.truncf %374 : vector<4x128xf32> to vector<4x128xbf16>
    %c28_408 = arith.constant 28 : index
    %c1280_409 = arith.constant 1280 : index
    %376 = vector.load %arg12[%c28_408, %c1280_409] : memref<32x2048xbf16, #tpu.memory_space<vmem>>, vector<4x128xbf16>
    tpu.vector_store %arg12[%c28_408, %c1280_409], %375 {strides = array<i32>} : memref<32x2048xbf16, #tpu.memory_space<vmem>>, vector<4x128xbf16>,
    %c387 = arith.constant 387 : index
    %c0_410 = arith.constant 0 : index
    %377 = tpu.strided_load %arg1[%c387, %c0_410] {strides = array<i32: 2, 1>} : memref<512x128xf32, #tpu.memory_space<vmem>>, vector<4x128xf32>
    %378 = arith.truncf %377 : vector<4x128xf32> to vector<4x128xbf16>
    %c28_411 = arith.constant 28 : index
    %c1408_412 = arith.constant 1408 : index
    %379 = vector.load %arg12[%c28_411, %c1408_412] : memref<32x2048xbf16, #tpu.memory_space<vmem>>, vector<4x128xbf16>
    tpu.vector_store %arg12[%c28_411, %c1408_412], %378 {strides = array<i32>} : memref<32x2048xbf16, #tpu.memory_space<vmem>>, vector<4x128xbf16>,
    %c400 = arith.constant 400 : index
    %c0_413 = arith.constant 0 : index
    %380 = tpu.strided_load %arg1[%c400, %c0_413] {strides = array<i32: 2, 1>} : memref<512x128xf32, #tpu.memory_space<vmem>>, vector<4x128xf32>
    %381 = arith.truncf %380 : vector<4x128xf32> to vector<4x128xbf16>
    %c28_414 = arith.constant 28 : index
    %c1536_415 = arith.constant 1536 : index
    %382 = vector.load %arg12[%c28_414, %c1536_415] : memref<32x2048xbf16, #tpu.memory_space<vmem>>, vector<4x128xbf16>
    tpu.vector_store %arg12[%c28_414, %c1536_415], %381 {strides = array<i32>} : memref<32x2048xbf16, #tpu.memory_space<vmem>>, vector<4x128xbf16>,
    %c401 = arith.constant 401 : index
    %c0_416 = arith.constant 0 : index
    %383 = tpu.strided_load %arg1[%c401, %c0_416] {strides = array<i32: 2, 1>} : memref<512x128xf32, #tpu.memory_space<vmem>>, vector<4x128xf32>
    %384 = arith.truncf %383 : vector<4x128xf32> to vector<4x128xbf16>
    %c28_417 = arith.constant 28 : index
    %c1664_418 = arith.constant 1664 : index
    %385 = vector.load %arg12[%c28_417, %c1664_418] : memref<32x2048xbf16, #tpu.memory_space<vmem>>, vector<4x128xbf16>
    tpu.vector_store %arg12[%c28_417, %c1664_418], %384 {strides = array<i32>} : memref<32x2048xbf16, #tpu.memory_space<vmem>>, vector<4x128xbf16>,
    %c402 = arith.constant 402 : index
    %c0_419 = arith.constant 0 : index
    %386 = tpu.strided_load %arg1[%c402, %c0_419] {strides = array<i32: 2, 1>} : memref<512x128xf32, #tpu.memory_space<vmem>>, vector<4x128xf32>
    %387 = arith.truncf %386 : vector<4x128xf32> to vector<4x128xbf16>
    %c28_420 = arith.constant 28 : index
    %c1792_421 = arith.constant 1792 : index
    %388 = vector.load %arg12[%c28_420, %c1792_421] : memref<32x2048xbf16, #tpu.memory_space<vmem>>, vector<4x128xbf16>
    tpu.vector_store %arg12[%c28_420, %c1792_421], %387 {strides = array<i32>} : memref<32x2048xbf16, #tpu.memory_space<vmem>>, vector<4x128xbf16>,
    %c403 = arith.constant 403 : index
    %c0_422 = arith.constant 0 : index
    %389 = tpu.strided_load %arg1[%c403, %c0_422] {strides = array<i32: 2, 1>} : memref<512x128xf32, #tpu.memory_space<vmem>>, vector<4x128xf32>
    %390 = arith.truncf %389 : vector<4x128xf32> to vector<4x128xbf16>
    %c28_423 = arith.constant 28 : index
    %c1920_424 = arith.constant 1920 : index
    %391 = vector.load %arg12[%c28_423, %c1920_424] : memref<32x2048xbf16, #tpu.memory_space<vmem>>, vector<4x128xbf16>
    tpu.vector_store %arg12[%c28_423, %c1920_424], %390 {strides = array<i32>} : memref<32x2048xbf16, #tpu.memory_space<vmem>>, vector<4x128xbf16>,
    %c0_425 = arith.constant 0 : index
    %c0_426 = arith.constant 0 : index
    %392 = vector.load %arg12[%c0_425, %c0_426] : memref<32x2048xbf16, #tpu.memory_space<vmem>>, vector<32x2048xbf16>
    %c0_427 = arith.constant 0 : index
    %c0_428 = arith.constant 0 : index
    %393 = vector.load %arg2[%c0_427, %c0_428] : memref<2048x128xbf16, #tpu.memory_space<vmem>>, vector<2048x128xbf16>
    %cst_429 = arith.constant dense<0.000000e+00> : vector<32x128xf32>
    %394 = tpu.matmul %392, %393, %cst_429 {dimension_numbers = #tpu.dot_dimension_numbers<[1], [0], [0], [1], [0, 0, 1, 1], [], []>} : vector<32x2048xbf16>, vector<2048x128xbf16>, vector<32x128xf32> -> vector<32x128xf32>
    %c0_430 = arith.constant 0 : index
    %c0_431 = arith.constant 0 : index
    %395 = vector.load %arg3[%c0_430, %c0_431] : memref<1x128xf32, #tpu.memory_space<vmem>>, vector<1x128xf32>
    %396 = vector.broadcast %395 : vector<1x128xf32> to vector<32x128xf32>
    %397 = arith.addf %394, %396 : vector<32x128xf32>
    %cst_432 = arith.constant 0.000000e+00 : f32
    %398 = vector.broadcast %cst_432 : f32 to vector<32x128xf32>
    %399 = arith.cmpf oge, %397, %398 : vector<32x128xf32>
    %cst_433 = arith.constant 0.00999999977 : f32
    %400 = vector.broadcast %cst_433 : f32 to vector<32x128xf32>
    %401 = arith.mulf %400, %397 : vector<32x128xf32>
    %402 = arith.select %399, %397, %401 : vector<32x128xi1>, vector<32x128xf32>
    %403 = vector.extract_strided_slice %402 {offsets = [0, 0], sizes = [4, 128], strides = [1, 1]} : vector<32x128xf32> to vector<4x128xf32>
    %c9 = arith.constant 9 : index
    %c0_434 = arith.constant 0 : index
    %404 = vector.load %arg10[%c9, %c0_434] : memref<128x128xf32, #tpu.memory_space<vmem>>, vector<4x128xf32>
    tpu.vector_store %arg10[%c9, %c0_434], %403 {strides = array<i32>} : memref<128x128xf32, #tpu.memory_space<vmem>>, vector<4x128xf32>,
    %405 = vector.extract_strided_slice %402 {offsets = [4, 0], sizes = [4, 128], strides = [1, 1]} : vector<32x128xf32> to vector<4x128xf32>
    %c17_435 = arith.constant 17 : index
    %c0_436 = arith.constant 0 : index
    %406 = vector.load %arg10[%c17_435, %c0_436] : memref<128x128xf32, #tpu.memory_space<vmem>>, vector<4x128xf32>
    tpu.vector_store %arg10[%c17_435, %c0_436], %405 {strides = array<i32>} : memref<128x128xf32, #tpu.memory_space<vmem>>, vector<4x128xf32>,
    %407 = vector.extract_strided_slice %402 {offsets = [8, 0], sizes = [4, 128], strides = [1, 1]} : vector<32x128xf32> to vector<4x128xf32>
    %c25 = arith.constant 25 : index
    %c0_437 = arith.constant 0 : index
    %408 = vector.load %arg10[%c25, %c0_437] : memref<128x128xf32, #tpu.memory_space<vmem>>, vector<4x128xf32>
    tpu.vector_store %arg10[%c25, %c0_437], %407 {strides = array<i32>} : memref<128x128xf32, #tpu.memory_space<vmem>>, vector<4x128xf32>,
    %409 = vector.extract_strided_slice %402 {offsets = [12, 0], sizes = [4, 128], strides = [1, 1]} : vector<32x128xf32> to vector<4x128xf32>
    %c33_438 = arith.constant 33 : index
    %c0_439 = arith.constant 0 : index
    %410 = vector.load %arg10[%c33_438, %c0_439] : memref<128x128xf32, #tpu.memory_space<vmem>>, vector<4x128xf32>
    tpu.vector_store %arg10[%c33_438, %c0_439], %409 {strides = array<i32>} : memref<128x128xf32, #tpu.memory_space<vmem>>, vector<4x128xf32>,
    %411 = vector.extract_strided_slice %402 {offsets = [16, 0], sizes = [4, 128], strides = [1, 1]} : vector<32x128xf32> to vector<4x128xf32>
    %c73 = arith.constant 73 : index
    %c0_440 = arith.constant 0 : index
    %412 = vector.load %arg10[%c73, %c0_440] : memref<128x128xf32, #tpu.memory_space<vmem>>, vector<4x128xf32>
    tpu.vector_store %arg10[%c73, %c0_440], %411 {strides = array<i32>} : memref<128x128xf32, #tpu.memory_space<vmem>>, vector<4x128xf32>,
    %413 = vector.extract_strided_slice %402 {offsets = [20, 0], sizes = [4, 128], strides = [1, 1]} : vector<32x128xf32> to vector<4x128xf32>
    %c81_441 = arith.constant 81 : index
    %c0_442 = arith.constant 0 : index
    %414 = vector.load %arg10[%c81_441, %c0_442] : memref<128x128xf32, #tpu.memory_space<vmem>>, vector<4x128xf32>
    tpu.vector_store %arg10[%c81_441, %c0_442], %413 {strides = array<i32>} : memref<128x128xf32, #tpu.memory_space<vmem>>, vector<4x128xf32>,
    %415 = vector.extract_strided_slice %402 {offsets = [24, 0], sizes = [4, 128], strides = [1, 1]} : vector<32x128xf32> to vector<4x128xf32>
    %c89 = arith.constant 89 : index
    %c0_443 = arith.constant 0 : index
    %416 = vector.load %arg10[%c89, %c0_443] : memref<128x128xf32, #tpu.memory_space<vmem>>, vector<4x128xf32>
    tpu.vector_store %arg10[%c89, %c0_443], %415 {strides = array<i32>} : memref<128x128xf32, #tpu.memory_space<vmem>>, vector<4x128xf32>,
    %417 = vector.extract_strided_slice %402 {offsets = [28, 0], sizes = [4, 128], strides = [1, 1]} : vector<32x128xf32> to vector<4x128xf32>
    %c97_444 = arith.constant 97 : index
    %c0_445 = arith.constant 0 : index
    %418 = vector.load %arg10[%c97_444, %c0_445] : memref<128x128xf32, #tpu.memory_space<vmem>>, vector<4x128xf32>
    tpu.vector_store %arg10[%c97_444, %c0_445], %417 {strides = array<i32>} : memref<128x128xf32, #tpu.memory_space<vmem>>, vector<4x128xf32>,
    %c0_446 = arith.constant 0 : index
    %c0_447 = arith.constant 0 : index
    %419 = tpu.strided_load %arg10[%c0_446, %c0_447] {strides = array<i32: 2, 1>} : memref<128x128xf32, #tpu.memory_space<vmem>>, vector<2x128xf32>
    %420 = arith.truncf %419 : vector<2x128xf32> to vector<2x128xbf16>
    %c0_448 = arith.constant 0 : index
    %c0_449 = arith.constant 0 : index
    %421 = vector.load %arg13[%c0_448, %c0_449] : memref<8x2048xbf16, #tpu.memory_space<vmem>>, vector<2x128xbf16>
    tpu.vector_store %arg13[%c0_448, %c0_449], %420 {strides = array<i32>} : memref<8x2048xbf16, #tpu.memory_space<vmem>>, vector<2x128xbf16>,
    %c1_450 = arith.constant 1 : index
    %c0_451 = arith.constant 0 : index
    %422 = tpu.strided_load %arg10[%c1_450, %c0_451] {strides = array<i32: 2, 1>} : memref<128x128xf32, #tpu.memory_space<vmem>>, vector<2x128xf32>
    %423 = arith.truncf %422 : vector<2x128xf32> to vector<2x128xbf16>
    %c0_452 = arith.constant 0 : index
    %c128_453 = arith.constant 128 : index
    %424 = vector.load %arg13[%c0_452, %c128_453] : memref<8x2048xbf16, #tpu.memory_space<vmem>>, vector<2x128xbf16>
    tpu.vector_store %arg13[%c0_452, %c128_453], %423 {strides = array<i32>} : memref<8x2048xbf16, #tpu.memory_space<vmem>>, vector<2x128xbf16>,
    %c2_454 = arith.constant 2 : index
    %c0_455 = arith.constant 0 : index
    %425 = tpu.strided_load %arg10[%c2_454, %c0_455] {strides = array<i32: 2, 1>} : memref<128x128xf32, #tpu.memory_space<vmem>>, vector<2x128xf32>
    %426 = arith.truncf %425 : vector<2x128xf32> to vector<2x128xbf16>
    %c0_456 = arith.constant 0 : index
    %c256_457 = arith.constant 256 : index
    %427 = vector.load %arg13[%c0_456, %c256_457] : memref<8x2048xbf16, #tpu.memory_space<vmem>>, vector<2x128xbf16>
    tpu.vector_store %arg13[%c0_456, %c256_457], %426 {strides = array<i32>} : memref<8x2048xbf16, #tpu.memory_space<vmem>>, vector<2x128xbf16>,
    %c3_458 = arith.constant 3 : index
    %c0_459 = arith.constant 0 : index
    %428 = tpu.strided_load %arg10[%c3_458, %c0_459] {strides = array<i32: 2, 1>} : memref<128x128xf32, #tpu.memory_space<vmem>>, vector<2x128xf32>
    %429 = arith.truncf %428 : vector<2x128xf32> to vector<2x128xbf16>
    %c0_460 = arith.constant 0 : index
    %c384_461 = arith.constant 384 : index
    %430 = vector.load %arg13[%c0_460, %c384_461] : memref<8x2048xbf16, #tpu.memory_space<vmem>>, vector<2x128xbf16>
    tpu.vector_store %arg13[%c0_460, %c384_461], %429 {strides = array<i32>} : memref<8x2048xbf16, #tpu.memory_space<vmem>>, vector<2x128xbf16>,
    %c8_462 = arith.constant 8 : index
    %c0_463 = arith.constant 0 : index
    %431 = tpu.strided_load %arg10[%c8_462, %c0_463] {strides = array<i32: 2, 1>} : memref<128x128xf32, #tpu.memory_space<vmem>>, vector<2x128xf32>
    %432 = arith.truncf %431 : vector<2x128xf32> to vector<2x128xbf16>
    %c0_464 = arith.constant 0 : index
    %c512_465 = arith.constant 512 : index
    %433 = vector.load %arg13[%c0_464, %c512_465] : memref<8x2048xbf16, #tpu.memory_space<vmem>>, vector<2x128xbf16>
    tpu.vector_store %arg13[%c0_464, %c512_465], %432 {strides = array<i32>} : memref<8x2048xbf16, #tpu.memory_space<vmem>>, vector<2x128xbf16>,
    %c9_466 = arith.constant 9 : index
    %c0_467 = arith.constant 0 : index
    %434 = tpu.strided_load %arg10[%c9_466, %c0_467] {strides = array<i32: 2, 1>} : memref<128x128xf32, #tpu.memory_space<vmem>>, vector<2x128xf32>
    %435 = arith.truncf %434 : vector<2x128xf32> to vector<2x128xbf16>
    %c0_468 = arith.constant 0 : index
    %c640_469 = arith.constant 640 : index
    %436 = vector.load %arg13[%c0_468, %c640_469] : memref<8x2048xbf16, #tpu.memory_space<vmem>>, vector<2x128xbf16>
    tpu.vector_store %arg13[%c0_468, %c640_469], %435 {strides = array<i32>} : memref<8x2048xbf16, #tpu.memory_space<vmem>>, vector<2x128xbf16>,
    %c10 = arith.constant 10 : index
    %c0_470 = arith.constant 0 : index
    %437 = tpu.strided_load %arg10[%c10, %c0_470] {strides = array<i32: 2, 1>} : memref<128x128xf32, #tpu.memory_space<vmem>>, vector<2x128xf32>
    %438 = arith.truncf %437 : vector<2x128xf32> to vector<2x128xbf16>
    %c0_471 = arith.constant 0 : index
    %c768_472 = arith.constant 768 : index
    %439 = vector.load %arg13[%c0_471, %c768_472] : memref<8x2048xbf16, #tpu.memory_space<vmem>>, vector<2x128xbf16>
    tpu.vector_store %arg13[%c0_471, %c768_472], %438 {strides = array<i32>} : memref<8x2048xbf16, #tpu.memory_space<vmem>>, vector<2x128xbf16>,
    %c11 = arith.constant 11 : index
    %c0_473 = arith.constant 0 : index
    %440 = tpu.strided_load %arg10[%c11, %c0_473] {strides = array<i32: 2, 1>} : memref<128x128xf32, #tpu.memory_space<vmem>>, vector<2x128xf32>
    %441 = arith.truncf %440 : vector<2x128xf32> to vector<2x128xbf16>
    %c0_474 = arith.constant 0 : index
    %c896_475 = arith.constant 896 : index
    %442 = vector.load %arg13[%c0_474, %c896_475] : memref<8x2048xbf16, #tpu.memory_space<vmem>>, vector<2x128xbf16>
    tpu.vector_store %arg13[%c0_474, %c896_475], %441 {strides = array<i32>} : memref<8x2048xbf16, #tpu.memory_space<vmem>>, vector<2x128xbf16>,
    %c16_476 = arith.constant 16 : index
    %c0_477 = arith.constant 0 : index
    %443 = tpu.strided_load %arg10[%c16_476, %c0_477] {strides = array<i32: 2, 1>} : memref<128x128xf32, #tpu.memory_space<vmem>>, vector<2x128xf32>
    %444 = arith.truncf %443 : vector<2x128xf32> to vector<2x128xbf16>
    %c0_478 = arith.constant 0 : index
    %c1024_479 = arith.constant 1024 : index
    %445 = vector.load %arg13[%c0_478, %c1024_479] : memref<8x2048xbf16, #tpu.memory_space<vmem>>, vector<2x128xbf16>
    tpu.vector_store %arg13[%c0_478, %c1024_479], %444 {strides = array<i32>} : memref<8x2048xbf16, #tpu.memory_space<vmem>>, vector<2x128xbf16>,
    %c17_480 = arith.constant 17 : index
    %c0_481 = arith.constant 0 : index
    %446 = tpu.strided_load %arg10[%c17_480, %c0_481] {strides = array<i32: 2, 1>} : memref<128x128xf32, #tpu.memory_space<vmem>>, vector<2x128xf32>
    %447 = arith.truncf %446 : vector<2x128xf32> to vector<2x128xbf16>
    %c0_482 = arith.constant 0 : index
    %c1152_483 = arith.constant 1152 : index
    %448 = vector.load %arg13[%c0_482, %c1152_483] : memref<8x2048xbf16, #tpu.memory_space<vmem>>, vector<2x128xbf16>
    tpu.vector_store %arg13[%c0_482, %c1152_483], %447 {strides = array<i32>} : memref<8x2048xbf16, #tpu.memory_space<vmem>>, vector<2x128xbf16>,
    %c18_484 = arith.constant 18 : index
    %c0_485 = arith.constant 0 : index
    %449 = tpu.strided_load %arg10[%c18_484, %c0_485] {strides = array<i32: 2, 1>} : memref<128x128xf32, #tpu.memory_space<vmem>>, vector<2x128xf32>
    %450 = arith.truncf %449 : vector<2x128xf32> to vector<2x128xbf16>
    %c0_486 = arith.constant 0 : index
    %c1280_487 = arith.constant 1280 : index
    %451 = vector.load %arg13[%c0_486, %c1280_487] : memref<8x2048xbf16, #tpu.memory_space<vmem>>, vector<2x128xbf16>
    tpu.vector_store %arg13[%c0_486, %c1280_487], %450 {strides = array<i32>} : memref<8x2048xbf16, #tpu.memory_space<vmem>>, vector<2x128xbf16>,
    %c19_488 = arith.constant 19 : index
    %c0_489 = arith.constant 0 : index
    %452 = tpu.strided_load %arg10[%c19_488, %c0_489] {strides = array<i32: 2, 1>} : memref<128x128xf32, #tpu.memory_space<vmem>>, vector<2x128xf32>
    %453 = arith.truncf %452 : vector<2x128xf32> to vector<2x128xbf16>
    %c0_490 = arith.constant 0 : index
    %c1408_491 = arith.constant 1408 : index
    %454 = vector.load %arg13[%c0_490, %c1408_491] : memref<8x2048xbf16, #tpu.memory_space<vmem>>, vector<2x128xbf16>
    tpu.vector_store %arg13[%c0_490, %c1408_491], %453 {strides = array<i32>} : memref<8x2048xbf16, #tpu.memory_space<vmem>>, vector<2x128xbf16>,
    %c24_492 = arith.constant 24 : index
    %c0_493 = arith.constant 0 : index
    %455 = tpu.strided_load %arg10[%c24_492, %c0_493] {strides = array<i32: 2, 1>} : memref<128x128xf32, #tpu.memory_space<vmem>>, vector<2x128xf32>
    %456 = arith.truncf %455 : vector<2x128xf32> to vector<2x128xbf16>
    %c0_494 = arith.constant 0 : index
    %c1536_495 = arith.constant 1536 : index
    %457 = vector.load %arg13[%c0_494, %c1536_495] : memref<8x2048xbf16, #tpu.memory_space<vmem>>, vector<2x128xbf16>
    tpu.vector_store %arg13[%c0_494, %c1536_495], %456 {strides = array<i32>} : memref<8x2048xbf16, #tpu.memory_space<vmem>>, vector<2x128xbf16>,
    %c25_496 = arith.constant 25 : index
    %c0_497 = arith.constant 0 : index
    %458 = tpu.strided_load %arg10[%c25_496, %c0_497] {strides = array<i32: 2, 1>} : memref<128x128xf32, #tpu.memory_space<vmem>>, vector<2x128xf32>
    %459 = arith.truncf %458 : vector<2x128xf32> to vector<2x128xbf16>
    %c0_498 = arith.constant 0 : index
    %c1664_499 = arith.constant 1664 : index
    %460 = vector.load %arg13[%c0_498, %c1664_499] : memref<8x2048xbf16, #tpu.memory_space<vmem>>, vector<2x128xbf16>
    tpu.vector_store %arg13[%c0_498, %c1664_499], %459 {strides = array<i32>} : memref<8x2048xbf16, #tpu.memory_space<vmem>>, vector<2x128xbf16>,
    %c26 = arith.constant 26 : index
    %c0_500 = arith.constant 0 : index
    %461 = tpu.strided_load %arg10[%c26, %c0_500] {strides = array<i32: 2, 1>} : memref<128x128xf32, #tpu.memory_space<vmem>>, vector<2x128xf32>
    %462 = arith.truncf %461 : vector<2x128xf32> to vector<2x128xbf16>
    %c0_501 = arith.constant 0 : index
    %c1792_502 = arith.constant 1792 : index
    %463 = vector.load %arg13[%c0_501, %c1792_502] : memref<8x2048xbf16, #tpu.memory_space<vmem>>, vector<2x128xbf16>
    tpu.vector_store %arg13[%c0_501, %c1792_502], %462 {strides = array<i32>} : memref<8x2048xbf16, #tpu.memory_space<vmem>>, vector<2x128xbf16>,
    %c27 = arith.constant 27 : index
    %c0_503 = arith.constant 0 : index
    %464 = tpu.strided_load %arg10[%c27, %c0_503] {strides = array<i32: 2, 1>} : memref<128x128xf32, #tpu.memory_space<vmem>>, vector<2x128xf32>
    %465 = arith.truncf %464 : vector<2x128xf32> to vector<2x128xbf16>
    %c0_504 = arith.constant 0 : index
    %c1920_505 = arith.constant 1920 : index
    %466 = vector.load %arg13[%c0_504, %c1920_505] : memref<8x2048xbf16, #tpu.memory_space<vmem>>, vector<2x128xbf16>
    tpu.vector_store %arg13[%c0_504, %c1920_505], %465 {strides = array<i32>} : memref<8x2048xbf16, #tpu.memory_space<vmem>>, vector<2x128xbf16>,
    %c16_506 = arith.constant 16 : index
    %c0_507 = arith.constant 0 : index
    %467 = tpu.strided_load %arg10[%c16_506, %c0_507] {strides = array<i32: 2, 1>} : memref<128x128xf32, #tpu.memory_space<vmem>>, vector<2x128xf32>
    %468 = arith.truncf %467 : vector<2x128xf32> to vector<2x128xbf16>
    %c2_508 = arith.constant 2 : index
    %c0_509 = arith.constant 0 : index
    %469 = vector.load %arg13[%c2_508, %c0_509] : memref<8x2048xbf16, #tpu.memory_space<vmem>>, vector<2x128xbf16>
    tpu.vector_store %arg13[%c2_508, %c0_509], %468 {strides = array<i32>} : memref<8x2048xbf16, #tpu.memory_space<vmem>>, vector<2x128xbf16>,
    %c17_510 = arith.constant 17 : index
    %c0_511 = arith.constant 0 : index
    %470 = tpu.strided_load %arg10[%c17_510, %c0_511] {strides = array<i32: 2, 1>} : memref<128x128xf32, #tpu.memory_space<vmem>>, vector<2x128xf32>
    %471 = arith.truncf %470 : vector<2x128xf32> to vector<2x128xbf16>
    %c2_512 = arith.constant 2 : index
    %c128_513 = arith.constant 128 : index
    %472 = vector.load %arg13[%c2_512, %c128_513] : memref<8x2048xbf16, #tpu.memory_space<vmem>>, vector<2x128xbf16>
    tpu.vector_store %arg13[%c2_512, %c128_513], %471 {strides = array<i32>} : memref<8x2048xbf16, #tpu.memory_space<vmem>>, vector<2x128xbf16>,
    %c18_514 = arith.constant 18 : index
    %c0_515 = arith.constant 0 : index
    %473 = tpu.strided_load %arg10[%c18_514, %c0_515] {strides = array<i32: 2, 1>} : memref<128x128xf32, #tpu.memory_space<vmem>>, vector<2x128xf32>
    %474 = arith.truncf %473 : vector<2x128xf32> to vector<2x128xbf16>
    %c2_516 = arith.constant 2 : index
    %c256_517 = arith.constant 256 : index
    %475 = vector.load %arg13[%c2_516, %c256_517] : memref<8x2048xbf16, #tpu.memory_space<vmem>>, vector<2x128xbf16>
    tpu.vector_store %arg13[%c2_516, %c256_517], %474 {strides = array<i32>} : memref<8x2048xbf16, #tpu.memory_space<vmem>>, vector<2x128xbf16>,
    %c19_518 = arith.constant 19 : index
    %c0_519 = arith.constant 0 : index
    %476 = tpu.strided_load %arg10[%c19_518, %c0_519] {strides = array<i32: 2, 1>} : memref<128x128xf32, #tpu.memory_space<vmem>>, vector<2x128xf32>
    %477 = arith.truncf %476 : vector<2x128xf32> to vector<2x128xbf16>
    %c2_520 = arith.constant 2 : index
    %c384_521 = arith.constant 384 : index
    %478 = vector.load %arg13[%c2_520, %c384_521] : memref<8x2048xbf16, #tpu.memory_space<vmem>>, vector<2x128xbf16>
    tpu.vector_store %arg13[%c2_520, %c384_521], %477 {strides = array<i32>} : memref<8x2048xbf16, #tpu.memory_space<vmem>>, vector<2x128xbf16>,
    %c24_522 = arith.constant 24 : index
    %c0_523 = arith.constant 0 : index
    %479 = tpu.strided_load %arg10[%c24_522, %c0_523] {strides = array<i32: 2, 1>} : memref<128x128xf32, #tpu.memory_space<vmem>>, vector<2x128xf32>
    %480 = arith.truncf %479 : vector<2x128xf32> to vector<2x128xbf16>
    %c2_524 = arith.constant 2 : index
    %c512_525 = arith.constant 512 : index
    %481 = vector.load %arg13[%c2_524, %c512_525] : memref<8x2048xbf16, #tpu.memory_space<vmem>>, vector<2x128xbf16>
    tpu.vector_store %arg13[%c2_524, %c512_525], %480 {strides = array<i32>} : memref<8x2048xbf16, #tpu.memory_space<vmem>>, vector<2x128xbf16>,
    %c25_526 = arith.constant 25 : index
    %c0_527 = arith.constant 0 : index
    %482 = tpu.strided_load %arg10[%c25_526, %c0_527] {strides = array<i32: 2, 1>} : memref<128x128xf32, #tpu.memory_space<vmem>>, vector<2x128xf32>
    %483 = arith.truncf %482 : vector<2x128xf32> to vector<2x128xbf16>
    %c2_528 = arith.constant 2 : index
    %c640_529 = arith.constant 640 : index
    %484 = vector.load %arg13[%c2_528, %c640_529] : memref<8x2048xbf16, #tpu.memory_space<vmem>>, vector<2x128xbf16>
    tpu.vector_store %arg13[%c2_528, %c640_529], %483 {strides = array<i32>} : memref<8x2048xbf16, #tpu.memory_space<vmem>>, vector<2x128xbf16>,
    %c26_530 = arith.constant 26 : index
    %c0_531 = arith.constant 0 : index
    %485 = tpu.strided_load %arg10[%c26_530, %c0_531] {strides = array<i32: 2, 1>} : memref<128x128xf32, #tpu.memory_space<vmem>>, vector<2x128xf32>
    %486 = arith.truncf %485 : vector<2x128xf32> to vector<2x128xbf16>
    %c2_532 = arith.constant 2 : index
    %c768_533 = arith.constant 768 : index
    %487 = vector.load %arg13[%c2_532, %c768_533] : memref<8x2048xbf16, #tpu.memory_space<vmem>>, vector<2x128xbf16>
    tpu.vector_store %arg13[%c2_532, %c768_533], %486 {strides = array<i32>} : memref<8x2048xbf16, #tpu.memory_space<vmem>>, vector<2x128xbf16>,
    %c27_534 = arith.constant 27 : index
    %c0_535 = arith.constant 0 : index
    %488 = tpu.strided_load %arg10[%c27_534, %c0_535] {strides = array<i32: 2, 1>} : memref<128x128xf32, #tpu.memory_space<vmem>>, vector<2x128xf32>
    %489 = arith.truncf %488 : vector<2x128xf32> to vector<2x128xbf16>
    %c2_536 = arith.constant 2 : index
    %c896_537 = arith.constant 896 : index
    %490 = vector.load %arg13[%c2_536, %c896_537] : memref<8x2048xbf16, #tpu.memory_space<vmem>>, vector<2x128xbf16>
    tpu.vector_store %arg13[%c2_536, %c896_537], %489 {strides = array<i32>} : memref<8x2048xbf16, #tpu.memory_space<vmem>>, vector<2x128xbf16>,
    %c32_538 = arith.constant 32 : index
    %c0_539 = arith.constant 0 : index
    %491 = tpu.strided_load %arg10[%c32_538, %c0_539] {strides = array<i32: 2, 1>} : memref<128x128xf32, #tpu.memory_space<vmem>>, vector<2x128xf32>
    %492 = arith.truncf %491 : vector<2x128xf32> to vector<2x128xbf16>
    %c2_540 = arith.constant 2 : index
    %c1024_541 = arith.constant 1024 : index
    %493 = vector.load %arg13[%c2_540, %c1024_541] : memref<8x2048xbf16, #tpu.memory_space<vmem>>, vector<2x128xbf16>
    tpu.vector_store %arg13[%c2_540, %c1024_541], %492 {strides = array<i32>} : memref<8x2048xbf16, #tpu.memory_space<vmem>>, vector<2x128xbf16>,
    %c33_542 = arith.constant 33 : index
    %c0_543 = arith.constant 0 : index
    %494 = tpu.strided_load %arg10[%c33_542, %c0_543] {strides = array<i32: 2, 1>} : memref<128x128xf32, #tpu.memory_space<vmem>>, vector<2x128xf32>
    %495 = arith.truncf %494 : vector<2x128xf32> to vector<2x128xbf16>
    %c2_544 = arith.constant 2 : index
    %c1152_545 = arith.constant 1152 : index
    %496 = vector.load %arg13[%c2_544, %c1152_545] : memref<8x2048xbf16, #tpu.memory_space<vmem>>, vector<2x128xbf16>
    tpu.vector_store %arg13[%c2_544, %c1152_545], %495 {strides = array<i32>} : memref<8x2048xbf16, #tpu.memory_space<vmem>>, vector<2x128xbf16>,
    %c34_546 = arith.constant 34 : index
    %c0_547 = arith.constant 0 : index
    %497 = tpu.strided_load %arg10[%c34_546, %c0_547] {strides = array<i32: 2, 1>} : memref<128x128xf32, #tpu.memory_space<vmem>>, vector<2x128xf32>
    %498 = arith.truncf %497 : vector<2x128xf32> to vector<2x128xbf16>
    %c2_548 = arith.constant 2 : index
    %c1280_549 = arith.constant 1280 : index
    %499 = vector.load %arg13[%c2_548, %c1280_549] : memref<8x2048xbf16, #tpu.memory_space<vmem>>, vector<2x128xbf16>
    tpu.vector_store %arg13[%c2_548, %c1280_549], %498 {strides = array<i32>} : memref<8x2048xbf16, #tpu.memory_space<vmem>>, vector<2x128xbf16>,
    %c35_550 = arith.constant 35 : index
    %c0_551 = arith.constant 0 : index
    %500 = tpu.strided_load %arg10[%c35_550, %c0_551] {strides = array<i32: 2, 1>} : memref<128x128xf32, #tpu.memory_space<vmem>>, vector<2x128xf32>
    %501 = arith.truncf %500 : vector<2x128xf32> to vector<2x128xbf16>
    %c2_552 = arith.constant 2 : index
    %c1408_553 = arith.constant 1408 : index
    %502 = vector.load %arg13[%c2_552, %c1408_553] : memref<8x2048xbf16, #tpu.memory_space<vmem>>, vector<2x128xbf16>
    tpu.vector_store %arg13[%c2_552, %c1408_553], %501 {strides = array<i32>} : memref<8x2048xbf16, #tpu.memory_space<vmem>>, vector<2x128xbf16>,
    %c40 = arith.constant 40 : index
    %c0_554 = arith.constant 0 : index
    %503 = tpu.strided_load %arg10[%c40, %c0_554] {strides = array<i32: 2, 1>} : memref<128x128xf32, #tpu.memory_space<vmem>>, vector<2x128xf32>
    %504 = arith.truncf %503 : vector<2x128xf32> to vector<2x128xbf16>
    %c2_555 = arith.constant 2 : index
    %c1536_556 = arith.constant 1536 : index
    %505 = vector.load %arg13[%c2_555, %c1536_556] : memref<8x2048xbf16, #tpu.memory_space<vmem>>, vector<2x128xbf16>
    tpu.vector_store %arg13[%c2_555, %c1536_556], %504 {strides = array<i32>} : memref<8x2048xbf16, #tpu.memory_space<vmem>>, vector<2x128xbf16>,
    %c41 = arith.constant 41 : index
    %c0_557 = arith.constant 0 : index
    %506 = tpu.strided_load %arg10[%c41, %c0_557] {strides = array<i32: 2, 1>} : memref<128x128xf32, #tpu.memory_space<vmem>>, vector<2x128xf32>
    %507 = arith.truncf %506 : vector<2x128xf32> to vector<2x128xbf16>
    %c2_558 = arith.constant 2 : index
    %c1664_559 = arith.constant 1664 : index
    %508 = vector.load %arg13[%c2_558, %c1664_559] : memref<8x2048xbf16, #tpu.memory_space<vmem>>, vector<2x128xbf16>
    tpu.vector_store %arg13[%c2_558, %c1664_559], %507 {strides = array<i32>} : memref<8x2048xbf16, #tpu.memory_space<vmem>>, vector<2x128xbf16>,
    %c42 = arith.constant 42 : index
    %c0_560 = arith.constant 0 : index
    %509 = tpu.strided_load %arg10[%c42, %c0_560] {strides = array<i32: 2, 1>} : memref<128x128xf32, #tpu.memory_space<vmem>>, vector<2x128xf32>
    %510 = arith.truncf %509 : vector<2x128xf32> to vector<2x128xbf16>
    %c2_561 = arith.constant 2 : index
    %c1792_562 = arith.constant 1792 : index
    %511 = vector.load %arg13[%c2_561, %c1792_562] : memref<8x2048xbf16, #tpu.memory_space<vmem>>, vector<2x128xbf16>
    tpu.vector_store %arg13[%c2_561, %c1792_562], %510 {strides = array<i32>} : memref<8x2048xbf16, #tpu.memory_space<vmem>>, vector<2x128xbf16>,
    %c43 = arith.constant 43 : index
    %c0_563 = arith.constant 0 : index
    %512 = tpu.strided_load %arg10[%c43, %c0_563] {strides = array<i32: 2, 1>} : memref<128x128xf32, #tpu.memory_space<vmem>>, vector<2x128xf32>
    %513 = arith.truncf %512 : vector<2x128xf32> to vector<2x128xbf16>
    %c2_564 = arith.constant 2 : index
    %c1920_565 = arith.constant 1920 : index
    %514 = vector.load %arg13[%c2_564, %c1920_565] : memref<8x2048xbf16, #tpu.memory_space<vmem>>, vector<2x128xbf16>
    tpu.vector_store %arg13[%c2_564, %c1920_565], %513 {strides = array<i32>} : memref<8x2048xbf16, #tpu.memory_space<vmem>>, vector<2x128xbf16>,
    %c64_566 = arith.constant 64 : index
    %c0_567 = arith.constant 0 : index
    %515 = tpu.strided_load %arg10[%c64_566, %c0_567] {strides = array<i32: 2, 1>} : memref<128x128xf32, #tpu.memory_space<vmem>>, vector<2x128xf32>
    %516 = arith.truncf %515 : vector<2x128xf32> to vector<2x128xbf16>
    %c4_568 = arith.constant 4 : index
    %c0_569 = arith.constant 0 : index
    %517 = vector.load %arg13[%c4_568, %c0_569] : memref<8x2048xbf16, #tpu.memory_space<vmem>>, vector<2x128xbf16>
    tpu.vector_store %arg13[%c4_568, %c0_569], %516 {strides = array<i32>} : memref<8x2048xbf16, #tpu.memory_space<vmem>>, vector<2x128xbf16>,
    %c65_570 = arith.constant 65 : index
    %c0_571 = arith.constant 0 : index
    %518 = tpu.strided_load %arg10[%c65_570, %c0_571] {strides = array<i32: 2, 1>} : memref<128x128xf32, #tpu.memory_space<vmem>>, vector<2x128xf32>
    %519 = arith.truncf %518 : vector<2x128xf32> to vector<2x128xbf16>
    %c4_572 = arith.constant 4 : index
    %c128_573 = arith.constant 128 : index
    %520 = vector.load %arg13[%c4_572, %c128_573] : memref<8x2048xbf16, #tpu.memory_space<vmem>>, vector<2x128xbf16>
    tpu.vector_store %arg13[%c4_572, %c128_573], %519 {strides = array<i32>} : memref<8x2048xbf16, #tpu.memory_space<vmem>>, vector<2x128xbf16>,
    %c66_574 = arith.constant 66 : index
    %c0_575 = arith.constant 0 : index
    %521 = tpu.strided_load %arg10[%c66_574, %c0_575] {strides = array<i32: 2, 1>} : memref<128x128xf32, #tpu.memory_space<vmem>>, vector<2x128xf32>
    %522 = arith.truncf %521 : vector<2x128xf32> to vector<2x128xbf16>
    %c4_576 = arith.constant 4 : index
    %c256_577 = arith.constant 256 : index
    %523 = vector.load %arg13[%c4_576, %c256_577] : memref<8x2048xbf16, #tpu.memory_space<vmem>>, vector<2x128xbf16>
    tpu.vector_store %arg13[%c4_576, %c256_577], %522 {strides = array<i32>} : memref<8x2048xbf16, #tpu.memory_space<vmem>>, vector<2x128xbf16>,
    %c67_578 = arith.constant 67 : index
    %c0_579 = arith.constant 0 : index
    %524 = tpu.strided_load %arg10[%c67_578, %c0_579] {strides = array<i32: 2, 1>} : memref<128x128xf32, #tpu.memory_space<vmem>>, vector<2x128xf32>
    %525 = arith.truncf %524 : vector<2x128xf32> to vector<2x128xbf16>
    %c4_580 = arith.constant 4 : index
    %c384_581 = arith.constant 384 : index
    %526 = vector.load %arg13[%c4_580, %c384_581] : memref<8x2048xbf16, #tpu.memory_space<vmem>>, vector<2x128xbf16>
    tpu.vector_store %arg13[%c4_580, %c384_581], %525 {strides = array<i32>} : memref<8x2048xbf16, #tpu.memory_space<vmem>>, vector<2x128xbf16>,
    %c72 = arith.constant 72 : index
    %c0_582 = arith.constant 0 : index
    %527 = tpu.strided_load %arg10[%c72, %c0_582] {strides = array<i32: 2, 1>} : memref<128x128xf32, #tpu.memory_space<vmem>>, vector<2x128xf32>
    %528 = arith.truncf %527 : vector<2x128xf32> to vector<2x128xbf16>
    %c4_583 = arith.constant 4 : index
    %c512_584 = arith.constant 512 : index
    %529 = vector.load %arg13[%c4_583, %c512_584] : memref<8x2048xbf16, #tpu.memory_space<vmem>>, vector<2x128xbf16>
    tpu.vector_store %arg13[%c4_583, %c512_584], %528 {strides = array<i32>} : memref<8x2048xbf16, #tpu.memory_space<vmem>>, vector<2x128xbf16>,
    %c73_585 = arith.constant 73 : index
    %c0_586 = arith.constant 0 : index
    %530 = tpu.strided_load %arg10[%c73_585, %c0_586] {strides = array<i32: 2, 1>} : memref<128x128xf32, #tpu.memory_space<vmem>>, vector<2x128xf32>
    %531 = arith.truncf %530 : vector<2x128xf32> to vector<2x128xbf16>
    %c4_587 = arith.constant 4 : index
    %c640_588 = arith.constant 640 : index
    %532 = vector.load %arg13[%c4_587, %c640_588] : memref<8x2048xbf16, #tpu.memory_space<vmem>>, vector<2x128xbf16>
    tpu.vector_store %arg13[%c4_587, %c640_588], %531 {strides = array<i32>} : memref<8x2048xbf16, #tpu.memory_space<vmem>>, vector<2x128xbf16>,
    %c74 = arith.constant 74 : index
    %c0_589 = arith.constant 0 : index
    %533 = tpu.strided_load %arg10[%c74, %c0_589] {strides = array<i32: 2, 1>} : memref<128x128xf32, #tpu.memory_space<vmem>>, vector<2x128xf32>
    %534 = arith.truncf %533 : vector<2x128xf32> to vector<2x128xbf16>
    %c4_590 = arith.constant 4 : index
    %c768_591 = arith.constant 768 : index
    %535 = vector.load %arg13[%c4_590, %c768_591] : memref<8x2048xbf16, #tpu.memory_space<vmem>>, vector<2x128xbf16>
    tpu.vector_store %arg13[%c4_590, %c768_591], %534 {strides = array<i32>} : memref<8x2048xbf16, #tpu.memory_space<vmem>>, vector<2x128xbf16>,
    %c75 = arith.constant 75 : index
    %c0_592 = arith.constant 0 : index
    %536 = tpu.strided_load %arg10[%c75, %c0_592] {strides = array<i32: 2, 1>} : memref<128x128xf32, #tpu.memory_space<vmem>>, vector<2x128xf32>
    %537 = arith.truncf %536 : vector<2x128xf32> to vector<2x128xbf16>
    %c4_593 = arith.constant 4 : index
    %c896_594 = arith.constant 896 : index
    %538 = vector.load %arg13[%c4_593, %c896_594] : memref<8x2048xbf16, #tpu.memory_space<vmem>>, vector<2x128xbf16>
    tpu.vector_store %arg13[%c4_593, %c896_594], %537 {strides = array<i32>} : memref<8x2048xbf16, #tpu.memory_space<vmem>>, vector<2x128xbf16>,
    %c80_595 = arith.constant 80 : index
    %c0_596 = arith.constant 0 : index
    %539 = tpu.strided_load %arg10[%c80_595, %c0_596] {strides = array<i32: 2, 1>} : memref<128x128xf32, #tpu.memory_space<vmem>>, vector<2x128xf32>
    %540 = arith.truncf %539 : vector<2x128xf32> to vector<2x128xbf16>
    %c4_597 = arith.constant 4 : index
    %c1024_598 = arith.constant 1024 : index
    %541 = vector.load %arg13[%c4_597, %c1024_598] : memref<8x2048xbf16, #tpu.memory_space<vmem>>, vector<2x128xbf16>
    tpu.vector_store %arg13[%c4_597, %c1024_598], %540 {strides = array<i32>} : memref<8x2048xbf16, #tpu.memory_space<vmem>>, vector<2x128xbf16>,
    %c81_599 = arith.constant 81 : index
    %c0_600 = arith.constant 0 : index
    %542 = tpu.strided_load %arg10[%c81_599, %c0_600] {strides = array<i32: 2, 1>} : memref<128x128xf32, #tpu.memory_space<vmem>>, vector<2x128xf32>
    %543 = arith.truncf %542 : vector<2x128xf32> to vector<2x128xbf16>
    %c4_601 = arith.constant 4 : index
    %c1152_602 = arith.constant 1152 : index
    %544 = vector.load %arg13[%c4_601, %c1152_602] : memref<8x2048xbf16, #tpu.memory_space<vmem>>, vector<2x128xbf16>
    tpu.vector_store %arg13[%c4_601, %c1152_602], %543 {strides = array<i32>} : memref<8x2048xbf16, #tpu.memory_space<vmem>>, vector<2x128xbf16>,
    %c82_603 = arith.constant 82 : index
    %c0_604 = arith.constant 0 : index
    %545 = tpu.strided_load %arg10[%c82_603, %c0_604] {strides = array<i32: 2, 1>} : memref<128x128xf32, #tpu.memory_space<vmem>>, vector<2x128xf32>
    %546 = arith.truncf %545 : vector<2x128xf32> to vector<2x128xbf16>
    %c4_605 = arith.constant 4 : index
    %c1280_606 = arith.constant 1280 : index
    %547 = vector.load %arg13[%c4_605, %c1280_606] : memref<8x2048xbf16, #tpu.memory_space<vmem>>, vector<2x128xbf16>
    tpu.vector_store %arg13[%c4_605, %c1280_606], %546 {strides = array<i32>} : memref<8x2048xbf16, #tpu.memory_space<vmem>>, vector<2x128xbf16>,
    %c83_607 = arith.constant 83 : index
    %c0_608 = arith.constant 0 : index
    %548 = tpu.strided_load %arg10[%c83_607, %c0_608] {strides = array<i32: 2, 1>} : memref<128x128xf32, #tpu.memory_space<vmem>>, vector<2x128xf32>
    %549 = arith.truncf %548 : vector<2x128xf32> to vector<2x128xbf16>
    %c4_609 = arith.constant 4 : index
    %c1408_610 = arith.constant 1408 : index
    %550 = vector.load %arg13[%c4_609, %c1408_610] : memref<8x2048xbf16, #tpu.memory_space<vmem>>, vector<2x128xbf16>
    tpu.vector_store %arg13[%c4_609, %c1408_610], %549 {strides = array<i32>} : memref<8x2048xbf16, #tpu.memory_space<vmem>>, vector<2x128xbf16>,
    %c88 = arith.constant 88 : index
    %c0_611 = arith.constant 0 : index
    %551 = tpu.strided_load %arg10[%c88, %c0_611] {strides = array<i32: 2, 1>} : memref<128x128xf32, #tpu.memory_space<vmem>>, vector<2x128xf32>
    %552 = arith.truncf %551 : vector<2x128xf32> to vector<2x128xbf16>
    %c4_612 = arith.constant 4 : index
    %c1536_613 = arith.constant 1536 : index
    %553 = vector.load %arg13[%c4_612, %c1536_613] : memref<8x2048xbf16, #tpu.memory_space<vmem>>, vector<2x128xbf16>
    tpu.vector_store %arg13[%c4_612, %c1536_613], %552 {strides = array<i32>} : memref<8x2048xbf16, #tpu.memory_space<vmem>>, vector<2x128xbf16>,
    %c89_614 = arith.constant 89 : index
    %c0_615 = arith.constant 0 : index
    %554 = tpu.strided_load %arg10[%c89_614, %c0_615] {strides = array<i32: 2, 1>} : memref<128x128xf32, #tpu.memory_space<vmem>>, vector<2x128xf32>
    %555 = arith.truncf %554 : vector<2x128xf32> to vector<2x128xbf16>
    %c4_616 = arith.constant 4 : index
    %c1664_617 = arith.constant 1664 : index
    %556 = vector.load %arg13[%c4_616, %c1664_617] : memref<8x2048xbf16, #tpu.memory_space<vmem>>, vector<2x128xbf16>
    tpu.vector_store %arg13[%c4_616, %c1664_617], %555 {strides = array<i32>} : memref<8x2048xbf16, #tpu.memory_space<vmem>>, vector<2x128xbf16>,
    %c90 = arith.constant 90 : index
    %c0_618 = arith.constant 0 : index
    %557 = tpu.strided_load %arg10[%c90, %c0_618] {strides = array<i32: 2, 1>} : memref<128x128xf32, #tpu.memory_space<vmem>>, vector<2x128xf32>
    %558 = arith.truncf %557 : vector<2x128xf32> to vector<2x128xbf16>
    %c4_619 = arith.constant 4 : index
    %c1792_620 = arith.constant 1792 : index
    %559 = vector.load %arg13[%c4_619, %c1792_620] : memref<8x2048xbf16, #tpu.memory_space<vmem>>, vector<2x128xbf16>
    tpu.vector_store %arg13[%c4_619, %c1792_620], %558 {strides = array<i32>} : memref<8x2048xbf16, #tpu.memory_space<vmem>>, vector<2x128xbf16>,
    %c91 = arith.constant 91 : index
    %c0_621 = arith.constant 0 : index
    %560 = tpu.strided_load %arg10[%c91, %c0_621] {strides = array<i32: 2, 1>} : memref<128x128xf32, #tpu.memory_space<vmem>>, vector<2x128xf32>
    %561 = arith.truncf %560 : vector<2x128xf32> to vector<2x128xbf16>
    %c4_622 = arith.constant 4 : index
    %c1920_623 = arith.constant 1920 : index
    %562 = vector.load %arg13[%c4_622, %c1920_623] : memref<8x2048xbf16, #tpu.memory_space<vmem>>, vector<2x128xbf16>
    tpu.vector_store %arg13[%c4_622, %c1920_623], %561 {strides = array<i32>} : memref<8x2048xbf16, #tpu.memory_space<vmem>>, vector<2x128xbf16>,
    %c80_624 = arith.constant 80 : index
    %c0_625 = arith.constant 0 : index
    %563 = tpu.strided_load %arg10[%c80_624, %c0_625] {strides = array<i32: 2, 1>} : memref<128x128xf32, #tpu.memory_space<vmem>>, vector<2x128xf32>
    %564 = arith.truncf %563 : vector<2x128xf32> to vector<2x128xbf16>
    %c6 = arith.constant 6 : index
    %c0_626 = arith.constant 0 : index
    %565 = vector.load %arg13[%c6, %c0_626] : memref<8x2048xbf16, #tpu.memory_space<vmem>>, vector<2x128xbf16>
    tpu.vector_store %arg13[%c6, %c0_626], %564 {strides = array<i32>} : memref<8x2048xbf16, #tpu.memory_space<vmem>>, vector<2x128xbf16>,
    %c81_627 = arith.constant 81 : index
    %c0_628 = arith.constant 0 : index
    %566 = tpu.strided_load %arg10[%c81_627, %c0_628] {strides = array<i32: 2, 1>} : memref<128x128xf32, #tpu.memory_space<vmem>>, vector<2x128xf32>
    %567 = arith.truncf %566 : vector<2x128xf32> to vector<2x128xbf16>
    %c6_629 = arith.constant 6 : index
    %c128_630 = arith.constant 128 : index
    %568 = vector.load %arg13[%c6_629, %c128_630] : memref<8x2048xbf16, #tpu.memory_space<vmem>>, vector<2x128xbf16>
    tpu.vector_store %arg13[%c6_629, %c128_630], %567 {strides = array<i32>} : memref<8x2048xbf16, #tpu.memory_space<vmem>>, vector<2x128xbf16>,
    %c82_631 = arith.constant 82 : index
    %c0_632 = arith.constant 0 : index
    %569 = tpu.strided_load %arg10[%c82_631, %c0_632] {strides = array<i32: 2, 1>} : memref<128x128xf32, #tpu.memory_space<vmem>>, vector<2x128xf32>
    %570 = arith.truncf %569 : vector<2x128xf32> to vector<2x128xbf16>
    %c6_633 = arith.constant 6 : index
    %c256_634 = arith.constant 256 : index
    %571 = vector.load %arg13[%c6_633, %c256_634] : memref<8x2048xbf16, #tpu.memory_space<vmem>>, vector<2x128xbf16>
    tpu.vector_store %arg13[%c6_633, %c256_634], %570 {strides = array<i32>} : memref<8x2048xbf16, #tpu.memory_space<vmem>>, vector<2x128xbf16>,
    %c83_635 = arith.constant 83 : index
    %c0_636 = arith.constant 0 : index
    %572 = tpu.strided_load %arg10[%c83_635, %c0_636] {strides = array<i32: 2, 1>} : memref<128x128xf32, #tpu.memory_space<vmem>>, vector<2x128xf32>
    %573 = arith.truncf %572 : vector<2x128xf32> to vector<2x128xbf16>
    %c6_637 = arith.constant 6 : index
    %c384_638 = arith.constant 384 : index
    %574 = vector.load %arg13[%c6_637, %c384_638] : memref<8x2048xbf16, #tpu.memory_space<vmem>>, vector<2x128xbf16>
    tpu.vector_store %arg13[%c6_637, %c384_638], %573 {strides = array<i32>} : memref<8x2048xbf16, #tpu.memory_space<vmem>>, vector<2x128xbf16>,
    %c88_639 = arith.constant 88 : index
    %c0_640 = arith.constant 0 : index
    %575 = tpu.strided_load %arg10[%c88_639, %c0_640] {strides = array<i32: 2, 1>} : memref<128x128xf32, #tpu.memory_space<vmem>>, vector<2x128xf32>
    %576 = arith.truncf %575 : vector<2x128xf32> to vector<2x128xbf16>
    %c6_641 = arith.constant 6 : index
    %c512_642 = arith.constant 512 : index
    %577 = vector.load %arg13[%c6_641, %c512_642] : memref<8x2048xbf16, #tpu.memory_space<vmem>>, vector<2x128xbf16>
    tpu.vector_store %arg13[%c6_641, %c512_642], %576 {strides = array<i32>} : memref<8x2048xbf16, #tpu.memory_space<vmem>>, vector<2x128xbf16>,
    %c89_643 = arith.constant 89 : index
    %c0_644 = arith.constant 0 : index
    %578 = tpu.strided_load %arg10[%c89_643, %c0_644] {strides = array<i32: 2, 1>} : memref<128x128xf32, #tpu.memory_space<vmem>>, vector<2x128xf32>
    %579 = arith.truncf %578 : vector<2x128xf32> to vector<2x128xbf16>
    %c6_645 = arith.constant 6 : index
    %c640_646 = arith.constant 640 : index
    %580 = vector.load %arg13[%c6_645, %c640_646] : memref<8x2048xbf16, #tpu.memory_space<vmem>>, vector<2x128xbf16>
    tpu.vector_store %arg13[%c6_645, %c640_646], %579 {strides = array<i32>} : memref<8x2048xbf16, #tpu.memory_space<vmem>>, vector<2x128xbf16>,
    %c90_647 = arith.constant 90 : index
    %c0_648 = arith.constant 0 : index
    %581 = tpu.strided_load %arg10[%c90_647, %c0_648] {strides = array<i32: 2, 1>} : memref<128x128xf32, #tpu.memory_space<vmem>>, vector<2x128xf32>
    %582 = arith.truncf %581 : vector<2x128xf32> to vector<2x128xbf16>
    %c6_649 = arith.constant 6 : index
    %c768_650 = arith.constant 768 : index
    %583 = vector.load %arg13[%c6_649, %c768_650] : memref<8x2048xbf16, #tpu.memory_space<vmem>>, vector<2x128xbf16>
    tpu.vector_store %arg13[%c6_649, %c768_650], %582 {strides = array<i32>} : memref<8x2048xbf16, #tpu.memory_space<vmem>>, vector<2x128xbf16>,
    %c91_651 = arith.constant 91 : index
    %c0_652 = arith.constant 0 : index
    %584 = tpu.strided_load %arg10[%c91_651, %c0_652] {strides = array<i32: 2, 1>} : memref<128x128xf32, #tpu.memory_space<vmem>>, vector<2x128xf32>
    %585 = arith.truncf %584 : vector<2x128xf32> to vector<2x128xbf16>
    %c6_653 = arith.constant 6 : index
    %c896_654 = arith.constant 896 : index
    %586 = vector.load %arg13[%c6_653, %c896_654] : memref<8x2048xbf16, #tpu.memory_space<vmem>>, vector<2x128xbf16>
    tpu.vector_store %arg13[%c6_653, %c896_654], %585 {strides = array<i32>} : memref<8x2048xbf16, #tpu.memory_space<vmem>>, vector<2x128xbf16>,
    %c96_655 = arith.constant 96 : index
    %c0_656 = arith.constant 0 : index
    %587 = tpu.strided_load %arg10[%c96_655, %c0_656] {strides = array<i32: 2, 1>} : memref<128x128xf32, #tpu.memory_space<vmem>>, vector<2x128xf32>
    %588 = arith.truncf %587 : vector<2x128xf32> to vector<2x128xbf16>
    %c6_657 = arith.constant 6 : index
    %c1024_658 = arith.constant 1024 : index
    %589 = vector.load %arg13[%c6_657, %c1024_658] : memref<8x2048xbf16, #tpu.memory_space<vmem>>, vector<2x128xbf16>
    tpu.vector_store %arg13[%c6_657, %c1024_658], %588 {strides = array<i32>} : memref<8x2048xbf16, #tpu.memory_space<vmem>>, vector<2x128xbf16>,
    %c97_659 = arith.constant 97 : index
    %c0_660 = arith.constant 0 : index
    %590 = tpu.strided_load %arg10[%c97_659, %c0_660] {strides = array<i32: 2, 1>} : memref<128x128xf32, #tpu.memory_space<vmem>>, vector<2x128xf32>
    %591 = arith.truncf %590 : vector<2x128xf32> to vector<2x128xbf16>
    %c6_661 = arith.constant 6 : index
    %c1152_662 = arith.constant 1152 : index
    %592 = vector.load %arg13[%c6_661, %c1152_662] : memref<8x2048xbf16, #tpu.memory_space<vmem>>, vector<2x128xbf16>
    tpu.vector_store %arg13[%c6_661, %c1152_662], %591 {strides = array<i32>} : memref<8x2048xbf16, #tpu.memory_space<vmem>>, vector<2x128xbf16>,
    %c98_663 = arith.constant 98 : index
    %c0_664 = arith.constant 0 : index
    %593 = tpu.strided_load %arg10[%c98_663, %c0_664] {strides = array<i32: 2, 1>} : memref<128x128xf32, #tpu.memory_space<vmem>>, vector<2x128xf32>
    %594 = arith.truncf %593 : vector<2x128xf32> to vector<2x128xbf16>
    %c6_665 = arith.constant 6 : index
    %c1280_666 = arith.constant 1280 : index
    %595 = vector.load %arg13[%c6_665, %c1280_666] : memref<8x2048xbf16, #tpu.memory_space<vmem>>, vector<2x128xbf16>
    tpu.vector_store %arg13[%c6_665, %c1280_666], %594 {strides = array<i32>} : memref<8x2048xbf16, #tpu.memory_space<vmem>>, vector<2x128xbf16>,
    %c99_667 = arith.constant 99 : index
    %c0_668 = arith.constant 0 : index
    %596 = tpu.strided_load %arg10[%c99_667, %c0_668] {strides = array<i32: 2, 1>} : memref<128x128xf32, #tpu.memory_space<vmem>>, vector<2x128xf32>
    %597 = arith.truncf %596 : vector<2x128xf32> to vector<2x128xbf16>
    %c6_669 = arith.constant 6 : index
    %c1408_670 = arith.constant 1408 : index
    %598 = vector.load %arg13[%c6_669, %c1408_670] : memref<8x2048xbf16, #tpu.memory_space<vmem>>, vector<2x128xbf16>
    tpu.vector_store %arg13[%c6_669, %c1408_670], %597 {strides = array<i32>} : memref<8x2048xbf16, #tpu.memory_space<vmem>>, vector<2x128xbf16>,
    %c104 = arith.constant 104 : index
    %c0_671 = arith.constant 0 : index
    %599 = tpu.strided_load %arg10[%c104, %c0_671] {strides = array<i32: 2, 1>} : memref<128x128xf32, #tpu.memory_space<vmem>>, vector<2x128xf32>
    %600 = arith.truncf %599 : vector<2x128xf32> to vector<2x128xbf16>
    %c6_672 = arith.constant 6 : index
    %c1536_673 = arith.constant 1536 : index
    %601 = vector.load %arg13[%c6_672, %c1536_673] : memref<8x2048xbf16, #tpu.memory_space<vmem>>, vector<2x128xbf16>
    tpu.vector_store %arg13[%c6_672, %c1536_673], %600 {strides = array<i32>} : memref<8x2048xbf16, #tpu.memory_space<vmem>>, vector<2x128xbf16>,
    %c105 = arith.constant 105 : index
    %c0_674 = arith.constant 0 : index
    %602 = tpu.strided_load %arg10[%c105, %c0_674] {strides = array<i32: 2, 1>} : memref<128x128xf32, #tpu.memory_space<vmem>>, vector<2x128xf32>
    %603 = arith.truncf %602 : vector<2x128xf32> to vector<2x128xbf16>
    %c6_675 = arith.constant 6 : index
    %c1664_676 = arith.constant 1664 : index
    %604 = vector.load %arg13[%c6_675, %c1664_676] : memref<8x2048xbf16, #tpu.memory_space<vmem>>, vector<2x128xbf16>
    tpu.vector_store %arg13[%c6_675, %c1664_676], %603 {strides = array<i32>} : memref<8x2048xbf16, #tpu.memory_space<vmem>>, vector<2x128xbf16>,
    %c106 = arith.constant 106 : index
    %c0_677 = arith.constant 0 : index
    %605 = tpu.strided_load %arg10[%c106, %c0_677] {strides = array<i32: 2, 1>} : memref<128x128xf32, #tpu.memory_space<vmem>>, vector<2x128xf32>
    %606 = arith.truncf %605 : vector<2x128xf32> to vector<2x128xbf16>
    %c6_678 = arith.constant 6 : index
    %c1792_679 = arith.constant 1792 : index
    %607 = vector.load %arg13[%c6_678, %c1792_679] : memref<8x2048xbf16, #tpu.memory_space<vmem>>, vector<2x128xbf16>
    tpu.vector_store %arg13[%c6_678, %c1792_679], %606 {strides = array<i32>} : memref<8x2048xbf16, #tpu.memory_space<vmem>>, vector<2x128xbf16>,
    %c107 = arith.constant 107 : index
    %c0_680 = arith.constant 0 : index
    %608 = tpu.strided_load %arg10[%c107, %c0_680] {strides = array<i32: 2, 1>} : memref<128x128xf32, #tpu.memory_space<vmem>>, vector<2x128xf32>
    %609 = arith.truncf %608 : vector<2x128xf32> to vector<2x128xbf16>
    %c6_681 = arith.constant 6 : index
    %c1920_682 = arith.constant 1920 : index
    %610 = vector.load %arg13[%c6_681, %c1920_682] : memref<8x2048xbf16, #tpu.memory_space<vmem>>, vector<2x128xbf16>
    tpu.vector_store %arg13[%c6_681, %c1920_682], %609 {strides = array<i32>} : memref<8x2048xbf16, #tpu.memory_space<vmem>>, vector<2x128xbf16>,
    %c0_683 = arith.constant 0 : index
    %c0_684 = arith.constant 0 : index
    %611 = vector.load %arg13[%c0_683, %c0_684] : memref<8x2048xbf16, #tpu.memory_space<vmem>>, vector<8x2048xbf16>
    %c0_685 = arith.constant 0 : index
    %c0_686 = arith.constant 0 : index
    %612 = vector.load %arg4[%c0_685, %c0_686] : memref<2048x128xbf16, #tpu.memory_space<vmem>>, vector<2048x128xbf16>
    %cst_687 = arith.constant dense<0.000000e+00> : vector<8x128xf32>
    %613 = tpu.matmul %611, %612, %cst_687 {dimension_numbers = #tpu.dot_dimension_numbers<[1], [0], [0], [1], [0, 0, 1, 1], [], []>} : vector<8x2048xbf16>, vector<2048x128xbf16>, vector<8x128xf32> -> vector<8x128xf32>
    %c0_688 = arith.constant 0 : index
    %c0_689 = arith.constant 0 : index
    %614 = vector.load %arg5[%c0_688, %c0_689] : memref<1x128xf32, #tpu.memory_space<vmem>>, vector<1x128xf32>
    %615 = vector.broadcast %614 : vector<1x128xf32> to vector<8x128xf32>
    %616 = arith.addf %613, %615 : vector<8x128xf32>
    %cst_690 = arith.constant 0.000000e+00 : f32
    %617 = vector.broadcast %cst_690 : f32 to vector<8x128xf32>
    %618 = arith.cmpf oge, %616, %617 : vector<8x128xf32>
    %cst_691 = arith.constant 0.00999999977 : f32
    %619 = vector.broadcast %cst_691 : f32 to vector<8x128xf32>
    %620 = arith.mulf %619, %616 : vector<8x128xf32>
    %621 = arith.select %618, %616, %620 : vector<8x128xi1>, vector<8x128xf32>
    %622 = vector.extract_strided_slice %621 {offsets = [0, 0], sizes = [2, 128], strides = [1, 1]} : vector<8x128xf32> to vector<2x128xf32>
    %c9_692 = arith.constant 9 : index
    %c0_693 = arith.constant 0 : index
    %623 = vector.load %arg11[%c9_692, %c0_693] : memref<128x128xf32, #tpu.memory_space<vmem>>, vector<2x128xf32>
    tpu.vector_store %arg11[%c9_692, %c0_693], %622 {strides = array<i32>} : memref<128x128xf32, #tpu.memory_space<vmem>>, vector<2x128xf32>,
    %624 = vector.extract_strided_slice %621 {offsets = [2, 0], sizes = [2, 128], strides = [1, 1]} : vector<8x128xf32> to vector<2x128xf32>
    %c17_694 = arith.constant 17 : index
    %c0_695 = arith.constant 0 : index
    %625 = vector.load %arg11[%c17_694, %c0_695] : memref<128x128xf32, #tpu.memory_space<vmem>>, vector<2x128xf32>
    tpu.vector_store %arg11[%c17_694, %c0_695], %624 {strides = array<i32>} : memref<128x128xf32, #tpu.memory_space<vmem>>, vector<2x128xf32>,
    %626 = vector.extract_strided_slice %621 {offsets = [4, 0], sizes = [2, 128], strides = [1, 1]} : vector<8x128xf32> to vector<2x128xf32>
    %c73_696 = arith.constant 73 : index
    %c0_697 = arith.constant 0 : index
    %627 = vector.load %arg11[%c73_696, %c0_697] : memref<128x128xf32, #tpu.memory_space<vmem>>, vector<2x128xf32>
    tpu.vector_store %arg11[%c73_696, %c0_697], %626 {strides = array<i32>} : memref<128x128xf32, #tpu.memory_space<vmem>>, vector<2x128xf32>,
    %628 = vector.extract_strided_slice %621 {offsets = [6, 0], sizes = [2, 128], strides = [1, 1]} : vector<8x128xf32> to vector<2x128xf32>
    %c81_698 = arith.constant 81 : index
    %c0_699 = arith.constant 0 : index
    %629 = vector.load %arg11[%c81_698, %c0_699] : memref<128x128xf32, #tpu.memory_space<vmem>>, vector<2x128xf32>
    tpu.vector_store %arg11[%c81_698, %c0_699], %628 {strides = array<i32>} : memref<128x128xf32, #tpu.memory_space<vmem>>, vector<2x128xf32>,
    %c0_700 = arith.constant 0 : index
    %c0_701 = arith.constant 0 : index
    %630 = vector.load %arg11[%c0_700, %c0_701] : memref<128x128xf32, #tpu.memory_space<vmem>>, vector<2x128xf32>
    %631 = arith.truncf %630 : vector<2x128xf32> to vector<2x128xbf16>
    %c0_702 = arith.constant 0 : index
    %c0_703 = arith.constant 0 : index
    %632 = vector.load %arg14[%c0_702, %c0_703] : memref<8x1152xbf16, #tpu.memory_space<vmem>>, vector<2x128xbf16>
    tpu.vector_store %arg14[%c0_702, %c0_703], %631 {strides = array<i32>} : memref<8x1152xbf16, #tpu.memory_space<vmem>>, vector<2x128xbf16>,
    %c1_704 = arith.constant 1 : index
    %c0_705 = arith.constant 0 : index
    %633 = vector.load %arg11[%c1_704, %c0_705] : memref<128x128xf32, #tpu.memory_space<vmem>>, vector<2x128xf32>
    %634 = arith.truncf %633 : vector<2x128xf32> to vector<2x128xbf16>
    %c0_706 = arith.constant 0 : index
    %c128_707 = arith.constant 128 : index
    %635 = vector.load %arg14[%c0_706, %c128_707] : memref<8x1152xbf16, #tpu.memory_space<vmem>>, vector<2x128xbf16>
    tpu.vector_store %arg14[%c0_706, %c128_707], %634 {strides = array<i32>} : memref<8x1152xbf16, #tpu.memory_space<vmem>>, vector<2x128xbf16>,
    %c2_708 = arith.constant 2 : index
    %c0_709 = arith.constant 0 : index
    %636 = vector.load %arg11[%c2_708, %c0_709] : memref<128x128xf32, #tpu.memory_space<vmem>>, vector<2x128xf32>
    %637 = arith.truncf %636 : vector<2x128xf32> to vector<2x128xbf16>
    %c0_710 = arith.constant 0 : index
    %c256_711 = arith.constant 256 : index
    %638 = vector.load %arg14[%c0_710, %c256_711] : memref<8x1152xbf16, #tpu.memory_space<vmem>>, vector<2x128xbf16>
    tpu.vector_store %arg14[%c0_710, %c256_711], %637 {strides = array<i32>} : memref<8x1152xbf16, #tpu.memory_space<vmem>>, vector<2x128xbf16>,
    %c8_712 = arith.constant 8 : index
    %c0_713 = arith.constant 0 : index
    %639 = vector.load %arg11[%c8_712, %c0_713] : memref<128x128xf32, #tpu.memory_space<vmem>>, vector<2x128xf32>
    %640 = arith.truncf %639 : vector<2x128xf32> to vector<2x128xbf16>
    %c0_714 = arith.constant 0 : index
    %c384_715 = arith.constant 384 : index
    %641 = vector.load %arg14[%c0_714, %c384_715] : memref<8x1152xbf16, #tpu.memory_space<vmem>>, vector<2x128xbf16>
    tpu.vector_store %arg14[%c0_714, %c384_715], %640 {strides = array<i32>} : memref<8x1152xbf16, #tpu.memory_space<vmem>>, vector<2x128xbf16>,
    %c9_716 = arith.constant 9 : index
    %c0_717 = arith.constant 0 : index
    %642 = vector.load %arg11[%c9_716, %c0_717] : memref<128x128xf32, #tpu.memory_space<vmem>>, vector<2x128xf32>
    %643 = arith.truncf %642 : vector<2x128xf32> to vector<2x128xbf16>
    %c0_718 = arith.constant 0 : index
    %c512_719 = arith.constant 512 : index
    %644 = vector.load %arg14[%c0_718, %c512_719] : memref<8x1152xbf16, #tpu.memory_space<vmem>>, vector<2x128xbf16>
    tpu.vector_store %arg14[%c0_718, %c512_719], %643 {strides = array<i32>} : memref<8x1152xbf16, #tpu.memory_space<vmem>>, vector<2x128xbf16>,
    %c10_720 = arith.constant 10 : index
    %c0_721 = arith.constant 0 : index
    %645 = vector.load %arg11[%c10_720, %c0_721] : memref<128x128xf32, #tpu.memory_space<vmem>>, vector<2x128xf32>
    %646 = arith.truncf %645 : vector<2x128xf32> to vector<2x128xbf16>
    %c0_722 = arith.constant 0 : index
    %c640_723 = arith.constant 640 : index
    %647 = vector.load %arg14[%c0_722, %c640_723] : memref<8x1152xbf16, #tpu.memory_space<vmem>>, vector<2x128xbf16>
    tpu.vector_store %arg14[%c0_722, %c640_723], %646 {strides = array<i32>} : memref<8x1152xbf16, #tpu.memory_space<vmem>>, vector<2x128xbf16>,
    %c16_724 = arith.constant 16 : index
    %c0_725 = arith.constant 0 : index
    %648 = vector.load %arg11[%c16_724, %c0_725] : memref<128x128xf32, #tpu.memory_space<vmem>>, vector<2x128xf32>
    %649 = arith.truncf %648 : vector<2x128xf32> to vector<2x128xbf16>
    %c0_726 = arith.constant 0 : index
    %c768_727 = arith.constant 768 : index
    %650 = vector.load %arg14[%c0_726, %c768_727] : memref<8x1152xbf16, #tpu.memory_space<vmem>>, vector<2x128xbf16>
    tpu.vector_store %arg14[%c0_726, %c768_727], %649 {strides = array<i32>} : memref<8x1152xbf16, #tpu.memory_space<vmem>>, vector<2x128xbf16>,
    %c17_728 = arith.constant 17 : index
    %c0_729 = arith.constant 0 : index
    %651 = vector.load %arg11[%c17_728, %c0_729] : memref<128x128xf32, #tpu.memory_space<vmem>>, vector<2x128xf32>
    %652 = arith.truncf %651 : vector<2x128xf32> to vector<2x128xbf16>
    %c0_730 = arith.constant 0 : index
    %c896_731 = arith.constant 896 : index
    %653 = vector.load %arg14[%c0_730, %c896_731] : memref<8x1152xbf16, #tpu.memory_space<vmem>>, vector<2x128xbf16>
    tpu.vector_store %arg14[%c0_730, %c896_731], %652 {strides = array<i32>} : memref<8x1152xbf16, #tpu.memory_space<vmem>>, vector<2x128xbf16>,
    %c18_732 = arith.constant 18 : index
    %c0_733 = arith.constant 0 : index
    %654 = vector.load %arg11[%c18_732, %c0_733] : memref<128x128xf32, #tpu.memory_space<vmem>>, vector<2x128xf32>
    %655 = arith.truncf %654 : vector<2x128xf32> to vector<2x128xbf16>
    %c0_734 = arith.constant 0 : index
    %c1024_735 = arith.constant 1024 : index
    %656 = vector.load %arg14[%c0_734, %c1024_735] : memref<8x1152xbf16, #tpu.memory_space<vmem>>, vector<2x128xbf16>
    tpu.vector_store %arg14[%c0_734, %c1024_735], %655 {strides = array<i32>} : memref<8x1152xbf16, #tpu.memory_space<vmem>>, vector<2x128xbf16>,
    %c8_736 = arith.constant 8 : index
    %c0_737 = arith.constant 0 : index
    %657 = vector.load %arg11[%c8_736, %c0_737] : memref<128x128xf32, #tpu.memory_space<vmem>>, vector<2x128xf32>
    %658 = arith.truncf %657 : vector<2x128xf32> to vector<2x128xbf16>
    %c2_738 = arith.constant 2 : index
    %c0_739 = arith.constant 0 : index
    %659 = vector.load %arg14[%c2_738, %c0_739] : memref<8x1152xbf16, #tpu.memory_space<vmem>>, vector<2x128xbf16>
    tpu.vector_store %arg14[%c2_738, %c0_739], %658 {strides = array<i32>} : memref<8x1152xbf16, #tpu.memory_space<vmem>>, vector<2x128xbf16>,
    %c9_740 = arith.constant 9 : index
    %c0_741 = arith.constant 0 : index
    %660 = vector.load %arg11[%c9_740, %c0_741] : memref<128x128xf32, #tpu.memory_space<vmem>>, vector<2x128xf32>
    %661 = arith.truncf %660 : vector<2x128xf32> to vector<2x128xbf16>
    %c2_742 = arith.constant 2 : index
    %c128_743 = arith.constant 128 : index
    %662 = vector.load %arg14[%c2_742, %c128_743] : memref<8x1152xbf16, #tpu.memory_space<vmem>>, vector<2x128xbf16>
    tpu.vector_store %arg14[%c2_742, %c128_743], %661 {strides = array<i32>} : memref<8x1152xbf16, #tpu.memory_space<vmem>>, vector<2x128xbf16>,
    %c10_744 = arith.constant 10 : index
    %c0_745 = arith.constant 0 : index
    %663 = vector.load %arg11[%c10_744, %c0_745] : memref<128x128xf32, #tpu.memory_space<vmem>>, vector<2x128xf32>
    %664 = arith.truncf %663 : vector<2x128xf32> to vector<2x128xbf16>
    %c2_746 = arith.constant 2 : index
    %c256_747 = arith.constant 256 : index
    %665 = vector.load %arg14[%c2_746, %c256_747] : memref<8x1152xbf16, #tpu.memory_space<vmem>>, vector<2x128xbf16>
    tpu.vector_store %arg14[%c2_746, %c256_747], %664 {strides = array<i32>} : memref<8x1152xbf16, #tpu.memory_space<vmem>>, vector<2x128xbf16>,
    %c16_748 = arith.constant 16 : index
    %c0_749 = arith.constant 0 : index
    %666 = vector.load %arg11[%c16_748, %c0_749] : memref<128x128xf32, #tpu.memory_space<vmem>>, vector<2x128xf32>
    %667 = arith.truncf %666 : vector<2x128xf32> to vector<2x128xbf16>
    %c2_750 = arith.constant 2 : index
    %c384_751 = arith.constant 384 : index
    %668 = vector.load %arg14[%c2_750, %c384_751] : memref<8x1152xbf16, #tpu.memory_space<vmem>>, vector<2x128xbf16>
    tpu.vector_store %arg14[%c2_750, %c384_751], %667 {strides = array<i32>} : memref<8x1152xbf16, #tpu.memory_space<vmem>>, vector<2x128xbf16>,
    %c17_752 = arith.constant 17 : index
    %c0_753 = arith.constant 0 : index
    %669 = vector.load %arg11[%c17_752, %c0_753] : memref<128x128xf32, #tpu.memory_space<vmem>>, vector<2x128xf32>
    %670 = arith.truncf %669 : vector<2x128xf32> to vector<2x128xbf16>
    %c2_754 = arith.constant 2 : index
    %c512_755 = arith.constant 512 : index
    %671 = vector.load %arg14[%c2_754, %c512_755] : memref<8x1152xbf16, #tpu.memory_space<vmem>>, vector<2x128xbf16>
    tpu.vector_store %arg14[%c2_754, %c512_755], %670 {strides = array<i32>} : memref<8x1152xbf16, #tpu.memory_space<vmem>>, vector<2x128xbf16>,
    %c18_756 = arith.constant 18 : index
    %c0_757 = arith.constant 0 : index
    %672 = vector.load %arg11[%c18_756, %c0_757] : memref<128x128xf32, #tpu.memory_space<vmem>>, vector<2x128xf32>
    %673 = arith.truncf %672 : vector<2x128xf32> to vector<2x128xbf16>
    %c2_758 = arith.constant 2 : index
    %c640_759 = arith.constant 640 : index
    %674 = vector.load %arg14[%c2_758, %c640_759] : memref<8x1152xbf16, #tpu.memory_space<vmem>>, vector<2x128xbf16>
    tpu.vector_store %arg14[%c2_758, %c640_759], %673 {strides = array<i32>} : memref<8x1152xbf16, #tpu.memory_space<vmem>>, vector<2x128xbf16>,
    %c24_760 = arith.constant 24 : index
    %c0_761 = arith.constant 0 : index
    %675 = vector.load %arg11[%c24_760, %c0_761] : memref<128x128xf32, #tpu.memory_space<vmem>>, vector<2x128xf32>
    %676 = arith.truncf %675 : vector<2x128xf32> to vector<2x128xbf16>
    %c2_762 = arith.constant 2 : index
    %c768_763 = arith.constant 768 : index
    %677 = vector.load %arg14[%c2_762, %c768_763] : memref<8x1152xbf16, #tpu.memory_space<vmem>>, vector<2x128xbf16>
    tpu.vector_store %arg14[%c2_762, %c768_763], %676 {strides = array<i32>} : memref<8x1152xbf16, #tpu.memory_space<vmem>>, vector<2x128xbf16>,
    %c25_764 = arith.constant 25 : index
    %c0_765 = arith.constant 0 : index
    %678 = vector.load %arg11[%c25_764, %c0_765] : memref<128x128xf32, #tpu.memory_space<vmem>>, vector<2x128xf32>
    %679 = arith.truncf %678 : vector<2x128xf32> to vector<2x128xbf16>
    %c2_766 = arith.constant 2 : index
    %c896_767 = arith.constant 896 : index
    %680 = vector.load %arg14[%c2_766, %c896_767] : memref<8x1152xbf16, #tpu.memory_space<vmem>>, vector<2x128xbf16>
    tpu.vector_store %arg14[%c2_766, %c896_767], %679 {strides = array<i32>} : memref<8x1152xbf16, #tpu.memory_space<vmem>>, vector<2x128xbf16>,
    %c26_768 = arith.constant 26 : index
    %c0_769 = arith.constant 0 : index
    %681 = vector.load %arg11[%c26_768, %c0_769] : memref<128x128xf32, #tpu.memory_space<vmem>>, vector<2x128xf32>
    %682 = arith.truncf %681 : vector<2x128xf32> to vector<2x128xbf16>
    %c2_770 = arith.constant 2 : index
    %c1024_771 = arith.constant 1024 : index
    %683 = vector.load %arg14[%c2_770, %c1024_771] : memref<8x1152xbf16, #tpu.memory_space<vmem>>, vector<2x128xbf16>
    tpu.vector_store %arg14[%c2_770, %c1024_771], %682 {strides = array<i32>} : memref<8x1152xbf16, #tpu.memory_space<vmem>>, vector<2x128xbf16>,
    %c64_772 = arith.constant 64 : index
    %c0_773 = arith.constant 0 : index
    %684 = vector.load %arg11[%c64_772, %c0_773] : memref<128x128xf32, #tpu.memory_space<vmem>>, vector<2x128xf32>
    %685 = arith.truncf %684 : vector<2x128xf32> to vector<2x128xbf16>
    %c4_774 = arith.constant 4 : index
    %c0_775 = arith.constant 0 : index
    %686 = vector.load %arg14[%c4_774, %c0_775] : memref<8x1152xbf16, #tpu.memory_space<vmem>>, vector<2x128xbf16>
    tpu.vector_store %arg14[%c4_774, %c0_775], %685 {strides = array<i32>} : memref<8x1152xbf16, #tpu.memory_space<vmem>>, vector<2x128xbf16>,
    %c65_776 = arith.constant 65 : index
    %c0_777 = arith.constant 0 : index
    %687 = vector.load %arg11[%c65_776, %c0_777] : memref<128x128xf32, #tpu.memory_space<vmem>>, vector<2x128xf32>
    %688 = arith.truncf %687 : vector<2x128xf32> to vector<2x128xbf16>
    %c4_778 = arith.constant 4 : index
    %c128_779 = arith.constant 128 : index
    %689 = vector.load %arg14[%c4_778, %c128_779] : memref<8x1152xbf16, #tpu.memory_space<vmem>>, vector<2x128xbf16>
    tpu.vector_store %arg14[%c4_778, %c128_779], %688 {strides = array<i32>} : memref<8x1152xbf16, #tpu.memory_space<vmem>>, vector<2x128xbf16>,
    %c66_780 = arith.constant 66 : index
    %c0_781 = arith.constant 0 : index
    %690 = vector.load %arg11[%c66_780, %c0_781] : memref<128x128xf32, #tpu.memory_space<vmem>>, vector<2x128xf32>
    %691 = arith.truncf %690 : vector<2x128xf32> to vector<2x128xbf16>
    %c4_782 = arith.constant 4 : index
    %c256_783 = arith.constant 256 : index
    %692 = vector.load %arg14[%c4_782, %c256_783] : memref<8x1152xbf16, #tpu.memory_space<vmem>>, vector<2x128xbf16>
    tpu.vector_store %arg14[%c4_782, %c256_783], %691 {strides = array<i32>} : memref<8x1152xbf16, #tpu.memory_space<vmem>>, vector<2x128xbf16>,
    %c72_784 = arith.constant 72 : index
    %c0_785 = arith.constant 0 : index
    %693 = vector.load %arg11[%c72_784, %c0_785] : memref<128x128xf32, #tpu.memory_space<vmem>>, vector<2x128xf32>
    %694 = arith.truncf %693 : vector<2x128xf32> to vector<2x128xbf16>
    %c4_786 = arith.constant 4 : index
    %c384_787 = arith.constant 384 : index
    %695 = vector.load %arg14[%c4_786, %c384_787] : memref<8x1152xbf16, #tpu.memory_space<vmem>>, vector<2x128xbf16>
    tpu.vector_store %arg14[%c4_786, %c384_787], %694 {strides = array<i32>} : memref<8x1152xbf16, #tpu.memory_space<vmem>>, vector<2x128xbf16>,
    %c73_788 = arith.constant 73 : index
    %c0_789 = arith.constant 0 : index
    %696 = vector.load %arg11[%c73_788, %c0_789] : memref<128x128xf32, #tpu.memory_space<vmem>>, vector<2x128xf32>
    %697 = arith.truncf %696 : vector<2x128xf32> to vector<2x128xbf16>
    %c4_790 = arith.constant 4 : index
    %c512_791 = arith.constant 512 : index
    %698 = vector.load %arg14[%c4_790, %c512_791] : memref<8x1152xbf16, #tpu.memory_space<vmem>>, vector<2x128xbf16>
    tpu.vector_store %arg14[%c4_790, %c512_791], %697 {strides = array<i32>} : memref<8x1152xbf16, #tpu.memory_space<vmem>>, vector<2x128xbf16>,
    %c74_792 = arith.constant 74 : index
    %c0_793 = arith.constant 0 : index
    %699 = vector.load %arg11[%c74_792, %c0_793] : memref<128x128xf32, #tpu.memory_space<vmem>>, vector<2x128xf32>
    %700 = arith.truncf %699 : vector<2x128xf32> to vector<2x128xbf16>
    %c4_794 = arith.constant 4 : index
    %c640_795 = arith.constant 640 : index
    %701 = vector.load %arg14[%c4_794, %c640_795] : memref<8x1152xbf16, #tpu.memory_space<vmem>>, vector<2x128xbf16>
    tpu.vector_store %arg14[%c4_794, %c640_795], %700 {strides = array<i32>} : memref<8x1152xbf16, #tpu.memory_space<vmem>>, vector<2x128xbf16>,
    %c80_796 = arith.constant 80 : index
    %c0_797 = arith.constant 0 : index
    %702 = vector.load %arg11[%c80_796, %c0_797] : memref<128x128xf32, #tpu.memory_space<vmem>>, vector<2x128xf32>
    %703 = arith.truncf %702 : vector<2x128xf32> to vector<2x128xbf16>
    %c4_798 = arith.constant 4 : index
    %c768_799 = arith.constant 768 : index
    %704 = vector.load %arg14[%c4_798, %c768_799] : memref<8x1152xbf16, #tpu.memory_space<vmem>>, vector<2x128xbf16>
    tpu.vector_store %arg14[%c4_798, %c768_799], %703 {strides = array<i32>} : memref<8x1152xbf16, #tpu.memory_space<vmem>>, vector<2x128xbf16>,
    %c81_800 = arith.constant 81 : index
    %c0_801 = arith.constant 0 : index
    %705 = vector.load %arg11[%c81_800, %c0_801] : memref<128x128xf32, #tpu.memory_space<vmem>>, vector<2x128xf32>
    %706 = arith.truncf %705 : vector<2x128xf32> to vector<2x128xbf16>
    %c4_802 = arith.constant 4 : index
    %c896_803 = arith.constant 896 : index
    %707 = vector.load %arg14[%c4_802, %c896_803] : memref<8x1152xbf16, #tpu.memory_space<vmem>>, vector<2x128xbf16>
    tpu.vector_store %arg14[%c4_802, %c896_803], %706 {strides = array<i32>} : memref<8x1152xbf16, #tpu.memory_space<vmem>>, vector<2x128xbf16>,
    %c82_804 = arith.constant 82 : index
    %c0_805 = arith.constant 0 : index
    %708 = vector.load %arg11[%c82_804, %c0_805] : memref<128x128xf32, #tpu.memory_space<vmem>>, vector<2x128xf32>
    %709 = arith.truncf %708 : vector<2x128xf32> to vector<2x128xbf16>
    %c4_806 = arith.constant 4 : index
    %c1024_807 = arith.constant 1024 : index
    %710 = vector.load %arg14[%c4_806, %c1024_807] : memref<8x1152xbf16, #tpu.memory_space<vmem>>, vector<2x128xbf16>
    tpu.vector_store %arg14[%c4_806, %c1024_807], %709 {strides = array<i32>} : memref<8x1152xbf16, #tpu.memory_space<vmem>>, vector<2x128xbf16>,
    %c72_808 = arith.constant 72 : index
    %c0_809 = arith.constant 0 : index
    %711 = vector.load %arg11[%c72_808, %c0_809] : memref<128x128xf32, #tpu.memory_space<vmem>>, vector<2x128xf32>
    %712 = arith.truncf %711 : vector<2x128xf32> to vector<2x128xbf16>
    %c6_810 = arith.constant 6 : index
    %c0_811 = arith.constant 0 : index
    %713 = vector.load %arg14[%c6_810, %c0_811] : memref<8x1152xbf16, #tpu.memory_space<vmem>>, vector<2x128xbf16>
    tpu.vector_store %arg14[%c6_810, %c0_811], %712 {strides = array<i32>} : memref<8x1152xbf16, #tpu.memory_space<vmem>>, vector<2x128xbf16>,
    %c73_812 = arith.constant 73 : index
    %c0_813 = arith.constant 0 : index
    %714 = vector.load %arg11[%c73_812, %c0_813] : memref<128x128xf32, #tpu.memory_space<vmem>>, vector<2x128xf32>
    %715 = arith.truncf %714 : vector<2x128xf32> to vector<2x128xbf16>
    %c6_814 = arith.constant 6 : index
    %c128_815 = arith.constant 128 : index
    %716 = vector.load %arg14[%c6_814, %c128_815] : memref<8x1152xbf16, #tpu.memory_space<vmem>>, vector<2x128xbf16>
    tpu.vector_store %arg14[%c6_814, %c128_815], %715 {strides = array<i32>} : memref<8x1152xbf16, #tpu.memory_space<vmem>>, vector<2x128xbf16>,
    %c74_816 = arith.constant 74 : index
    %c0_817 = arith.constant 0 : index
    %717 = vector.load %arg11[%c74_816, %c0_817] : memref<128x128xf32, #tpu.memory_space<vmem>>, vector<2x128xf32>
    %718 = arith.truncf %717 : vector<2x128xf32> to vector<2x128xbf16>
    %c6_818 = arith.constant 6 : index
    %c256_819 = arith.constant 256 : index
    %719 = vector.load %arg14[%c6_818, %c256_819] : memref<8x1152xbf16, #tpu.memory_space<vmem>>, vector<2x128xbf16>
    tpu.vector_store %arg14[%c6_818, %c256_819], %718 {strides = array<i32>} : memref<8x1152xbf16, #tpu.memory_space<vmem>>, vector<2x128xbf16>,
    %c80_820 = arith.constant 80 : index
    %c0_821 = arith.constant 0 : index
    %720 = vector.load %arg11[%c80_820, %c0_821] : memref<128x128xf32, #tpu.memory_space<vmem>>, vector<2x128xf32>
    %721 = arith.truncf %720 : vector<2x128xf32> to vector<2x128xbf16>
    %c6_822 = arith.constant 6 : index
    %c384_823 = arith.constant 384 : index
    %722 = vector.load %arg14[%c6_822, %c384_823] : memref<8x1152xbf16, #tpu.memory_space<vmem>>, vector<2x128xbf16>
    tpu.vector_store %arg14[%c6_822, %c384_823], %721 {strides = array<i32>} : memref<8x1152xbf16, #tpu.memory_space<vmem>>, vector<2x128xbf16>,
    %c81_824 = arith.constant 81 : index
    %c0_825 = arith.constant 0 : index
    %723 = vector.load %arg11[%c81_824, %c0_825] : memref<128x128xf32, #tpu.memory_space<vmem>>, vector<2x128xf32>
    %724 = arith.truncf %723 : vector<2x128xf32> to vector<2x128xbf16>
    %c6_826 = arith.constant 6 : index
    %c512_827 = arith.constant 512 : index
    %725 = vector.load %arg14[%c6_826, %c512_827] : memref<8x1152xbf16, #tpu.memory_space<vmem>>, vector<2x128xbf16>
    tpu.vector_store %arg14[%c6_826, %c512_827], %724 {strides = array<i32>} : memref<8x1152xbf16, #tpu.memory_space<vmem>>, vector<2x128xbf16>,
    %c82_828 = arith.constant 82 : index
    %c0_829 = arith.constant 0 : index
    %726 = vector.load %arg11[%c82_828, %c0_829] : memref<128x128xf32, #tpu.memory_space<vmem>>, vector<2x128xf32>
    %727 = arith.truncf %726 : vector<2x128xf32> to vector<2x128xbf16>
    %c6_830 = arith.constant 6 : index
    %c640_831 = arith.constant 640 : index
    %728 = vector.load %arg14[%c6_830, %c640_831] : memref<8x1152xbf16, #tpu.memory_space<vmem>>, vector<2x128xbf16>
    tpu.vector_store %arg14[%c6_830, %c640_831], %727 {strides = array<i32>} : memref<8x1152xbf16, #tpu.memory_space<vmem>>, vector<2x128xbf16>,
    %c88_832 = arith.constant 88 : index
    %c0_833 = arith.constant 0 : index
    %729 = vector.load %arg11[%c88_832, %c0_833] : memref<128x128xf32, #tpu.memory_space<vmem>>, vector<2x128xf32>
    %730 = arith.truncf %729 : vector<2x128xf32> to vector<2x128xbf16>
    %c6_834 = arith.constant 6 : index
    %c768_835 = arith.constant 768 : index
    %731 = vector.load %arg14[%c6_834, %c768_835] : memref<8x1152xbf16, #tpu.memory_space<vmem>>, vector<2x128xbf16>
    tpu.vector_store %arg14[%c6_834, %c768_835], %730 {strides = array<i32>} : memref<8x1152xbf16, #tpu.memory_space<vmem>>, vector<2x128xbf16>,
    %c89_836 = arith.constant 89 : index
    %c0_837 = arith.constant 0 : index
    %732 = vector.load %arg11[%c89_836, %c0_837] : memref<128x128xf32, #tpu.memory_space<vmem>>, vector<2x128xf32>
    %733 = arith.truncf %732 : vector<2x128xf32> to vector<2x128xbf16>
    %c6_838 = arith.constant 6 : index
    %c896_839 = arith.constant 896 : index
    %734 = vector.load %arg14[%c6_838, %c896_839] : memref<8x1152xbf16, #tpu.memory_space<vmem>>, vector<2x128xbf16>
    tpu.vector_store %arg14[%c6_838, %c896_839], %733 {strides = array<i32>} : memref<8x1152xbf16, #tpu.memory_space<vmem>>, vector<2x128xbf16>,
    %c90_840 = arith.constant 90 : index
    %c0_841 = arith.constant 0 : index
    %735 = vector.load %arg11[%c90_840, %c0_841] : memref<128x128xf32, #tpu.memory_space<vmem>>, vector<2x128xf32>
    %736 = arith.truncf %735 : vector<2x128xf32> to vector<2x128xbf16>
    %c6_842 = arith.constant 6 : index
    %c1024_843 = arith.constant 1024 : index
    %737 = vector.load %arg14[%c6_842, %c1024_843] : memref<8x1152xbf16, #tpu.memory_space<vmem>>, vector<2x128xbf16>
    tpu.vector_store %arg14[%c6_842, %c1024_843], %736 {strides = array<i32>} : memref<8x1152xbf16, #tpu.memory_space<vmem>>, vector<2x128xbf16>,
    %c0_844 = arith.constant 0 : index
    %c0_845 = arith.constant 0 : index
    %738 = vector.load %arg14[%c0_844, %c0_845] : memref<8x1152xbf16, #tpu.memory_space<vmem>>, vector<8x1152xbf16>
    %c0_846 = arith.constant 0 : index
    %c0_847 = arith.constant 0 : index
    %739 = vector.load %arg6[%c0_846, %c0_847] : memref<1152x128xbf16, #tpu.memory_space<vmem>>, vector<1152x128xbf16>
    %cst_848 = arith.constant dense<0.000000e+00> : vector<8x128xf32>
    %740 = tpu.matmul %738, %739, %cst_848 {dimension_numbers = #tpu.dot_dimension_numbers<[1], [0], [0], [1], [0, 0, 1, 1], [], []>} : vector<8x1152xbf16>, vector<1152x128xbf16>, vector<8x128xf32> -> vector<8x128xf32>
    %c0_849 = arith.constant 0 : index
    %c0_850 = arith.constant 0 : index
    %741 = vector.load %arg8[%c0_849, %c0_850] : memref<8x128xf32, #tpu.memory_space<vmem>>, vector<8x128xf32>
    tpu.vector_store %arg8[%c0_849, %c0_850], %740 {strides = array<i32>} : memref<8x128xf32, #tpu.memory_space<vmem>>, vector<8x128xf32>,
    %c9_851 = arith.constant 9 : index
    %c0_852 = arith.constant 0 : index
    %742 = vector.load %arg11[%c9_851, %c0_852] : memref<128x128xf32, #tpu.memory_space<vmem>>, vector<1x128xf32>
    %743 = arith.truncf %742 : vector<1x128xf32> to vector<1x128xbf16>
    %c0_853 = arith.constant 0 : index
    %c0_854 = arith.constant 0 : index
    %744 = vector.load %arg15[%c0_853, %c0_854] : memref<8x512xbf16, #tpu.memory_space<vmem>>, vector<1x128xbf16>
    tpu.vector_store %arg15[%c0_853, %c0_854], %743 {strides = array<i32>} : memref<8x512xbf16, #tpu.memory_space<vmem>>, vector<1x128xbf16>,
    %c10_855 = arith.constant 10 : index
    %c0_856 = arith.constant 0 : index
    %745 = vector.load %arg11[%c10_855, %c0_856] : memref<128x128xf32, #tpu.memory_space<vmem>>, vector<1x128xf32>
    %746 = arith.truncf %745 : vector<1x128xf32> to vector<1x128xbf16>
    %c0_857 = arith.constant 0 : index
    %c128_858 = arith.constant 128 : index
    %747 = vector.load %arg15[%c0_857, %c128_858] : memref<8x512xbf16, #tpu.memory_space<vmem>>, vector<1x128xbf16>
    tpu.vector_store %arg15[%c0_857, %c128_858], %746 {strides = array<i32>} : memref<8x512xbf16, #tpu.memory_space<vmem>>, vector<1x128xbf16>,
    %c17_859 = arith.constant 17 : index
    %c0_860 = arith.constant 0 : index
    %748 = vector.load %arg11[%c17_859, %c0_860] : memref<128x128xf32, #tpu.memory_space<vmem>>, vector<1x128xf32>
    %749 = arith.truncf %748 : vector<1x128xf32> to vector<1x128xbf16>
    %c0_861 = arith.constant 0 : index
    %c256_862 = arith.constant 256 : index
    %750 = vector.load %arg15[%c0_861, %c256_862] : memref<8x512xbf16, #tpu.memory_space<vmem>>, vector<1x128xbf16>
    tpu.vector_store %arg15[%c0_861, %c256_862], %749 {strides = array<i32>} : memref<8x512xbf16, #tpu.memory_space<vmem>>, vector<1x128xbf16>,
    %c18_863 = arith.constant 18 : index
    %c0_864 = arith.constant 0 : index
    %751 = vector.load %arg11[%c18_863, %c0_864] : memref<128x128xf32, #tpu.memory_space<vmem>>, vector<1x128xf32>
    %752 = arith.truncf %751 : vector<1x128xf32> to vector<1x128xbf16>
    %c0_865 = arith.constant 0 : index
    %c384_866 = arith.constant 384 : index
    %753 = vector.load %arg15[%c0_865, %c384_866] : memref<8x512xbf16, #tpu.memory_space<vmem>>, vector<1x128xbf16>
    tpu.vector_store %arg15[%c0_865, %c384_866], %752 {strides = array<i32>} : memref<8x512xbf16, #tpu.memory_space<vmem>>, vector<1x128xbf16>,
    %c73_867 = arith.constant 73 : index
    %c0_868 = arith.constant 0 : index
    %754 = vector.load %arg11[%c73_867, %c0_868] : memref<128x128xf32, #tpu.memory_space<vmem>>, vector<1x128xf32>
    %755 = arith.truncf %754 : vector<1x128xf32> to vector<1x128xbf16>
    %c1_869 = arith.constant 1 : index
    %c0_870 = arith.constant 0 : index
    %756 = vector.load %arg15[%c1_869, %c0_870] : memref<8x512xbf16, #tpu.memory_space<vmem>>, vector<1x128xbf16>
    tpu.vector_store %arg15[%c1_869, %c0_870], %755 {strides = array<i32>} : memref<8x512xbf16, #tpu.memory_space<vmem>>, vector<1x128xbf16>,
    %c74_871 = arith.constant 74 : index
    %c0_872 = arith.constant 0 : index
    %757 = vector.load %arg11[%c74_871, %c0_872] : memref<128x128xf32, #tpu.memory_space<vmem>>, vector<1x128xf32>
    %758 = arith.truncf %757 : vector<1x128xf32> to vector<1x128xbf16>
    %c1_873 = arith.constant 1 : index
    %c128_874 = arith.constant 128 : index
    %759 = vector.load %arg15[%c1_873, %c128_874] : memref<8x512xbf16, #tpu.memory_space<vmem>>, vector<1x128xbf16>
    tpu.vector_store %arg15[%c1_873, %c128_874], %758 {strides = array<i32>} : memref<8x512xbf16, #tpu.memory_space<vmem>>, vector<1x128xbf16>,
    %c81_875 = arith.constant 81 : index
    %c0_876 = arith.constant 0 : index
    %760 = vector.load %arg11[%c81_875, %c0_876] : memref<128x128xf32, #tpu.memory_space<vmem>>, vector<1x128xf32>
    %761 = arith.truncf %760 : vector<1x128xf32> to vector<1x128xbf16>
    %c1_877 = arith.constant 1 : index
    %c256_878 = arith.constant 256 : index
    %762 = vector.load %arg15[%c1_877, %c256_878] : memref<8x512xbf16, #tpu.memory_space<vmem>>, vector<1x128xbf16>
    tpu.vector_store %arg15[%c1_877, %c256_878], %761 {strides = array<i32>} : memref<8x512xbf16, #tpu.memory_space<vmem>>, vector<1x128xbf16>,
    %c82_879 = arith.constant 82 : index
    %c0_880 = arith.constant 0 : index
    %763 = vector.load %arg11[%c82_879, %c0_880] : memref<128x128xf32, #tpu.memory_space<vmem>>, vector<1x128xf32>
    %764 = arith.truncf %763 : vector<1x128xf32> to vector<1x128xbf16>
    %c1_881 = arith.constant 1 : index
    %c384_882 = arith.constant 384 : index
    %765 = vector.load %arg15[%c1_881, %c384_882] : memref<8x512xbf16, #tpu.memory_space<vmem>>, vector<1x128xbf16>
    tpu.vector_store %arg15[%c1_881, %c384_882], %764 {strides = array<i32>} : memref<8x512xbf16, #tpu.memory_space<vmem>>, vector<1x128xbf16>,
    %c0_883 = arith.constant 0 : index
    %c0_884 = arith.constant 0 : index
    %766 = vector.load %arg15[%c0_883, %c0_884] : memref<8x512xbf16, #tpu.memory_space<vmem>>, vector<2x512xbf16>
    %c0_885 = arith.constant 0 : index
    %c0_886 = arith.constant 0 : index
    %767 = vector.load %arg7[%c0_885, %c0_886] : memref<512x128xbf16, #tpu.memory_space<vmem>>, vector<512x128xbf16>
    %cst_887 = arith.constant dense<0.000000e+00> : vector<2x128xf32>
    %768 = tpu.matmul %766, %767, %cst_887 {dimension_numbers = #tpu.dot_dimension_numbers<[1], [0], [0], [1], [0, 0, 1, 1], [], []>} : vector<2x512xbf16>, vector<512x128xbf16>, vector<2x128xf32> -> vector<2x128xf32>
    %c0_888 = arith.constant 0 : index
    %c0_889 = arith.constant 0 : index
    %769 = vector.load %arg9[%c0_888, %c0_889] : memref<2x128xf32, #tpu.memory_space<vmem>>, vector<2x128xf32>
    tpu.vector_store %arg9[%c0_888, %c0_889], %768 {strides = array<i32>} : memref<2x128xf32, #tpu.memory_space<vmem>>, vector<2x128xf32>,
    return
  }
  func.func @transform_0(%arg0: i32) -> (i32, i32) {
    %c0_i32 = arith.constant 0 : i32
    %c0_i32_0 = arith.constant 0 : i32
    %c0_i32_1 = arith.constant 0 : i32
    return %c0_i32, %c0_i32_0 : i32, i32
  }
  func.func @transform_1(%arg0: i32) -> (i32, i32) {
    %c0_i32 = arith.constant 0 : i32
    %c0_i32_0 = arith.constant 0 : i32
    %c0_i32_1 = arith.constant 0 : i32
    return %c0_i32, %c0_i32_0 : i32, i32
  }
  func.func @transform_2(%arg0: i32) -> (i32, i32) {
    %c0_i32 = arith.constant 0 : i32
    %c0_i32_0 = arith.constant 0 : i32
    %c0_i32_1 = arith.constant 0 : i32
    return %c0_i32, %c0_i32_0 : i32, i32
  }
  func.func @transform_3(%arg0: i32) -> (i32, i32) {
    %c0_i32 = arith.constant 0 : i32
    %c0_i32_0 = arith.constant 0 : i32
    %c0_i32_1 = arith.constant 0 : i32
    return %c0_i32, %c0_i32_0 : i32, i32
  }
  func.func @transform_4(%arg0: i32) -> (i32, i32) {
    %c0_i32 = arith.constant 0 : i32
    %c0_i32_0 = arith.constant 0 : i32
    %c0_i32_1 = arith.constant 0 : i32
    return %c0_i32, %c0_i32_0 : i32, i32
  }
  func.func @transform_5(%arg0: i32) -> (i32, i32) {
    %c0_i32 = arith.constant 0 : i32
    %c0_i32_0 = arith.constant 0 : i32
    %c0_i32_1 = arith.constant 0 : i32
    return %c0_i32, %c0_i32_0 : i32, i32
  }
  func.func @transform_6(%arg0: i32) -> (i32, i32) {
    %c0_i32 = arith.constant 0 : i32
    %c0_i32_0 = arith.constant 0 : i32
    %c0_i32_1 = arith.constant 0 : i32
    return %c0_i32, %c0_i32_0 : i32, i32
  }
  func.func @transform_7(%arg0: i32) -> (i32, i32) {
    %c0_i32 = arith.constant 0 : i32
    %c0_i32_0 = arith.constant 0 : i32
    %c0_i32_1 = arith.constant 0 : i32
    return %c0_i32, %c0_i32_0 : i32, i32
  }
  func.func @transform_8(%arg0: i32) -> (i32, i32) {
    %c0_i32 = arith.constant 0 : i32
    %c0_i32_0 = arith.constant 0 : i32
    %c0_i32_1 = arith.constant 0 : i32
    return %c0_i32, %c0_i32_0 : i32, i32
  }
}

</mosaic_0001>

<llo_original>
// kernel: forward.1
$region0: #{forward.1}
  #allocation0 [shape = 'u32[]', space=smem, size = 0x4, offset = 0x4, fixed_abs, tag = 'smem constant byte address 0x4 - core index']
  #allocation1 [shape = 'u32[144,128]{1,0:T(1,128)}', space=vmem, size = 0x12000, scoped, tag = 'internal scratch']
  #allocation2 [shape = 'f32[128,128]{1,0:T(8,128)}', space=vmem, size = 0x10000, scoped, tag = 'scratch operand']
  #allocation3 [shape = 'f32[128,128]{1,0:T(8,128)}', space=vmem, size = 0x10000, scoped, tag = 'scratch operand']
  #allocation4 [shape = 'bf16[32,2048]{1,0:T(16,128)(2,1)}', space=vmem, size = 0x20000, scoped, tag = 'scratch operand']
  #allocation5 [shape = 'bf16[8,2048]{1,0:T(8,128)(2,1)}', space=vmem, size = 0x8000, scoped, tag = 'scratch operand']
  #allocation6 [shape = 'bf16[8,1152]{1,0:T(8,128)(2,1)}', space=vmem, size = 0x4800, scoped, tag = 'scratch operand']
  #allocation7 [shape = 'bf16[8,512]{1,0:T(8,128)(2,1)}', space=vmem, size = 0x2000, scoped, tag = 'scratch operand']
  %s0 = inlined_call_operand.vmem [shape: f32[512,128], index: 0, kind: input, shape index: {}]
  %s1 = inlined_call_operand.vmem [shape: bf16[2048,128], index: 1, kind: input, shape index: {}]
  %s2 = inlined_call_operand.vmem [shape: f32[1,128], index: 2, kind: input, shape index: {}]
  %s3 = inlined_call_operand.vmem [shape: bf16[2048,128], index: 3, kind: input, shape index: {}]
  %s4 = inlined_call_operand.vmem [shape: f32[1,128], index: 4, kind: input, shape index: {}]
  %s5 = inlined_call_operand.vmem [shape: bf16[1152,128], index: 5, kind: input, shape index: {}]
  %s6 = inlined_call_operand.vmem [shape: bf16[512,128], index: 6, kind: input, shape index: {}]
  %s7 = inlined_call_operand.vmem [shape: f32[8,128], index: 7, kind: output, shape index: {0}]
  %s8 = inlined_call_operand.hbm [shape: f32[2,128], index: 8, kind: output, shape index: {1}]
  %9 = xla_tuple %s7, %s8
  %s10 = sld [smem:[#allocation0]]
  $region46: #{forward.1} parent=0
    _
  %s12 = ssub.s32 1, %s10
  %s13 = scalar_select 0, %s12, %s10
  $region1: #{forward.1} parent=0
    #allocation8 [shape = 'u8[1024]{0}', space=vmem, size = 0x400, scoped, tag = 'output window, operand 1, single buffered']
    #allocation9 [shape = 's32[1]{0}', space=sflag, size = 0x4, scoped, tag = 'scoped memory for forward.1']
    %14 = vsyncpa [#allocation9], 0
    // Predicated region
    $region2: #{forward.1} parent=1 // pred_check
      _
    $region3: #{forward.1} parent=1 // pred_check_branch
      %16 = sbr.rel (0) target = $region5
    $region4: #{forward.1} parent=1 // pred_region
      _
    $region5: #{forward.1} parent=1 // pred_fallthru
      _
    // Predicated region
    $region6: #{forward.1} parent=1 // pred_check
      _
    $region7: #{forward.1} parent=1 // pred_check_branch
      %18 = sbr.rel (0) target = $region9
    $region8: #{forward.1} parent=1 // pred_region
      _
    $region9: #{forward.1} parent=1 // pred_fallthru
      _
    // Predicated region
    $region10: #{forward.1} parent=1 // pred_check
      _
    $region11: #{forward.1} parent=1 // pred_check_branch
      %20 = sbr.rel (0) target = $region13
    $region12: #{forward.1} parent=1 // pred_region
      _
    $region13: #{forward.1} parent=1 // pred_fallthru
      _
    // Predicated region
    $region14: #{forward.1} parent=1 // pred_check
      _
    $region15: #{forward.1} parent=1 // pred_check_branch
      %22 = sbr.rel (0) target = $region17
    $region16: #{forward.1} parent=1 // pred_region
      _
    $region17: #{forward.1} parent=1 // pred_fallthru
      _
    // Predicated region
    $region18: #{forward.1} parent=1 // pred_check
      _
    $region19: #{forward.1} parent=1 // pred_check_branch
      %24 = sbr.rel (0) target = $region21
    $region20: #{forward.1} parent=1 // pred_region
      _
    $region21: #{forward.1} parent=1 // pred_fallthru
      _
    // Predicated region
    $region22: #{forward.1} parent=1 // pred_check
      _
    $region23: #{forward.1} parent=1 // pred_check_branch
      %26 = sbr.rel (0) target = $region25
    $region24: #{forward.1} parent=1 // pred_region
      _
    $region25: #{forward.1} parent=1 // pred_fallthru
      _
    // Predicated region
    $region26: #{forward.1} parent=1 // pred_check
      _
    $region27: #{forward.1} parent=1 // pred_check_branch
      %28 = sbr.rel (0) target = $region29
    $region28: #{forward.1} parent=1 // pred_region
      _
    $region29: #{forward.1} parent=1 // pred_fallthru
      _
    %30 = vst [vmem:[#allocation2] sm:$0xff] 0.0
    %31 = vst [vmem:[#allocation2 + $0x8] sm:$0xff] 0.0
    %32 = vst [vmem:[#allocation2 + $0x10] sm:$0xff] 0.0
    %33 = vst [vmem:[#allocation2 + $0x18] sm:$0xff] 0.0
    %34 = vst [vmem:[#allocation2 + $0x20] sm:$0xff] 0.0
    %35 = vst [vmem:[#allocation2 + $0x28] sm:$0xff] 0.0
    %36 = vst [vmem:[#allocation2 + $0x40] sm:$0xff] 0.0
    %37 = vst [vmem:[#allocation2 + $0x48] sm:$0xff] 0.0
    %38 = vst [vmem:[#allocation2 + $0x50] sm:$0xff] 0.0
    %39 = vst [vmem:[#allocation2 + $0x58] sm:$0xff] 0.0
    %40 = vst [vmem:[#allocation2 + $0x60] sm:$0xff] 0.0
    %41 = vst [vmem:[#allocation2 + $0x68] sm:$0xff] 0.0
    %42 = vst [vmem:[#allocation3] sm:$0xff] 0.0
    %43 = vst [vmem:[#allocation3 + $0x8] sm:$0xff] 0.0
    %44 = vst [vmem:[#allocation3 + $0x10] sm:$0xff] 0.0
    %45 = vst [vmem:[#allocation3 + $0x18] sm:$0xff] 0.0
    %46 = vst [vmem:[#allocation3 + $0x40] sm:$0xff] 0.0
    %47 = vst [vmem:[#allocation3 + $0x48] sm:$0xff] 0.0
    %48 = vst [vmem:[#allocation3 + $0x50] sm:$0xff] 0.0
    %49 = vst [vmem:[#allocation3 + $0x58] sm:$0xff] 0.0
    %v50 = vld [vmem:[%s0] ss:$2 sm:$0xf]
    %v51 = vpack.c.bf16 %v50, %v50
    %52 = vst [vmem:[#allocation4] sm:$0x3] %v51
    %s53 = scalar_lea.vmem %s0, 1
    %v54 = vld [vmem:[%s53] ss:$2 sm:$0xf]
    %v55 = vpack.c.bf16 %v54, %v54
    %56 = vst [vmem:[#allocation4 + $0x8] sm:$0x3] %v55
    %s57 = scalar_lea.vmem %s0, 2
    %v58 = vld [vmem:[%s57] ss:$2 sm:$0xf]
    %v59 = vpack.c.bf16 %v58, %v58
    %60 = vst [vmem:[#allocation4 + $0x10] sm:$0x3] %v59
    %s61 = scalar_lea.vmem %s0, 3
    %v62 = vld [vmem:[%s61] ss:$2 sm:$0xf]
    %v63 = vpack.c.bf16 %v62, %v62
    %64 = vst [vmem:[#allocation4 + $0x18] sm:$0x3] %v63
    %s65 = scalar_lea.vmem %s0, 16
    %v66 = vld [vmem:[%s65] ss:$2 sm:$0xf]
    %v67 = vpack.c.bf16 %v66, %v66
    %68 = vst [vmem:[#allocation4 + $0x20] sm:$0x3] %v67
    %s69 = scalar_lea.vmem %s0, 17
    %v70 = vld [vmem:[%s69] ss:$2 sm:$0xf]
    %v71 = vpack.c.bf16 %v70, %v70
    %72 = vst [vmem:[#allocation4 + $0x28] sm:$0x3] %v71
    %s73 = scalar_lea.vmem %s0, 18
    %v74 = vld [vmem:[%s73] ss:$2 sm:$0xf]
    %v75 = vpack.c.bf16 %v74, %v74
    %76 = vst [vmem:[#allocation4 + $0x30] sm:$0x3] %v75
    %s77 = scalar_lea.vmem %s0, 19
    %v78 = vld [vmem:[%s77] ss:$2 sm:$0xf]
    %v79 = vpack.c.bf16 %v78, %v78
    %80 = vst [vmem:[#allocation4 + $0x38] sm:$0x3] %v79
    %s81 = scalar_lea.vmem %s0, 32
    %v82 = vld [vmem:[%s81] ss:$2 sm:$0xf]
    %v83 = vpack.c.bf16 %v82, %v82
    %84 = vst [vmem:[#allocation4 + $0x40] sm:$0x3] %v83
    %s85 = scalar_lea.vmem %s0, 33
    %v86 = vld [vmem:[%s85] ss:$2 sm:$0xf]
    %v87 = vpack.c.bf16 %v86, %v86
    %88 = vst [vmem:[#allocation4 + $0x48] sm:$0x3] %v87
    %s89 = scalar_lea.vmem %s0, 34
    %v90 = vld [vmem:[%s89] ss:$2 sm:$0xf]
    %v91 = vpack.c.bf16 %v90, %v90
    %92 = vst [vmem:[#allocation4 + $0x50] sm:$0x3] %v91
    %s93 = scalar_lea.vmem %s0, 35
    %v94 = vld [vmem:[%s93] ss:$2 sm:$0xf]
    %v95 = vpack.c.bf16 %v94, %v94
    %96 = vst [vmem:[#allocation4 + $0x58] sm:$0x3] %v95
    %s97 = scalar_lea.vmem %s0, 48
    %v98 = vld [vmem:[%s97] ss:$2 sm:$0xf]
    %v99 = vpack.c.bf16 %v98, %v98
    %100 = vst [vmem:[#allocation4 + $0x60] sm:$0x3] %v99
    %s101 = scalar_lea.vmem %s0, 49
    %v102 = vld [vmem:[%s101] ss:$2 sm:$0xf]
    %v103 = vpack.c.bf16 %v102, %v102
    %104 = vst [vmem:[#allocation4 + $0x68] sm:$0x3] %v103
    %s105 = scalar_lea.vmem %s0, 50
    %v106 = vld [vmem:[%s105] ss:$2 sm:$0xf]
    %v107 = vpack.c.bf16 %v106, %v106
    %108 = vst [vmem:[#allocation4 + $0x70] sm:$0x3] %v107
    %s109 = scalar_lea.vmem %s0, 51
    %v110 = vld [vmem:[%s109] ss:$2 sm:$0xf]
    %v111 = vpack.c.bf16 %v110, %v110
    %112 = vst [vmem:[#allocation4 + $0x78] sm:$0x3] %v111
    %v113 = vld [vmem:[%s81] ss:$2 sm:$0xf]
    %v114 = vpack.c.bf16 %v113, %v113
    %v116 = vrot.slane %v114, 6
    %118 = vst [vmem:[#allocation4] sm:$0xc] %v116
    %v119 = vld [vmem:[%s85] ss:$2 sm:$0xf]
    %v120 = vpack.c.bf16 %v119, %v119
    %v122 = vrot.slane %v120, 6
    %124 = vst [vmem:[#allocation4 + $0x8] sm:$0xc] %v122
    %v125 = vld [vmem:[%s89] ss:$2 sm:$0xf]
    %v126 = vpack.c.bf16 %v125, %v125
    %v128 = vrot.slane %v126, 6
    %130 = vst [vmem:[#allocation4 + $0x10] sm:$0xc] %v128
    %v131 = vld [vmem:[%s93] ss:$2 sm:$0xf]
    %v132 = vpack.c.bf16 %v131, %v131
    %v134 = vrot.slane %v132, 6
    %136 = vst [vmem:[#allocation4 + $0x18] sm:$0xc] %v134
    %v137 = vld [vmem:[%s97] ss:$2 sm:$0xf]
    %v138 = vpack.c.bf16 %v137, %v137
    %v140 = vrot.slane %v138, 6
    %142 = vst [vmem:[#allocation4 + $0x20] sm:$0xc] %v140
    %v143 = vld [vmem:[%s101] ss:$2 sm:$0xf]
    %v144 = vpack.c.bf16 %v143, %v143
    %v146 = vrot.slane %v144, 6
    %148 = vst [vmem:[#allocation4 + $0x28] sm:$0xc] %v146
    %v149 = vld [vmem:[%s105] ss:$2 sm:$0xf]
    %v150 = vpack.c.bf16 %v149, %v149
    %v152 = vrot.slane %v150, 6
    %154 = vst [vmem:[#allocation4 + $0x30] sm:$0xc] %v152
    %v155 = vld [vmem:[%s109] ss:$2 sm:$0xf]
    %v156 = vpack.c.bf16 %v155, %v155
    %v158 = vrot.slane %v156, 6
    %160 = vst [vmem:[#allocation4 + $0x38] sm:$0xc] %v158
    %s161 = scalar_lea.vmem %s0, 64
    %v162 = vld [vmem:[%s161] ss:$2 sm:$0xf]
    %v163 = vpack.c.bf16 %v162, %v162
    %v165 = vrot.slane %v163, 6
    %167 = vst [vmem:[#allocation4 + $0x40] sm:$0xc] %v165
    %s168 = scalar_lea.vmem %s0, 65
    %v169 = vld [vmem:[%s168] ss:$2 sm:$0xf]
    %v170 = vpack.c.bf16 %v169, %v169
    %v172 = vrot.slane %v170, 6
    %174 = vst [vmem:[#allocation4 + $0x48] sm:$0xc] %v172
    %s175 = scalar_lea.vmem %s0, 66
    %v176 = vld [vmem:[%s175] ss:$2 sm:$0xf]
    %v177 = vpack.c.bf16 %v176, %v176
    %v179 = vrot.slane %v177, 6
    %181 = vst [vmem:[#allocation4 + $0x50] sm:$0xc] %v179
    %s182 = scalar_lea.vmem %s0, 67
    %v183 = vld [vmem:[%s182] ss:$2 sm:$0xf]
    %v184 = vpack.c.bf16 %v183, %v183
    %v186 = vrot.slane %v184, 6
    %188 = vst [vmem:[#allocation4 + $0x58] sm:$0xc] %v186
    %s189 = scalar_lea.vmem %s0, 80
    %v190 = vld [vmem:[%s189] ss:$2 sm:$0xf]
    %v191 = vpack.c.bf16 %v190, %v190
    %v193 = vrot.slane %v191, 6
    %195 = vst [vmem:[#allocation4 + $0x60] sm:$0xc] %v193
    %s196 = scalar_lea.vmem %s0, 81
    %v197 = vld [vmem:[%s196] ss:$2 sm:$0xf]
    %v198 = vpack.c.bf16 %v197, %v197
    %v200 = vrot.slane %v198, 6
    %202 = vst [vmem:[#allocation4 + $0x68] sm:$0xc] %v200
    %s203 = scalar_lea.vmem %s0, 82
    %v204 = vld [vmem:[%s203] ss:$2 sm:$0xf]
    %v205 = vpack.c.bf16 %v204, %v204
    %v207 = vrot.slane %v205, 6
    %209 = vst [vmem:[#allocation4 + $0x70] sm:$0xc] %v207
    %s210 = scalar_lea.vmem %s0, 83
    %v211 = vld [vmem:[%s210] ss:$2 sm:$0xf]
    %v212 = vpack.c.bf16 %v211, %v211
    %v214 = vrot.slane %v212, 6
    %216 = vst [vmem:[#allocation4 + $0x78] sm:$0xc] %v214
    %v217 = vld [vmem:[%s161] ss:$2 sm:$0xf]
    %v218 = vpack.c.bf16 %v217, %v217
    %v220 = vrot.slane %v218, 4
    %222 = vst [vmem:[#allocation4] sm:$0x30] %v220
    %v223 = vld [vmem:[%s168] ss:$2 sm:$0xf]
    %v224 = vpack.c.bf16 %v223, %v223
    %v226 = vrot.slane %v224, 4
    %228 = vst [vmem:[#allocation4 + $0x8] sm:$0x30] %v226
    %v229 = vld [vmem:[%s175] ss:$2 sm:$0xf]
    %v230 = vpack.c.bf16 %v229, %v229
    %v232 = vrot.slane %v230, 4
    %234 = vst [vmem:[#allocation4 + $0x10] sm:$0x30] %v232
    %v235 = vld [vmem:[%s182] ss:$2 sm:$0xf]
    %v236 = vpack.c.bf16 %v235, %v235
    %v238 = vrot.slane %v236, 4
    %240 = vst [vmem:[#allocation4 + $0x18] sm:$0x30] %v238
    %v241 = vld [vmem:[%s189] ss:$2 sm:$0xf]
    %v242 = vpack.c.bf16 %v241, %v241
    %v244 = vrot.slane %v242, 4
    %246 = vst [vmem:[#allocation4 + $0x20] sm:$0x30] %v244
    %v247 = vld [vmem:[%s196] ss:$2 sm:$0xf]
    %v248 = vpack.c.bf16 %v247, %v247
    %v250 = vrot.slane %v248, 4
    %252 = vst [vmem:[#allocation4 + $0x28] sm:$0x30] %v250
    %v253 = vld [vmem:[%s203] ss:$2 sm:$0xf]
    %v254 = vpack.c.bf16 %v253, %v253
    %v256 = vrot.slane %v254, 4
    %258 = vst [vmem:[#allocation4 + $0x30] sm:$0x30] %v256
    %v259 = vld [vmem:[%s210] ss:$2 sm:$0xf]
    %v260 = vpack.c.bf16 %v259, %v259
    %v262 = vrot.slane %v260, 4
    %264 = vst [vmem:[#allocation4 + $0x38] sm:$0x30] %v262
    %s265 = scalar_lea.vmem %s0, 96
    %v266 = vld [vmem:[%s265] ss:$2 sm:$0xf]
    %v267 = vpack.c.bf16 %v266, %v266
    %v269 = vrot.slane %v267, 4
    %271 = vst [vmem:[#allocation4 + $0x40] sm:$0x30] %v269
    %s272 = scalar_lea.vmem %s0, 97
    %v273 = vld [vmem:[%s272] ss:$2 sm:$0xf]
    %v274 = vpack.c.bf16 %v273, %v273
    %v276 = vrot.slane %v274, 4
    %278 = vst [vmem:[#allocation4 + $0x48] sm:$0x30] %v276
    %s279 = scalar_lea.vmem %s0, 98
    %v280 = vld [vmem:[%s279] ss:$2 sm:$0xf]
    %v281 = vpack.c.bf16 %v280, %v280
    %v283 = vrot.slane %v281, 4
    %285 = vst [vmem:[#allocation4 + $0x50] sm:$0x30] %v283
    %s286 = scalar_lea.vmem %s0, 99
    %v287 = vld [vmem:[%s286] ss:$2 sm:$0xf]
    %v288 = vpack.c.bf16 %v287, %v287
    %v290 = vrot.slane %v288, 4
    %292 = vst [vmem:[#allocation4 + $0x58] sm:$0x30] %v290
    %s293 = scalar_lea.vmem %s0, 112
    %v294 = vld [vmem:[%s293] ss:$2 sm:$0xf]
    %v295 = vpack.c.bf16 %v294, %v294
    %v297 = vrot.slane %v295, 4
    %299 = vst [vmem:[#allocation4 + $0x60] sm:$0x30] %v297
    %s300 = scalar_lea.vmem %s0, 113
    %v301 = vld [vmem:[%s300] ss:$2 sm:$0xf]
    %v302 = vpack.c.bf16 %v301, %v301
    %v304 = vrot.slane %v302, 4
    %306 = vst [vmem:[#allocation4 + $0x68] sm:$0x30] %v304
    %s307 = scalar_lea.vmem %s0, 114
    %v308 = vld [vmem:[%s307] ss:$2 sm:$0xf]
    %v309 = vpack.c.bf16 %v308, %v308
    %v311 = vrot.slane %v309, 4
    %313 = vst [vmem:[#allocation4 + $0x70] sm:$0x30] %v311
    %s314 = scalar_lea.vmem %s0, 115
    %v315 = vld [vmem:[%s314] ss:$2 sm:$0xf]
    %v316 = vpack.c.bf16 %v315, %v315
    %v318 = vrot.slane %v316, 4
    %320 = vst [vmem:[#allocation4 + $0x78] sm:$0x30] %v318
    %v321 = vld [vmem:[%s265] ss:$2 sm:$0xf]
    %v322 = vpack.c.bf16 %v321, %v321
    %v324 = vrot.slane %v322, 2
    %326 = vst [vmem:[#allocation4] sm:$0xc0] %v324
    %v327 = vld [vmem:[%s272] ss:$2 sm:$0xf]
    %v328 = vpack.c.bf16 %v327, %v327
    %v330 = vrot.slane %v328, 2
    %332 = vst [vmem:[#allocation4 + $0x8] sm:$0xc0] %v330
    %v333 = vld [vmem:[%s279] ss:$2 sm:$0xf]
    %v334 = vpack.c.bf16 %v333, %v333
    %v336 = vrot.slane %v334, 2
    %338 = vst [vmem:[#allocation4 + $0x10] sm:$0xc0] %v336
    %v339 = vld [vmem:[%s286] ss:$2 sm:$0xf]
    %v340 = vpack.c.bf16 %v339, %v339
    %v342 = vrot.slane %v340, 2
    %344 = vst [vmem:[#allocation4 + $0x18] sm:$0xc0] %v342
    %v345 = vld [vmem:[%s293] ss:$2 sm:$0xf]
    %v346 = vpack.c.bf16 %v345, %v345
    %v348 = vrot.slane %v346, 2
    %350 = vst [vmem:[#allocation4 + $0x20] sm:$0xc0] %v348
    %v351 = vld [vmem:[%s300] ss:$2 sm:$0xf]
    %v352 = vpack.c.bf16 %v351, %v351
    %v354 = vrot.slane %v352, 2
    %356 = vst [vmem:[#allocation4 + $0x28] sm:$0xc0] %v354
    %v357 = vld [vmem:[%s307] ss:$2 sm:$0xf]
    %v358 = vpack.c.bf16 %v357, %v357
    %v360 = vrot.slane %v358, 2
    %362 = vst [vmem:[#allocation4 + $0x30] sm:$0xc0] %v360
    %v363 = vld [vmem:[%s314] ss:$2 sm:$0xf]
    %v364 = vpack.c.bf16 %v363, %v363
    %v366 = vrot.slane %v364, 2
    %368 = vst [vmem:[#allocation4 + $0x38] sm:$0xc0] %v366
    %s369 = scalar_lea.vmem %s0, 128
    %v370 = vld [vmem:[%s369] ss:$2 sm:$0xf]
    %v371 = vpack.c.bf16 %v370, %v370
    %v373 = vrot.slane %v371, 2
    %375 = vst [vmem:[#allocation4 + $0x40] sm:$0xc0] %v373
    %s376 = scalar_lea.vmem %s0, 129
    %v377 = vld [vmem:[%s376] ss:$2 sm:$0xf]
    %v378 = vpack.c.bf16 %v377, %v377
    %v380 = vrot.slane %v378, 2
    %382 = vst [vmem:[#allocation4 + $0x48] sm:$0xc0] %v380
    %s383 = scalar_lea.vmem %s0, 130
    %v384 = vld [vmem:[%s383] ss:$2 sm:$0xf]
    %v385 = vpack.c.bf16 %v384, %v384
    %v387 = vrot.slane %v385, 2
    %389 = vst [vmem:[#allocation4 + $0x50] sm:$0xc0] %v387
    %s390 = scalar_lea.vmem %s0, 131
    %v391 = vld [vmem:[%s390] ss:$2 sm:$0xf]
    %v392 = vpack.c.bf16 %v391, %v391
    %v394 = vrot.slane %v392, 2
    %396 = vst [vmem:[#allocation4 + $0x58] sm:$0xc0] %v394
    %s397 = scalar_lea.vmem %s0, 144
    %v398 = vld [vmem:[%s397] ss:$2 sm:$0xf]
    %v399 = vpack.c.bf16 %v398, %v398
    %v401 = vrot.slane %v399, 2
    %403 = vst [vmem:[#allocation4 + $0x60] sm:$0xc0] %v401
    %s404 = scalar_lea.vmem %s0, 145
    %v405 = vld [vmem:[%s404] ss:$2 sm:$0xf]
    %v406 = vpack.c.bf16 %v405, %v405
    %v408 = vrot.slane %v406, 2
    %410 = vst [vmem:[#allocation4 + $0x68] sm:$0xc0] %v408
    %s411 = scalar_lea.vmem %s0, 146
    %v412 = vld [vmem:[%s411] ss:$2 sm:$0xf]
    %v413 = vpack.c.bf16 %v412, %v412
    %v415 = vrot.slane %v413, 2
    %417 = vst [vmem:[#allocation4 + $0x70] sm:$0xc0] %v415
    %s418 = scalar_lea.vmem %s0, 147
    %v419 = vld [vmem:[%s418] ss:$2 sm:$0xf]
    %v420 = vpack.c.bf16 %v419, %v419
    %v422 = vrot.slane %v420, 2
    %424 = vst [vmem:[#allocation4 + $0x78] sm:$0xc0] %v422
    %s425 = scalar_lea.vmem %s0, 256
    %v426 = vld [vmem:[%s425] ss:$2 sm:$0xf]
    %v427 = vpack.c.bf16 %v426, %v426
    %428 = vst [vmem:[#allocation4 + $0x80] sm:$0x3] %v427
    %s429 = scalar_lea.vmem %s0, 257
    %v430 = vld [vmem:[%s429] ss:$2 sm:$0xf]
    %v431 = vpack.c.bf16 %v430, %v430
    %432 = vst [vmem:[#allocation4 + $0x88] sm:$0x3] %v431
    %s433 = scalar_lea.vmem %s0, 258
    %v434 = vld [vmem:[%s433] ss:$2 sm:$0xf]
    %v435 = vpack.c.bf16 %v434, %v434
    %436 = vst [vmem:[#allocation4 + $0x90] sm:$0x3] %v435
    %s437 = scalar_lea.vmem %s0, 259
    %v438 = vld [vmem:[%s437] ss:$2 sm:$0xf]
    %v439 = vpack.c.bf16 %v438, %v438
    %440 = vst [vmem:[#allocation4 + $0x98] sm:$0x3] %v439
    %s441 = scalar_lea.vmem %s0, 272
    %v442 = vld [vmem:[%s441] ss:$2 sm:$0xf]
    %v443 = vpack.c.bf16 %v442, %v442
    %444 = vst [vmem:[#allocation4 + $0xa0] sm:$0x3] %v443
    %s445 = scalar_lea.vmem %s0, 273
    %v446 = vld [vmem:[%s445] ss:$2 sm:$0xf]
    %v447 = vpack.c.bf16 %v446, %v446
    %448 = vst [vmem:[#allocation4 + $0xa8] sm:$0x3] %v447
    %s449 = scalar_lea.vmem %s0, 274
    %v450 = vld [vmem:[%s449] ss:$2 sm:$0xf]
    %v451 = vpack.c.bf16 %v450, %v450
    %452 = vst [vmem:[#allocation4 + $0xb0] sm:$0x3] %v451
    %s453 = scalar_lea.vmem %s0, 275
    %v454 = vld [vmem:[%s453] ss:$2 sm:$0xf]
    %v455 = vpack.c.bf16 %v454, %v454
    %456 = vst [vmem:[#allocation4 + $0xb8] sm:$0x3] %v455
    %s457 = scalar_lea.vmem %s0, 288
    %v458 = vld [vmem:[%s457] ss:$2 sm:$0xf]
    %v459 = vpack.c.bf16 %v458, %v458
    %460 = vst [vmem:[#allocation4 + $0xc0] sm:$0x3] %v459
    %s461 = scalar_lea.vmem %s0, 289
    %v462 = vld [vmem:[%s461] ss:$2 sm:$0xf]
    %v463 = vpack.c.bf16 %v462, %v462
    %464 = vst [vmem:[#allocation4 + $0xc8] sm:$0x3] %v463
    %s465 = scalar_lea.vmem %s0, 290
    %v466 = vld [vmem:[%s465] ss:$2 sm:$0xf]
    %v467 = vpack.c.bf16 %v466, %v466
    %468 = vst [vmem:[#allocation4 + $0xd0] sm:$0x3] %v467
    %s469 = scalar_lea.vmem %s0, 291
    %v470 = vld [vmem:[%s469] ss:$2 sm:$0xf]
    %v471 = vpack.c.bf16 %v470, %v470
    %472 = vst [vmem:[#allocation4 + $0xd8] sm:$0x3] %v471
    %s473 = scalar_lea.vmem %s0, 304
    %v474 = vld [vmem:[%s473] ss:$2 sm:$0xf]
    %v475 = vpack.c.bf16 %v474, %v474
    %476 = vst [vmem:[#allocation4 + $0xe0] sm:$0x3] %v475
    %s477 = scalar_lea.vmem %s0, 305
    %v478 = vld [vmem:[%s477] ss:$2 sm:$0xf]
    %v479 = vpack.c.bf16 %v478, %v478
    %480 = vst [vmem:[#allocation4 + $0xe8] sm:$0x3] %v479
    %s481 = scalar_lea.vmem %s0, 306
    %v482 = vld [vmem:[%s481] ss:$2 sm:$0xf]
    %v483 = vpack.c.bf16 %v482, %v482
    %484 = vst [vmem:[#allocation4 + $0xf0] sm:$0x3] %v483
    %s485 = scalar_lea.vmem %s0, 307
    %v486 = vld [vmem:[%s485] ss:$2 sm:$0xf]
    %v487 = vpack.c.bf16 %v486, %v486
    %488 = vst [vmem:[#allocation4 + $0xf8] sm:$0x3] %v487
    %v489 = vld [vmem:[%s457] ss:$2 sm:$0xf]
    %v490 = vpack.c.bf16 %v489, %v489
    %v492 = vrot.slane %v490, 6
    %494 = vst [vmem:[#allocation4 + $0x80] sm:$0xc] %v492
    %v495 = vld [vmem:[%s461] ss:$2 sm:$0xf]
    %v496 = vpack.c.bf16 %v495, %v495
    %v498 = vrot.slane %v496, 6
    %500 = vst [vmem:[#allocation4 + $0x88] sm:$0xc] %v498
    %v501 = vld [vmem:[%s465] ss:$2 sm:$0xf]
    %v502 = vpack.c.bf16 %v501, %v501
    %v504 = vrot.slane %v502, 6
    %506 = vst [vmem:[#allocation4 + $0x90] sm:$0xc] %v504
    %v507 = vld [vmem:[%s469] ss:$2 sm:$0xf]
    %v508 = vpack.c.bf16 %v507, %v507
    %v510 = vrot.slane %v508, 6
    %512 = vst [vmem:[#allocation4 + $0x98] sm:$0xc] %v510
    %v513 = vld [vmem:[%s473] ss:$2 sm:$0xf]
    %v514 = vpack.c.bf16 %v513, %v513
    %v516 = vrot.slane %v514, 6
    %518 = vst [vmem:[#allocation4 + $0xa0] sm:$0xc] %v516
    %v519 = vld [vmem:[%s477] ss:$2 sm:$0xf]
    %v520 = vpack.c.bf16 %v519, %v519
    %v522 = vrot.slane %v520, 6
    %524 = vst [vmem:[#allocation4 + $0xa8] sm:$0xc] %v522
    %v525 = vld [vmem:[%s481] ss:$2 sm:$0xf]
    %v526 = vpack.c.bf16 %v525, %v525
    %v528 = vrot.slane %v526, 6
    %530 = vst [vmem:[#allocation4 + $0xb0] sm:$0xc] %v528
    %v531 = vld [vmem:[%s485] ss:$2 sm:$0xf]
    %v532 = vpack.c.bf16 %v531, %v531
    %v534 = vrot.slane %v532, 6
    %536 = vst [vmem:[#allocation4 + $0xb8] sm:$0xc] %v534
    %s537 = scalar_lea.vmem %s0, 320
    %v538 = vld [vmem:[%s537] ss:$2 sm:$0xf]
    %v539 = vpack.c.bf16 %v538, %v538
    %v541 = vrot.slane %v539, 6
    %543 = vst [vmem:[#allocation4 + $0xc0] sm:$0xc] %v541
    %s544 = scalar_lea.vmem %s0, 321
    %v545 = vld [vmem:[%s544] ss:$2 sm:$0xf]
    %v546 = vpack.c.bf16 %v545, %v545
    %v548 = vrot.slane %v546, 6
    %550 = vst [vmem:[#allocation4 + $0xc8] sm:$0xc] %v548
    %s551 = scalar_lea.vmem %s0, 322
    %v552 = vld [vmem:[%s551] ss:$2 sm:$0xf]
    %v553 = vpack.c.bf16 %v552, %v552
    %v555 = vrot.slane %v553, 6
    %557 = vst [vmem:[#allocation4 + $0xd0] sm:$0xc] %v555
    %s558 = scalar_lea.vmem %s0, 323
    %v559 = vld [vmem:[%s558] ss:$2 sm:$0xf]
    %v560 = vpack.c.bf16 %v559, %v559
    %v562 = vrot.slane %v560, 6
    %564 = vst [vmem:[#allocation4 + $0xd8] sm:$0xc] %v562
    %s565 = scalar_lea.vmem %s0, 336
    %v566 = vld [vmem:[%s565] ss:$2 sm:$0xf]
    %v567 = vpack.c.bf16 %v566, %v566
    %v569 = vrot.slane %v567, 6
    %571 = vst [vmem:[#allocation4 + $0xe0] sm:$0xc] %v569
    %s572 = scalar_lea.vmem %s0, 337
    %v573 = vld [vmem:[%s572] ss:$2 sm:$0xf]
    %v574 = vpack.c.bf16 %v573, %v573
    %v576 = vrot.slane %v574, 6
    %578 = vst [vmem:[#allocation4 + $0xe8] sm:$0xc] %v576
    %s579 = scalar_lea.vmem %s0, 338
    %v580 = vld [vmem:[%s579] ss:$2 sm:$0xf]
    %v581 = vpack.c.bf16 %v580, %v580
    %v583 = vrot.slane %v581, 6
    %585 = vst [vmem:[#allocation4 + $0xf0] sm:$0xc] %v583
    %s586 = scalar_lea.vmem %s0, 339
    %v587 = vld [vmem:[%s586] ss:$2 sm:$0xf]
    %v588 = vpack.c.bf16 %v587, %v587
    %v590 = vrot.slane %v588, 6
    %592 = vst [vmem:[#allocation4 + $0xf8] sm:$0xc] %v590
    %v593 = vld [vmem:[%s537] ss:$2 sm:$0xf]
    %v594 = vpack.c.bf16 %v593, %v593
    %v596 = vrot.slane %v594, 4
    %598 = vst [vmem:[#allocation4 + $0x80] sm:$0x30] %v596
    %v599 = vld [vmem:[%s544] ss:$2 sm:$0xf]
    %v600 = vpack.c.bf16 %v599, %v599
    %v602 = vrot.slane %v600, 4
    %604 = vst [vmem:[#allocation4 + $0x88] sm:$0x30] %v602
    %v605 = vld [vmem:[%s551] ss:$2 sm:$0xf]
    %v606 = vpack.c.bf16 %v605, %v605
    %v608 = vrot.slane %v606, 4
    %610 = vst [vmem:[#allocation4 + $0x90] sm:$0x30] %v608
    %v611 = vld [vmem:[%s558] ss:$2 sm:$0xf]
    %v612 = vpack.c.bf16 %v611, %v611
    %v614 = vrot.slane %v612, 4
    %616 = vst [vmem:[#allocation4 + $0x98] sm:$0x30] %v614
    %v617 = vld [vmem:[%s565] ss:$2 sm:$0xf]
    %v618 = vpack.c.bf16 %v617, %v617
    %v620 = vrot.slane %v618, 4
    %622 = vst [vmem:[#allocation4 + $0xa0] sm:$0x30] %v620
    %v623 = vld [vmem:[%s572] ss:$2 sm:$0xf]
    %v624 = vpack.c.bf16 %v623, %v623
    %v626 = vrot.slane %v624, 4
    %628 = vst [vmem:[#allocation4 + $0xa8] sm:$0x30] %v626
    %v629 = vld [vmem:[%s579] ss:$2 sm:$0xf]
    %v630 = vpack.c.bf16 %v629, %v629
    %v632 = vrot.slane %v630, 4
    %634 = vst [vmem:[#allocation4 + $0xb0] sm:$0x30] %v632
    %v635 = vld [vmem:[%s586] ss:$2 sm:$0xf]
    %v636 = vpack.c.bf16 %v635, %v635
    %v638 = vrot.slane %v636, 4
    %640 = vst [vmem:[#allocation4 + $0xb8] sm:$0x30] %v638
    %s641 = scalar_lea.vmem %s0, 352
    %v642 = vld [vmem:[%s641] ss:$2 sm:$0xf]
    %v643 = vpack.c.bf16 %v642, %v642
    %v645 = vrot.slane %v643, 4
    %647 = vst [vmem:[#allocation4 + $0xc0] sm:$0x30] %v645
    %s648 = scalar_lea.vmem %s0, 353
    %v649 = vld [vmem:[%s648] ss:$2 sm:$0xf]
    %v650 = vpack.c.bf16 %v649, %v649
    %v652 = vrot.slane %v650, 4
    %654 = vst [vmem:[#allocation4 + $0xc8] sm:$0x30] %v652
    %s655 = scalar_lea.vmem %s0, 354
    %v656 = vld [vmem:[%s655] ss:$2 sm:$0xf]
    %v657 = vpack.c.bf16 %v656, %v656
    %v659 = vrot.slane %v657, 4
    %661 = vst [vmem:[#allocation4 + $0xd0] sm:$0x30] %v659
    %s662 = scalar_lea.vmem %s0, 355
    %v663 = vld [vmem:[%s662] ss:$2 sm:$0xf]
    %v664 = vpack.c.bf16 %v663, %v663
    %v666 = vrot.slane %v664, 4
    %668 = vst [vmem:[#allocation4 + $0xd8] sm:$0x30] %v666
    %s669 = scalar_lea.vmem %s0, 368
    %v670 = vld [vmem:[%s669] ss:$2 sm:$0xf]
    %v671 = vpack.c.bf16 %v670, %v670
    %v673 = vrot.slane %v671, 4
    %675 = vst [vmem:[#allocation4 + $0xe0] sm:$0x30] %v673
    %s676 = scalar_lea.vmem %s0, 369
    %v677 = vld [vmem:[%s676] ss:$2 sm:$0xf]
    %v678 = vpack.c.bf16 %v677, %v677
    %v680 = vrot.slane %v678, 4
    %682 = vst [vmem:[#allocation4 + $0xe8] sm:$0x30] %v680
    %s683 = scalar_lea.vmem %s0, 370
    %v684 = vld [vmem:[%s683] ss:$2 sm:$0xf]
    %v685 = vpack.c.bf16 %v684, %v684
    %v687 = vrot.slane %v685, 4
    %689 = vst [vmem:[#allocation4 + $0xf0] sm:$0x30] %v687
    %s690 = scalar_lea.vmem %s0, 371
    %v691 = vld [vmem:[%s690] ss:$2 sm:$0xf]
    %v692 = vpack.c.bf16 %v691, %v691
    %v694 = vrot.slane %v692, 4
    %696 = vst [vmem:[#allocation4 + $0xf8] sm:$0x30] %v694
    %v697 = vld [vmem:[%s641] ss:$2 sm:$0xf]
    %v698 = vpack.c.bf16 %v697, %v697
    %v700 = vrot.slane %v698, 2
    %702 = vst [vmem:[#allocation4 + $0x80] sm:$0xc0] %v700
    %v703 = vld [vmem:[%s648] ss:$2 sm:$0xf]
    %v704 = vpack.c.bf16 %v703, %v703
    %v706 = vrot.slane %v704, 2
    %708 = vst [vmem:[#allocation4 + $0x88] sm:$0xc0] %v706
    %v709 = vld [vmem:[%s655] ss:$2 sm:$0xf]
    %v710 = vpack.c.bf16 %v709, %v709
    %v712 = vrot.slane %v710, 2
    %714 = vst [vmem:[#allocation4 + $0x90] sm:$0xc0] %v712
    %v715 = vld [vmem:[%s662] ss:$2 sm:$0xf]
    %v716 = vpack.c.bf16 %v715, %v715
    %v718 = vrot.slane %v716, 2
    %720 = vst [vmem:[#allocation4 + $0x98] sm:$0xc0] %v718
    %v721 = vld [vmem:[%s669] ss:$2 sm:$0xf]
    %v722 = vpack.c.bf16 %v721, %v721
    %v724 = vrot.slane %v722, 2
    %726 = vst [vmem:[#allocation4 + $0xa0] sm:$0xc0] %v724
    %v727 = vld [vmem:[%s676] ss:$2 sm:$0xf]
    %v728 = vpack.c.bf16 %v727, %v727
    %v730 = vrot.slane %v728, 2
    %732 = vst [vmem:[#allocation4 + $0xa8] sm:$0xc0] %v730
    %v733 = vld [vmem:[%s683] ss:$2 sm:$0xf]
    %v734 = vpack.c.bf16 %v733, %v733
    %v736 = vrot.slane %v734, 2
    %738 = vst [vmem:[#allocation4 + $0xb0] sm:$0xc0] %v736
    %v739 = vld [vmem:[%s690] ss:$2 sm:$0xf]
    %v740 = vpack.c.bf16 %v739, %v739
    %v742 = vrot.slane %v740, 2
    %744 = vst [vmem:[#allocation4 + $0xb8] sm:$0xc0] %v742
    %s745 = scalar_lea.vmem %s0, 384
    %v746 = vld [vmem:[%s745] ss:$2 sm:$0xf]
    %v747 = vpack.c.bf16 %v746, %v746
    %v749 = vrot.slane %v747, 2
    %751 = vst [vmem:[#allocation4 + $0xc0] sm:$0xc0] %v749
    %s752 = scalar_lea.vmem %s0, 385
    %v753 = vld [vmem:[%s752] ss:$2 sm:$0xf]
    %v754 = vpack.c.bf16 %v753, %v753
    %v756 = vrot.slane %v754, 2
    %758 = vst [vmem:[#allocation4 + $0xc8] sm:$0xc0] %v756
    %s759 = scalar_lea.vmem %s0, 386
    %v760 = vld [vmem:[%s759] ss:$2 sm:$0xf]
    %v761 = vpack.c.bf16 %v760, %v760
    %v763 = vrot.slane %v761, 2
    %765 = vst [vmem:[#allocation4 + $0xd0] sm:$0xc0] %v763
    %s766 = scalar_lea.vmem %s0, 387
    %v767 = vld [vmem:[%s766] ss:$2 sm:$0xf]
    %v768 = vpack.c.bf16 %v767, %v767
    %v770 = vrot.slane %v768, 2
    %772 = vst [vmem:[#allocation4 + $0xd8] sm:$0xc0] %v770
    %s773 = scalar_lea.vmem %s0, 400
    %v774 = vld [vmem:[%s773] ss:$2 sm:$0xf]
    %v775 = vpack.c.bf16 %v774, %v774
    %v777 = vrot.slane %v775, 2
    %779 = vst [vmem:[#allocation4 + $0xe0] sm:$0xc0] %v777
    %s780 = scalar_lea.vmem %s0, 401
    %v781 = vld [vmem:[%s780] ss:$2 sm:$0xf]
    %v782 = vpack.c.bf16 %v781, %v781
    %v784 = vrot.slane %v782, 2
    %786 = vst [vmem:[#allocation4 + $0xe8] sm:$0xc0] %v784
    %s787 = scalar_lea.vmem %s0, 402
    %v788 = vld [vmem:[%s787] ss:$2 sm:$0xf]
    %v789 = vpack.c.bf16 %v788, %v788
    %v791 = vrot.slane %v789, 2
    %793 = vst [vmem:[#allocation4 + $0xf0] sm:$0xc0] %v791
    %s794 = scalar_lea.vmem %s0, 403
    %v795 = vld [vmem:[%s794] ss:$2 sm:$0xf]
    %v796 = vpack.c.bf16 %v795, %v795
    %v798 = vrot.slane %v796, 2
    %800 = vst [vmem:[#allocation4 + $0xf8] sm:$0xc0] %v798
    %v801 = vld [vmem:[#allocation4] sm:$0xff]
    %v802 = vld [vmem:[#allocation4 + $0x8] sm:$0xff]
    %v803 = vld [vmem:[#allocation4 + $0x10] sm:$0xff]
    %v804 = vld [vmem:[#allocation4 + $0x18] sm:$0xff]
    %v805 = vld [vmem:[#allocation4 + $0x20] sm:$0xff]
    %v806 = vld [vmem:[#allocation4 + $0x28] sm:$0xff]
    %v807 = vld [vmem:[#allocation4 + $0x30] sm:$0xff]
    %v808 = vld [vmem:[#allocation4 + $0x38] sm:$0xff]
    %v809 = vld [vmem:[#allocation4 + $0x40] sm:$0xff]
    %v810 = vld [vmem:[#allocation4 + $0x48] sm:$0xff]
    %v811 = vld [vmem:[#allocation4 + $0x50] sm:$0xff]
    %v812 = vld [vmem:[#allocation4 + $0x58] sm:$0xff]
    %v813 = vld [vmem:[#allocation4 + $0x60] sm:$0xff]
    %v814 = vld [vmem:[#allocation4 + $0x68] sm:$0xff]
    %v815 = vld [vmem:[#allocation4 + $0x70] sm:$0xff]
    %v816 = vld [vmem:[#allocation4 + $0x78] sm:$0xff]
    %v817 = vld [vmem:[#allocation4 + $0x80] sm:$0xff]
    %v818 = vld [vmem:[#allocation4 + $0x88] sm:$0xff]
    %v819 = vld [vmem:[#allocation4 + $0x90] sm:$0xff]
    %v820 = vld [vmem:[#allocation4 + $0x98] sm:$0xff]
    %v821 = vld [vmem:[#allocation4 + $0xa0] sm:$0xff]
    %v822 = vld [vmem:[#allocation4 + $0xa8] sm:$0xff]
    %v823 = vld [vmem:[#allocation4 + $0xb0] sm:$0xff]
    %v824 = vld [vmem:[#allocation4 + $0xb8] sm:$0xff]
    %v825 = vld [vmem:[#allocation4 + $0xc0] sm:$0xff]
    %v826 = vld [vmem:[#allocation4 + $0xc8] sm:$0xff]
    %v827 = vld [vmem:[#allocation4 + $0xd0] sm:$0xff]
    %v828 = vld [vmem:[#allocation4 + $0xd8] sm:$0xff]
    %v829 = vld [vmem:[#allocation4 + $0xe0] sm:$0xff]
    %v830 = vld [vmem:[#allocation4 + $0xe8] sm:$0xff]
    %v831 = vld [vmem:[#allocation4 + $0xf0] sm:$0xff]
    %v832 = vld [vmem:[#allocation4 + $0xf8] sm:$0xff]
    %v833 = vld [vmem:[%s1] sm:$0xf]
    %v834 = vld [vmem:[%s1 + $0x4] sm:$0xf]
    %v835 = vld [vmem:[%s1 + $0x8] sm:$0xf]
    %v836 = vld [vmem:[%s1 + $0xc] sm:$0xf]
    %v837 = vld [vmem:[%s1 + $0x10] sm:$0xf]
    %v838 = vld [vmem:[%s1 + $0x14] sm:$0xf]
    %v839 = vld [vmem:[%s1 + $0x18] sm:$0xf]
    %v840 = vld [vmem:[%s1 + $0x1c] sm:$0xf]
    %v841 = vld [vmem:[%s1 + $0x20] sm:$0xf]
    %v842 = vld [vmem:[%s1 + $0x24] sm:$0xf]
    %v843 = vld [vmem:[%s1 + $0x28] sm:$0xf]
    %v844 = vld [vmem:[%s1 + $0x2c] sm:$0xf]
    %v845 = vld [vmem:[%s1 + $0x30] sm:$0xf]
    %v846 = vld [vmem:[%s1 + $0x34] sm:$0xf]
    %v847 = vld [vmem:[%s1 + $0x38] sm:$0xf]
    %v848 = vld [vmem:[%s1 + $0x3c] sm:$0xf]
    %v849 = vld [vmem:[%s1 + $0x40] sm:$0xf]
    %v850 = vld [vmem:[%s1 + $0x44] sm:$0xf]
    %v851 = vld [vmem:[%s1 + $0x48] sm:$0xf]
    %v852 = vld [vmem:[%s1 + $0x4c] sm:$0xf]
    %v853 = vld [vmem:[%s1 + $0x50] sm:$0xf]
    %v854 = vld [vmem:[%s1 + $0x54] sm:$0xf]
    %v855 = vld [vmem:[%s1 + $0x58] sm:$0xf]
    %v856 = vld [vmem:[%s1 + $0x5c] sm:$0xf]
    %v857 = vld [vmem:[%s1 + $0x60] sm:$0xf]
    %v858 = vld [vmem:[%s1 + $0x64] sm:$0xf]
    %v859 = vld [vmem:[%s1 + $0x68] sm:$0xf]
    %v860 = vld [vmem:[%s1 + $0x6c] sm:$0xf]
    %v861 = vld [vmem:[%s1 + $0x70] sm:$0xf]
    %v862 = vld [vmem:[%s1 + $0x74] sm:$0xf]
    %v863 = vld [vmem:[%s1 + $0x78] sm:$0xf]
    %v864 = vld [vmem:[%s1 + $0x7c] sm:$0xf]
    %v865 = vld [vmem:[%s1 + $0x80] sm:$0xf]
    %v866 = vld [vmem:[%s1 + $0x84] sm:$0xf]
    %v867 = vld [vmem:[%s1 + $0x88] sm:$0xf]
    %v868 = vld [vmem:[%s1 + $0x8c] sm:$0xf]
    %v869 = vld [vmem:[%s1 + $0x90] sm:$0xf]
    %v870 = vld [vmem:[%s1 + $0x94] sm:$0xf]
    %v871 = vld [vmem:[%s1 + $0x98] sm:$0xf]
    %v872 = vld [vmem:[%s1 + $0x9c] sm:$0xf]
    %v873 = vld [vmem:[%s1 + $0xa0] sm:$0xf]
    %v874 = vld [vmem:[%s1 + $0xa4] sm:$0xf]
    %v875 = vld [vmem:[%s1 + $0xa8] sm:$0xf]
    %v876 = vld [vmem:[%s1 + $0xac] sm:$0xf]
    %v877 = vld [vmem:[%s1 + $0xb0] sm:$0xf]
    %v878 = vld [vmem:[%s1 + $0xb4] sm:$0xf]
    %v879 = vld [vmem:[%s1 + $0xb8] sm:$0xf]
    %v880 = vld [vmem:[%s1 + $0xbc] sm:$0xf]
    %v881 = vld [vmem:[%s1 + $0xc0] sm:$0xf]
    %v882 = vld [vmem:[%s1 + $0xc4] sm:$0xf]
    %v883 = vld [vmem:[%s1 + $0xc8] sm:$0xf]
    %v884 = vld [vmem:[%s1 + $0xcc] sm:$0xf]
    %v885 = vld [vmem:[%s1 + $0xd0] sm:$0xf]
    %v886 = vld [vmem:[%s1 + $0xd4] sm:$0xf]
    %v887 = vld [vmem:[%s1 + $0xd8] sm:$0xf]
    %v888 = vld [vmem:[%s1 + $0xdc] sm:$0xf]
    %v889 = vld [vmem:[%s1 + $0xe0] sm:$0xf]
    %v890 = vld [vmem:[%s1 + $0xe4] sm:$0xf]
    %v891 = vld [vmem:[%s1 + $0xe8] sm:$0xf]
    %v892 = vld [vmem:[%s1 + $0xec] sm:$0xf]
    %v893 = vld [vmem:[%s1 + $0xf0] sm:$0xf]
    %v894 = vld [vmem:[%s1 + $0xf4] sm:$0xf]
    %v895 = vld [vmem:[%s1 + $0xf8] sm:$0xf]
    %v896 = vld [vmem:[%s1 + $0xfc] sm:$0xf]
    %v897 = vld [vmem:[%s1 + $0x100] sm:$0xf]
    %v898 = vld [vmem:[%s1 + $0x104] sm:$0xf]
    %v899 = vld [vmem:[%s1 + $0x108] sm:$0xf]
    %v900 = vld [vmem:[%s1 + $0x10c] sm:$0xf]
    %v901 = vld [vmem:[%s1 + $0x110] sm:$0xf]
    %v902 = vld [vmem:[%s1 + $0x114] sm:$0xf]
    %v903 = vld [vmem:[%s1 + $0x118] sm:$0xf]
    %v904 = vld [vmem:[%s1 + $0x11c] sm:$0xf]
    %v905 = vld [vmem:[%s1 + $0x120] sm:$0xf]
    %v906 = vld [vmem:[%s1 + $0x124] sm:$0xf]
    %v907 = vld [vmem:[%s1 + $0x128] sm:$0xf]
    %v908 = vld [vmem:[%s1 + $0x12c] sm:$0xf]
    %v909 = vld [vmem:[%s1 + $0x130] sm:$0xf]
    %v910 = vld [vmem:[%s1 + $0x134] sm:$0xf]
    %v911 = vld [vmem:[%s1 + $0x138] sm:$0xf]
    %v912 = vld [vmem:[%s1 + $0x13c] sm:$0xf]
    %v913 = vld [vmem:[%s1 + $0x140] sm:$0xf]
    %v914 = vld [vmem:[%s1 + $0x144] sm:$0xf]
    %v915 = vld [vmem:[%s1 + $0x148] sm:$0xf]
    %v916 = vld [vmem:[%s1 + $0x14c] sm:$0xf]
    %v917 = vld [vmem:[%s1 + $0x150] sm:$0xf]
    %v918 = vld [vmem:[%s1 + $0x154] sm:$0xf]
    %v919 = vld [vmem:[%s1 + $0x158] sm:$0xf]
    %v920 = vld [vmem:[%s1 + $0x15c] sm:$0xf]
    %v921 = vld [vmem:[%s1 + $0x160] sm:$0xf]
    %v922 = vld [vmem:[%s1 + $0x164] sm:$0xf]
    %v923 = vld [vmem:[%s1 + $0x168] sm:$0xf]
    %v924 = vld [vmem:[%s1 + $0x16c] sm:$0xf]
    %v925 = vld [vmem:[%s1 + $0x170] sm:$0xf]
    %v926 = vld [vmem:[%s1 + $0x174] sm:$0xf]
    %v927 = vld [vmem:[%s1 + $0x178] sm:$0xf]
    %v928 = vld [vmem:[%s1 + $0x17c] sm:$0xf]
    %v929 = vld [vmem:[%s1 + $0x180] sm:$0xf]
    %v930 = vld [vmem:[%s1 + $0x184] sm:$0xf]
    %v931 = vld [vmem:[%s1 + $0x188] sm:$0xf]
    %v932 = vld [vmem:[%s1 + $0x18c] sm:$0xf]
    %v933 = vld [vmem:[%s1 + $0x190] sm:$0xf]
    %v934 = vld [vmem:[%s1 + $0x194] sm:$0xf]
    %v935 = vld [vmem:[%s1 + $0x198] sm:$0xf]
    %v936 = vld [vmem:[%s1 + $0x19c] sm:$0xf]
    %v937 = vld [vmem:[%s1 + $0x1a0] sm:$0xf]
    %v938 = vld [vmem:[%s1 + $0x1a4] sm:$0xf]
    %v939 = vld [vmem:[%s1 + $0x1a8] sm:$0xf]
    %v940 = vld [vmem:[%s1 + $0x1ac] sm:$0xf]
    %v941 = vld [vmem:[%s1 + $0x1b0] sm:$0xf]
    %v942 = vld [vmem:[%s1 + $0x1b4] sm:$0xf]
    %v943 = vld [vmem:[%s1 + $0x1b8] sm:$0xf]
    %v944 = vld [vmem:[%s1 + $0x1bc] sm:$0xf]
    %v945 = vld [vmem:[%s1 + $0x1c0] sm:$0xf]
    %v946 = vld [vmem:[%s1 + $0x1c4] sm:$0xf]
    %v947 = vld [vmem:[%s1 + $0x1c8] sm:$0xf]
    %v948 = vld [vmem:[%s1 + $0x1cc] sm:$0xf]
    %v949 = vld [vmem:[%s1 + $0x1d0] sm:$0xf]
    %v950 = vld [vmem:[%s1 + $0x1d4] sm:$0xf]
    %v951 = vld [vmem:[%s1 + $0x1d8] sm:$0xf]
    %v952 = vld [vmem:[%s1 + $0x1dc] sm:$0xf]
    %v953 = vld [vmem:[%s1 + $0x1e0] sm:$0xf]
    %v954 = vld [vmem:[%s1 + $0x1e4] sm:$0xf]
    %v955 = vld [vmem:[%s1 + $0x1e8] sm:$0xf]
    %v956 = vld [vmem:[%s1 + $0x1ec] sm:$0xf]
    %v957 = vld [vmem:[%s1 + $0x1f0] sm:$0xf]
    %v958 = vld [vmem:[%s1 + $0x1f4] sm:$0xf]
    %v959 = vld [vmem:[%s1 + $0x1f8] sm:$0xf]
    %v960 = vld [vmem:[%s1 + $0x1fc] sm:$0xf]
    %v961 = vld [vmem:[%s1 + $0x200] sm:$0xf]
    %v962 = vld [vmem:[%s1 + $0x204] sm:$0xf]
    %v963 = vld [vmem:[%s1 + $0x208] sm:$0xf]
    %v964 = vld [vmem:[%s1 + $0x20c] sm:$0xf]
    %v965 = vld [vmem:[%s1 + $0x210] sm:$0xf]
    %v966 = vld [vmem:[%s1 + $0x214] sm:$0xf]
    %v967 = vld [vmem:[%s1 + $0x218] sm:$0xf]
    %v968 = vld [vmem:[%s1 + $0x21c] sm:$0xf]
    %v969 = vld [vmem:[%s1 + $0x220] sm:$0xf]
    %v970 = vld [vmem:[%s1 + $0x224] sm:$0xf]
    %v971 = vld [vmem:[%s1 + $0x228] sm:$0xf]
    %v972 = vld [vmem:[%s1 + $0x22c] sm:$0xf]
    %v973 = vld [vmem:[%s1 + $0x230] sm:$0xf]
    %v974 = vld [vmem:[%s1 + $0x234] sm:$0xf]
    %v975 = vld [vmem:[%s1 + $0x238] sm:$0xf]
    %v976 = vld [vmem:[%s1 + $0x23c] sm:$0xf]
    %v977 = vld [vmem:[%s1 + $0x240] sm:$0xf]
    %v978 = vld [vmem:[%s1 + $0x244] sm:$0xf]
    %v979 = vld [vmem:[%s1 + $0x248] sm:$0xf]
    %v980 = vld [vmem:[%s1 + $0x24c] sm:$0xf]
    %v981 = vld [vmem:[%s1 + $0x250] sm:$0xf]
    %v982 = vld [vmem:[%s1 + $0x254] sm:$0xf]
    %v983 = vld [vmem:[%s1 + $0x258] sm:$0xf]
    %v984 = vld [vmem:[%s1 + $0x25c] sm:$0xf]
    %v985 = vld [vmem:[%s1 + $0x260] sm:$0xf]
    %v986 = vld [vmem:[%s1 + $0x264] sm:$0xf]
    %v987 = vld [vmem:[%s1 + $0x268] sm:$0xf]
    %v988 = vld [vmem:[%s1 + $0x26c] sm:$0xf]
    %v989 = vld [vmem:[%s1 + $0x270] sm:$0xf]
    %v990 = vld [vmem:[%s1 + $0x274] sm:$0xf]
    %v991 = vld [vmem:[%s1 + $0x278] sm:$0xf]
    %v992 = vld [vmem:[%s1 + $0x27c] sm:$0xf]
    %v993 = vld [vmem:[%s1 + $0x280] sm:$0xf]
    %v994 = vld [vmem:[%s1 + $0x284] sm:$0xf]
    %v995 = vld [vmem:[%s1 + $0x288] sm:$0xf]
    %v996 = vld [vmem:[%s1 + $0x28c] sm:$0xf]
    %v997 = vld [vmem:[%s1 + $0x290] sm:$0xf]
    %v998 = vld [vmem:[%s1 + $0x294] sm:$0xf]
    %v999 = vld [vmem:[%s1 + $0x298] sm:$0xf]
    %v1000 = vld [vmem:[%s1 + $0x29c] sm:$0xf]
    %v1001 = vld [vmem:[%s1 + $0x2a0] sm:$0xf]
    %v1002 = vld [vmem:[%s1 + $0x2a4] sm:$0xf]
    %v1003 = vld [vmem:[%s1 + $0x2a8] sm:$0xf]
    %v1004 = vld [vmem:[%s1 + $0x2ac] sm:$0xf]
    %v1005 = vld [vmem:[%s1 + $0x2b0] sm:$0xf]
    %v1006 = vld [vmem:[%s1 + $0x2b4] sm:$0xf]
    %v1007 = vld [vmem:[%s1 + $0x2b8] sm:$0xf]
    %v1008 = vld [vmem:[%s1 + $0x2bc] sm:$0xf]
    %v1009 = vld [vmem:[%s1 + $0x2c0] sm:$0xf]
    %v1010 = vld [vmem:[%s1 + $0x2c4] sm:$0xf]
    %v1011 = vld [vmem:[%s1 + $0x2c8] sm:$0xf]
    %v1012 = vld [vmem:[%s1 + $0x2cc] sm:$0xf]
    %v1013 = vld [vmem:[%s1 + $0x2d0] sm:$0xf]
    %v1014 = vld [vmem:[%s1 + $0x2d4] sm:$0xf]
    %v1015 = vld [vmem:[%s1 + $0x2d8] sm:$0xf]
    %v1016 = vld [vmem:[%s1 + $0x2dc] sm:$0xf]
    %v1017 = vld [vmem:[%s1 + $0x2e0] sm:$0xf]
    %v1018 = vld [vmem:[%s1 + $0x2e4] sm:$0xf]
    %v1019 = vld [vmem:[%s1 + $0x2e8] sm:$0xf]
    %v1020 = vld [vmem:[%s1 + $0x2ec] sm:$0xf]
    %v1021 = vld [vmem:[%s1 + $0x2f0] sm:$0xf]
    %v1022 = vld [vmem:[%s1 + $0x2f4] sm:$0xf]
    %v1023 = vld [vmem:[%s1 + $0x2f8] sm:$0xf]
    %v1024 = vld [vmem:[%s1 + $0x2fc] sm:$0xf]
    %v1025 = vld [vmem:[%s1 + $0x300] sm:$0xf]
    %v1026 = vld [vmem:[%s1 + $0x304] sm:$0xf]
    %v1027 = vld [vmem:[%s1 + $0x308] sm:$0xf]
    %v1028 = vld [vmem:[%s1 + $0x30c] sm:$0xf]
    %v1029 = vld [vmem:[%s1 + $0x310] sm:$0xf]
    %v1030 = vld [vmem:[%s1 + $0x314] sm:$0xf]
    %v1031 = vld [vmem:[%s1 + $0x318] sm:$0xf]
    %v1032 = vld [vmem:[%s1 + $0x31c] sm:$0xf]
    %v1033 = vld [vmem:[%s1 + $0x320] sm:$0xf]
    %v1034 = vld [vmem:[%s1 + $0x324] sm:$0xf]
    %v1035 = vld [vmem:[%s1 + $0x328] sm:$0xf]
    %v1036 = vld [vmem:[%s1 + $0x32c] sm:$0xf]
    %v1037 = vld [vmem:[%s1 + $0x330] sm:$0xf]
    %v1038 = vld [vmem:[%s1 + $0x334] sm:$0xf]
    %v1039 = vld [vmem:[%s1 + $0x338] sm:$0xf]
    %v1040 = vld [vmem:[%s1 + $0x33c] sm:$0xf]
    %v1041 = vld [vmem:[%s1 + $0x340] sm:$0xf]
    %v1042 = vld [vmem:[%s1 + $0x344] sm:$0xf]
    %v1043 = vld [vmem:[%s1 + $0x348] sm:$0xf]
    %v1044 = vld [vmem:[%s1 + $0x34c] sm:$0xf]
    %v1045 = vld [vmem:[%s1 + $0x350] sm:$0xf]
    %v1046 = vld [vmem:[%s1 + $0x354] sm:$0xf]
    %v1047 = vld [vmem:[%s1 + $0x358] sm:$0xf]
    %v1048 = vld [vmem:[%s1 + $0x35c] sm:$0xf]
    %v1049 = vld [vmem:[%s1 + $0x360] sm:$0xf]
    %v1050 = vld [vmem:[%s1 + $0x364] sm:$0xf]
    %v1051 = vld [vmem:[%s1 + $0x368] sm:$0xf]
    %v1052 = vld [vmem:[%s1 + $0x36c] sm:$0xf]
    %v1053 = vld [vmem:[%s1 + $0x370] sm:$0xf]
    %v1054 = vld [vmem:[%s1 + $0x374] sm:$0xf]
    %v1055 = vld [vmem:[%s1 + $0x378] sm:$0xf]
    %v1056 = vld [vmem:[%s1 + $0x37c] sm:$0xf]
    %v1057 = vld [vmem:[%s1 + $0x380] sm:$0xf]
    %v1058 = vld [vmem:[%s1 + $0x384] sm:$0xf]
    %v1059 = vld [vmem:[%s1 + $0x388] sm:$0xf]
    %v1060 = vld [vmem:[%s1 + $0x38c] sm:$0xf]
    %v1061 = vld [vmem:[%s1 + $0x390] sm:$0xf]
    %v1062 = vld [vmem:[%s1 + $0x394] sm:$0xf]
    %v1063 = vld [vmem:[%s1 + $0x398] sm:$0xf]
    %v1064 = vld [vmem:[%s1 + $0x39c] sm:$0xf]
    %v1065 = vld [vmem:[%s1 + $0x3a0] sm:$0xf]
    %v1066 = vld [vmem:[%s1 + $0x3a4] sm:$0xf]
    %v1067 = vld [vmem:[%s1 + $0x3a8] sm:$0xf]
    %v1068 = vld [vmem:[%s1 + $0x3ac] sm:$0xf]
    %v1069 = vld [vmem:[%s1 + $0x3b0] sm:$0xf]
    %v1070 = vld [vmem:[%s1 + $0x3b4] sm:$0xf]
    %v1071 = vld [vmem:[%s1 + $0x3b8] sm:$0xf]
    %v1072 = vld [vmem:[%s1 + $0x3bc] sm:$0xf]
    %v1073 = vld [vmem:[%s1 + $0x3c0] sm:$0xf]
    %v1074 = vld [vmem:[%s1 + $0x3c4] sm:$0xf]
    %v1075 = vld [vmem:[%s1 + $0x3c8] sm:$0xf]
    %v1076 = vld [vmem:[%s1 + $0x3cc] sm:$0xf]
    %v1077 = vld [vmem:[%s1 + $0x3d0] sm:$0xf]
    %v1078 = vld [vmem:[%s1 + $0x3d4] sm:$0xf]
    %v1079 = vld [vmem:[%s1 + $0x3d8] sm:$0xf]
    %v1080 = vld [vmem:[%s1 + $0x3dc] sm:$0xf]
    %v1081 = vld [vmem:[%s1 + $0x3e0] sm:$0xf]
    %v1082 = vld [vmem:[%s1 + $0x3e4] sm:$0xf]
    %v1083 = vld [vmem:[%s1 + $0x3e8] sm:$0xf]
    %v1084 = vld [vmem:[%s1 + $0x3ec] sm:$0xf]
    %v1085 = vld [vmem:[%s1 + $0x3f0] sm:$0xf]
    %v1086 = vld [vmem:[%s1 + $0x3f4] sm:$0xf]
    %v1087 = vld [vmem:[%s1 + $0x3f8] sm:$0xf]
    %v1088 = vld [vmem:[%s1 + $0x3fc] sm:$0xf]
    %v1089 = vld [vmem:[%s2] sm:$0x1]
    %v1091 = vlaneseq
    %v1092 = vshrl.u32 %v1091, 7
    %v1093 = vsub.s32 0, %v1092
    %v1094 = vrot.slane %v1089, %v1093
    %v1352 = vunpack.c.l.b16 %v833
    %v1353 = vunpack.c.l.b16 %v834
    %v1354 = vunpack.c.l.b16 %v835
    %v1355 = vunpack.c.l.b16 %v836
    %v1356 = vunpack.c.l.b16 %v837
    %v1357 = vunpack.c.l.b16 %v838
    %v1358 = vunpack.c.l.b16 %v839
    %v1359 = vunpack.c.l.b16 %v840
    %v1360 = vunpack.c.l.b16 %v841
    %v1361 = vunpack.c.l.b16 %v842
    %v1362 = vunpack.c.l.b16 %v843
    %v1363 = vunpack.c.l.b16 %v844
    %v1364 = vunpack.c.l.b16 %v845
    %v1365 = vunpack.c.l.b16 %v846
    %v1366 = vunpack.c.l.b16 %v847
    %v1367 = vunpack.c.l.b16 %v848
    %v1368 = vunpack.c.l.b16 %v849
    %v1369 = vunpack.c.l.b16 %v850
    %v1370 = vunpack.c.l.b16 %v851
    %v1371 = vunpack.c.l.b16 %v852
    %v1372 = vunpack.c.l.b16 %v853
    %v1373 = vunpack.c.l.b16 %v854
    %v1374 = vunpack.c.l.b16 %v855
    %v1375 = vunpack.c.l.b16 %v856
    %v1376 = vunpack.c.l.b16 %v857
    %v1377 = vunpack.c.l.b16 %v858
    %v1378 = vunpack.c.l.b16 %v859
    %v1379 = vunpack.c.l.b16 %v860
    %v1380 = vunpack.c.l.b16 %v861
    %v1381 = vunpack.c.l.b16 %v862
    %v1382 = vunpack.c.l.b16 %v863
    %v1383 = vunpack.c.l.b16 %v864
    %v1384 = vunpack.c.l.b16 %v865
    %v1385 = vunpack.c.l.b16 %v866
    %v1386 = vunpack.c.l.b16 %v867
    %v1387 = vunpack.c.l.b16 %v868
    %v1388 = vunpack.c.l.b16 %v869
    %v1389 = vunpack.c.l.b16 %v870
    %v1390 = vunpack.c.l.b16 %v871
    %v1391 = vunpack.c.l.b16 %v872
    %v1392 = vunpack.c.l.b16 %v873
    %v1393 = vunpack.c.l.b16 %v874
    %v1394 = vunpack.c.l.b16 %v875
    %v1395 = vunpack.c.l.b16 %v876
    %v1396 = vunpack.c.l.b16 %v877
    %v1397 = vunpack.c.l.b16 %v878
    %v1398 = vunpack.c.l.b16 %v879
    %v1399 = vunpack.c.l.b16 %v880
    %v1400 = vunpack.c.l.b16 %v881
    %v1401 = vunpack.c.l.b16 %v882
    %v1402 = vunpack.c.l.b16 %v883
    %v1403 = vunpack.c.l.b16 %v884
    %v1404 = vunpack.c.l.b16 %v885
    %v1405 = vunpack.c.l.b16 %v886
    %v1406 = vunpack.c.l.b16 %v887
    %v1407 = vunpack.c.l.b16 %v888
    %v1408 = vunpack.c.l.b16 %v889
    %v1409 = vunpack.c.l.b16 %v890
    %v1410 = vunpack.c.l.b16 %v891
    %v1411 = vunpack.c.l.b16 %v892
    %v1412 = vunpack.c.l.b16 %v893
    %v1413 = vunpack.c.l.b16 %v894
    %v1414 = vunpack.c.l.b16 %v895
    %v1415 = vunpack.c.l.b16 %v896
    %v1416 = vunpack.c.l.b16 %v897
    %v1417 = vunpack.c.l.b16 %v898
    %v1418 = vunpack.c.l.b16 %v899
    %v1419 = vunpack.c.l.b16 %v900
    %v1420 = vunpack.c.l.b16 %v901
    %v1421 = vunpack.c.l.b16 %v902
    %v1422 = vunpack.c.l.b16 %v903
    %v1423 = vunpack.c.l.b16 %v904
    %v1424 = vunpack.c.l.b16 %v905
    %v1425 = vunpack.c.l.b16 %v906
    %v1426 = vunpack.c.l.b16 %v907
    %v1427 = vunpack.c.l.b16 %v908
    %v1428 = vunpack.c.l.b16 %v909
    %v1429 = vunpack.c.l.b16 %v910
    %v1430 = vunpack.c.l.b16 %v911
    %v1431 = vunpack.c.l.b16 %v912
    %v1432 = vunpack.c.l.b16 %v913
    %v1433 = vunpack.c.l.b16 %v914
    %v1434 = vunpack.c.l.b16 %v915
    %v1435 = vunpack.c.l.b16 %v916
    %v1436 = vunpack.c.l.b16 %v917
    %v1437 = vunpack.c.l.b16 %v918
    %v1438 = vunpack.c.l.b16 %v919
    %v1439 = vunpack.c.l.b16 %v920
    %v1440 = vunpack.c.l.b16 %v921
    %v1441 = vunpack.c.l.b16 %v922
    %v1442 = vunpack.c.l.b16 %v923
    %v1443 = vunpack.c.l.b16 %v924
    %v1444 = vunpack.c.l.b16 %v925
    %v1445 = vunpack.c.l.b16 %v926
    %v1446 = vunpack.c.l.b16 %v927
    %v1447 = vunpack.c.l.b16 %v928
    %v1448 = vunpack.c.l.b16 %v929
    %v1449 = vunpack.c.l.b16 %v930
    %v1450 = vunpack.c.l.b16 %v931
    %v1451 = vunpack.c.l.b16 %v932
    %v1452 = vunpack.c.l.b16 %v933
    %v1453 = vunpack.c.l.b16 %v934
    %v1454 = vunpack.c.l.b16 %v935
    %v1455 = vunpack.c.l.b16 %v936
    %v1456 = vunpack.c.l.b16 %v937
    %v1457 = vunpack.c.l.b16 %v938
    %v1458 = vunpack.c.l.b16 %v939
    %v1459 = vunpack.c.l.b16 %v940
    %v1460 = vunpack.c.l.b16 %v941
    %v1461 = vunpack.c.l.b16 %v942
    %v1462 = vunpack.c.l.b16 %v943
    %v1463 = vunpack.c.l.b16 %v944
    %v1464 = vunpack.c.l.b16 %v945
    %v1465 = vunpack.c.l.b16 %v946
    %v1466 = vunpack.c.l.b16 %v947
    %v1467 = vunpack.c.l.b16 %v948
    %v1468 = vunpack.c.l.b16 %v949
    %v1469 = vunpack.c.l.b16 %v950
    %v1470 = vunpack.c.l.b16 %v951
    %v1471 = vunpack.c.l.b16 %v952
    %v1472 = vunpack.c.l.b16 %v953
    %v1473 = vunpack.c.l.b16 %v954
    %v1474 = vunpack.c.l.b16 %v955
    %v1475 = vunpack.c.l.b16 %v956
    %v1476 = vunpack.c.l.b16 %v957
    %v1477 = vunpack.c.l.b16 %v958
    %v1478 = vunpack.c.l.b16 %v959
    %v1479 = vunpack.c.l.b16 %v960
    %v1480 = vunpack.c.l.b16 %v961
    %v1481 = vunpack.c.l.b16 %v962
    %v1482 = vunpack.c.l.b16 %v963
    %v1483 = vunpack.c.l.b16 %v964
    %v1484 = vunpack.c.l.b16 %v965
    %v1485 = vunpack.c.l.b16 %v966
    %v1486 = vunpack.c.l.b16 %v967
    %v1487 = vunpack.c.l.b16 %v968
    %v1488 = vunpack.c.l.b16 %v969
    %v1489 = vunpack.c.l.b16 %v970
    %v1490 = vunpack.c.l.b16 %v971
    %v1491 = vunpack.c.l.b16 %v972
    %v1492 = vunpack.c.l.b16 %v973
    %v1493 = vunpack.c.l.b16 %v974
    %v1494 = vunpack.c.l.b16 %v975
    %v1495 = vunpack.c.l.b16 %v976
    %v1496 = vunpack.c.l.b16 %v977
    %v1497 = vunpack.c.l.b16 %v978
    %v1498 = vunpack.c.l.b16 %v979
    %v1499 = vunpack.c.l.b16 %v980
    %v1500 = vunpack.c.l.b16 %v981
    %v1501 = vunpack.c.l.b16 %v982
    %v1502 = vunpack.c.l.b16 %v983
    %v1503 = vunpack.c.l.b16 %v984
    %v1504 = vunpack.c.l.b16 %v985
    %v1505 = vunpack.c.l.b16 %v986
    %v1506 = vunpack.c.l.b16 %v987
    %v1507 = vunpack.c.l.b16 %v988
    %v1508 = vunpack.c.l.b16 %v989
    %v1509 = vunpack.c.l.b16 %v990
    %v1510 = vunpack.c.l.b16 %v991
    %v1511 = vunpack.c.l.b16 %v992
    %v1512 = vunpack.c.l.b16 %v993
    %v1513 = vunpack.c.l.b16 %v994
    %v1514 = vunpack.c.l.b16 %v995
    %v1515 = vunpack.c.l.b16 %v996
    %v1516 = vunpack.c.l.b16 %v997
    %v1517 = vunpack.c.l.b16 %v998
    %v1518 = vunpack.c.l.b16 %v999
    %v1519 = vunpack.c.l.b16 %v1000
    %v1520 = vunpack.c.l.b16 %v1001
    %v1521 = vunpack.c.l.b16 %v1002
    %v1522 = vunpack.c.l.b16 %v1003
    %v1523 = vunpack.c.l.b16 %v1004
    %v1524 = vunpack.c.l.b16 %v1005
    %v1525 = vunpack.c.l.b16 %v1006
    %v1526 = vunpack.c.l.b16 %v1007
    %v1527 = vunpack.c.l.b16 %v1008
    %v1528 = vunpack.c.l.b16 %v1009
    %v1529 = vunpack.c.l.b16 %v1010
    %v1530 = vunpack.c.l.b16 %v1011
    %v1531 = vunpack.c.l.b16 %v1012
    %v1532 = vunpack.c.l.b16 %v1013
    %v1533 = vunpack.c.l.b16 %v1014
    %v1534 = vunpack.c.l.b16 %v1015
    %v1535 = vunpack.c.l.b16 %v1016
    %v1536 = vunpack.c.l.b16 %v1017
    %v1537 = vunpack.c.l.b16 %v1018
    %v1538 = vunpack.c.l.b16 %v1019
    %v1539 = vunpack.c.l.b16 %v1020
    %v1540 = vunpack.c.l.b16 %v1021
    %v1541 = vunpack.c.l.b16 %v1022
    %v1542 = vunpack.c.l.b16 %v1023
    %v1543 = vunpack.c.l.b16 %v1024
    %v1544 = vunpack.c.l.b16 %v1025
    %v1545 = vunpack.c.l.b16 %v1026
    %v1546 = vunpack.c.l.b16 %v1027
    %v1547 = vunpack.c.l.b16 %v1028
    %v1548 = vunpack.c.l.b16 %v1029
    %v1549 = vunpack.c.l.b16 %v1030
    %v1550 = vunpack.c.l.b16 %v1031
    %v1551 = vunpack.c.l.b16 %v1032
    %v1552 = vunpack.c.l.b16 %v1033
    %v1553 = vunpack.c.l.b16 %v1034
    %v1554 = vunpack.c.l.b16 %v1035
    %v1555 = vunpack.c.l.b16 %v1036
    %v1556 = vunpack.c.l.b16 %v1037
    %v1557 = vunpack.c.l.b16 %v1038
    %v1558 = vunpack.c.l.b16 %v1039
    %v1559 = vunpack.c.l.b16 %v1040
    %v1560 = vunpack.c.l.b16 %v1041
    %v1561 = vunpack.c.l.b16 %v1042
    %v1562 = vunpack.c.l.b16 %v1043
    %v1563 = vunpack.c.l.b16 %v1044
    %v1564 = vunpack.c.l.b16 %v1045
    %v1565 = vunpack.c.l.b16 %v1046
    %v1566 = vunpack.c.l.b16 %v1047
    %v1567 = vunpack.c.l.b16 %v1048
    %v1568 = vunpack.c.l.b16 %v1049
    %v1569 = vunpack.c.l.b16 %v1050
    %v1570 = vunpack.c.l.b16 %v1051
    %v1571 = vunpack.c.l.b16 %v1052
    %v1572 = vunpack.c.l.b16 %v1053
    %v1573 = vunpack.c.l.b16 %v1054
    %v1574 = vunpack.c.l.b16 %v1055
    %v1575 = vunpack.c.l.b16 %v1056
    %v1576 = vunpack.c.l.b16 %v1057
    %v1577 = vunpack.c.l.b16 %v1058
    %v1578 = vunpack.c.l.b16 %v1059
    %v1579 = vunpack.c.l.b16 %v1060
    %v1580 = vunpack.c.l.b16 %v1061
    %v1581 = vunpack.c.l.b16 %v1062
    %v1582 = vunpack.c.l.b16 %v1063
    %v1583 = vunpack.c.l.b16 %v1064
    %v1584 = vunpack.c.l.b16 %v1065
    %v1585 = vunpack.c.l.b16 %v1066
    %v1586 = vunpack.c.l.b16 %v1067
    %v1587 = vunpack.c.l.b16 %v1068
    %v1588 = vunpack.c.l.b16 %v1069
    %v1589 = vunpack.c.l.b16 %v1070
    %v1590 = vunpack.c.l.b16 %v1071
    %v1591 = vunpack.c.l.b16 %v1072
    %v1592 = vunpack.c.l.b16 %v1073
    %v1593 = vunpack.c.l.b16 %v1074
    %v1594 = vunpack.c.l.b16 %v1075
    %v1595 = vunpack.c.l.b16 %v1076
    %v1596 = vunpack.c.l.b16 %v1077
    %v1597 = vunpack.c.l.b16 %v1078
    %v1598 = vunpack.c.l.b16 %v1079
    %v1599 = vunpack.c.l.b16 %v1080
    %v1600 = vunpack.c.l.b16 %v1081
    %v1601 = vunpack.c.l.b16 %v1082
    %v1602 = vunpack.c.l.b16 %v1083
    %v1603 = vunpack.c.l.b16 %v1084
    %v1604 = vunpack.c.l.b16 %v1085
    %v1605 = vunpack.c.l.b16 %v1086
    %v1606 = vunpack.c.l.b16 %v1087
    %v1607 = vunpack.c.l.b16 %v1088
    %v1608 = vpack.c.b16 %v1353, %v1352
    %v1609 = vpack.c.b16 %v1355, %v1354
    %v1610 = vpack.c.b16 %v1357, %v1356
    %v1611 = vpack.c.b16 %v1359, %v1358
    %v1612 = vpack.c.b16 %v1361, %v1360
    %v1613 = vpack.c.b16 %v1363, %v1362
    %v1614 = vpack.c.b16 %v1365, %v1364
    %v1615 = vpack.c.b16 %v1367, %v1366
    %v1616 = vpack.c.b16 %v1369, %v1368
    %v1617 = vpack.c.b16 %v1371, %v1370
    %v1618 = vpack.c.b16 %v1373, %v1372
    %v1619 = vpack.c.b16 %v1375, %v1374
    %v1620 = vpack.c.b16 %v1377, %v1376
    %v1621 = vpack.c.b16 %v1379, %v1378
    %v1622 = vpack.c.b16 %v1381, %v1380
    %v1623 = vpack.c.b16 %v1383, %v1382
    %v1624 = vpack.c.b16 %v1385, %v1384
    %v1625 = vpack.c.b16 %v1387, %v1386
    %v1626 = vpack.c.b16 %v1389, %v1388
    %v1627 = vpack.c.b16 %v1391, %v1390
    %v1628 = vpack.c.b16 %v1393, %v1392
    %v1629 = vpack.c.b16 %v1395, %v1394
    %v1630 = vpack.c.b16 %v1397, %v1396
    %v1631 = vpack.c.b16 %v1399, %v1398
    %v1632 = vpack.c.b16 %v1401, %v1400
    %v1633 = vpack.c.b16 %v1403, %v1402
    %v1634 = vpack.c.b16 %v1405, %v1404
    %v1635 = vpack.c.b16 %v1407, %v1406
    %v1636 = vpack.c.b16 %v1409, %v1408
    %v1637 = vpack.c.b16 %v1411, %v1410
    %v1638 = vpack.c.b16 %v1413, %v1412
    %v1639 = vpack.c.b16 %v1415, %v1414
    %v1640 = vpack.c.b16 %v1417, %v1416
    %v1641 = vpack.c.b16 %v1419, %v1418
    %v1642 = vpack.c.b16 %v1421, %v1420
    %v1643 = vpack.c.b16 %v1423, %v1422
    %v1644 = vpack.c.b16 %v1425, %v1424
    %v1645 = vpack.c.b16 %v1427, %v1426
    %v1646 = vpack.c.b16 %v1429, %v1428
    %v1647 = vpack.c.b16 %v1431, %v1430
    %v1648 = vpack.c.b16 %v1433, %v1432
    %v1649 = vpack.c.b16 %v1435, %v1434
    %v1650 = vpack.c.b16 %v1437, %v1436
    %v1651 = vpack.c.b16 %v1439, %v1438
    %v1652 = vpack.c.b16 %v1441, %v1440
    %v1653 = vpack.c.b16 %v1443, %v1442
    %v1654 = vpack.c.b16 %v1445, %v1444
    %v1655 = vpack.c.b16 %v1447, %v1446
    %v1656 = vpack.c.b16 %v1449, %v1448
    %v1657 = vpack.c.b16 %v1451, %v1450
    %v1658 = vpack.c.b16 %v1453, %v1452
    %v1659 = vpack.c.b16 %v1455, %v1454
    %v1660 = vpack.c.b16 %v1457, %v1456
    %v1661 = vpack.c.b16 %v1459, %v1458
    %v1662 = vpack.c.b16 %v1461, %v1460
    %v1663 = vpack.c.b16 %v1463, %v1462
    %v1664 = vpack.c.b16 %v1465, %v1464
    %v1665 = vpack.c.b16 %v1467, %v1466
    %v1666 = vpack.c.b16 %v1469, %v1468
    %v1667 = vpack.c.b16 %v1471, %v1470
    %v1668 = vpack.c.b16 %v1473, %v1472
    %v1669 = vpack.c.b16 %v1475, %v1474
    %v1670 = vpack.c.b16 %v1477, %v1476
    %v1671 = vpack.c.b16 %v1479, %v1478
    %v1672 = vpack.c.b16 %v1481, %v1480
    %v1673 = vpack.c.b16 %v1483, %v1482
    %v1674 = vpack.c.b16 %v1485, %v1484
    %v1675 = vpack.c.b16 %v1487, %v1486
    %v1676 = vpack.c.b16 %v1489, %v1488
    %v1677 = vpack.c.b16 %v1491, %v1490
    %v1678 = vpack.c.b16 %v1493, %v1492
    %v1679 = vpack.c.b16 %v1495, %v1494
    %v1680 = vpack.c.b16 %v1497, %v1496
    %v1681 = vpack.c.b16 %v1499, %v1498
    %v1682 = vpack.c.b16 %v1501, %v1500
    %v1683 = vpack.c.b16 %v1503, %v1502
    %v1684 = vpack.c.b16 %v1505, %v1504
    %v1685 = vpack.c.b16 %v1507, %v1506
    %v1686 = vpack.c.b16 %v1509, %v1508
    %v1687 = vpack.c.b16 %v1511, %v1510
    %v1688 = vpack.c.b16 %v1513, %v1512
    %v1689 = vpack.c.b16 %v1515, %v1514
    %v1690 = vpack.c.b16 %v1517, %v1516
    %v1691 = vpack.c.b16 %v1519, %v1518
    %v1692 = vpack.c.b16 %v1521, %v1520
    %v1693 = vpack.c.b16 %v1523, %v1522
    %v1694 = vpack.c.b16 %v1525, %v1524
    %v1695 = vpack.c.b16 %v1527, %v1526
    %v1696 = vpack.c.b16 %v1529, %v1528
    %v1697 = vpack.c.b16 %v1531, %v1530
    %v1698 = vpack.c.b16 %v1533, %v1532
    %v1699 = vpack.c.b16 %v1535, %v1534
    %v1700 = vpack.c.b16 %v1537, %v1536
    %v1701 = vpack.c.b16 %v1539, %v1538
    %v1702 = vpack.c.b16 %v1541, %v1540
    %v1703 = vpack.c.b16 %v1543, %v1542
    %v1704 = vpack.c.b16 %v1545, %v1544
    %v1705 = vpack.c.b16 %v1547, %v1546
    %v1706 = vpack.c.b16 %v1549, %v1548
    %v1707 = vpack.c.b16 %v1551, %v1550
    %v1708 = vpack.c.b16 %v1553, %v1552
    %v1709 = vpack.c.b16 %v1555, %v1554
    %v1710 = vpack.c.b16 %v1557, %v1556
    %v1711 = vpack.c.b16 %v1559, %v1558
    %v1712 = vpack.c.b16 %v1561, %v1560
    %v1713 = vpack.c.b16 %v1563, %v1562
    %v1714 = vpack.c.b16 %v1565, %v1564
    %v1715 = vpack.c.b16 %v1567, %v1566
    %v1716 = vpack.c.b16 %v1569, %v1568
    %v1717 = vpack.c.b16 %v1571, %v1570
    %v1718 = vpack.c.b16 %v1573, %v1572
    %v1719 = vpack.c.b16 %v1575, %v1574
    %v1720 = vpack.c.b16 %v1577, %v1576
    %v1721 = vpack.c.b16 %v1579, %v1578
    %v1722 = vpack.c.b16 %v1581, %v1580
    %v1723 = vpack.c.b16 %v1583, %v1582
    %v1724 = vpack.c.b16 %v1585, %v1584
    %v1725 = vpack.c.b16 %v1587, %v1586
    %v1726 = vpack.c.b16 %v1589, %v1588
    %v1727 = vpack.c.b16 %v1591, %v1590
    %v1728 = vpack.c.b16 %v1593, %v1592
    %v1729 = vpack.c.b16 %v1595, %v1594
    %v1730 = vpack.c.b16 %v1597, %v1596
    %v1731 = vpack.c.b16 %v1599, %v1598
    %v1732 = vpack.c.b16 %v1601, %v1600
    %v1733 = vpack.c.b16 %v1603, %v1602
    %v1734 = vpack.c.b16 %v1605, %v1604
    %v1735 = vpack.c.b16 %v1607, %v1606
    %1864 = vmatprep.subr.bf16.mxu0 0
    %1865 = vmatpush1.bf16.msra.mxu0 %v1608
    %1866 = vmatprep.subr.bf16.mxu0 0
    %1867 = vmatpush1.bf16.msra.mxu0 %v1609
    %1868 = vmatprep.subr.bf16.mxu0 0
    %1869 = vmatpush1.bf16.msra.mxu0 %v1610
    %1870 = vmatprep.subr.bf16.mxu0 0
    %1871 = vmatpush1.bf16.msra.mxu0 %v1611
    %1872 = vmatprep.subr.bf16.mxu0 0
    %1873 = vmatpush1.bf16.msra.mxu0 %v1612
    %1874 = vmatprep.subr.bf16.mxu0 0
    %1875 = vmatpush1.bf16.msra.mxu0 %v1613
    %1876 = vmatprep.subr.bf16.mxu0 0
    %1877 = vmatpush1.bf16.msra.mxu0 %v1614
    %1878 = vmatprep.subr.bf16.mxu0 0
    %1879 = vmatpush1.bf16.msra.mxu0 %v1615
    %1880 = vmatprep.subr.bf16.mxu0 0
    %1881 = vmatpush1.bf16.msra.mxu0 %v1616
    %1882 = vmatprep.subr.bf16.mxu0 0
    %1883 = vmatpush1.bf16.msra.mxu0 %v1617
    %1884 = vmatprep.subr.bf16.mxu0 0
    %1885 = vmatpush1.bf16.msra.mxu0 %v1618
    %1886 = vmatprep.subr.bf16.mxu0 0
    %1887 = vmatpush1.bf16.msra.mxu0 %v1619
    %1888 = vmatprep.subr.bf16.mxu0 0
    %1889 = vmatpush1.bf16.msra.mxu0 %v1620
    %1890 = vmatprep.subr.bf16.mxu0 0
    %1891 = vmatpush1.bf16.msra.mxu0 %v1621
    %1892 = vmatprep.subr.bf16.mxu0 0
    %1893 = vmatpush1.bf16.msra.mxu0 %v1622
    %1894 = vmatprep.subr.bf16.mxu0 0
    %1895 = vmatpush1.bf16.msra.mxu0 %v1623
    %1896 = vmatprep.mubr.bf16.mxu0 %v802
    %1897 = vmatmul.mubr.bf16.gmra.mrb[0].mxu0 %v801
    %v1898 = vpop.f32.mrb[0].mxu0
    %v1899 = vadd.f32 %v1094, %v1898
    %v1900 = vpop.f32.mrb[0].mxu0
    %v1901 = vpop.f32.mrb[0].mxu0
    %v1902 = vadd.f32 %v1094, %v1901
    %v1903 = vpop.f32.mrb[0].mxu0
    %1904 = vmatprep.mubr.bf16.mxu0 %v818
    %1905 = vmatmul.mubr.bf16.gmra.mrb[0].mxu0 %v817
    %v1906 = vpop.f32.mrb[0].mxu0
    %v1907 = vadd.f32 %v1094, %v1906
    %v1908 = vpop.f32.mrb[0].mxu0
    %v1909 = vpop.f32.mrb[0].mxu0
    %v1910 = vadd.f32 %v1094, %v1909
    %v1911 = vpop.f32.mrb[0].mxu0
    %1912 = vdwg.mxu0
    %1913 = vmatprep.subr.bf16.mxu0 0
    %1914 = vmatpush1.bf16.msra.mxu0 %v1624
    %1915 = vmatprep.subr.bf16.mxu0 0
    %1916 = vmatpush1.bf16.msra.mxu0 %v1625
    %1917 = vmatprep.subr.bf16.mxu0 0
    %1918 = vmatpush1.bf16.msra.mxu0 %v1626
    %1919 = vmatprep.subr.bf16.mxu0 0
    %1920 = vmatpush1.bf16.msra.mxu0 %v1627
    %1921 = vmatprep.subr.bf16.mxu0 0
    %1922 = vmatpush1.bf16.msra.mxu0 %v1628
    %1923 = vmatprep.subr.bf16.mxu0 0
    %1924 = vmatpush1.bf16.msra.mxu0 %v1629
    %1925 = vmatprep.subr.bf16.mxu0 0
    %1926 = vmatpush1.bf16.msra.mxu0 %v1630
    %1927 = vmatprep.subr.bf16.mxu0 0
    %1928 = vmatpush1.bf16.msra.mxu0 %v1631
    %1929 = vmatprep.subr.bf16.mxu0 0
    %1930 = vmatpush1.bf16.msra.mxu0 %v1632
    %1931 = vmatprep.subr.bf16.mxu0 0
    %1932 = vmatpush1.bf16.msra.mxu0 %v1633
    %1933 = vmatprep.subr.bf16.mxu0 0
    %1934 = vmatpush1.bf16.msra.mxu0 %v1634
    %1935 = vmatprep.subr.bf16.mxu0 0
    %1936 = vmatpush1.bf16.msra.mxu0 %v1635
    %1937 = vmatprep.subr.bf16.mxu0 0
    %1938 = vmatpush1.bf16.msra.mxu0 %v1636
    %1939 = vmatprep.subr.bf16.mxu0 0
    %1940 = vmatpush1.bf16.msra.mxu0 %v1637
    %1941 = vmatprep.subr.bf16.mxu0 0
    %1942 = vmatpush1.bf16.msra.mxu0 %v1638
    %1943 = vmatprep.subr.bf16.mxu0 0
    %1944 = vmatpush1.bf16.msra.mxu0 %v1639
    %1945 = vmatprep.mubr.bf16.mxu0 %v804
    %1946 = vmatmul.mubr.bf16.gmra.mrb[0].mxu0 %v803
    %v1947 = vpop.f32.mrb[0].mxu0
    %v1948 = vadd.f32 %v1899, %v1947
    %v1949 = vpop.f32.mrb[0].mxu0
    %v1950 = vpop.f32.mrb[0].mxu0
    %v1951 = vadd.f32 %v1902, %v1950
    %v1952 = vpop.f32.mrb[0].mxu0
    %1953 = vmatprep.mubr.bf16.mxu0 %v820
    %1954 = vmatmul.mubr.bf16.gmra.mrb[0].mxu0 %v819
    %v1955 = vpop.f32.mrb[0].mxu0
    %v1956 = vadd.f32 %v1907, %v1955
    %v1957 = vpop.f32.mrb[0].mxu0
    %v1958 = vpop.f32.mrb[0].mxu0
    %v1959 = vadd.f32 %v1910, %v1958
    %v1960 = vpop.f32.mrb[0].mxu0
    %1961 = vdwg.mxu0
    %1962 = vmatprep.subr.bf16.mxu0 0
    %1963 = vmatpush1.bf16.msra.mxu0 %v1640
    %1964 = vmatprep.subr.bf16.mxu0 0
    %1965 = vmatpush1.bf16.msra.mxu0 %v1641
    %1966 = vmatprep.subr.bf16.mxu0 0
    %1967 = vmatpush1.bf16.msra.mxu0 %v1642
    %1968 = vmatprep.subr.bf16.mxu0 0
    %1969 = vmatpush1.bf16.msra.mxu0 %v1643
    %1970 = vmatprep.subr.bf16.mxu0 0
    %1971 = vmatpush1.bf16.msra.mxu0 %v1644
    %1972 = vmatprep.subr.bf16.mxu0 0
    %1973 = vmatpush1.bf16.msra.mxu0 %v1645
    %1974 = vmatprep.subr.bf16.mxu0 0
    %1975 = vmatpush1.bf16.msra.mxu0 %v1646
    %1976 = vmatprep.subr.bf16.mxu0 0
    %1977 = vmatpush1.bf16.msra.mxu0 %v1647
    %1978 = vmatprep.subr.bf16.mxu0 0
    %1979 = vmatpush1.bf16.msra.mxu0 %v1648
    %1980 = vmatprep.subr.bf16.mxu0 0
    %1981 = vmatpush1.bf16.msra.mxu0 %v1649
    %1982 = vmatprep.subr.bf16.mxu0 0
    %1983 = vmatpush1.bf16.msra.mxu0 %v1650
    %1984 = vmatprep.subr.bf16.mxu0 0
    %1985 = vmatpush1.bf16.msra.mxu0 %v1651
    %1986 = vmatprep.subr.bf16.mxu0 0
    %1987 = vmatpush1.bf16.msra.mxu0 %v1652
    %1988 = vmatprep.subr.bf16.mxu0 0
    %1989 = vmatpush1.bf16.msra.mxu0 %v1653
    %1990 = vmatprep.subr.bf16.mxu0 0
    %1991 = vmatpush1.bf16.msra.mxu0 %v1654
    %1992 = vmatprep.subr.bf16.mxu0 0
    %1993 = vmatpush1.bf16.msra.mxu0 %v1655
    %1994 = vmatprep.mubr.bf16.mxu0 %v806
    %1995 = vmatmul.mubr.bf16.gmra.mrb[0].mxu0 %v805
    %v1996 = vpop.f32.mrb[0].mxu0
    %v1997 = vadd.f32 %v1948, %v1996
    %v1998 = vpop.f32.mrb[0].mxu0
    %v1999 = vpop.f32.mrb[0].mxu0
    %v2000 = vadd.f32 %v1951, %v1999
    %v2001 = vpop.f32.mrb[0].mxu0
    %2002 = vmatprep.mubr.bf16.mxu0 %v822
    %2003 = vmatmul.mubr.bf16.gmra.mrb[0].mxu0 %v821
    %v2004 = vpop.f32.mrb[0].mxu0
    %v2005 = vadd.f32 %v1956, %v2004
    %v2006 = vpop.f32.mrb[0].mxu0
    %v2007 = vpop.f32.mrb[0].mxu0
    %v2008 = vadd.f32 %v1959, %v2007
    %v2009 = vpop.f32.mrb[0].mxu0
    %2010 = vdwg.mxu0
    %2011 = vmatprep.subr.bf16.mxu0 0
    %2012 = vmatpush1.bf16.msra.mxu0 %v1656
    %2013 = vmatprep.subr.bf16.mxu0 0
    %2014 = vmatpush1.bf16.msra.mxu0 %v1657
    %2015 = vmatprep.subr.bf16.mxu0 0
    %2016 = vmatpush1.bf16.msra.mxu0 %v1658
    %2017 = vmatprep.subr.bf16.mxu0 0
    %2018 = vmatpush1.bf16.msra.mxu0 %v1659
    %2019 = vmatprep.subr.bf16.mxu0 0
    %2020 = vmatpush1.bf16.msra.mxu0 %v1660
    %2021 = vmatprep.subr.bf16.mxu0 0
    %2022 = vmatpush1.bf16.msra.mxu0 %v1661
    %2023 = vmatprep.subr.bf16.mxu0 0
    %2024 = vmatpush1.bf16.msra.mxu0 %v1662
    %2025 = vmatprep.subr.bf16.mxu0 0
    %2026 = vmatpush1.bf16.msra.mxu0 %v1663
    %2027 = vmatprep.subr.bf16.mxu0 0
    %2028 = vmatpush1.bf16.msra.mxu0 %v1664
    %2029 = vmatprep.subr.bf16.mxu0 0
    %2030 = vmatpush1.bf16.msra.mxu0 %v1665
    %2031 = vmatprep.subr.bf16.mxu0 0
    %2032 = vmatpush1.bf16.msra.mxu0 %v1666
    %2033 = vmatprep.subr.bf16.mxu0 0
    %2034 = vmatpush1.bf16.msra.mxu0 %v1667
    %2035 = vmatprep.subr.bf16.mxu0 0
    %2036 = vmatpush1.bf16.msra.mxu0 %v1668
    %2037 = vmatprep.subr.bf16.mxu0 0
    %2038 = vmatpush1.bf16.msra.mxu0 %v1669
    %2039 = vmatprep.subr.bf16.mxu0 0
    %2040 = vmatpush1.bf16.msra.mxu0 %v1670
    %2041 = vmatprep.subr.bf16.mxu0 0
    %2042 = vmatpush1.bf16.msra.mxu0 %v1671
    %2043 = vmatprep.mubr.bf16.mxu0 %v808
    %2044 = vmatmul.mubr.bf16.gmra.mrb[0].mxu0 %v807
    %v2045 = vpop.f32.mrb[0].mxu0
    %v2046 = vadd.f32 %v1997, %v2045
    %v2047 = vpop.f32.mrb[0].mxu0
    %v2048 = vpop.f32.mrb[0].mxu0
    %v2049 = vadd.f32 %v2000, %v2048
    %v2050 = vpop.f32.mrb[0].mxu0
    %2051 = vmatprep.mubr.bf16.mxu0 %v824
    %2052 = vmatmul.mubr.bf16.gmra.mrb[0].mxu0 %v823
    %v2053 = vpop.f32.mrb[0].mxu0
    %v2054 = vadd.f32 %v2005, %v2053
    %v2055 = vpop.f32.mrb[0].mxu0
    %v2056 = vpop.f32.mrb[0].mxu0
    %v2057 = vadd.f32 %v2008, %v2056
    %v2058 = vpop.f32.mrb[0].mxu0
    %2059 = vdwg.mxu0
    %2060 = vmatprep.subr.bf16.mxu0 0
    %2061 = vmatpush1.bf16.msra.mxu0 %v1672
    %2062 = vmatprep.subr.bf16.mxu0 0
    %2063 = vmatpush1.bf16.msra.mxu0 %v1673
    %2064 = vmatprep.subr.bf16.mxu0 0
    %2065 = vmatpush1.bf16.msra.mxu0 %v1674
    %2066 = vmatprep.subr.bf16.mxu0 0
    %2067 = vmatpush1.bf16.msra.mxu0 %v1675
    %2068 = vmatprep.subr.bf16.mxu0 0
    %2069 = vmatpush1.bf16.msra.mxu0 %v1676
    %2070 = vmatprep.subr.bf16.mxu0 0
    %2071 = vmatpush1.bf16.msra.mxu0 %v1677
    %2072 = vmatprep.subr.bf16.mxu0 0
    %2073 = vmatpush1.bf16.msra.mxu0 %v1678
    %2074 = vmatprep.subr.bf16.mxu0 0
    %2075 = vmatpush1.bf16.msra.mxu0 %v1679
    %2076 = vmatprep.subr.bf16.mxu0 0
    %2077 = vmatpush1.bf16.msra.mxu0 %v1680
    %2078 = vmatprep.subr.bf16.mxu0 0
    %2079 = vmatpush1.bf16.msra.mxu0 %v1681
    %2080 = vmatprep.subr.bf16.mxu0 0
    %2081 = vmatpush1.bf16.msra.mxu0 %v1682
    %2082 = vmatprep.subr.bf16.mxu0 0
    %2083 = vmatpush1.bf16.msra.mxu0 %v1683
    %2084 = vmatprep.subr.bf16.mxu0 0
    %2085 = vmatpush1.bf16.msra.mxu0 %v1684
    %2086 = vmatprep.subr.bf16.mxu0 0
    %2087 = vmatpush1.bf16.msra.mxu0 %v1685
    %2088 = vmatprep.subr.bf16.mxu0 0
    %2089 = vmatpush1.bf16.msra.mxu0 %v1686
    %2090 = vmatprep.subr.bf16.mxu0 0
    %2091 = vmatpush1.bf16.msra.mxu0 %v1687
    %2092 = vmatprep.mubr.bf16.mxu0 %v810
    %2093 = vmatmul.mubr.bf16.gmra.mrb[0].mxu0 %v809
    %v2094 = vpop.f32.mrb[0].mxu0
    %v2095 = vadd.f32 %v2046, %v2094
    %v2096 = vpop.f32.mrb[0].mxu0
    %v2097 = vpop.f32.mrb[0].mxu0
    %v2098 = vadd.f32 %v2049, %v2097
    %v2099 = vpop.f32.mrb[0].mxu0
    %2100 = vmatprep.mubr.bf16.mxu0 %v826
    %2101 = vmatmul.mubr.bf16.gmra.mrb[0].mxu0 %v825
    %v2102 = vpop.f32.mrb[0].mxu0
    %v2103 = vadd.f32 %v2054, %v2102
    %v2104 = vpop.f32.mrb[0].mxu0
    %v2105 = vpop.f32.mrb[0].mxu0
    %v2106 = vadd.f32 %v2057, %v2105
    %v2107 = vpop.f32.mrb[0].mxu0
    %2108 = vdwg.mxu0
    %2109 = vmatprep.subr.bf16.mxu0 0
    %2110 = vmatpush1.bf16.msra.mxu0 %v1688
    %2111 = vmatprep.subr.bf16.mxu0 0
    %2112 = vmatpush1.bf16.msra.mxu0 %v1689
    %2113 = vmatprep.subr.bf16.mxu0 0
    %2114 = vmatpush1.bf16.msra.mxu0 %v1690
    %2115 = vmatprep.subr.bf16.mxu0 0
    %2116 = vmatpush1.bf16.msra.mxu0 %v1691
    %2117 = vmatprep.subr.bf16.mxu0 0
    %2118 = vmatpush1.bf16.msra.mxu0 %v1692
    %2119 = vmatprep.subr.bf16.mxu0 0
    %2120 = vmatpush1.bf16.msra.mxu0 %v1693
    %2121 = vmatprep.subr.bf16.mxu0 0
    %2122 = vmatpush1.bf16.msra.mxu0 %v1694
    %2123 = vmatprep.subr.bf16.mxu0 0
    %2124 = vmatpush1.bf16.msra.mxu0 %v1695
    %2125 = vmatprep.subr.bf16.mxu0 0
    %2126 = vmatpush1.bf16.msra.mxu0 %v1696
    %2127 = vmatprep.subr.bf16.mxu0 0
    %2128 = vmatpush1.bf16.msra.mxu0 %v1697
    %2129 = vmatprep.subr.bf16.mxu0 0
    %2130 = vmatpush1.bf16.msra.mxu0 %v1698
    %2131 = vmatprep.subr.bf16.mxu0 0
    %2132 = vmatpush1.bf16.msra.mxu0 %v1699
    %2133 = vmatprep.subr.bf16.mxu0 0
    %2134 = vmatpush1.bf16.msra.mxu0 %v1700
    %2135 = vmatprep.subr.bf16.mxu0 0
    %2136 = vmatpush1.bf16.msra.mxu0 %v1701
    %2137 = vmatprep.subr.bf16.mxu0 0
    %2138 = vmatpush1.bf16.msra.mxu0 %v1702
    %2139 = vmatprep.subr.bf16.mxu0 0
    %2140 = vmatpush1.bf16.msra.mxu0 %v1703
    %2141 = vmatprep.mubr.bf16.mxu0 %v812
    %2142 = vmatmul.mubr.bf16.gmra.mrb[0].mxu0 %v811
    %v2143 = vpop.f32.mrb[0].mxu0
    %v2144 = vadd.f32 %v2095, %v2143
    %v2145 = vpop.f32.mrb[0].mxu0
    %v2146 = vpop.f32.mrb[0].mxu0
    %v2147 = vadd.f32 %v2098, %v2146
    %v2148 = vpop.f32.mrb[0].mxu0
    %2149 = vmatprep.mubr.bf16.mxu0 %v828
    %2150 = vmatmul.mubr.bf16.gmra.mrb[0].mxu0 %v827
    %v2151 = vpop.f32.mrb[0].mxu0
    %v2152 = vadd.f32 %v2103, %v2151
    %v2153 = vpop.f32.mrb[0].mxu0
    %v2154 = vpop.f32.mrb[0].mxu0
    %v2155 = vadd.f32 %v2106, %v2154
    %v2156 = vpop.f32.mrb[0].mxu0
    %2157 = vdwg.mxu0
    %2158 = vmatprep.subr.bf16.mxu0 0
    %2159 = vmatpush1.bf16.msra.mxu0 %v1704
    %2160 = vmatprep.subr.bf16.mxu0 0
    %2161 = vmatpush1.bf16.msra.mxu0 %v1705
    %2162 = vmatprep.subr.bf16.mxu0 0
    %2163 = vmatpush1.bf16.msra.mxu0 %v1706
    %2164 = vmatprep.subr.bf16.mxu0 0
    %2165 = vmatpush1.bf16.msra.mxu0 %v1707
    %2166 = vmatprep.subr.bf16.mxu0 0
    %2167 = vmatpush1.bf16.msra.mxu0 %v1708
    %2168 = vmatprep.subr.bf16.mxu0 0
    %2169 = vmatpush1.bf16.msra.mxu0 %v1709
    %2170 = vmatprep.subr.bf16.mxu0 0
    %2171 = vmatpush1.bf16.msra.mxu0 %v1710
    %2172 = vmatprep.subr.bf16.mxu0 0
    %2173 = vmatpush1.bf16.msra.mxu0 %v1711
    %2174 = vmatprep.subr.bf16.mxu0 0
    %2175 = vmatpush1.bf16.msra.mxu0 %v1712
    %2176 = vmatprep.subr.bf16.mxu0 0
    %2177 = vmatpush1.bf16.msra.mxu0 %v1713
    %2178 = vmatprep.subr.bf16.mxu0 0
    %2179 = vmatpush1.bf16.msra.mxu0 %v1714
    %2180 = vmatprep.subr.bf16.mxu0 0
    %2181 = vmatpush1.bf16.msra.mxu0 %v1715
    %2182 = vmatprep.subr.bf16.mxu0 0
    %2183 = vmatpush1.bf16.msra.mxu0 %v1716
    %2184 = vmatprep.subr.bf16.mxu0 0
    %2185 = vmatpush1.bf16.msra.mxu0 %v1717
    %2186 = vmatprep.subr.bf16.mxu0 0
    %2187 = vmatpush1.bf16.msra.mxu0 %v1718
    %2188 = vmatprep.subr.bf16.mxu0 0
    %2189 = vmatpush1.bf16.msra.mxu0 %v1719
    %2190 = vmatprep.mubr.bf16.mxu0 %v814
    %2191 = vmatmul.mubr.bf16.gmra.mrb[0].mxu0 %v813
    %v2192 = vpop.f32.mrb[0].mxu0
    %v2193 = vadd.f32 %v2144, %v2192
    %v2194 = vpop.f32.mrb[0].mxu0
    %v2195 = vpop.f32.mrb[0].mxu0
    %v2196 = vadd.f32 %v2147, %v2195
    %v2197 = vpop.f32.mrb[0].mxu0
    %2198 = vmatprep.mubr.bf16.mxu0 %v830
    %2199 = vmatmul.mubr.bf16.gmra.mrb[0].mxu0 %v829
    %v2200 = vpop.f32.mrb[0].mxu0
    %v2201 = vadd.f32 %v2152, %v2200
    %v2202 = vpop.f32.mrb[0].mxu0
    %v2203 = vpop.f32.mrb[0].mxu0
    %v2204 = vadd.f32 %v2155, %v2203
    %v2205 = vpop.f32.mrb[0].mxu0
    %2206 = vdwg.mxu0
    %2207 = vmatprep.subr.bf16.mxu0 0
    %2208 = vmatpush1.bf16.msra.mxu0 %v1720
    %2209 = vmatprep.subr.bf16.mxu0 0
    %2210 = vmatpush1.bf16.msra.mxu0 %v1721
    %2211 = vmatprep.subr.bf16.mxu0 0
    %2212 = vmatpush1.bf16.msra.mxu0 %v1722
    %2213 = vmatprep.subr.bf16.mxu0 0
    %2214 = vmatpush1.bf16.msra.mxu0 %v1723
    %2215 = vmatprep.subr.bf16.mxu0 0
    %2216 = vmatpush1.bf16.msra.mxu0 %v1724
    %2217 = vmatprep.subr.bf16.mxu0 0
    %2218 = vmatpush1.bf16.msra.mxu0 %v1725
    %2219 = vmatprep.subr.bf16.mxu0 0
    %2220 = vmatpush1.bf16.msra.mxu0 %v1726
    %2221 = vmatprep.subr.bf16.mxu0 0
    %2222 = vmatpush1.bf16.msra.mxu0 %v1727
    %2223 = vmatprep.subr.bf16.mxu0 0
    %2224 = vmatpush1.bf16.msra.mxu0 %v1728
    %2225 = vmatprep.subr.bf16.mxu0 0
    %2226 = vmatpush1.bf16.msra.mxu0 %v1729
    %2227 = vmatprep.subr.bf16.mxu0 0
    %2228 = vmatpush1.bf16.msra.mxu0 %v1730
    %2229 = vmatprep.subr.bf16.mxu0 0
    %2230 = vmatpush1.bf16.msra.mxu0 %v1731
    %2231 = vmatprep.subr.bf16.mxu0 0
    %2232 = vmatpush1.bf16.msra.mxu0 %v1732
    %2233 = vmatprep.subr.bf16.mxu0 0
    %2234 = vmatpush1.bf16.msra.mxu0 %v1733
    %2235 = vmatprep.subr.bf16.mxu0 0
    %2236 = vmatpush1.bf16.msra.mxu0 %v1734
    %2237 = vmatprep.subr.bf16.mxu0 0
    %2238 = vmatpush1.bf16.msra.mxu0 %v1735
    %2239 = vmatprep.mubr.bf16.mxu0 %v816
    %2240 = vmatmul.mubr.bf16.gmra.mrb[0].mxu0 %v815
    %v2241 = vpop.f32.mrb[0].mxu0
    %v2242 = vadd.f32 %v2193, %v2241
    %v2243 = vpop.f32.mrb[0].mxu0
    %v2244 = vpop.f32.mrb[0].mxu0
    %v2245 = vadd.f32 %v2196, %v2244
    %v2246 = vpop.f32.mrb[0].mxu0
    %2247 = vmatprep.mubr.bf16.mxu0 %v832
    %2248 = vmatmul.mubr.bf16.gmra.mrb[0].mxu0 %v831
    %v2249 = vpop.f32.mrb[0].mxu0
    %v2250 = vadd.f32 %v2201, %v2249
    %v2251 = vpop.f32.mrb[0].mxu0
    %v2252 = vpop.f32.mrb[0].mxu0
    %v2253 = vadd.f32 %v2204, %v2252
    %v2254 = vpop.f32.mrb[0].mxu0
    %2255 = vdwg.mxu0
    %vm2256 = vcmp.ge.f32.partialorder %v2242, 0.0
    %vm2257 = vcmp.ge.f32.partialorder %v2245, 0.0
    %vm2258 = vcmp.ge.f32.partialorder %v2250, 0.0
    %vm2259 = vcmp.ge.f32.partialorder %v2253, 0.0
    %v2260 = vmul.f32 %v2242, 0.01
    %v2261 = vmul.f32 %v2245, 0.01
    %v2262 = vmul.f32 %v2250, 0.01
    %v2263 = vmul.f32 %v2253, 0.01
    %v2264 = vsel %vm2256, %v2242, %v2260
    %v2265 = vsel %vm2257, %v2245, %v2261
    %v2266 = vsel %vm2258, %v2250, %v2262
    %v2267 = vsel %vm2259, %v2253, %v2263
    %2268 = vst [vmem:[#allocation2 + $0x9] sm:$0xf] %v2264
    %2269 = vst [vmem:[#allocation2 + $0xd] sm:$0xf0] %v2264
    %2270 = vst [vmem:[#allocation2 + $0x19] sm:$0xf] %v2265
    %2271 = vst [vmem:[#allocation2 + $0x1d] sm:$0xf0] %v2265
    %2272 = vst [vmem:[#allocation2 + $0x49] sm:$0xf] %v2266
    %2273 = vst [vmem:[#allocation2 + $0x4d] sm:$0xf0] %v2266
    %2274 = vst [vmem:[#allocation2 + $0x59] sm:$0xf] %v2267
    %2275 = vst [vmem:[#allocation2 + $0x5d] sm:$0xf0] %v2267
    %v2276 = vld [vmem:[#allocation2] ss:$2 sm:$0x3]
    %v2277 = vpack.c.bf16 %v2276, %v2276
    %2278 = vst [vmem:[#allocation5] sm:$0x1] %v2277
    %s2279 = scalar_lea.vmem [#allocation2], 1
    %v2280 = vld [vmem:[%s2279] ss:$2 sm:$0x3]
    %v2281 = vpack.c.bf16 %v2280, %v2280
    %2282 = vst [vmem:[#allocation5 + $0x4] sm:$0x1] %v2281
    %s2283 = scalar_lea.vmem [#allocation2], 2
    %v2284 = vld [vmem:[%s2283] ss:$2 sm:$0x3]
    %v2285 = vpack.c.bf16 %v2284, %v2284
    %2286 = vst [vmem:[#allocation5 + $0x8] sm:$0x1] %v2285
    %s2287 = scalar_lea.vmem [#allocation2], 3
    %v2288 = vld [vmem:[%s2287] ss:$2 sm:$0x3]
    %v2289 = vpack.c.bf16 %v2288, %v2288
    %2290 = vst [vmem:[#allocation5 + $0xc] sm:$0x1] %v2289
    %s2291 = scalar_lea.vmem [#allocation2], 8
    %v2292 = vld [vmem:[%s2291] ss:$2 sm:$0x3]
    %v2293 = vpack.c.bf16 %v2292, %v2292
    %2294 = vst [vmem:[#allocation5 + $0x10] sm:$0x1] %v2293
    %s2295 = scalar_lea.vmem [#allocation2], 9
    %v2296 = vld [vmem:[%s2295] ss:$2 sm:$0x3]
    %v2297 = vpack.c.bf16 %v2296, %v2296
    %2298 = vst [vmem:[#allocation5 + $0x14] sm:$0x1] %v2297
    %s2299 = scalar_lea.vmem [#allocation2], 10
    %v2300 = vld [vmem:[%s2299] ss:$2 sm:$0x3]
    %v2301 = vpack.c.bf16 %v2300, %v2300
    %2302 = vst [vmem:[#allocation5 + $0x18] sm:$0x1] %v2301
    %s2303 = scalar_lea.vmem [#allocation2], 11
    %v2304 = vld [vmem:[%s2303] ss:$2 sm:$0x3]
    %v2305 = vpack.c.bf16 %v2304, %v2304
    %2306 = vst [vmem:[#allocation5 + $0x1c] sm:$0x1] %v2305
    %s2307 = scalar_lea.vmem [#allocation2], 16
    %v2308 = vld [vmem:[%s2307] ss:$2 sm:$0x3]
    %v2309 = vpack.c.bf16 %v2308, %v2308
    %2310 = vst [vmem:[#allocation5 + $0x20] sm:$0x1] %v2309
    %s2311 = scalar_lea.vmem [#allocation2], 17
    %v2312 = vld [vmem:[%s2311] ss:$2 sm:$0x3]
    %v2313 = vpack.c.bf16 %v2312, %v2312
    %2314 = vst [vmem:[#allocation5 + $0x24] sm:$0x1] %v2313
    %s2315 = scalar_lea.vmem [#allocation2], 18
    %v2316 = vld [vmem:[%s2315] ss:$2 sm:$0x3]
    %v2317 = vpack.c.bf16 %v2316, %v2316
    %2318 = vst [vmem:[#allocation5 + $0x28] sm:$0x1] %v2317
    %s2319 = scalar_lea.vmem [#allocation2], 19
    %v2320 = vld [vmem:[%s2319] ss:$2 sm:$0x3]
    %v2321 = vpack.c.bf16 %v2320, %v2320
    %2322 = vst [vmem:[#allocation5 + $0x2c] sm:$0x1] %v2321
    %s2323 = scalar_lea.vmem [#allocation2], 24
    %v2324 = vld [vmem:[%s2323] ss:$2 sm:$0x3]
    %v2325 = vpack.c.bf16 %v2324, %v2324
    %2326 = vst [vmem:[#allocation5 + $0x30] sm:$0x1] %v2325
    %s2327 = scalar_lea.vmem [#allocation2], 25
    %v2328 = vld [vmem:[%s2327] ss:$2 sm:$0x3]
    %v2329 = vpack.c.bf16 %v2328, %v2328
    %2330 = vst [vmem:[#allocation5 + $0x34] sm:$0x1] %v2329
    %s2331 = scalar_lea.vmem [#allocation2], 26
    %v2332 = vld [vmem:[%s2331] ss:$2 sm:$0x3]
    %v2333 = vpack.c.bf16 %v2332, %v2332
    %2334 = vst [vmem:[#allocation5 + $0x38] sm:$0x1] %v2333
    %s2335 = scalar_lea.vmem [#allocation2], 27
    %v2336 = vld [vmem:[%s2335] ss:$2 sm:$0x3]
    %v2337 = vpack.c.bf16 %v2336, %v2336
    %2338 = vst [vmem:[#allocation5 + $0x3c] sm:$0x1] %v2337
    %v2339 = vld [vmem:[%s2307] ss:$2 sm:$0x3]
    %v2340 = vpack.c.bf16 %v2339, %v2339
    %v2342 = vunpack.c.l.b16 %v2340
    %v2343 = vpack.c.b16 %v2342, %v2342
    %v2344 = vrot.slane %v2343, 7
    %2346 = vst [vmem:[#allocation5] sm:$0x2] %v2344
    %v2347 = vld [vmem:[%s2311] ss:$2 sm:$0x3]
    %v2348 = vpack.c.bf16 %v2347, %v2347
    %v2350 = vunpack.c.l.b16 %v2348
    %v2351 = vpack.c.b16 %v2350, %v2350
    %v2352 = vrot.slane %v2351, 7
    %2354 = vst [vmem:[#allocation5 + $0x4] sm:$0x2] %v2352
    %v2355 = vld [vmem:[%s2315] ss:$2 sm:$0x3]
    %v2356 = vpack.c.bf16 %v2355, %v2355
    %v2358 = vunpack.c.l.b16 %v2356
    %v2359 = vpack.c.b16 %v2358, %v2358
    %v2360 = vrot.slane %v2359, 7
    %2362 = vst [vmem:[#allocation5 + $0x8] sm:$0x2] %v2360
    %v2363 = vld [vmem:[%s2319] ss:$2 sm:$0x3]
    %v2364 = vpack.c.bf16 %v2363, %v2363
    %v2366 = vunpack.c.l.b16 %v2364
    %v2367 = vpack.c.b16 %v2366, %v2366
    %v2368 = vrot.slane %v2367, 7
    %2370 = vst [vmem:[#allocation5 + $0xc] sm:$0x2] %v2368
    %v2371 = vld [vmem:[%s2323] ss:$2 sm:$0x3]
    %v2372 = vpack.c.bf16 %v2371, %v2371
    %v2374 = vunpack.c.l.b16 %v2372
    %v2375 = vpack.c.b16 %v2374, %v2374
    %v2376 = vrot.slane %v2375, 7
    %2378 = vst [vmem:[#allocation5 + $0x10] sm:$0x2] %v2376
    %v2379 = vld [vmem:[%s2327] ss:$2 sm:$0x3]
    %v2380 = vpack.c.bf16 %v2379, %v2379
    %v2382 = vunpack.c.l.b16 %v2380
    %v2383 = vpack.c.b16 %v2382, %v2382
    %v2384 = vrot.slane %v2383, 7
    %2386 = vst [vmem:[#allocation5 + $0x14] sm:$0x2] %v2384
    %v2387 = vld [vmem:[%s2331] ss:$2 sm:$0x3]
    %v2388 = vpack.c.bf16 %v2387, %v2387
    %v2390 = vunpack.c.l.b16 %v2388
    %v2391 = vpack.c.b16 %v2390, %v2390
    %v2392 = vrot.slane %v2391, 7
    %2394 = vst [vmem:[#allocation5 + $0x18] sm:$0x2] %v2392
    %v2395 = vld [vmem:[%s2335] ss:$2 sm:$0x3]
    %v2396 = vpack.c.bf16 %v2395, %v2395
    %v2398 = vunpack.c.l.b16 %v2396
    %v2399 = vpack.c.b16 %v2398, %v2398
    %v2400 = vrot.slane %v2399, 7
    %2402 = vst [vmem:[#allocation5 + $0x1c] sm:$0x2] %v2400
    %s2403 = scalar_lea.vmem [#allocation2], 32
    %v2404 = vld [vmem:[%s2403] ss:$2 sm:$0x3]
    %v2405 = vpack.c.bf16 %v2404, %v2404
    %v2407 = vunpack.c.l.b16 %v2405
    %v2408 = vpack.c.b16 %v2407, %v2407
    %v2409 = vrot.slane %v2408, 7
    %2411 = vst [vmem:[#allocation5 + $0x20] sm:$0x2] %v2409
    %s2412 = scalar_lea.vmem [#allocation2], 33
    %v2413 = vld [vmem:[%s2412] ss:$2 sm:$0x3]
    %v2414 = vpack.c.bf16 %v2413, %v2413
    %v2416 = vunpack.c.l.b16 %v2414
    %v2417 = vpack.c.b16 %v2416, %v2416
    %v2418 = vrot.slane %v2417, 7
    %2420 = vst [vmem:[#allocation5 + $0x24] sm:$0x2] %v2418
    %s2421 = scalar_lea.vmem [#allocation2], 34
    %v2422 = vld [vmem:[%s2421] ss:$2 sm:$0x3]
    %v2423 = vpack.c.bf16 %v2422, %v2422
    %v2425 = vunpack.c.l.b16 %v2423
    %v2426 = vpack.c.b16 %v2425, %v2425
    %v2427 = vrot.slane %v2426, 7
    %2429 = vst [vmem:[#allocation5 + $0x28] sm:$0x2] %v2427
    %s2430 = scalar_lea.vmem [#allocation2], 35
    %v2431 = vld [vmem:[%s2430] ss:$2 sm:$0x3]
    %v2432 = vpack.c.bf16 %v2431, %v2431
    %v2434 = vunpack.c.l.b16 %v2432
    %v2435 = vpack.c.b16 %v2434, %v2434
    %v2436 = vrot.slane %v2435, 7
    %2438 = vst [vmem:[#allocation5 + $0x2c] sm:$0x2] %v2436
    %s2439 = scalar_lea.vmem [#allocation2], 40
    %v2440 = vld [vmem:[%s2439] ss:$2 sm:$0x3]
    %v2441 = vpack.c.bf16 %v2440, %v2440
    %v2443 = vunpack.c.l.b16 %v2441
    %v2444 = vpack.c.b16 %v2443, %v2443
    %v2445 = vrot.slane %v2444, 7
    %2447 = vst [vmem:[#allocation5 + $0x30] sm:$0x2] %v2445
    %s2448 = scalar_lea.vmem [#allocation2], 41
    %v2449 = vld [vmem:[%s2448] ss:$2 sm:$0x3]
    %v2450 = vpack.c.bf16 %v2449, %v2449
    %v2452 = vunpack.c.l.b16 %v2450
    %v2453 = vpack.c.b16 %v2452, %v2452
    %v2454 = vrot.slane %v2453, 7
    %2456 = vst [vmem:[#allocation5 + $0x34] sm:$0x2] %v2454
    %s2457 = scalar_lea.vmem [#allocation2], 42
    %v2458 = vld [vmem:[%s2457] ss:$2 sm:$0x3]
    %v2459 = vpack.c.bf16 %v2458, %v2458
    %v2461 = vunpack.c.l.b16 %v2459
    %v2462 = vpack.c.b16 %v2461, %v2461
    %v2463 = vrot.slane %v2462, 7
    %2465 = vst [vmem:[#allocation5 + $0x38] sm:$0x2] %v2463
    %s2466 = scalar_lea.vmem [#allocation2], 43
    %v2467 = vld [vmem:[%s2466] ss:$2 sm:$0x3]
    %v2468 = vpack.c.bf16 %v2467, %v2467
    %v2470 = vunpack.c.l.b16 %v2468
    %v2471 = vpack.c.b16 %v2470, %v2470
    %v2472 = vrot.slane %v2471, 7
    %2474 = vst [vmem:[#allocation5 + $0x3c] sm:$0x2] %v2472
    %s2475 = scalar_lea.vmem [#allocation2], 64
    %v2476 = vld [vmem:[%s2475] ss:$2 sm:$0x3]
    %v2477 = vpack.c.bf16 %v2476, %v2476
    %v2479 = vunpack.c.l.b16 %v2477
    %v2480 = vpack.c.b16 %v2479, %v2479
    %v2481 = vrot.slane %v2480, 6
    %2483 = vst [vmem:[#allocation5] sm:$0x4] %v2481
    %s2484 = scalar_lea.vmem [#allocation2], 65
    %v2485 = vld [vmem:[%s2484] ss:$2 sm:$0x3]
    %v2486 = vpack.c.bf16 %v2485, %v2485
    %v2488 = vunpack.c.l.b16 %v2486
    %v2489 = vpack.c.b16 %v2488, %v2488
    %v2490 = vrot.slane %v2489, 6
    %2492 = vst [vmem:[#allocation5 + $0x4] sm:$0x4] %v2490
    %s2493 = scalar_lea.vmem [#allocation2], 66
    %v2494 = vld [vmem:[%s2493] ss:$2 sm:$0x3]
    %v2495 = vpack.c.bf16 %v2494, %v2494
    %v2497 = vunpack.c.l.b16 %v2495
    %v2498 = vpack.c.b16 %v2497, %v2497
    %v2499 = vrot.slane %v2498, 6
    %2501 = vst [vmem:[#allocation5 + $0x8] sm:$0x4] %v2499
    %s2502 = scalar_lea.vmem [#allocation2], 67
    %v2503 = vld [vmem:[%s2502] ss:$2 sm:$0x3]
    %v2504 = vpack.c.bf16 %v2503, %v2503
    %v2506 = vunpack.c.l.b16 %v2504
    %v2507 = vpack.c.b16 %v2506, %v2506
    %v2508 = vrot.slane %v2507, 6
    %2510 = vst [vmem:[#allocation5 + $0xc] sm:$0x4] %v2508
    %s2511 = scalar_lea.vmem [#allocation2], 72
    %v2512 = vld [vmem:[%s2511] ss:$2 sm:$0x3]
    %v2513 = vpack.c.bf16 %v2512, %v2512
    %v2515 = vunpack.c.l.b16 %v2513
    %v2516 = vpack.c.b16 %v2515, %v2515
    %v2517 = vrot.slane %v2516, 6
    %2519 = vst [vmem:[#allocation5 + $0x10] sm:$0x4] %v2517
    %s2520 = scalar_lea.vmem [#allocation2], 73
    %v2521 = vld [vmem:[%s2520] ss:$2 sm:$0x3]
    %v2522 = vpack.c.bf16 %v2521, %v2521
    %v2524 = vunpack.c.l.b16 %v2522
    %v2525 = vpack.c.b16 %v2524, %v2524
    %v2526 = vrot.slane %v2525, 6
    %2528 = vst [vmem:[#allocation5 + $0x14] sm:$0x4] %v2526
    %s2529 = scalar_lea.vmem [#allocation2], 74
    %v2530 = vld [vmem:[%s2529] ss:$2 sm:$0x3]
    %v2531 = vpack.c.bf16 %v2530, %v2530
    %v2533 = vunpack.c.l.b16 %v2531
    %v2534 = vpack.c.b16 %v2533, %v2533
    %v2535 = vrot.slane %v2534, 6
    %2537 = vst [vmem:[#allocation5 + $0x18] sm:$0x4] %v2535
    %s2538 = scalar_lea.vmem [#allocation2], 75
    %v2539 = vld [vmem:[%s2538] ss:$2 sm:$0x3]
    %v2540 = vpack.c.bf16 %v2539, %v2539
    %v2542 = vunpack.c.l.b16 %v2540
    %v2543 = vpack.c.b16 %v2542, %v2542
    %v2544 = vrot.slane %v2543, 6
    %2546 = vst [vmem:[#allocation5 + $0x1c] sm:$0x4] %v2544
    %s2547 = scalar_lea.vmem [#allocation2], 80
    %v2548 = vld [vmem:[%s2547] ss:$2 sm:$0x3]
    %v2549 = vpack.c.bf16 %v2548, %v2548
    %v2551 = vunpack.c.l.b16 %v2549
    %v2552 = vpack.c.b16 %v2551, %v2551
    %v2553 = vrot.slane %v2552, 6
    %2555 = vst [vmem:[#allocation5 + $0x20] sm:$0x4] %v2553
    %s2556 = scalar_lea.vmem [#allocation2], 81
    %v2557 = vld [vmem:[%s2556] ss:$2 sm:$0x3]
    %v2558 = vpack.c.bf16 %v2557, %v2557
    %v2560 = vunpack.c.l.b16 %v2558
    %v2561 = vpack.c.b16 %v2560, %v2560
    %v2562 = vrot.slane %v2561, 6
    %2564 = vst [vmem:[#allocation5 + $0x24] sm:$0x4] %v2562
    %s2565 = scalar_lea.vmem [#allocation2], 82
    %v2566 = vld [vmem:[%s2565] ss:$2 sm:$0x3]
    %v2567 = vpack.c.bf16 %v2566, %v2566
    %v2569 = vunpack.c.l.b16 %v2567
    %v2570 = vpack.c.b16 %v2569, %v2569
    %v2571 = vrot.slane %v2570, 6
    %2573 = vst [vmem:[#allocation5 + $0x28] sm:$0x4] %v2571
    %s2574 = scalar_lea.vmem [#allocation2], 83
    %v2575 = vld [vmem:[%s2574] ss:$2 sm:$0x3]
    %v2576 = vpack.c.bf16 %v2575, %v2575
    %v2578 = vunpack.c.l.b16 %v2576
    %v2579 = vpack.c.b16 %v2578, %v2578
    %v2580 = vrot.slane %v2579, 6
    %2582 = vst [vmem:[#allocation5 + $0x2c] sm:$0x4] %v2580
    %s2583 = scalar_lea.vmem [#allocation2], 88
    %v2584 = vld [vmem:[%s2583] ss:$2 sm:$0x3]
    %v2585 = vpack.c.bf16 %v2584, %v2584
    %v2587 = vunpack.c.l.b16 %v2585
    %v2588 = vpack.c.b16 %v2587, %v2587
    %v2589 = vrot.slane %v2588, 6
    %2591 = vst [vmem:[#allocation5 + $0x30] sm:$0x4] %v2589
    %s2592 = scalar_lea.vmem [#allocation2], 89
    %v2593 = vld [vmem:[%s2592] ss:$2 sm:$0x3]
    %v2594 = vpack.c.bf16 %v2593, %v2593
    %v2596 = vunpack.c.l.b16 %v2594
    %v2597 = vpack.c.b16 %v2596, %v2596
    %v2598 = vrot.slane %v2597, 6
    %2600 = vst [vmem:[#allocation5 + $0x34] sm:$0x4] %v2598
    %s2601 = scalar_lea.vmem [#allocation2], 90
    %v2602 = vld [vmem:[%s2601] ss:$2 sm:$0x3]
    %v2603 = vpack.c.bf16 %v2602, %v2602
    %v2605 = vunpack.c.l.b16 %v2603
    %v2606 = vpack.c.b16 %v2605, %v2605
    %v2607 = vrot.slane %v2606, 6
    %2609 = vst [vmem:[#allocation5 + $0x38] sm:$0x4] %v2607
    %s2610 = scalar_lea.vmem [#allocation2], 91
    %v2611 = vld [vmem:[%s2610] ss:$2 sm:$0x3]
    %v2612 = vpack.c.bf16 %v2611, %v2611
    %v2614 = vunpack.c.l.b16 %v2612
    %v2615 = vpack.c.b16 %v2614, %v2614
    %v2616 = vrot.slane %v2615, 6
    %2618 = vst [vmem:[#allocation5 + $0x3c] sm:$0x4] %v2616
    %v2619 = vld [vmem:[%s2547] ss:$2 sm:$0x3]
    %v2620 = vpack.c.bf16 %v2619, %v2619
    %v2622 = vunpack.c.l.b16 %v2620
    %v2623 = vpack.c.b16 %v2622, %v2622
    %v2624 = vrot.slane %v2623, 5
    %2626 = vst [vmem:[#allocation5] sm:$0x8] %v2624
    %v2627 = vld [vmem:[%s2556] ss:$2 sm:$0x3]
    %v2628 = vpack.c.bf16 %v2627, %v2627
    %v2630 = vunpack.c.l.b16 %v2628
    %v2631 = vpack.c.b16 %v2630, %v2630
    %v2632 = vrot.slane %v2631, 5
    %2634 = vst [vmem:[#allocation5 + $0x4] sm:$0x8] %v2632
    %v2635 = vld [vmem:[%s2565] ss:$2 sm:$0x3]
    %v2636 = vpack.c.bf16 %v2635, %v2635
    %v2638 = vunpack.c.l.b16 %v2636
    %v2639 = vpack.c.b16 %v2638, %v2638
    %v2640 = vrot.slane %v2639, 5
    %2642 = vst [vmem:[#allocation5 + $0x8] sm:$0x8] %v2640
    %v2643 = vld [vmem:[%s2574] ss:$2 sm:$0x3]
    %v2644 = vpack.c.bf16 %v2643, %v2643
    %v2646 = vunpack.c.l.b16 %v2644
    %v2647 = vpack.c.b16 %v2646, %v2646
    %v2648 = vrot.slane %v2647, 5
    %2650 = vst [vmem:[#allocation5 + $0xc] sm:$0x8] %v2648
    %v2651 = vld [vmem:[%s2583] ss:$2 sm:$0x3]
    %v2652 = vpack.c.bf16 %v2651, %v2651
    %v2654 = vunpack.c.l.b16 %v2652
    %v2655 = vpack.c.b16 %v2654, %v2654
    %v2656 = vrot.slane %v2655, 5
    %2658 = vst [vmem:[#allocation5 + $0x10] sm:$0x8] %v2656
    %v2659 = vld [vmem:[%s2592] ss:$2 sm:$0x3]
    %v2660 = vpack.c.bf16 %v2659, %v2659
    %v2662 = vunpack.c.l.b16 %v2660
    %v2663 = vpack.c.b16 %v2662, %v2662
    %v2664 = vrot.slane %v2663, 5
    %2666 = vst [vmem:[#allocation5 + $0x14] sm:$0x8] %v2664
    %v2667 = vld [vmem:[%s2601] ss:$2 sm:$0x3]
    %v2668 = vpack.c.bf16 %v2667, %v2667
    %v2670 = vunpack.c.l.b16 %v2668
    %v2671 = vpack.c.b16 %v2670, %v2670
    %v2672 = vrot.slane %v2671, 5
    %2674 = vst [vmem:[#allocation5 + $0x18] sm:$0x8] %v2672
    %v2675 = vld [vmem:[%s2610] ss:$2 sm:$0x3]
    %v2676 = vpack.c.bf16 %v2675, %v2675
    %v2678 = vunpack.c.l.b16 %v2676
    %v2679 = vpack.c.b16 %v2678, %v2678
    %v2680 = vrot.slane %v2679, 5
    %2682 = vst [vmem:[#allocation5 + $0x1c] sm:$0x8] %v2680
    %s2683 = scalar_lea.vmem [#allocation2], 96
    %v2684 = vld [vmem:[%s2683] ss:$2 sm:$0x3]
    %v2685 = vpack.c.bf16 %v2684, %v2684
    %v2687 = vunpack.c.l.b16 %v2685
    %v2688 = vpack.c.b16 %v2687, %v2687
    %v2689 = vrot.slane %v2688, 5
    %2691 = vst [vmem:[#allocation5 + $0x20] sm:$0x8] %v2689
    %s2692 = scalar_lea.vmem [#allocation2], 97
    %v2693 = vld [vmem:[%s2692] ss:$2 sm:$0x3]
    %v2694 = vpack.c.bf16 %v2693, %v2693
    %v2696 = vunpack.c.l.b16 %v2694
    %v2697 = vpack.c.b16 %v2696, %v2696
    %v2698 = vrot.slane %v2697, 5
    %2700 = vst [vmem:[#allocation5 + $0x24] sm:$0x8] %v2698
    %s2701 = scalar_lea.vmem [#allocation2], 98
    %v2702 = vld [vmem:[%s2701] ss:$2 sm:$0x3]
    %v2703 = vpack.c.bf16 %v2702, %v2702
    %v2705 = vunpack.c.l.b16 %v2703
    %v2706 = vpack.c.b16 %v2705, %v2705
    %v2707 = vrot.slane %v2706, 5
    %2709 = vst [vmem:[#allocation5 + $0x28] sm:$0x8] %v2707
    %s2710 = scalar_lea.vmem [#allocation2], 99
    %v2711 = vld [vmem:[%s2710] ss:$2 sm:$0x3]
    %v2712 = vpack.c.bf16 %v2711, %v2711
    %v2714 = vunpack.c.l.b16 %v2712
    %v2715 = vpack.c.b16 %v2714, %v2714
    %v2716 = vrot.slane %v2715, 5
    %2718 = vst [vmem:[#allocation5 + $0x2c] sm:$0x8] %v2716
    %s2719 = scalar_lea.vmem [#allocation2], 104
    %v2720 = vld [vmem:[%s2719] ss:$2 sm:$0x3]
    %v2721 = vpack.c.bf16 %v2720, %v2720
    %v2723 = vunpack.c.l.b16 %v2721
    %v2724 = vpack.c.b16 %v2723, %v2723
    %v2725 = vrot.slane %v2724, 5
    %2727 = vst [vmem:[#allocation5 + $0x30] sm:$0x8] %v2725
    %s2728 = scalar_lea.vmem [#allocation2], 105
    %v2729 = vld [vmem:[%s2728] ss:$2 sm:$0x3]
    %v2730 = vpack.c.bf16 %v2729, %v2729
    %v2732 = vunpack.c.l.b16 %v2730
    %v2733 = vpack.c.b16 %v2732, %v2732
    %v2734 = vrot.slane %v2733, 5
    %2736 = vst [vmem:[#allocation5 + $0x34] sm:$0x8] %v2734
    %s2737 = scalar_lea.vmem [#allocation2], 106
    %v2738 = vld [vmem:[%s2737] ss:$2 sm:$0x3]
    %v2739 = vpack.c.bf16 %v2738, %v2738
    %v2741 = vunpack.c.l.b16 %v2739
    %v2742 = vpack.c.b16 %v2741, %v2741
    %v2743 = vrot.slane %v2742, 5
    %2745 = vst [vmem:[#allocation5 + $0x38] sm:$0x8] %v2743
    %s2746 = scalar_lea.vmem [#allocation2], 107
    %v2747 = vld [vmem:[%s2746] ss:$2 sm:$0x3]
    %v2748 = vpack.c.bf16 %v2747, %v2747
    %v2750 = vunpack.c.l.b16 %v2748
    %v2751 = vpack.c.b16 %v2750, %v2750
    %v2752 = vrot.slane %v2751, 5
    %2754 = vst [vmem:[#allocation5 + $0x3c] sm:$0x8] %v2752
    %v2755 = vld [vmem:[#allocation5] sm:$0xff]
    %v2756 = vld [vmem:[#allocation5 + $0x8] sm:$0xff]
    %v2757 = vld [vmem:[#allocation5 + $0x10] sm:$0xff]
    %v2758 = vld [vmem:[#allocation5 + $0x18] sm:$0xff]
    %v2759 = vld [vmem:[#allocation5 + $0x20] sm:$0xff]
    %v2760 = vld [vmem:[#allocation5 + $0x28] sm:$0xff]
    %v2761 = vld [vmem:[#allocation5 + $0x30] sm:$0xff]
    %v2762 = vld [vmem:[#allocation5 + $0x38] sm:$0xff]
    %v2763 = vld [vmem:[%s3] sm:$0xf]
    %v2764 = vld [vmem:[%s3 + $0x4] sm:$0xf]
    %v2765 = vld [vmem:[%s3 + $0x8] sm:$0xf]
    %v2766 = vld [vmem:[%s3 + $0xc] sm:$0xf]
    %v2767 = vld [vmem:[%s3 + $0x10] sm:$0xf]
    %v2768 = vld [vmem:[%s3 + $0x14] sm:$0xf]
    %v2769 = vld [vmem:[%s3 + $0x18] sm:$0xf]
    %v2770 = vld [vmem:[%s3 + $0x1c] sm:$0xf]
    %v2771 = vld [vmem:[%s3 + $0x20] sm:$0xf]
    %v2772 = vld [vmem:[%s3 + $0x24] sm:$0xf]
    %v2773 = vld [vmem:[%s3 + $0x28] sm:$0xf]
    %v2774 = vld [vmem:[%s3 + $0x2c] sm:$0xf]
    %v2775 = vld [vmem:[%s3 + $0x30] sm:$0xf]
    %v2776 = vld [vmem:[%s3 + $0x34] sm:$0xf]
    %v2777 = vld [vmem:[%s3 + $0x38] sm:$0xf]
    %v2778 = vld [vmem:[%s3 + $0x3c] sm:$0xf]
    %v2779 = vld [vmem:[%s3 + $0x40] sm:$0xf]
    %v2780 = vld [vmem:[%s3 + $0x44] sm:$0xf]
    %v2781 = vld [vmem:[%s3 + $0x48] sm:$0xf]
    %v2782 = vld [vmem:[%s3 + $0x4c] sm:$0xf]
    %v2783 = vld [vmem:[%s3 + $0x50] sm:$0xf]
    %v2784 = vld [vmem:[%s3 + $0x54] sm:$0xf]
    %v2785 = vld [vmem:[%s3 + $0x58] sm:$0xf]
    %v2786 = vld [vmem:[%s3 + $0x5c] sm:$0xf]
    %v2787 = vld [vmem:[%s3 + $0x60] sm:$0xf]
    %v2788 = vld [vmem:[%s3 + $0x64] sm:$0xf]
    %v2789 = vld [vmem:[%s3 + $0x68] sm:$0xf]
    %v2790 = vld [vmem:[%s3 + $0x6c] sm:$0xf]
    %v2791 = vld [vmem:[%s3 + $0x70] sm:$0xf]
    %v2792 = vld [vmem:[%s3 + $0x74] sm:$0xf]
    %v2793 = vld [vmem:[%s3 + $0x78] sm:$0xf]
    %v2794 = vld [vmem:[%s3 + $0x7c] sm:$0xf]
    %v2795 = vld [vmem:[%s3 + $0x80] sm:$0xf]
    %v2796 = vld [vmem:[%s3 + $0x84] sm:$0xf]
    %v2797 = vld [vmem:[%s3 + $0x88] sm:$0xf]
    %v2798 = vld [vmem:[%s3 + $0x8c] sm:$0xf]
    %v2799 = vld [vmem:[%s3 + $0x90] sm:$0xf]
    %v2800 = vld [vmem:[%s3 + $0x94] sm:$0xf]
    %v2801 = vld [vmem:[%s3 + $0x98] sm:$0xf]
    %v2802 = vld [vmem:[%s3 + $0x9c] sm:$0xf]
    %v2803 = vld [vmem:[%s3 + $0xa0] sm:$0xf]
    %v2804 = vld [vmem:[%s3 + $0xa4] sm:$0xf]
    %v2805 = vld [vmem:[%s3 + $0xa8] sm:$0xf]
    %v2806 = vld [vmem:[%s3 + $0xac] sm:$0xf]
    %v2807 = vld [vmem:[%s3 + $0xb0] sm:$0xf]
    %v2808 = vld [vmem:[%s3 + $0xb4] sm:$0xf]
    %v2809 = vld [vmem:[%s3 + $0xb8] sm:$0xf]
    %v2810 = vld [vmem:[%s3 + $0xbc] sm:$0xf]
    %v2811 = vld [vmem:[%s3 + $0xc0] sm:$0xf]
    %v2812 = vld [vmem:[%s3 + $0xc4] sm:$0xf]
    %v2813 = vld [vmem:[%s3 + $0xc8] sm:$0xf]
    %v2814 = vld [vmem:[%s3 + $0xcc] sm:$0xf]
    %v2815 = vld [vmem:[%s3 + $0xd0] sm:$0xf]
    %v2816 = vld [vmem:[%s3 + $0xd4] sm:$0xf]
    %v2817 = vld [vmem:[%s3 + $0xd8] sm:$0xf]
    %v2818 = vld [vmem:[%s3 + $0xdc] sm:$0xf]
    %v2819 = vld [vmem:[%s3 + $0xe0] sm:$0xf]
    %v2820 = vld [vmem:[%s3 + $0xe4] sm:$0xf]
    %v2821 = vld [vmem:[%s3 + $0xe8] sm:$0xf]
    %v2822 = vld [vmem:[%s3 + $0xec] sm:$0xf]
    %v2823 = vld [vmem:[%s3 + $0xf0] sm:$0xf]
    %v2824 = vld [vmem:[%s3 + $0xf4] sm:$0xf]
    %v2825 = vld [vmem:[%s3 + $0xf8] sm:$0xf]
    %v2826 = vld [vmem:[%s3 + $0xfc] sm:$0xf]
    %v2827 = vld [vmem:[%s3 + $0x100] sm:$0xf]
    %v2828 = vld [vmem:[%s3 + $0x104] sm:$0xf]
    %v2829 = vld [vmem:[%s3 + $0x108] sm:$0xf]
    %v2830 = vld [vmem:[%s3 + $0x10c] sm:$0xf]
    %v2831 = vld [vmem:[%s3 + $0x110] sm:$0xf]
    %v2832 = vld [vmem:[%s3 + $0x114] sm:$0xf]
    %v2833 = vld [vmem:[%s3 + $0x118] sm:$0xf]
    %v2834 = vld [vmem:[%s3 + $0x11c] sm:$0xf]
    %v2835 = vld [vmem:[%s3 + $0x120] sm:$0xf]
    %v2836 = vld [vmem:[%s3 + $0x124] sm:$0xf]
    %v2837 = vld [vmem:[%s3 + $0x128] sm:$0xf]
    %v2838 = vld [vmem:[%s3 + $0x12c] sm:$0xf]
    %v2839 = vld [vmem:[%s3 + $0x130] sm:$0xf]
    %v2840 = vld [vmem:[%s3 + $0x134] sm:$0xf]
    %v2841 = vld [vmem:[%s3 + $0x138] sm:$0xf]
    %v2842 = vld [vmem:[%s3 + $0x13c] sm:$0xf]
    %v2843 = vld [vmem:[%s3 + $0x140] sm:$0xf]
    %v2844 = vld [vmem:[%s3 + $0x144] sm:$0xf]
    %v2845 = vld [vmem:[%s3 + $0x148] sm:$0xf]
    %v2846 = vld [vmem:[%s3 + $0x14c] sm:$0xf]
    %v2847 = vld [vmem:[%s3 + $0x150] sm:$0xf]
    %v2848 = vld [vmem:[%s3 + $0x154] sm:$0xf]
    %v2849 = vld [vmem:[%s3 + $0x158] sm:$0xf]
    %v2850 = vld [vmem:[%s3 + $0x15c] sm:$0xf]
    %v2851 = vld [vmem:[%s3 + $0x160] sm:$0xf]
    %v2852 = vld [vmem:[%s3 + $0x164] sm:$0xf]
    %v2853 = vld [vmem:[%s3 + $0x168] sm:$0xf]
    %v2854 = vld [vmem:[%s3 + $0x16c] sm:$0xf]
    %v2855 = vld [vmem:[%s3 + $0x170] sm:$0xf]
    %v2856 = vld [vmem:[%s3 + $0x174] sm:$0xf]
    %v2857 = vld [vmem:[%s3 + $0x178] sm:$0xf]
    %v2858 = vld [vmem:[%s3 + $0x17c] sm:$0xf]
    %v2859 = vld [vmem:[%s3 + $0x180] sm:$0xf]
    %v2860 = vld [vmem:[%s3 + $0x184] sm:$0xf]
    %v2861 = vld [vmem:[%s3 + $0x188] sm:$0xf]
    %v2862 = vld [vmem:[%s3 + $0x18c] sm:$0xf]
    %v2863 = vld [vmem:[%s3 + $0x190] sm:$0xf]
    %v2864 = vld [vmem:[%s3 + $0x194] sm:$0xf]
    %v2865 = vld [vmem:[%s3 + $0x198] sm:$0xf]
    %v2866 = vld [vmem:[%s3 + $0x19c] sm:$0xf]
    %v2867 = vld [vmem:[%s3 + $0x1a0] sm:$0xf]
    %v2868 = vld [vmem:[%s3 + $0x1a4] sm:$0xf]
    %v2869 = vld [vmem:[%s3 + $0x1a8] sm:$0xf]
    %v2870 = vld [vmem:[%s3 + $0x1ac] sm:$0xf]
    %v2871 = vld [vmem:[%s3 + $0x1b0] sm:$0xf]
    %v2872 = vld [vmem:[%s3 + $0x1b4] sm:$0xf]
    %v2873 = vld [vmem:[%s3 + $0x1b8] sm:$0xf]
    %v2874 = vld [vmem:[%s3 + $0x1bc] sm:$0xf]
    %v2875 = vld [vmem:[%s3 + $0x1c0] sm:$0xf]
    %v2876 = vld [vmem:[%s3 + $0x1c4] sm:$0xf]
    %v2877 = vld [vmem:[%s3 + $0x1c8] sm:$0xf]
    %v2878 = vld [vmem:[%s3 + $0x1cc] sm:$0xf]
    %v2879 = vld [vmem:[%s3 + $0x1d0] sm:$0xf]
    %v2880 = vld [vmem:[%s3 + $0x1d4] sm:$0xf]
    %v2881 = vld [vmem:[%s3 + $0x1d8] sm:$0xf]
    %v2882 = vld [vmem:[%s3 + $0x1dc] sm:$0xf]
    %v2883 = vld [vmem:[%s3 + $0x1e0] sm:$0xf]
    %v2884 = vld [vmem:[%s3 + $0x1e4] sm:$0xf]
    %v2885 = vld [vmem:[%s3 + $0x1e8] sm:$0xf]
    %v2886 = vld [vmem:[%s3 + $0x1ec] sm:$0xf]
    %v2887 = vld [vmem:[%s3 + $0x1f0] sm:$0xf]
    %v2888 = vld [vmem:[%s3 + $0x1f4] sm:$0xf]
    %v2889 = vld [vmem:[%s3 + $0x1f8] sm:$0xf]
    %v2890 = vld [vmem:[%s3 + $0x1fc] sm:$0xf]
    %v2891 = vld [vmem:[%s3 + $0x200] sm:$0xf]
    %v2892 = vld [vmem:[%s3 + $0x204] sm:$0xf]
    %v2893 = vld [vmem:[%s3 + $0x208] sm:$0xf]
    %v2894 = vld [vmem:[%s3 + $0x20c] sm:$0xf]
    %v2895 = vld [vmem:[%s3 + $0x210] sm:$0xf]
    %v2896 = vld [vmem:[%s3 + $0x214] sm:$0xf]
    %v2897 = vld [vmem:[%s3 + $0x218] sm:$0xf]
    %v2898 = vld [vmem:[%s3 + $0x21c] sm:$0xf]
    %v2899 = vld [vmem:[%s3 + $0x220] sm:$0xf]
    %v2900 = vld [vmem:[%s3 + $0x224] sm:$0xf]
    %v2901 = vld [vmem:[%s3 + $0x228] sm:$0xf]
    %v2902 = vld [vmem:[%s3 + $0x22c] sm:$0xf]
    %v2903 = vld [vmem:[%s3 + $0x230] sm:$0xf]
    %v2904 = vld [vmem:[%s3 + $0x234] sm:$0xf]
    %v2905 = vld [vmem:[%s3 + $0x238] sm:$0xf]
    %v2906 = vld [vmem:[%s3 + $0x23c] sm:$0xf]
    %v2907 = vld [vmem:[%s3 + $0x240] sm:$0xf]
    %v2908 = vld [vmem:[%s3 + $0x244] sm:$0xf]
    %v2909 = vld [vmem:[%s3 + $0x248] sm:$0xf]
    %v2910 = vld [vmem:[%s3 + $0x24c] sm:$0xf]
    %v2911 = vld [vmem:[%s3 + $0x250] sm:$0xf]
    %v2912 = vld [vmem:[%s3 + $0x254] sm:$0xf]
    %v2913 = vld [vmem:[%s3 + $0x258] sm:$0xf]
    %v2914 = vld [vmem:[%s3 + $0x25c] sm:$0xf]
    %v2915 = vld [vmem:[%s3 + $0x260] sm:$0xf]
    %v2916 = vld [vmem:[%s3 + $0x264] sm:$0xf]
    %v2917 = vld [vmem:[%s3 + $0x268] sm:$0xf]
    %v2918 = vld [vmem:[%s3 + $0x26c] sm:$0xf]
    %v2919 = vld [vmem:[%s3 + $0x270] sm:$0xf]
    %v2920 = vld [vmem:[%s3 + $0x274] sm:$0xf]
    %v2921 = vld [vmem:[%s3 + $0x278] sm:$0xf]
    %v2922 = vld [vmem:[%s3 + $0x27c] sm:$0xf]
    %v2923 = vld [vmem:[%s3 + $0x280] sm:$0xf]
    %v2924 = vld [vmem:[%s3 + $0x284] sm:$0xf]
    %v2925 = vld [vmem:[%s3 + $0x288] sm:$0xf]
    %v2926 = vld [vmem:[%s3 + $0x28c] sm:$0xf]
    %v2927 = vld [vmem:[%s3 + $0x290] sm:$0xf]
    %v2928 = vld [vmem:[%s3 + $0x294] sm:$0xf]
    %v2929 = vld [vmem:[%s3 + $0x298] sm:$0xf]
    %v2930 = vld [vmem:[%s3 + $0x29c] sm:$0xf]
    %v2931 = vld [vmem:[%s3 + $0x2a0] sm:$0xf]
    %v2932 = vld [vmem:[%s3 + $0x2a4] sm:$0xf]
    %v2933 = vld [vmem:[%s3 + $0x2a8] sm:$0xf]
    %v2934 = vld [vmem:[%s3 + $0x2ac] sm:$0xf]
    %v2935 = vld [vmem:[%s3 + $0x2b0] sm:$0xf]
    %v2936 = vld [vmem:[%s3 + $0x2b4] sm:$0xf]
    %v2937 = vld [vmem:[%s3 + $0x2b8] sm:$0xf]
    %v2938 = vld [vmem:[%s3 + $0x2bc] sm:$0xf]
    %v2939 = vld [vmem:[%s3 + $0x2c0] sm:$0xf]
    %v2940 = vld [vmem:[%s3 + $0x2c4] sm:$0xf]
    %v2941 = vld [vmem:[%s3 + $0x2c8] sm:$0xf]
    %v2942 = vld [vmem:[%s3 + $0x2cc] sm:$0xf]
    %v2943 = vld [vmem:[%s3 + $0x2d0] sm:$0xf]
    %v2944 = vld [vmem:[%s3 + $0x2d4] sm:$0xf]
    %v2945 = vld [vmem:[%s3 + $0x2d8] sm:$0xf]
    %v2946 = vld [vmem:[%s3 + $0x2dc] sm:$0xf]
    %v2947 = vld [vmem:[%s3 + $0x2e0] sm:$0xf]
    %v2948 = vld [vmem:[%s3 + $0x2e4] sm:$0xf]
    %v2949 = vld [vmem:[%s3 + $0x2e8] sm:$0xf]
    %v2950 = vld [vmem:[%s3 + $0x2ec] sm:$0xf]
    %v2951 = vld [vmem:[%s3 + $0x2f0] sm:$0xf]
    %v2952 = vld [vmem:[%s3 + $0x2f4] sm:$0xf]
    %v2953 = vld [vmem:[%s3 + $0x2f8] sm:$0xf]
    %v2954 = vld [vmem:[%s3 + $0x2fc] sm:$0xf]
    %v2955 = vld [vmem:[%s3 + $0x300] sm:$0xf]
    %v2956 = vld [vmem:[%s3 + $0x304] sm:$0xf]
    %v2957 = vld [vmem:[%s3 + $0x308] sm:$0xf]
    %v2958 = vld [vmem:[%s3 + $0x30c] sm:$0xf]
    %v2959 = vld [vmem:[%s3 + $0x310] sm:$0xf]
    %v2960 = vld [vmem:[%s3 + $0x314] sm:$0xf]
    %v2961 = vld [vmem:[%s3 + $0x318] sm:$0xf]
    %v2962 = vld [vmem:[%s3 + $0x31c] sm:$0xf]
    %v2963 = vld [vmem:[%s3 + $0x320] sm:$0xf]
    %v2964 = vld [vmem:[%s3 + $0x324] sm:$0xf]
    %v2965 = vld [vmem:[%s3 + $0x328] sm:$0xf]
    %v2966 = vld [vmem:[%s3 + $0x32c] sm:$0xf]
    %v2967 = vld [vmem:[%s3 + $0x330] sm:$0xf]
    %v2968 = vld [vmem:[%s3 + $0x334] sm:$0xf]
    %v2969 = vld [vmem:[%s3 + $0x338] sm:$0xf]
    %v2970 = vld [vmem:[%s3 + $0x33c] sm:$0xf]
    %v2971 = vld [vmem:[%s3 + $0x340] sm:$0xf]
    %v2972 = vld [vmem:[%s3 + $0x344] sm:$0xf]
    %v2973 = vld [vmem:[%s3 + $0x348] sm:$0xf]
    %v2974 = vld [vmem:[%s3 + $0x34c] sm:$0xf]
    %v2975 = vld [vmem:[%s3 + $0x350] sm:$0xf]
    %v2976 = vld [vmem:[%s3 + $0x354] sm:$0xf]
    %v2977 = vld [vmem:[%s3 + $0x358] sm:$0xf]
    %v2978 = vld [vmem:[%s3 + $0x35c] sm:$0xf]
    %v2979 = vld [vmem:[%s3 + $0x360] sm:$0xf]
    %v2980 = vld [vmem:[%s3 + $0x364] sm:$0xf]
    %v2981 = vld [vmem:[%s3 + $0x368] sm:$0xf]
    %v2982 = vld [vmem:[%s3 + $0x36c] sm:$0xf]
    %v2983 = vld [vmem:[%s3 + $0x370] sm:$0xf]
    %v2984 = vld [vmem:[%s3 + $0x374] sm:$0xf]
    %v2985 = vld [vmem:[%s3 + $0x378] sm:$0xf]
    %v2986 = vld [vmem:[%s3 + $0x37c] sm:$0xf]
    %v2987 = vld [vmem:[%s3 + $0x380] sm:$0xf]
    %v2988 = vld [vmem:[%s3 + $0x384] sm:$0xf]
    %v2989 = vld [vmem:[%s3 + $0x388] sm:$0xf]
    %v2990 = vld [vmem:[%s3 + $0x38c] sm:$0xf]
    %v2991 = vld [vmem:[%s3 + $0x390] sm:$0xf]
    %v2992 = vld [vmem:[%s3 + $0x394] sm:$0xf]
    %v2993 = vld [vmem:[%s3 + $0x398] sm:$0xf]
    %v2994 = vld [vmem:[%s3 + $0x39c] sm:$0xf]
    %v2995 = vld [vmem:[%s3 + $0x3a0] sm:$0xf]
    %v2996 = vld [vmem:[%s3 + $0x3a4] sm:$0xf]
    %v2997 = vld [vmem:[%s3 + $0x3a8] sm:$0xf]
    %v2998 = vld [vmem:[%s3 + $0x3ac] sm:$0xf]
    %v2999 = vld [vmem:[%s3 + $0x3b0] sm:$0xf]
    %v3000 = vld [vmem:[%s3 + $0x3b4] sm:$0xf]
    %v3001 = vld [vmem:[%s3 + $0x3b8] sm:$0xf]
    %v3002 = vld [vmem:[%s3 + $0x3bc] sm:$0xf]
    %v3003 = vld [vmem:[%s3 + $0x3c0] sm:$0xf]
    %v3004 = vld [vmem:[%s3 + $0x3c4] sm:$0xf]
    %v3005 = vld [vmem:[%s3 + $0x3c8] sm:$0xf]
    %v3006 = vld [vmem:[%s3 + $0x3cc] sm:$0xf]
    %v3007 = vld [vmem:[%s3 + $0x3d0] sm:$0xf]
    %v3008 = vld [vmem:[%s3 + $0x3d4] sm:$0xf]
    %v3009 = vld [vmem:[%s3 + $0x3d8] sm:$0xf]
    %v3010 = vld [vmem:[%s3 + $0x3dc] sm:$0xf]
    %v3011 = vld [vmem:[%s3 + $0x3e0] sm:$0xf]
    %v3012 = vld [vmem:[%s3 + $0x3e4] sm:$0xf]
    %v3013 = vld [vmem:[%s3 + $0x3e8] sm:$0xf]
    %v3014 = vld [vmem:[%s3 + $0x3ec] sm:$0xf]
    %v3015 = vld [vmem:[%s3 + $0x3f0] sm:$0xf]
    %v3016 = vld [vmem:[%s3 + $0x3f4] sm:$0xf]
    %v3017 = vld [vmem:[%s3 + $0x3f8] sm:$0xf]
    %v3018 = vld [vmem:[%s3 + $0x3fc] sm:$0xf]
    %v3019 = vld [vmem:[%s4] sm:$0x1]
    %v3021 = vlaneseq
    %v3022 = vshrl.u32 %v3021, 7
    %v3023 = vsub.s32 0, %v3022
    %v3024 = vrot.slane %v3019, %v3023
    %v3034 = vunpack.c.l.b16 %v2755
    %v3035 = vunpack.c.h.b16 %v2755
    %v3036 = vunpack.c.l.b16 %v2756
    %v3037 = vunpack.c.h.b16 %v2756
    %v3038 = vunpack.c.l.b16 %v2757
    %v3039 = vunpack.c.h.b16 %v2757
    %v3040 = vunpack.c.l.b16 %v2758
    %v3041 = vunpack.c.h.b16 %v2758
    %v3042 = vunpack.c.l.b16 %v2759
    %v3043 = vunpack.c.h.b16 %v2759
    %v3044 = vunpack.c.l.b16 %v2760
    %v3045 = vunpack.c.h.b16 %v2760
    %v3046 = vunpack.c.l.b16 %v2761
    %v3047 = vunpack.c.h.b16 %v2761
    %v3048 = vunpack.c.l.b16 %v2762
    %v3049 = vunpack.c.h.b16 %v2762
    %v3050 = vpack.c.b16 %v3034, %v3034
    %v3051 = vpack.c.b16 %v3035, %v3035
    %v3052 = vpack.c.b16 %v3036, %v3036
    %v3053 = vpack.c.b16 %v3037, %v3037
    %v3054 = vpack.c.b16 %v3038, %v3038
    %v3055 = vpack.c.b16 %v3039, %v3039
    %v3056 = vpack.c.b16 %v3040, %v3040
    %v3057 = vpack.c.b16 %v3041, %v3041
    %v3058 = vpack.c.b16 %v3042, %v3042
    %v3059 = vpack.c.b16 %v3043, %v3043
    %v3060 = vpack.c.b16 %v3044, %v3044
    %v3061 = vpack.c.b16 %v3045, %v3045
    %v3062 = vpack.c.b16 %v3046, %v3046
    %v3063 = vpack.c.b16 %v3047, %v3047
    %v3064 = vpack.c.b16 %v3048, %v3048
    %v3065 = vpack.c.b16 %v3049, %v3049
    %v3338 = vunpack.c.l.b16 %v2763
    %v3339 = vunpack.c.l.b16 %v2764
    %v3340 = vunpack.c.l.b16 %v2765
    %v3341 = vunpack.c.l.b16 %v2766
    %v3342 = vunpack.c.l.b16 %v2767
    %v3343 = vunpack.c.l.b16 %v2768
    %v3344 = vunpack.c.l.b16 %v2769
    %v3345 = vunpack.c.l.b16 %v2770
    %v3346 = vunpack.c.l.b16 %v2771
    %v3347 = vunpack.c.l.b16 %v2772
    %v3348 = vunpack.c.l.b16 %v2773
    %v3349 = vunpack.c.l.b16 %v2774
    %v3350 = vunpack.c.l.b16 %v2775
    %v3351 = vunpack.c.l.b16 %v2776
    %v3352 = vunpack.c.l.b16 %v2777
    %v3353 = vunpack.c.l.b16 %v2778
    %v3354 = vunpack.c.l.b16 %v2779
    %v3355 = vunpack.c.l.b16 %v2780
    %v3356 = vunpack.c.l.b16 %v2781
    %v3357 = vunpack.c.l.b16 %v2782
    %v3358 = vunpack.c.l.b16 %v2783
    %v3359 = vunpack.c.l.b16 %v2784
    %v3360 = vunpack.c.l.b16 %v2785
    %v3361 = vunpack.c.l.b16 %v2786
    %v3362 = vunpack.c.l.b16 %v2787
    %v3363 = vunpack.c.l.b16 %v2788
    %v3364 = vunpack.c.l.b16 %v2789
    %v3365 = vunpack.c.l.b16 %v2790
    %v3366 = vunpack.c.l.b16 %v2791
    %v3367 = vunpack.c.l.b16 %v2792
    %v3368 = vunpack.c.l.b16 %v2793
    %v3369 = vunpack.c.l.b16 %v2794
    %v3370 = vunpack.c.l.b16 %v2795
    %v3371 = vunpack.c.l.b16 %v2796
    %v3372 = vunpack.c.l.b16 %v2797
    %v3373 = vunpack.c.l.b16 %v2798
    %v3374 = vunpack.c.l.b16 %v2799
    %v3375 = vunpack.c.l.b16 %v2800
    %v3376 = vunpack.c.l.b16 %v2801
    %v3377 = vunpack.c.l.b16 %v2802
    %v3378 = vunpack.c.l.b16 %v2803
    %v3379 = vunpack.c.l.b16 %v2804
    %v3380 = vunpack.c.l.b16 %v2805
    %v3381 = vunpack.c.l.b16 %v2806
    %v3382 = vunpack.c.l.b16 %v2807
    %v3383 = vunpack.c.l.b16 %v2808
    %v3384 = vunpack.c.l.b16 %v2809
    %v3385 = vunpack.c.l.b16 %v2810
    %v3386 = vunpack.c.l.b16 %v2811
    %v3387 = vunpack.c.l.b16 %v2812
    %v3388 = vunpack.c.l.b16 %v2813
    %v3389 = vunpack.c.l.b16 %v2814
    %v3390 = vunpack.c.l.b16 %v2815
    %v3391 = vunpack.c.l.b16 %v2816
    %v3392 = vunpack.c.l.b16 %v2817
    %v3393 = vunpack.c.l.b16 %v2818
    %v3394 = vunpack.c.l.b16 %v2819
    %v3395 = vunpack.c.l.b16 %v2820
    %v3396 = vunpack.c.l.b16 %v2821
    %v3397 = vunpack.c.l.b16 %v2822
    %v3398 = vunpack.c.l.b16 %v2823
    %v3399 = vunpack.c.l.b16 %v2824
    %v3400 = vunpack.c.l.b16 %v2825
    %v3401 = vunpack.c.l.b16 %v2826
    %v3402 = vunpack.c.l.b16 %v2827
    %v3403 = vunpack.c.l.b16 %v2828
    %v3404 = vunpack.c.l.b16 %v2829
    %v3405 = vunpack.c.l.b16 %v2830
    %v3406 = vunpack.c.l.b16 %v2831
    %v3407 = vunpack.c.l.b16 %v2832
    %v3408 = vunpack.c.l.b16 %v2833
    %v3409 = vunpack.c.l.b16 %v2834
    %v3410 = vunpack.c.l.b16 %v2835
    %v3411 = vunpack.c.l.b16 %v2836
    %v3412 = vunpack.c.l.b16 %v2837
    %v3413 = vunpack.c.l.b16 %v2838
    %v3414 = vunpack.c.l.b16 %v2839
    %v3415 = vunpack.c.l.b16 %v2840
    %v3416 = vunpack.c.l.b16 %v2841
    %v3417 = vunpack.c.l.b16 %v2842
    %v3418 = vunpack.c.l.b16 %v2843
    %v3419 = vunpack.c.l.b16 %v2844
    %v3420 = vunpack.c.l.b16 %v2845
    %v3421 = vunpack.c.l.b16 %v2846
    %v3422 = vunpack.c.l.b16 %v2847
    %v3423 = vunpack.c.l.b16 %v2848
    %v3424 = vunpack.c.l.b16 %v2849
    %v3425 = vunpack.c.l.b16 %v2850
    %v3426 = vunpack.c.l.b16 %v2851
    %v3427 = vunpack.c.l.b16 %v2852
    %v3428 = vunpack.c.l.b16 %v2853
    %v3429 = vunpack.c.l.b16 %v2854
    %v3430 = vunpack.c.l.b16 %v2855
    %v3431 = vunpack.c.l.b16 %v2856
    %v3432 = vunpack.c.l.b16 %v2857
    %v3433 = vunpack.c.l.b16 %v2858
    %v3434 = vunpack.c.l.b16 %v2859
    %v3435 = vunpack.c.l.b16 %v2860
    %v3436 = vunpack.c.l.b16 %v2861
    %v3437 = vunpack.c.l.b16 %v2862
    %v3438 = vunpack.c.l.b16 %v2863
    %v3439 = vunpack.c.l.b16 %v2864
    %v3440 = vunpack.c.l.b16 %v2865
    %v3441 = vunpack.c.l.b16 %v2866
    %v3442 = vunpack.c.l.b16 %v2867
    %v3443 = vunpack.c.l.b16 %v2868
    %v3444 = vunpack.c.l.b16 %v2869
    %v3445 = vunpack.c.l.b16 %v2870
    %v3446 = vunpack.c.l.b16 %v2871
    %v3447 = vunpack.c.l.b16 %v2872
    %v3448 = vunpack.c.l.b16 %v2873
    %v3449 = vunpack.c.l.b16 %v2874
    %v3450 = vunpack.c.l.b16 %v2875
    %v3451 = vunpack.c.l.b16 %v2876
    %v3452 = vunpack.c.l.b16 %v2877
    %v3453 = vunpack.c.l.b16 %v2878
    %v3454 = vunpack.c.l.b16 %v2879
    %v3455 = vunpack.c.l.b16 %v2880
    %v3456 = vunpack.c.l.b16 %v2881
    %v3457 = vunpack.c.l.b16 %v2882
    %v3458 = vunpack.c.l.b16 %v2883
    %v3459 = vunpack.c.l.b16 %v2884
    %v3460 = vunpack.c.l.b16 %v2885
    %v3461 = vunpack.c.l.b16 %v2886
    %v3462 = vunpack.c.l.b16 %v2887
    %v3463 = vunpack.c.l.b16 %v2888
    %v3464 = vunpack.c.l.b16 %v2889
    %v3465 = vunpack.c.l.b16 %v2890
    %v3466 = vunpack.c.l.b16 %v2891
    %v3467 = vunpack.c.l.b16 %v2892
    %v3468 = vunpack.c.l.b16 %v2893
    %v3469 = vunpack.c.l.b16 %v2894
    %v3470 = vunpack.c.l.b16 %v2895
    %v3471 = vunpack.c.l.b16 %v2896
    %v3472 = vunpack.c.l.b16 %v2897
    %v3473 = vunpack.c.l.b16 %v2898
    %v3474 = vunpack.c.l.b16 %v2899
    %v3475 = vunpack.c.l.b16 %v2900
    %v3476 = vunpack.c.l.b16 %v2901
    %v3477 = vunpack.c.l.b16 %v2902
    %v3478 = vunpack.c.l.b16 %v2903
    %v3479 = vunpack.c.l.b16 %v2904
    %v3480 = vunpack.c.l.b16 %v2905
    %v3481 = vunpack.c.l.b16 %v2906
    %v3482 = vunpack.c.l.b16 %v2907
    %v3483 = vunpack.c.l.b16 %v2908
    %v3484 = vunpack.c.l.b16 %v2909
    %v3485 = vunpack.c.l.b16 %v2910
    %v3486 = vunpack.c.l.b16 %v2911
    %v3487 = vunpack.c.l.b16 %v2912
    %v3488 = vunpack.c.l.b16 %v2913
    %v3489 = vunpack.c.l.b16 %v2914
    %v3490 = vunpack.c.l.b16 %v2915
    %v3491 = vunpack.c.l.b16 %v2916
    %v3492 = vunpack.c.l.b16 %v2917
    %v3493 = vunpack.c.l.b16 %v2918
    %v3494 = vunpack.c.l.b16 %v2919
    %v3495 = vunpack.c.l.b16 %v2920
    %v3496 = vunpack.c.l.b16 %v2921
    %v3497 = vunpack.c.l.b16 %v2922
    %v3498 = vunpack.c.l.b16 %v2923
    %v3499 = vunpack.c.l.b16 %v2924
    %v3500 = vunpack.c.l.b16 %v2925
    %v3501 = vunpack.c.l.b16 %v2926
    %v3502 = vunpack.c.l.b16 %v2927
    %v3503 = vunpack.c.l.b16 %v2928
    %v3504 = vunpack.c.l.b16 %v2929
    %v3505 = vunpack.c.l.b16 %v2930
    %v3506 = vunpack.c.l.b16 %v2931
    %v3507 = vunpack.c.l.b16 %v2932
    %v3508 = vunpack.c.l.b16 %v2933
    %v3509 = vunpack.c.l.b16 %v2934
    %v3510 = vunpack.c.l.b16 %v2935
    %v3511 = vunpack.c.l.b16 %v2936
    %v3512 = vunpack.c.l.b16 %v2937
    %v3513 = vunpack.c.l.b16 %v2938
    %v3514 = vunpack.c.l.b16 %v2939
    %v3515 = vunpack.c.l.b16 %v2940
    %v3516 = vunpack.c.l.b16 %v2941
    %v3517 = vunpack.c.l.b16 %v2942
    %v3518 = vunpack.c.l.b16 %v2943
    %v3519 = vunpack.c.l.b16 %v2944
    %v3520 = vunpack.c.l.b16 %v2945
    %v3521 = vunpack.c.l.b16 %v2946
    %v3522 = vunpack.c.l.b16 %v2947
    %v3523 = vunpack.c.l.b16 %v2948
    %v3524 = vunpack.c.l.b16 %v2949
    %v3525 = vunpack.c.l.b16 %v2950
    %v3526 = vunpack.c.l.b16 %v2951
    %v3527 = vunpack.c.l.b16 %v2952
    %v3528 = vunpack.c.l.b16 %v2953
    %v3529 = vunpack.c.l.b16 %v2954
    %v3530 = vunpack.c.l.b16 %v2955
    %v3531 = vunpack.c.l.b16 %v2956
    %v3532 = vunpack.c.l.b16 %v2957
    %v3533 = vunpack.c.l.b16 %v2958
    %v3534 = vunpack.c.l.b16 %v2959
    %v3535 = vunpack.c.l.b16 %v2960
    %v3536 = vunpack.c.l.b16 %v2961
    %v3537 = vunpack.c.l.b16 %v2962
    %v3538 = vunpack.c.l.b16 %v2963
    %v3539 = vunpack.c.l.b16 %v2964
    %v3540 = vunpack.c.l.b16 %v2965
    %v3541 = vunpack.c.l.b16 %v2966
    %v3542 = vunpack.c.l.b16 %v2967
    %v3543 = vunpack.c.l.b16 %v2968
    %v3544 = vunpack.c.l.b16 %v2969
    %v3545 = vunpack.c.l.b16 %v2970
    %v3546 = vunpack.c.l.b16 %v2971
    %v3547 = vunpack.c.l.b16 %v2972
    %v3548 = vunpack.c.l.b16 %v2973
    %v3549 = vunpack.c.l.b16 %v2974
    %v3550 = vunpack.c.l.b16 %v2975
    %v3551 = vunpack.c.l.b16 %v2976
    %v3552 = vunpack.c.l.b16 %v2977
    %v3553 = vunpack.c.l.b16 %v2978
    %v3554 = vunpack.c.l.b16 %v2979
    %v3555 = vunpack.c.l.b16 %v2980
    %v3556 = vunpack.c.l.b16 %v2981
    %v3557 = vunpack.c.l.b16 %v2982
    %v3558 = vunpack.c.l.b16 %v2983
    %v3559 = vunpack.c.l.b16 %v2984
    %v3560 = vunpack.c.l.b16 %v2985
    %v3561 = vunpack.c.l.b16 %v2986
    %v3562 = vunpack.c.l.b16 %v2987
    %v3563 = vunpack.c.l.b16 %v2988
    %v3564 = vunpack.c.l.b16 %v2989
    %v3565 = vunpack.c.l.b16 %v2990
    %v3566 = vunpack.c.l.b16 %v2991
    %v3567 = vunpack.c.l.b16 %v2992
    %v3568 = vunpack.c.l.b16 %v2993
    %v3569 = vunpack.c.l.b16 %v2994
    %v3570 = vunpack.c.l.b16 %v2995
    %v3571 = vunpack.c.l.b16 %v2996
    %v3572 = vunpack.c.l.b16 %v2997
    %v3573 = vunpack.c.l.b16 %v2998
    %v3574 = vunpack.c.l.b16 %v2999
    %v3575 = vunpack.c.l.b16 %v3000
    %v3576 = vunpack.c.l.b16 %v3001
    %v3577 = vunpack.c.l.b16 %v3002
    %v3578 = vunpack.c.l.b16 %v3003
    %v3579 = vunpack.c.l.b16 %v3004
    %v3580 = vunpack.c.l.b16 %v3005
    %v3581 = vunpack.c.l.b16 %v3006
    %v3582 = vunpack.c.l.b16 %v3007
    %v3583 = vunpack.c.l.b16 %v3008
    %v3584 = vunpack.c.l.b16 %v3009
    %v3585 = vunpack.c.l.b16 %v3010
    %v3586 = vunpack.c.l.b16 %v3011
    %v3587 = vunpack.c.l.b16 %v3012
    %v3588 = vunpack.c.l.b16 %v3013
    %v3589 = vunpack.c.l.b16 %v3014
    %v3590 = vunpack.c.l.b16 %v3015
    %v3591 = vunpack.c.l.b16 %v3016
    %v3592 = vunpack.c.l.b16 %v3017
    %v3593 = vunpack.c.l.b16 %v3018
    %v3594 = vpack.c.b16 %v3339, %v3338
    %v3595 = vpack.c.b16 %v3341, %v3340
    %v3596 = vpack.c.b16 %v3343, %v3342
    %v3597 = vpack.c.b16 %v3345, %v3344
    %v3598 = vpack.c.b16 %v3347, %v3346
    %v3599 = vpack.c.b16 %v3349, %v3348
    %v3600 = vpack.c.b16 %v3351, %v3350
    %v3601 = vpack.c.b16 %v3353, %v3352
    %v3602 = vpack.c.b16 %v3355, %v3354
    %v3603 = vpack.c.b16 %v3357, %v3356
    %v3604 = vpack.c.b16 %v3359, %v3358
    %v3605 = vpack.c.b16 %v3361, %v3360
    %v3606 = vpack.c.b16 %v3363, %v3362
    %v3607 = vpack.c.b16 %v3365, %v3364
    %v3608 = vpack.c.b16 %v3367, %v3366
    %v3609 = vpack.c.b16 %v3369, %v3368
    %v3610 = vpack.c.b16 %v3371, %v3370
    %v3611 = vpack.c.b16 %v3373, %v3372
    %v3612 = vpack.c.b16 %v3375, %v3374
    %v3613 = vpack.c.b16 %v3377, %v3376
    %v3614 = vpack.c.b16 %v3379, %v3378
    %v3615 = vpack.c.b16 %v3381, %v3380
    %v3616 = vpack.c.b16 %v3383, %v3382
    %v3617 = vpack.c.b16 %v3385, %v3384
    %v3618 = vpack.c.b16 %v3387, %v3386
    %v3619 = vpack.c.b16 %v3389, %v3388
    %v3620 = vpack.c.b16 %v3391, %v3390
    %v3621 = vpack.c.b16 %v3393, %v3392
    %v3622 = vpack.c.b16 %v3395, %v3394
    %v3623 = vpack.c.b16 %v3397, %v3396
    %v3624 = vpack.c.b16 %v3399, %v3398
    %v3625 = vpack.c.b16 %v3401, %v3400
    %v3626 = vpack.c.b16 %v3403, %v3402
    %v3627 = vpack.c.b16 %v3405, %v3404
    %v3628 = vpack.c.b16 %v3407, %v3406
    %v3629 = vpack.c.b16 %v3409, %v3408
    %v3630 = vpack.c.b16 %v3411, %v3410
    %v3631 = vpack.c.b16 %v3413, %v3412
    %v3632 = vpack.c.b16 %v3415, %v3414
    %v3633 = vpack.c.b16 %v3417, %v3416
    %v3634 = vpack.c.b16 %v3419, %v3418
    %v3635 = vpack.c.b16 %v3421, %v3420
    %v3636 = vpack.c.b16 %v3423, %v3422
    %v3637 = vpack.c.b16 %v3425, %v3424
    %v3638 = vpack.c.b16 %v3427, %v3426
    %v3639 = vpack.c.b16 %v3429, %v3428
    %v3640 = vpack.c.b16 %v3431, %v3430
    %v3641 = vpack.c.b16 %v3433, %v3432
    %v3642 = vpack.c.b16 %v3435, %v3434
    %v3643 = vpack.c.b16 %v3437, %v3436
    %v3644 = vpack.c.b16 %v3439, %v3438
    %v3645 = vpack.c.b16 %v3441, %v3440
    %v3646 = vpack.c.b16 %v3443, %v3442
    %v3647 = vpack.c.b16 %v3445, %v3444
    %v3648 = vpack.c.b16 %v3447, %v3446
    %v3649 = vpack.c.b16 %v3449, %v3448
    %v3650 = vpack.c.b16 %v3451, %v3450
    %v3651 = vpack.c.b16 %v3453, %v3452
    %v3652 = vpack.c.b16 %v3455, %v3454
    %v3653 = vpack.c.b16 %v3457, %v3456
    %v3654 = vpack.c.b16 %v3459, %v3458
    %v3655 = vpack.c.b16 %v3461, %v3460
    %v3656 = vpack.c.b16 %v3463, %v3462
    %v3657 = vpack.c.b16 %v3465, %v3464
    %v3658 = vpack.c.b16 %v3467, %v3466
    %v3659 = vpack.c.b16 %v3469, %v3468
    %v3660 = vpack.c.b16 %v3471, %v3470
    %v3661 = vpack.c.b16 %v3473, %v3472
    %v3662 = vpack.c.b16 %v3475, %v3474
    %v3663 = vpack.c.b16 %v3477, %v3476
    %v3664 = vpack.c.b16 %v3479, %v3478
    %v3665 = vpack.c.b16 %v3481, %v3480
    %v3666 = vpack.c.b16 %v3483, %v3482
    %v3667 = vpack.c.b16 %v3485, %v3484
    %v3668 = vpack.c.b16 %v3487, %v3486
    %v3669 = vpack.c.b16 %v3489, %v3488
    %v3670 = vpack.c.b16 %v3491, %v3490
    %v3671 = vpack.c.b16 %v3493, %v3492
    %v3672 = vpack.c.b16 %v3495, %v3494
    %v3673 = vpack.c.b16 %v3497, %v3496
    %v3674 = vpack.c.b16 %v3499, %v3498
    %v3675 = vpack.c.b16 %v3501, %v3500
    %v3676 = vpack.c.b16 %v3503, %v3502
    %v3677 = vpack.c.b16 %v3505, %v3504
    %v3678 = vpack.c.b16 %v3507, %v3506
    %v3679 = vpack.c.b16 %v3509, %v3508
    %v3680 = vpack.c.b16 %v3511, %v3510
    %v3681 = vpack.c.b16 %v3513, %v3512
    %v3682 = vpack.c.b16 %v3515, %v3514
    %v3683 = vpack.c.b16 %v3517, %v3516
    %v3684 = vpack.c.b16 %v3519, %v3518
    %v3685 = vpack.c.b16 %v3521, %v3520
    %v3686 = vpack.c.b16 %v3523, %v3522
    %v3687 = vpack.c.b16 %v3525, %v3524
    %v3688 = vpack.c.b16 %v3527, %v3526
    %v3689 = vpack.c.b16 %v3529, %v3528
    %v3690 = vpack.c.b16 %v3531, %v3530
    %v3691 = vpack.c.b16 %v3533, %v3532
    %v3692 = vpack.c.b16 %v3535, %v3534
    %v3693 = vpack.c.b16 %v3537, %v3536
    %v3694 = vpack.c.b16 %v3539, %v3538
    %v3695 = vpack.c.b16 %v3541, %v3540
    %v3696 = vpack.c.b16 %v3543, %v3542
    %v3697 = vpack.c.b16 %v3545, %v3544
    %v3698 = vpack.c.b16 %v3547, %v3546
    %v3699 = vpack.c.b16 %v3549, %v3548
    %v3700 = vpack.c.b16 %v3551, %v3550
    %v3701 = vpack.c.b16 %v3553, %v3552
    %v3702 = vpack.c.b16 %v3555, %v3554
    %v3703 = vpack.c.b16 %v3557, %v3556
    %v3704 = vpack.c.b16 %v3559, %v3558
    %v3705 = vpack.c.b16 %v3561, %v3560
    %v3706 = vpack.c.b16 %v3563, %v3562
    %v3707 = vpack.c.b16 %v3565, %v3564
    %v3708 = vpack.c.b16 %v3567, %v3566
    %v3709 = vpack.c.b16 %v3569, %v3568
    %v3710 = vpack.c.b16 %v3571, %v3570
    %v3711 = vpack.c.b16 %v3573, %v3572
    %v3712 = vpack.c.b16 %v3575, %v3574
    %v3713 = vpack.c.b16 %v3577, %v3576
    %v3714 = vpack.c.b16 %v3579, %v3578
    %v3715 = vpack.c.b16 %v3581, %v3580
    %v3716 = vpack.c.b16 %v3583, %v3582
    %v3717 = vpack.c.b16 %v3585, %v3584
    %v3718 = vpack.c.b16 %v3587, %v3586
    %v3719 = vpack.c.b16 %v3589, %v3588
    %v3720 = vpack.c.b16 %v3591, %v3590
    %v3721 = vpack.c.b16 %v3593, %v3592
    %3850 = vmatprep.subr.bf16.mxu0 0
    %3851 = vmatpush1.bf16.msra.mxu0 %v3594
    %3852 = vmatprep.subr.bf16.mxu0 0
    %3853 = vmatpush1.bf16.msra.mxu0 %v3595
    %3854 = vmatprep.subr.bf16.mxu0 0
    %3855 = vmatpush1.bf16.msra.mxu0 %v3596
    %3856 = vmatprep.subr.bf16.mxu0 0
    %3857 = vmatpush1.bf16.msra.mxu0 %v3597
    %3858 = vmatprep.subr.bf16.mxu0 0
    %3859 = vmatpush1.bf16.msra.mxu0 %v3598
    %3860 = vmatprep.subr.bf16.mxu0 0
    %3861 = vmatpush1.bf16.msra.mxu0 %v3599
    %3862 = vmatprep.subr.bf16.mxu0 0
    %3863 = vmatpush1.bf16.msra.mxu0 %v3600
    %3864 = vmatprep.subr.bf16.mxu0 0
    %3865 = vmatpush1.bf16.msra.mxu0 %v3601
    %3866 = vmatprep.subr.bf16.mxu0 0
    %3867 = vmatpush1.bf16.msra.mxu0 %v3602
    %3868 = vmatprep.subr.bf16.mxu0 0
    %3869 = vmatpush1.bf16.msra.mxu0 %v3603
    %3870 = vmatprep.subr.bf16.mxu0 0
    %3871 = vmatpush1.bf16.msra.mxu0 %v3604
    %3872 = vmatprep.subr.bf16.mxu0 0
    %3873 = vmatpush1.bf16.msra.mxu0 %v3605
    %3874 = vmatprep.subr.bf16.mxu0 0
    %3875 = vmatpush1.bf16.msra.mxu0 %v3606
    %3876 = vmatprep.subr.bf16.mxu0 0
    %3877 = vmatpush1.bf16.msra.mxu0 %v3607
    %3878 = vmatprep.subr.bf16.mxu0 0
    %3879 = vmatpush1.bf16.msra.mxu0 %v3608
    %3880 = vmatprep.subr.bf16.mxu0 0
    %3881 = vmatpush1.bf16.msra.mxu0 %v3609
    %3882 = vmatprep.mubr.bf16.mxu0 %v3051
    %3883 = vmatmul.mubr.bf16.gmra.mrb[0].mxu0 %v3050
    %v3884 = vpop.f32.mrb[0].mxu0
    %v3885 = vadd.f32 %v3024, %v3884
    %v3886 = vpop.f32.mrb[0].mxu0
    %v3887 = vpop.f32.mrb[0].mxu0
    %v3888 = vpop.f32.mrb[0].mxu0
    %3889 = vdwg.mxu0
    %3890 = vmatprep.subr.bf16.mxu0 0
    %3891 = vmatpush1.bf16.msra.mxu0 %v3610
    %3892 = vmatprep.subr.bf16.mxu0 0
    %3893 = vmatpush1.bf16.msra.mxu0 %v3611
    %3894 = vmatprep.subr.bf16.mxu0 0
    %3895 = vmatpush1.bf16.msra.mxu0 %v3612
    %3896 = vmatprep.subr.bf16.mxu0 0
    %3897 = vmatpush1.bf16.msra.mxu0 %v3613
    %3898 = vmatprep.subr.bf16.mxu0 0
    %3899 = vmatpush1.bf16.msra.mxu0 %v3614
    %3900 = vmatprep.subr.bf16.mxu0 0
    %3901 = vmatpush1.bf16.msra.mxu0 %v3615
    %3902 = vmatprep.subr.bf16.mxu0 0
    %3903 = vmatpush1.bf16.msra.mxu0 %v3616
    %3904 = vmatprep.subr.bf16.mxu0 0
    %3905 = vmatpush1.bf16.msra.mxu0 %v3617
    %3906 = vmatprep.subr.bf16.mxu0 0
    %3907 = vmatpush1.bf16.msra.mxu0 %v3618
    %3908 = vmatprep.subr.bf16.mxu0 0
    %3909 = vmatpush1.bf16.msra.mxu0 %v3619
    %3910 = vmatprep.subr.bf16.mxu0 0
    %3911 = vmatpush1.bf16.msra.mxu0 %v3620
    %3912 = vmatprep.subr.bf16.mxu0 0
    %3913 = vmatpush1.bf16.msra.mxu0 %v3621
    %3914 = vmatprep.subr.bf16.mxu0 0
    %3915 = vmatpush1.bf16.msra.mxu0 %v3622
    %3916 = vmatprep.subr.bf16.mxu0 0
    %3917 = vmatpush1.bf16.msra.mxu0 %v3623
    %3918 = vmatprep.subr.bf16.mxu0 0
    %3919 = vmatpush1.bf16.msra.mxu0 %v3624
    %3920 = vmatprep.subr.bf16.mxu0 0
    %3921 = vmatpush1.bf16.msra.mxu0 %v3625
    %3922 = vmatprep.mubr.bf16.mxu0 %v3053
    %3923 = vmatmul.mubr.bf16.gmra.mrb[0].mxu0 %v3052
    %v3924 = vpop.f32.mrb[0].mxu0
    %v3925 = vadd.f32 %v3885, %v3924
    %v3926 = vpop.f32.mrb[0].mxu0
    %v3927 = vpop.f32.mrb[0].mxu0
    %v3928 = vpop.f32.mrb[0].mxu0
    %3929 = vdwg.mxu0
    %3930 = vmatprep.subr.bf16.mxu0 0
    %3931 = vmatpush1.bf16.msra.mxu0 %v3626
    %3932 = vmatprep.subr.bf16.mxu0 0
    %3933 = vmatpush1.bf16.msra.mxu0 %v3627
    %3934 = vmatprep.subr.bf16.mxu0 0
    %3935 = vmatpush1.bf16.msra.mxu0 %v3628
    %3936 = vmatprep.subr.bf16.mxu0 0
    %3937 = vmatpush1.bf16.msra.mxu0 %v3629
    %3938 = vmatprep.subr.bf16.mxu0 0
    %3939 = vmatpush1.bf16.msra.mxu0 %v3630
    %3940 = vmatprep.subr.bf16.mxu0 0
    %3941 = vmatpush1.bf16.msra.mxu0 %v3631
    %3942 = vmatprep.subr.bf16.mxu0 0
    %3943 = vmatpush1.bf16.msra.mxu0 %v3632
    %3944 = vmatprep.subr.bf16.mxu0 0
    %3945 = vmatpush1.bf16.msra.mxu0 %v3633
    %3946 = vmatprep.subr.bf16.mxu0 0
    %3947 = vmatpush1.bf16.msra.mxu0 %v3634
    %3948 = vmatprep.subr.bf16.mxu0 0
    %3949 = vmatpush1.bf16.msra.mxu0 %v3635
    %3950 = vmatprep.subr.bf16.mxu0 0
    %3951 = vmatpush1.bf16.msra.mxu0 %v3636
    %3952 = vmatprep.subr.bf16.mxu0 0
    %3953 = vmatpush1.bf16.msra.mxu0 %v3637
    %3954 = vmatprep.subr.bf16.mxu0 0
    %3955 = vmatpush1.bf16.msra.mxu0 %v3638
    %3956 = vmatprep.subr.bf16.mxu0 0
    %3957 = vmatpush1.bf16.msra.mxu0 %v3639
    %3958 = vmatprep.subr.bf16.mxu0 0
    %3959 = vmatpush1.bf16.msra.mxu0 %v3640
    %3960 = vmatprep.subr.bf16.mxu0 0
    %3961 = vmatpush1.bf16.msra.mxu0 %v3641
    %3962 = vmatprep.mubr.bf16.mxu0 %v3055
    %3963 = vmatmul.mubr.bf16.gmra.mrb[0].mxu0 %v3054
    %v3964 = vpop.f32.mrb[0].mxu0
    %v3965 = vadd.f32 %v3925, %v3964
    %v3966 = vpop.f32.mrb[0].mxu0
    %v3967 = vpop.f32.mrb[0].mxu0
    %v3968 = vpop.f32.mrb[0].mxu0
    %3969 = vdwg.mxu0
    %3970 = vmatprep.subr.bf16.mxu0 0
    %3971 = vmatpush1.bf16.msra.mxu0 %v3642
    %3972 = vmatprep.subr.bf16.mxu0 0
    %3973 = vmatpush1.bf16.msra.mxu0 %v3643
    %3974 = vmatprep.subr.bf16.mxu0 0
    %3975 = vmatpush1.bf16.msra.mxu0 %v3644
    %3976 = vmatprep.subr.bf16.mxu0 0
    %3977 = vmatpush1.bf16.msra.mxu0 %v3645
    %3978 = vmatprep.subr.bf16.mxu0 0
    %3979 = vmatpush1.bf16.msra.mxu0 %v3646
    %3980 = vmatprep.subr.bf16.mxu0 0
    %3981 = vmatpush1.bf16.msra.mxu0 %v3647
    %3982 = vmatprep.subr.bf16.mxu0 0
    %3983 = vmatpush1.bf16.msra.mxu0 %v3648
    %3984 = vmatprep.subr.bf16.mxu0 0
    %3985 = vmatpush1.bf16.msra.mxu0 %v3649
    %3986 = vmatprep.subr.bf16.mxu0 0
    %3987 = vmatpush1.bf16.msra.mxu0 %v3650
    %3988 = vmatprep.subr.bf16.mxu0 0
    %3989 = vmatpush1.bf16.msra.mxu0 %v3651
    %3990 = vmatprep.subr.bf16.mxu0 0
    %3991 = vmatpush1.bf16.msra.mxu0 %v3652
    %3992 = vmatprep.subr.bf16.mxu0 0
    %3993 = vmatpush1.bf16.msra.mxu0 %v3653
    %3994 = vmatprep.subr.bf16.mxu0 0
    %3995 = vmatpush1.bf16.msra.mxu0 %v3654
    %3996 = vmatprep.subr.bf16.mxu0 0
    %3997 = vmatpush1.bf16.msra.mxu0 %v3655
    %3998 = vmatprep.subr.bf16.mxu0 0
    %3999 = vmatpush1.bf16.msra.mxu0 %v3656
    %4000 = vmatprep.subr.bf16.mxu0 0
    %4001 = vmatpush1.bf16.msra.mxu0 %v3657
    %4002 = vmatprep.mubr.bf16.mxu0 %v3057
    %4003 = vmatmul.mubr.bf16.gmra.mrb[0].mxu0 %v3056
    %v4004 = vpop.f32.mrb[0].mxu0
    %v4005 = vadd.f32 %v3965, %v4004
    %v4006 = vpop.f32.mrb[0].mxu0
    %v4007 = vpop.f32.mrb[0].mxu0
    %v4008 = vpop.f32.mrb[0].mxu0
    %4009 = vdwg.mxu0
    %4010 = vmatprep.subr.bf16.mxu0 0
    %4011 = vmatpush1.bf16.msra.mxu0 %v3658
    %4012 = vmatprep.subr.bf16.mxu0 0
    %4013 = vmatpush1.bf16.msra.mxu0 %v3659
    %4014 = vmatprep.subr.bf16.mxu0 0
    %4015 = vmatpush1.bf16.msra.mxu0 %v3660
    %4016 = vmatprep.subr.bf16.mxu0 0
    %4017 = vmatpush1.bf16.msra.mxu0 %v3661
    %4018 = vmatprep.subr.bf16.mxu0 0
    %4019 = vmatpush1.bf16.msra.mxu0 %v3662
    %4020 = vmatprep.subr.bf16.mxu0 0
    %4021 = vmatpush1.bf16.msra.mxu0 %v3663
    %4022 = vmatprep.subr.bf16.mxu0 0
    %4023 = vmatpush1.bf16.msra.mxu0 %v3664
    %4024 = vmatprep.subr.bf16.mxu0 0
    %4025 = vmatpush1.bf16.msra.mxu0 %v3665
    %4026 = vmatprep.subr.bf16.mxu0 0
    %4027 = vmatpush1.bf16.msra.mxu0 %v3666
    %4028 = vmatprep.subr.bf16.mxu0 0
    %4029 = vmatpush1.bf16.msra.mxu0 %v3667
    %4030 = vmatprep.subr.bf16.mxu0 0
    %4031 = vmatpush1.bf16.msra.mxu0 %v3668
    %4032 = vmatprep.subr.bf16.mxu0 0
    %4033 = vmatpush1.bf16.msra.mxu0 %v3669
    %4034 = vmatprep.subr.bf16.mxu0 0
    %4035 = vmatpush1.bf16.msra.mxu0 %v3670
    %4036 = vmatprep.subr.bf16.mxu0 0
    %4037 = vmatpush1.bf16.msra.mxu0 %v3671
    %4038 = vmatprep.subr.bf16.mxu0 0
    %4039 = vmatpush1.bf16.msra.mxu0 %v3672
    %4040 = vmatprep.subr.bf16.mxu0 0
    %4041 = vmatpush1.bf16.msra.mxu0 %v3673
    %4042 = vmatprep.mubr.bf16.mxu0 %v3059
    %4043 = vmatmul.mubr.bf16.gmra.mrb[0].mxu0 %v3058
    %v4044 = vpop.f32.mrb[0].mxu0
    %v4045 = vadd.f32 %v4005, %v4044
    %v4046 = vpop.f32.mrb[0].mxu0
    %v4047 = vpop.f32.mrb[0].mxu0
    %v4048 = vpop.f32.mrb[0].mxu0
    %4049 = vdwg.mxu0
    %4050 = vmatprep.subr.bf16.mxu0 0
    %4051 = vmatpush1.bf16.msra.mxu0 %v3674
    %4052 = vmatprep.subr.bf16.mxu0 0
    %4053 = vmatpush1.bf16.msra.mxu0 %v3675
    %4054 = vmatprep.subr.bf16.mxu0 0
    %4055 = vmatpush1.bf16.msra.mxu0 %v3676
    %4056 = vmatprep.subr.bf16.mxu0 0
    %4057 = vmatpush1.bf16.msra.mxu0 %v3677
    %4058 = vmatprep.subr.bf16.mxu0 0
    %4059 = vmatpush1.bf16.msra.mxu0 %v3678
    %4060 = vmatprep.subr.bf16.mxu0 0
    %4061 = vmatpush1.bf16.msra.mxu0 %v3679
    %4062 = vmatprep.subr.bf16.mxu0 0
    %4063 = vmatpush1.bf16.msra.mxu0 %v3680
    %4064 = vmatprep.subr.bf16.mxu0 0
    %4065 = vmatpush1.bf16.msra.mxu0 %v3681
    %4066 = vmatprep.subr.bf16.mxu0 0
    %4067 = vmatpush1.bf16.msra.mxu0 %v3682
    %4068 = vmatprep.subr.bf16.mxu0 0
    %4069 = vmatpush1.bf16.msra.mxu0 %v3683
    %4070 = vmatprep.subr.bf16.mxu0 0
    %4071 = vmatpush1.bf16.msra.mxu0 %v3684
    %4072 = vmatprep.subr.bf16.mxu0 0
    %4073 = vmatpush1.bf16.msra.mxu0 %v3685
    %4074 = vmatprep.subr.bf16.mxu0 0
    %4075 = vmatpush1.bf16.msra.mxu0 %v3686
    %4076 = vmatprep.subr.bf16.mxu0 0
    %4077 = vmatpush1.bf16.msra.mxu0 %v3687
    %4078 = vmatprep.subr.bf16.mxu0 0
    %4079 = vmatpush1.bf16.msra.mxu0 %v3688
    %4080 = vmatprep.subr.bf16.mxu0 0
    %4081 = vmatpush1.bf16.msra.mxu0 %v3689
    %4082 = vmatprep.mubr.bf16.mxu0 %v3061
    %4083 = vmatmul.mubr.bf16.gmra.mrb[0].mxu0 %v3060
    %v4084 = vpop.f32.mrb[0].mxu0
    %v4085 = vadd.f32 %v4045, %v4084
    %v4086 = vpop.f32.mrb[0].mxu0
    %v4087 = vpop.f32.mrb[0].mxu0
    %v4088 = vpop.f32.mrb[0].mxu0
    %4089 = vdwg.mxu0
    %4090 = vmatprep.subr.bf16.mxu0 0
    %4091 = vmatpush1.bf16.msra.mxu0 %v3690
    %4092 = vmatprep.subr.bf16.mxu0 0
    %4093 = vmatpush1.bf16.msra.mxu0 %v3691
    %4094 = vmatprep.subr.bf16.mxu0 0
    %4095 = vmatpush1.bf16.msra.mxu0 %v3692
    %4096 = vmatprep.subr.bf16.mxu0 0
    %4097 = vmatpush1.bf16.msra.mxu0 %v3693
    %4098 = vmatprep.subr.bf16.mxu0 0
    %4099 = vmatpush1.bf16.msra.mxu0 %v3694
    %4100 = vmatprep.subr.bf16.mxu0 0
    %4101 = vmatpush1.bf16.msra.mxu0 %v3695
    %4102 = vmatprep.subr.bf16.mxu0 0
    %4103 = vmatpush1.bf16.msra.mxu0 %v3696
    %4104 = vmatprep.subr.bf16.mxu0 0
    %4105 = vmatpush1.bf16.msra.mxu0 %v3697
    %4106 = vmatprep.subr.bf16.mxu0 0
    %4107 = vmatpush1.bf16.msra.mxu0 %v3698
    %4108 = vmatprep.subr.bf16.mxu0 0
    %4109 = vmatpush1.bf16.msra.mxu0 %v3699
    %4110 = vmatprep.subr.bf16.mxu0 0
    %4111 = vmatpush1.bf16.msra.mxu0 %v3700
    %4112 = vmatprep.subr.bf16.mxu0 0
    %4113 = vmatpush1.bf16.msra.mxu0 %v3701
    %4114 = vmatprep.subr.bf16.mxu0 0
    %4115 = vmatpush1.bf16.msra.mxu0 %v3702
    %4116 = vmatprep.subr.bf16.mxu0 0
    %4117 = vmatpush1.bf16.msra.mxu0 %v3703
    %4118 = vmatprep.subr.bf16.mxu0 0
    %4119 = vmatpush1.bf16.msra.mxu0 %v3704
    %4120 = vmatprep.subr.bf16.mxu0 0
    %4121 = vmatpush1.bf16.msra.mxu0 %v3705
    %4122 = vmatprep.mubr.bf16.mxu0 %v3063
    %4123 = vmatmul.mubr.bf16.gmra.mrb[0].mxu0 %v3062
    %v4124 = vpop.f32.mrb[0].mxu0
    %v4125 = vadd.f32 %v4085, %v4124
    %v4126 = vpop.f32.mrb[0].mxu0
    %v4127 = vpop.f32.mrb[0].mxu0
    %v4128 = vpop.f32.mrb[0].mxu0
    %4129 = vdwg.mxu0
    %4130 = vmatprep.subr.bf16.mxu0 0
    %4131 = vmatpush1.bf16.msra.mxu0 %v3706
    %4132 = vmatprep.subr.bf16.mxu0 0
    %4133 = vmatpush1.bf16.msra.mxu0 %v3707
    %4134 = vmatprep.subr.bf16.mxu0 0
    %4135 = vmatpush1.bf16.msra.mxu0 %v3708
    %4136 = vmatprep.subr.bf16.mxu0 0
    %4137 = vmatpush1.bf16.msra.mxu0 %v3709
    %4138 = vmatprep.subr.bf16.mxu0 0
    %4139 = vmatpush1.bf16.msra.mxu0 %v3710
    %4140 = vmatprep.subr.bf16.mxu0 0
    %4141 = vmatpush1.bf16.msra.mxu0 %v3711
    %4142 = vmatprep.subr.bf16.mxu0 0
    %4143 = vmatpush1.bf16.msra.mxu0 %v3712
    %4144 = vmatprep.subr.bf16.mxu0 0
    %4145 = vmatpush1.bf16.msra.mxu0 %v3713
    %4146 = vmatprep.subr.bf16.mxu0 0
    %4147 = vmatpush1.bf16.msra.mxu0 %v3714
    %4148 = vmatprep.subr.bf16.mxu0 0
    %4149 = vmatpush1.bf16.msra.mxu0 %v3715
    %4150 = vmatprep.subr.bf16.mxu0 0
    %4151 = vmatpush1.bf16.msra.mxu0 %v3716
    %4152 = vmatprep.subr.bf16.mxu0 0
    %4153 = vmatpush1.bf16.msra.mxu0 %v3717
    %4154 = vmatprep.subr.bf16.mxu0 0
    %4155 = vmatpush1.bf16.msra.mxu0 %v3718
    %4156 = vmatprep.subr.bf16.mxu0 0
    %4157 = vmatpush1.bf16.msra.mxu0 %v3719
    %4158 = vmatprep.subr.bf16.mxu0 0
    %4159 = vmatpush1.bf16.msra.mxu0 %v3720
    %4160 = vmatprep.subr.bf16.mxu0 0
    %4161 = vmatpush1.bf16.msra.mxu0 %v3721
    %4162 = vmatprep.mubr.bf16.mxu0 %v3065
    %4163 = vmatmul.mubr.bf16.gmra.mrb[0].mxu0 %v3064
    %v4164 = vpop.f32.mrb[0].mxu0
    %v4165 = vadd.f32 %v4125, %v4164
    %v4166 = vpop.f32.mrb[0].mxu0
    %v4167 = vpop.f32.mrb[0].mxu0
    %v4168 = vpop.f32.mrb[0].mxu0
    %4169 = vdwg.mxu0
    %vm4170 = vcmp.ge.f32.partialorder %v4165, 0.0
    %v4171 = vmul.f32 %v4165, 0.01
    %v4172 = vsel %vm4170, %v4165, %v4171
    %4173 = vst [vmem:[#allocation3 + $0x9] sm:$0x3] %v4172
    %4174 = vst [vmem:[#allocation3 + $0xf] sm:$0xc] %v4172
    %4175 = vst [vmem:[#allocation3 + $0x45] sm:$0x30] %v4172
    %4176 = vst [vmem:[#allocation3 + $0x4b] sm:$0xc0] %v4172
    %v4177 = vld [vmem:[#allocation3] sm:$0x3]
    %v4178 = vpack.c.bf16 %v4177, %v4177
    %4179 = vst [vmem:[#allocation6] sm:$0x1] %v4178
    %v4180 = vld [vmem:[#allocation3 + $0x1] sm:$0x3]
    %v4181 = vpack.c.bf16 %v4180, %v4180
    %4182 = vst [vmem:[#allocation6 + $0x4] sm:$0x1] %v4181
    %v4183 = vld [vmem:[#allocation3 + $0x2] sm:$0x3]
    %v4184 = vpack.c.bf16 %v4183, %v4183
    %4185 = vst [vmem:[#allocation6 + $0x8] sm:$0x1] %v4184
    %v4186 = vld [vmem:[#allocation3 + $0x8] sm:$0x3]
    %v4187 = vpack.c.bf16 %v4186, %v4186
    %4188 = vst [vmem:[#allocation6 + $0xc] sm:$0x1] %v4187
    %v4189 = vld [vmem:[#allocation3 + $0x9] sm:$0x3]
    %v4190 = vpack.c.bf16 %v4189, %v4189
    %4191 = vst [vmem:[#allocation6 + $0x10] sm:$0x1] %v4190
    %v4192 = vld [vmem:[#allocation3 + $0xa] sm:$0x3]
    %v4193 = vpack.c.bf16 %v4192, %v4192
    %4194 = vst [vmem:[#allocation6 + $0x14] sm:$0x1] %v4193
    %v4195 = vld [vmem:[#allocation3 + $0x10] sm:$0x3]
    %v4196 = vpack.c.bf16 %v4195, %v4195
    %4197 = vst [vmem:[#allocation6 + $0x18] sm:$0x1] %v4196
    %v4198 = vld [vmem:[#allocation3 + $0x11] sm:$0x3]
    %v4199 = vpack.c.bf16 %v4198, %v4198
    %4200 = vst [vmem:[#allocation6 + $0x1c] sm:$0x1] %v4199
    %v4201 = vld [vmem:[#allocation3 + $0x12] sm:$0x3]
    %v4202 = vpack.c.bf16 %v4201, %v4201
    %4203 = vst [vmem:[#allocation6 + $0x20] sm:$0x1] %v4202
    %v4204 = vld [vmem:[#allocation3 + $0x8] sm:$0x3]
    %v4205 = vpack.c.bf16 %v4204, %v4204
    %v4207 = vunpack.c.l.b16 %v4205
    %v4208 = vpack.c.b16 %v4207, %v4207
    %v4209 = vrot.slane %v4208, 7
    %4211 = vst [vmem:[#allocation6] sm:$0x2] %v4209
    %v4212 = vld [vmem:[#allocation3 + $0x9] sm:$0x3]
    %v4213 = vpack.c.bf16 %v4212, %v4212
    %v4215 = vunpack.c.l.b16 %v4213
    %v4216 = vpack.c.b16 %v4215, %v4215
    %v4217 = vrot.slane %v4216, 7
    %4219 = vst [vmem:[#allocation6 + $0x4] sm:$0x2] %v4217
    %v4220 = vld [vmem:[#allocation3 + $0xa] sm:$0x3]
    %v4221 = vpack.c.bf16 %v4220, %v4220
    %v4223 = vunpack.c.l.b16 %v4221
    %v4224 = vpack.c.b16 %v4223, %v4223
    %v4225 = vrot.slane %v4224, 7
    %4227 = vst [vmem:[#allocation6 + $0x8] sm:$0x2] %v4225
    %v4228 = vld [vmem:[#allocation3 + $0x10] sm:$0x3]
    %v4229 = vpack.c.bf16 %v4228, %v4228
    %v4231 = vunpack.c.l.b16 %v4229
    %v4232 = vpack.c.b16 %v4231, %v4231
    %v4233 = vrot.slane %v4232, 7
    %4235 = vst [vmem:[#allocation6 + $0xc] sm:$0x2] %v4233
    %v4236 = vld [vmem:[#allocation3 + $0x11] sm:$0x3]
    %v4237 = vpack.c.bf16 %v4236, %v4236
    %v4239 = vunpack.c.l.b16 %v4237
    %v4240 = vpack.c.b16 %v4239, %v4239
    %v4241 = vrot.slane %v4240, 7
    %4243 = vst [vmem:[#allocation6 + $0x10] sm:$0x2] %v4241
    %v4244 = vld [vmem:[#allocation3 + $0x12] sm:$0x3]
    %v4245 = vpack.c.bf16 %v4244, %v4244
    %v4247 = vunpack.c.l.b16 %v4245
    %v4248 = vpack.c.b16 %v4247, %v4247
    %v4249 = vrot.slane %v4248, 7
    %4251 = vst [vmem:[#allocation6 + $0x14] sm:$0x2] %v4249
    %v4252 = vld [vmem:[#allocation3 + $0x18] sm:$0x3]
    %v4253 = vpack.c.bf16 %v4252, %v4252
    %v4255 = vunpack.c.l.b16 %v4253
    %v4256 = vpack.c.b16 %v4255, %v4255
    %v4257 = vrot.slane %v4256, 7
    %4259 = vst [vmem:[#allocation6 + $0x18] sm:$0x2] %v4257
    %v4260 = vld [vmem:[#allocation3 + $0x19] sm:$0x3]
    %v4261 = vpack.c.bf16 %v4260, %v4260
    %v4263 = vunpack.c.l.b16 %v4261
    %v4264 = vpack.c.b16 %v4263, %v4263
    %v4265 = vrot.slane %v4264, 7
    %4267 = vst [vmem:[#allocation6 + $0x1c] sm:$0x2] %v4265
    %v4268 = vld [vmem:[#allocation3 + $0x1a] sm:$0x3]
    %v4269 = vpack.c.bf16 %v4268, %v4268
    %v4271 = vunpack.c.l.b16 %v4269
    %v4272 = vpack.c.b16 %v4271, %v4271
    %v4273 = vrot.slane %v4272, 7
    %4275 = vst [vmem:[#allocation6 + $0x20] sm:$0x2] %v4273
    %v4276 = vld [vmem:[#allocation3 + $0x40] sm:$0x3]
    %v4277 = vpack.c.bf16 %v4276, %v4276
    %v4279 = vunpack.c.l.b16 %v4277
    %v4280 = vpack.c.b16 %v4279, %v4279
    %v4281 = vrot.slane %v4280, 6
    %4283 = vst [vmem:[#allocation6] sm:$0x4] %v4281
    %v4284 = vld [vmem:[#allocation3 + $0x41] sm:$0x3]
    %v4285 = vpack.c.bf16 %v4284, %v4284
    %v4287 = vunpack.c.l.b16 %v4285
    %v4288 = vpack.c.b16 %v4287, %v4287
    %v4289 = vrot.slane %v4288, 6
    %4291 = vst [vmem:[#allocation6 + $0x4] sm:$0x4] %v4289
    %v4292 = vld [vmem:[#allocation3 + $0x42] sm:$0x3]
    %v4293 = vpack.c.bf16 %v4292, %v4292
    %v4295 = vunpack.c.l.b16 %v4293
    %v4296 = vpack.c.b16 %v4295, %v4295
    %v4297 = vrot.slane %v4296, 6
    %4299 = vst [vmem:[#allocation6 + $0x8] sm:$0x4] %v4297
    %v4300 = vld [vmem:[#allocation3 + $0x48] sm:$0x3]
    %v4301 = vpack.c.bf16 %v4300, %v4300
    %v4303 = vunpack.c.l.b16 %v4301
    %v4304 = vpack.c.b16 %v4303, %v4303
    %v4305 = vrot.slane %v4304, 6
    %4307 = vst [vmem:[#allocation6 + $0xc] sm:$0x4] %v4305
    %v4308 = vld [vmem:[#allocation3 + $0x49] sm:$0x3]
    %v4309 = vpack.c.bf16 %v4308, %v4308
    %v4311 = vunpack.c.l.b16 %v4309
    %v4312 = vpack.c.b16 %v4311, %v4311
    %v4313 = vrot.slane %v4312, 6
    %4315 = vst [vmem:[#allocation6 + $0x10] sm:$0x4] %v4313
    %v4316 = vld [vmem:[#allocation3 + $0x4a] sm:$0x3]
    %v4317 = vpack.c.bf16 %v4316, %v4316
    %v4319 = vunpack.c.l.b16 %v4317
    %v4320 = vpack.c.b16 %v4319, %v4319
    %v4321 = vrot.slane %v4320, 6
    %4323 = vst [vmem:[#allocation6 + $0x14] sm:$0x4] %v4321
    %v4324 = vld [vmem:[#allocation3 + $0x50] sm:$0x3]
    %v4325 = vpack.c.bf16 %v4324, %v4324
    %v4327 = vunpack.c.l.b16 %v4325
    %v4328 = vpack.c.b16 %v4327, %v4327
    %v4329 = vrot.slane %v4328, 6
    %4331 = vst [vmem:[#allocation6 + $0x18] sm:$0x4] %v4329
    %v4332 = vld [vmem:[#allocation3 + $0x51] sm:$0x3]
    %v4333 = vpack.c.bf16 %v4332, %v4332
    %v4335 = vunpack.c.l.b16 %v4333
    %v4336 = vpack.c.b16 %v4335, %v4335
    %v4337 = vrot.slane %v4336, 6
    %4339 = vst [vmem:[#allocation6 + $0x1c] sm:$0x4] %v4337
    %v4340 = vld [vmem:[#allocation3 + $0x52] sm:$0x3]
    %v4341 = vpack.c.bf16 %v4340, %v4340
    %v4343 = vunpack.c.l.b16 %v4341
    %v4344 = vpack.c.b16 %v4343, %v4343
    %v4345 = vrot.slane %v4344, 6
    %4347 = vst [vmem:[#allocation6 + $0x20] sm:$0x4] %v4345
    %v4348 = vld [vmem:[#allocation3 + $0x48] sm:$0x3]
    %v4349 = vpack.c.bf16 %v4348, %v4348
    %v4351 = vunpack.c.l.b16 %v4349
    %v4352 = vpack.c.b16 %v4351, %v4351
    %v4353 = vrot.slane %v4352, 5
    %4355 = vst [vmem:[#allocation6] sm:$0x8] %v4353
    %v4356 = vld [vmem:[#allocation3 + $0x49] sm:$0x3]
    %v4357 = vpack.c.bf16 %v4356, %v4356
    %v4359 = vunpack.c.l.b16 %v4357
    %v4360 = vpack.c.b16 %v4359, %v4359
    %v4361 = vrot.slane %v4360, 5
    %4363 = vst [vmem:[#allocation6 + $0x4] sm:$0x8] %v4361
    %v4364 = vld [vmem:[#allocation3 + $0x4a] sm:$0x3]
    %v4365 = vpack.c.bf16 %v4364, %v4364
    %v4367 = vunpack.c.l.b16 %v4365
    %v4368 = vpack.c.b16 %v4367, %v4367
    %v4369 = vrot.slane %v4368, 5
    %4371 = vst [vmem:[#allocation6 + $0x8] sm:$0x8] %v4369
    %v4372 = vld [vmem:[#allocation3 + $0x50] sm:$0x3]
    %v4373 = vpack.c.bf16 %v4372, %v4372
    %v4375 = vunpack.c.l.b16 %v4373
    %v4376 = vpack.c.b16 %v4375, %v4375
    %v4377 = vrot.slane %v4376, 5
    %4379 = vst [vmem:[#allocation6 + $0xc] sm:$0x8] %v4377
    %v4380 = vld [vmem:[#allocation3 + $0x51] sm:$0x3]
    %v4381 = vpack.c.bf16 %v4380, %v4380
    %v4383 = vunpack.c.l.b16 %v4381
    %v4384 = vpack.c.b16 %v4383, %v4383
    %v4385 = vrot.slane %v4384, 5
    %4387 = vst [vmem:[#allocation6 + $0x10] sm:$0x8] %v4385
    %v4388 = vld [vmem:[#allocation3 + $0x52] sm:$0x3]
    %v4389 = vpack.c.bf16 %v4388, %v4388
    %v4391 = vunpack.c.l.b16 %v4389
    %v4392 = vpack.c.b16 %v4391, %v4391
    %v4393 = vrot.slane %v4392, 5
    %4395 = vst [vmem:[#allocation6 + $0x14] sm:$0x8] %v4393
    %v4396 = vld [vmem:[#allocation3 + $0x58] sm:$0x3]
    %v4397 = vpack.c.bf16 %v4396, %v4396
    %v4399 = vunpack.c.l.b16 %v4397
    %v4400 = vpack.c.b16 %v4399, %v4399
    %v4401 = vrot.slane %v4400, 5
    %4403 = vst [vmem:[#allocation6 + $0x18] sm:$0x8] %v4401
    %v4404 = vld [vmem:[#allocation3 + $0x59] sm:$0x3]
    %v4405 = vpack.c.bf16 %v4404, %v4404
    %v4407 = vunpack.c.l.b16 %v4405
    %v4408 = vpack.c.b16 %v4407, %v4407
    %v4409 = vrot.slane %v4408, 5
    %4411 = vst [vmem:[#allocation6 + $0x1c] sm:$0x8] %v4409
    %v4412 = vld [vmem:[#allocation3 + $0x5a] sm:$0x3]
    %v4413 = vpack.c.bf16 %v4412, %v4412
    %v4415 = vunpack.c.l.b16 %v4413
    %v4416 = vpack.c.b16 %v4415, %v4415
    %v4417 = vrot.slane %v4416, 5
    %4419 = vst [vmem:[#allocation6 + $0x20] sm:$0x8] %v4417
    %v4420 = vld [vmem:[#allocation6] sm:$0xff]
    %v4421 = vld [vmem:[#allocation6 + $0x8] sm:$0xff]
    %v4422 = vld [vmem:[#allocation6 + $0x10] sm:$0xff]
    %v4423 = vld [vmem:[#allocation6 + $0x18] sm:$0xff]
    %v4424 = vld [vmem:[#allocation6 + $0x20] sm:$0xf]
    %v4425 = vld [vmem:[%s5] sm:$0xf]
    %v4426 = vld [vmem:[%s5 + $0x4] sm:$0xf]
    %v4427 = vld [vmem:[%s5 + $0x8] sm:$0xf]
    %v4428 = vld [vmem:[%s5 + $0xc] sm:$0xf]
    %v4429 = vld [vmem:[%s5 + $0x10] sm:$0xf]
    %v4430 = vld [vmem:[%s5 + $0x14] sm:$0xf]
    %v4431 = vld [vmem:[%s5 + $0x18] sm:$0xf]
    %v4432 = vld [vmem:[%s5 + $0x1c] sm:$0xf]
    %v4433 = vld [vmem:[%s5 + $0x20] sm:$0xf]
    %v4434 = vld [vmem:[%s5 + $0x24] sm:$0xf]
    %v4435 = vld [vmem:[%s5 + $0x28] sm:$0xf]
    %v4436 = vld [vmem:[%s5 + $0x2c] sm:$0xf]
    %v4437 = vld [vmem:[%s5 + $0x30] sm:$0xf]
    %v4438 = vld [vmem:[%s5 + $0x34] sm:$0xf]
    %v4439 = vld [vmem:[%s5 + $0x38] sm:$0xf]
    %v4440 = vld [vmem:[%s5 + $0x3c] sm:$0xf]
    %v4441 = vld [vmem:[%s5 + $0x40] sm:$0xf]
    %v4442 = vld [vmem:[%s5 + $0x44] sm:$0xf]
    %v4443 = vld [vmem:[%s5 + $0x48] sm:$0xf]
    %v4444 = vld [vmem:[%s5 + $0x4c] sm:$0xf]
    %v4445 = vld [vmem:[%s5 + $0x50] sm:$0xf]
    %v4446 = vld [vmem:[%s5 + $0x54] sm:$0xf]
    %v4447 = vld [vmem:[%s5 + $0x58] sm:$0xf]
    %v4448 = vld [vmem:[%s5 + $0x5c] sm:$0xf]
    %v4449 = vld [vmem:[%s5 + $0x60] sm:$0xf]
    %v4450 = vld [vmem:[%s5 + $0x64] sm:$0xf]
    %v4451 = vld [vmem:[%s5 + $0x68] sm:$0xf]
    %v4452 = vld [vmem:[%s5 + $0x6c] sm:$0xf]
    %v4453 = vld [vmem:[%s5 + $0x70] sm:$0xf]
    %v4454 = vld [vmem:[%s5 + $0x74] sm:$0xf]
    %v4455 = vld [vmem:[%s5 + $0x78] sm:$0xf]
    %v4456 = vld [vmem:[%s5 + $0x7c] sm:$0xf]
    %v4457 = vld [vmem:[%s5 + $0x80] sm:$0xf]
    %v4458 = vld [vmem:[%s5 + $0x84] sm:$0xf]
    %v4459 = vld [vmem:[%s5 + $0x88] sm:$0xf]
    %v4460 = vld [vmem:[%s5 + $0x8c] sm:$0xf]
    %v4461 = vld [vmem:[%s5 + $0x90] sm:$0xf]
    %v4462 = vld [vmem:[%s5 + $0x94] sm:$0xf]
    %v4463 = vld [vmem:[%s5 + $0x98] sm:$0xf]
    %v4464 = vld [vmem:[%s5 + $0x9c] sm:$0xf]
    %v4465 = vld [vmem:[%s5 + $0xa0] sm:$0xf]
    %v4466 = vld [vmem:[%s5 + $0xa4] sm:$0xf]
    %v4467 = vld [vmem:[%s5 + $0xa8] sm:$0xf]
    %v4468 = vld [vmem:[%s5 + $0xac] sm:$0xf]
    %v4469 = vld [vmem:[%s5 + $0xb0] sm:$0xf]
    %v4470 = vld [vmem:[%s5 + $0xb4] sm:$0xf]
    %v4471 = vld [vmem:[%s5 + $0xb8] sm:$0xf]
    %v4472 = vld [vmem:[%s5 + $0xbc] sm:$0xf]
    %v4473 = vld [vmem:[%s5 + $0xc0] sm:$0xf]
    %v4474 = vld [vmem:[%s5 + $0xc4] sm:$0xf]
    %v4475 = vld [vmem:[%s5 + $0xc8] sm:$0xf]
    %v4476 = vld [vmem:[%s5 + $0xcc] sm:$0xf]
    %v4477 = vld [vmem:[%s5 + $0xd0] sm:$0xf]
    %v4478 = vld [vmem:[%s5 + $0xd4] sm:$0xf]
    %v4479 = vld [vmem:[%s5 + $0xd8] sm:$0xf]
    %v4480 = vld [vmem:[%s5 + $0xdc] sm:$0xf]
    %v4481 = vld [vmem:[%s5 + $0xe0] sm:$0xf]
    %v4482 = vld [vmem:[%s5 + $0xe4] sm:$0xf]
    %v4483 = vld [vmem:[%s5 + $0xe8] sm:$0xf]
    %v4484 = vld [vmem:[%s5 + $0xec] sm:$0xf]
    %v4485 = vld [vmem:[%s5 + $0xf0] sm:$0xf]
    %v4486 = vld [vmem:[%s5 + $0xf4] sm:$0xf]
    %v4487 = vld [vmem:[%s5 + $0xf8] sm:$0xf]
    %v4488 = vld [vmem:[%s5 + $0xfc] sm:$0xf]
    %v4489 = vld [vmem:[%s5 + $0x100] sm:$0xf]
    %v4490 = vld [vmem:[%s5 + $0x104] sm:$0xf]
    %v4491 = vld [vmem:[%s5 + $0x108] sm:$0xf]
    %v4492 = vld [vmem:[%s5 + $0x10c] sm:$0xf]
    %v4493 = vld [vmem:[%s5 + $0x110] sm:$0xf]
    %v4494 = vld [vmem:[%s5 + $0x114] sm:$0xf]
    %v4495 = vld [vmem:[%s5 + $0x118] sm:$0xf]
    %v4496 = vld [vmem:[%s5 + $0x11c] sm:$0xf]
    %v4497 = vld [vmem:[%s5 + $0x120] sm:$0xf]
    %v4498 = vld [vmem:[%s5 + $0x124] sm:$0xf]
    %v4499 = vld [vmem:[%s5 + $0x128] sm:$0xf]
    %v4500 = vld [vmem:[%s5 + $0x12c] sm:$0xf]
    %v4501 = vld [vmem:[%s5 + $0x130] sm:$0xf]
    %v4502 = vld [vmem:[%s5 + $0x134] sm:$0xf]
    %v4503 = vld [vmem:[%s5 + $0x138] sm:$0xf]
    %v4504 = vld [vmem:[%s5 + $0x13c] sm:$0xf]
    %v4505 = vld [vmem:[%s5 + $0x140] sm:$0xf]
    %v4506 = vld [vmem:[%s5 + $0x144] sm:$0xf]
    %v4507 = vld [vmem:[%s5 + $0x148] sm:$0xf]
    %v4508 = vld [vmem:[%s5 + $0x14c] sm:$0xf]
    %v4509 = vld [vmem:[%s5 + $0x150] sm:$0xf]
    %v4510 = vld [vmem:[%s5 + $0x154] sm:$0xf]
    %v4511 = vld [vmem:[%s5 + $0x158] sm:$0xf]
    %v4512 = vld [vmem:[%s5 + $0x15c] sm:$0xf]
    %v4513 = vld [vmem:[%s5 + $0x160] sm:$0xf]
    %v4514 = vld [vmem:[%s5 + $0x164] sm:$0xf]
    %v4515 = vld [vmem:[%s5 + $0x168] sm:$0xf]
    %v4516 = vld [vmem:[%s5 + $0x16c] sm:$0xf]
    %v4517 = vld [vmem:[%s5 + $0x170] sm:$0xf]
    %v4518 = vld [vmem:[%s5 + $0x174] sm:$0xf]
    %v4519 = vld [vmem:[%s5 + $0x178] sm:$0xf]
    %v4520 = vld [vmem:[%s5 + $0x17c] sm:$0xf]
    %v4521 = vld [vmem:[%s5 + $0x180] sm:$0xf]
    %v4522 = vld [vmem:[%s5 + $0x184] sm:$0xf]
    %v4523 = vld [vmem:[%s5 + $0x188] sm:$0xf]
    %v4524 = vld [vmem:[%s5 + $0x18c] sm:$0xf]
    %v4525 = vld [vmem:[%s5 + $0x190] sm:$0xf]
    %v4526 = vld [vmem:[%s5 + $0x194] sm:$0xf]
    %v4527 = vld [vmem:[%s5 + $0x198] sm:$0xf]
    %v4528 = vld [vmem:[%s5 + $0x19c] sm:$0xf]
    %v4529 = vld [vmem:[%s5 + $0x1a0] sm:$0xf]
    %v4530 = vld [vmem:[%s5 + $0x1a4] sm:$0xf]
    %v4531 = vld [vmem:[%s5 + $0x1a8] sm:$0xf]
    %v4532 = vld [vmem:[%s5 + $0x1ac] sm:$0xf]
    %v4533 = vld [vmem:[%s5 + $0x1b0] sm:$0xf]
    %v4534 = vld [vmem:[%s5 + $0x1b4] sm:$0xf]
    %v4535 = vld [vmem:[%s5 + $0x1b8] sm:$0xf]
    %v4536 = vld [vmem:[%s5 + $0x1bc] sm:$0xf]
    %v4537 = vld [vmem:[%s5 + $0x1c0] sm:$0xf]
    %v4538 = vld [vmem:[%s5 + $0x1c4] sm:$0xf]
    %v4539 = vld [vmem:[%s5 + $0x1c8] sm:$0xf]
    %v4540 = vld [vmem:[%s5 + $0x1cc] sm:$0xf]
    %v4541 = vld [vmem:[%s5 + $0x1d0] sm:$0xf]
    %v4542 = vld [vmem:[%s5 + $0x1d4] sm:$0xf]
    %v4543 = vld [vmem:[%s5 + $0x1d8] sm:$0xf]
    %v4544 = vld [vmem:[%s5 + $0x1dc] sm:$0xf]
    %v4545 = vld [vmem:[%s5 + $0x1e0] sm:$0xf]
    %v4546 = vld [vmem:[%s5 + $0x1e4] sm:$0xf]
    %v4547 = vld [vmem:[%s5 + $0x1e8] sm:$0xf]
    %v4548 = vld [vmem:[%s5 + $0x1ec] sm:$0xf]
    %v4549 = vld [vmem:[%s5 + $0x1f0] sm:$0xf]
    %v4550 = vld [vmem:[%s5 + $0x1f4] sm:$0xf]
    %v4551 = vld [vmem:[%s5 + $0x1f8] sm:$0xf]
    %v4552 = vld [vmem:[%s5 + $0x1fc] sm:$0xf]
    %v4553 = vld [vmem:[%s5 + $0x200] sm:$0xf]
    %v4554 = vld [vmem:[%s5 + $0x204] sm:$0xf]
    %v4555 = vld [vmem:[%s5 + $0x208] sm:$0xf]
    %v4556 = vld [vmem:[%s5 + $0x20c] sm:$0xf]
    %v4557 = vld [vmem:[%s5 + $0x210] sm:$0xf]
    %v4558 = vld [vmem:[%s5 + $0x214] sm:$0xf]
    %v4559 = vld [vmem:[%s5 + $0x218] sm:$0xf]
    %v4560 = vld [vmem:[%s5 + $0x21c] sm:$0xf]
    %v4561 = vld [vmem:[%s5 + $0x220] sm:$0xf]
    %v4562 = vld [vmem:[%s5 + $0x224] sm:$0xf]
    %v4563 = vld [vmem:[%s5 + $0x228] sm:$0xf]
    %v4564 = vld [vmem:[%s5 + $0x22c] sm:$0xf]
    %v4565 = vld [vmem:[%s5 + $0x230] sm:$0xf]
    %v4566 = vld [vmem:[%s5 + $0x234] sm:$0xf]
    %v4567 = vld [vmem:[%s5 + $0x238] sm:$0xf]
    %v4568 = vld [vmem:[%s5 + $0x23c] sm:$0xf]
    %v4574 = vunpack.c.l.b16 %v4420
    %v4575 = vunpack.c.h.b16 %v4420
    %v4576 = vunpack.c.l.b16 %v4421
    %v4577 = vunpack.c.h.b16 %v4421
    %v4578 = vunpack.c.l.b16 %v4422
    %v4579 = vunpack.c.h.b16 %v4422
    %v4580 = vunpack.c.l.b16 %v4423
    %v4581 = vunpack.c.h.b16 %v4423
    %v4582 = vunpack.c.l.b16 %v4424
    %v4583 = vpack.c.b16 %v4574, %v4574
    %v4584 = vpack.c.b16 %v4575, %v4575
    %v4585 = vpack.c.b16 %v4576, %v4576
    %v4586 = vpack.c.b16 %v4577, %v4577
    %v4587 = vpack.c.b16 %v4578, %v4578
    %v4588 = vpack.c.b16 %v4579, %v4579
    %v4589 = vpack.c.b16 %v4580, %v4580
    %v4590 = vpack.c.b16 %v4581, %v4581
    %v4591 = vpack.c.b16 %v4582, %v4582
    %v4745 = vunpack.c.l.b16 %v4425
    %v4746 = vunpack.c.l.b16 %v4426
    %v4747 = vunpack.c.l.b16 %v4427
    %v4748 = vunpack.c.l.b16 %v4428
    %v4749 = vunpack.c.l.b16 %v4429
    %v4750 = vunpack.c.l.b16 %v4430
    %v4751 = vunpack.c.l.b16 %v4431
    %v4752 = vunpack.c.l.b16 %v4432
    %v4753 = vunpack.c.l.b16 %v4433
    %v4754 = vunpack.c.l.b16 %v4434
    %v4755 = vunpack.c.l.b16 %v4435
    %v4756 = vunpack.c.l.b16 %v4436
    %v4757 = vunpack.c.l.b16 %v4437
    %v4758 = vunpack.c.l.b16 %v4438
    %v4759 = vunpack.c.l.b16 %v4439
    %v4760 = vunpack.c.l.b16 %v4440
    %v4761 = vunpack.c.l.b16 %v4441
    %v4762 = vunpack.c.l.b16 %v4442
    %v4763 = vunpack.c.l.b16 %v4443
    %v4764 = vunpack.c.l.b16 %v4444
    %v4765 = vunpack.c.l.b16 %v4445
    %v4766 = vunpack.c.l.b16 %v4446
    %v4767 = vunpack.c.l.b16 %v4447
    %v4768 = vunpack.c.l.b16 %v4448
    %v4769 = vunpack.c.l.b16 %v4449
    %v4770 = vunpack.c.l.b16 %v4450
    %v4771 = vunpack.c.l.b16 %v4451
    %v4772 = vunpack.c.l.b16 %v4452
    %v4773 = vunpack.c.l.b16 %v4453
    %v4774 = vunpack.c.l.b16 %v4454
    %v4775 = vunpack.c.l.b16 %v4455
    %v4776 = vunpack.c.l.b16 %v4456
    %v4777 = vunpack.c.l.b16 %v4457
    %v4778 = vunpack.c.l.b16 %v4458
    %v4779 = vunpack.c.l.b16 %v4459
    %v4780 = vunpack.c.l.b16 %v4460
    %v4781 = vunpack.c.l.b16 %v4461
    %v4782 = vunpack.c.l.b16 %v4462
    %v4783 = vunpack.c.l.b16 %v4463
    %v4784 = vunpack.c.l.b16 %v4464
    %v4785 = vunpack.c.l.b16 %v4465
    %v4786 = vunpack.c.l.b16 %v4466
    %v4787 = vunpack.c.l.b16 %v4467
    %v4788 = vunpack.c.l.b16 %v4468
    %v4789 = vunpack.c.l.b16 %v4469
    %v4790 = vunpack.c.l.b16 %v4470
    %v4791 = vunpack.c.l.b16 %v4471
    %v4792 = vunpack.c.l.b16 %v4472
    %v4793 = vunpack.c.l.b16 %v4473
    %v4794 = vunpack.c.l.b16 %v4474
    %v4795 = vunpack.c.l.b16 %v4475
    %v4796 = vunpack.c.l.b16 %v4476
    %v4797 = vunpack.c.l.b16 %v4477
    %v4798 = vunpack.c.l.b16 %v4478
    %v4799 = vunpack.c.l.b16 %v4479
    %v4800 = vunpack.c.l.b16 %v4480
    %v4801 = vunpack.c.l.b16 %v4481
    %v4802 = vunpack.c.l.b16 %v4482
    %v4803 = vunpack.c.l.b16 %v4483
    %v4804 = vunpack.c.l.b16 %v4484
    %v4805 = vunpack.c.l.b16 %v4485
    %v4806 = vunpack.c.l.b16 %v4486
    %v4807 = vunpack.c.l.b16 %v4487
    %v4808 = vunpack.c.l.b16 %v4488
    %v4809 = vunpack.c.l.b16 %v4489
    %v4810 = vunpack.c.l.b16 %v4490
    %v4811 = vunpack.c.l.b16 %v4491
    %v4812 = vunpack.c.l.b16 %v4492
    %v4813 = vunpack.c.l.b16 %v4493
    %v4814 = vunpack.c.l.b16 %v4494
    %v4815 = vunpack.c.l.b16 %v4495
    %v4816 = vunpack.c.l.b16 %v4496
    %v4817 = vunpack.c.l.b16 %v4497
    %v4818 = vunpack.c.l.b16 %v4498
    %v4819 = vunpack.c.l.b16 %v4499
    %v4820 = vunpack.c.l.b16 %v4500
    %v4821 = vunpack.c.l.b16 %v4501
    %v4822 = vunpack.c.l.b16 %v4502
    %v4823 = vunpack.c.l.b16 %v4503
    %v4824 = vunpack.c.l.b16 %v4504
    %v4825 = vunpack.c.l.b16 %v4505
    %v4826 = vunpack.c.l.b16 %v4506
    %v4827 = vunpack.c.l.b16 %v4507
    %v4828 = vunpack.c.l.b16 %v4508
    %v4829 = vunpack.c.l.b16 %v4509
    %v4830 = vunpack.c.l.b16 %v4510
    %v4831 = vunpack.c.l.b16 %v4511
    %v4832 = vunpack.c.l.b16 %v4512
    %v4833 = vunpack.c.l.b16 %v4513
    %v4834 = vunpack.c.l.b16 %v4514
    %v4835 = vunpack.c.l.b16 %v4515
    %v4836 = vunpack.c.l.b16 %v4516
    %v4837 = vunpack.c.l.b16 %v4517
    %v4838 = vunpack.c.l.b16 %v4518
    %v4839 = vunpack.c.l.b16 %v4519
    %v4840 = vunpack.c.l.b16 %v4520
    %v4841 = vunpack.c.l.b16 %v4521
    %v4842 = vunpack.c.l.b16 %v4522
    %v4843 = vunpack.c.l.b16 %v4523
    %v4844 = vunpack.c.l.b16 %v4524
    %v4845 = vunpack.c.l.b16 %v4525
    %v4846 = vunpack.c.l.b16 %v4526
    %v4847 = vunpack.c.l.b16 %v4527
    %v4848 = vunpack.c.l.b16 %v4528
    %v4849 = vunpack.c.l.b16 %v4529
    %v4850 = vunpack.c.l.b16 %v4530
    %v4851 = vunpack.c.l.b16 %v4531
    %v4852 = vunpack.c.l.b16 %v4532
    %v4853 = vunpack.c.l.b16 %v4533
    %v4854 = vunpack.c.l.b16 %v4534
    %v4855 = vunpack.c.l.b16 %v4535
    %v4856 = vunpack.c.l.b16 %v4536
    %v4857 = vunpack.c.l.b16 %v4537
    %v4858 = vunpack.c.l.b16 %v4538
    %v4859 = vunpack.c.l.b16 %v4539
    %v4860 = vunpack.c.l.b16 %v4540
    %v4861 = vunpack.c.l.b16 %v4541
    %v4862 = vunpack.c.l.b16 %v4542
    %v4863 = vunpack.c.l.b16 %v4543
    %v4864 = vunpack.c.l.b16 %v4544
    %v4865 = vunpack.c.l.b16 %v4545
    %v4866 = vunpack.c.l.b16 %v4546
    %v4867 = vunpack.c.l.b16 %v4547
    %v4868 = vunpack.c.l.b16 %v4548
    %v4869 = vunpack.c.l.b16 %v4549
    %v4870 = vunpack.c.l.b16 %v4550
    %v4871 = vunpack.c.l.b16 %v4551
    %v4872 = vunpack.c.l.b16 %v4552
    %v4873 = vunpack.c.l.b16 %v4553
    %v4874 = vunpack.c.l.b16 %v4554
    %v4875 = vunpack.c.l.b16 %v4555
    %v4876 = vunpack.c.l.b16 %v4556
    %v4877 = vunpack.c.l.b16 %v4557
    %v4878 = vunpack.c.l.b16 %v4558
    %v4879 = vunpack.c.l.b16 %v4559
    %v4880 = vunpack.c.l.b16 %v4560
    %v4881 = vunpack.c.l.b16 %v4561
    %v4882 = vunpack.c.l.b16 %v4562
    %v4883 = vunpack.c.l.b16 %v4563
    %v4884 = vunpack.c.l.b16 %v4564
    %v4885 = vunpack.c.l.b16 %v4565
    %v4886 = vunpack.c.l.b16 %v4566
    %v4887 = vunpack.c.l.b16 %v4567
    %v4888 = vunpack.c.l.b16 %v4568
    %v4889 = vpack.c.b16 %v4746, %v4745
    %v4890 = vpack.c.b16 %v4748, %v4747
    %v4891 = vpack.c.b16 %v4750, %v4749
    %v4892 = vpack.c.b16 %v4752, %v4751
    %v4893 = vpack.c.b16 %v4754, %v4753
    %v4894 = vpack.c.b16 %v4756, %v4755
    %v4895 = vpack.c.b16 %v4758, %v4757
    %v4896 = vpack.c.b16 %v4760, %v4759
    %v4897 = vpack.c.b16 %v4762, %v4761
    %v4898 = vpack.c.b16 %v4764, %v4763
    %v4899 = vpack.c.b16 %v4766, %v4765
    %v4900 = vpack.c.b16 %v4768, %v4767
    %v4901 = vpack.c.b16 %v4770, %v4769
    %v4902 = vpack.c.b16 %v4772, %v4771
    %v4903 = vpack.c.b16 %v4774, %v4773
    %v4904 = vpack.c.b16 %v4776, %v4775
    %v4905 = vpack.c.b16 %v4778, %v4777
    %v4906 = vpack.c.b16 %v4780, %v4779
    %v4907 = vpack.c.b16 %v4782, %v4781
    %v4908 = vpack.c.b16 %v4784, %v4783
    %v4909 = vpack.c.b16 %v4786, %v4785
    %v4910 = vpack.c.b16 %v4788, %v4787
    %v4911 = vpack.c.b16 %v4790, %v4789
    %v4912 = vpack.c.b16 %v4792, %v4791
    %v4913 = vpack.c.b16 %v4794, %v4793
    %v4914 = vpack.c.b16 %v4796, %v4795
    %v4915 = vpack.c.b16 %v4798, %v4797
    %v4916 = vpack.c.b16 %v4800, %v4799
    %v4917 = vpack.c.b16 %v4802, %v4801
    %v4918 = vpack.c.b16 %v4804, %v4803
    %v4919 = vpack.c.b16 %v4806, %v4805
    %v4920 = vpack.c.b16 %v4808, %v4807
    %v4921 = vpack.c.b16 %v4810, %v4809
    %v4922 = vpack.c.b16 %v4812, %v4811
    %v4923 = vpack.c.b16 %v4814, %v4813
    %v4924 = vpack.c.b16 %v4816, %v4815
    %v4925 = vpack.c.b16 %v4818, %v4817
    %v4926 = vpack.c.b16 %v4820, %v4819
    %v4927 = vpack.c.b16 %v4822, %v4821
    %v4928 = vpack.c.b16 %v4824, %v4823
    %v4929 = vpack.c.b16 %v4826, %v4825
    %v4930 = vpack.c.b16 %v4828, %v4827
    %v4931 = vpack.c.b16 %v4830, %v4829
    %v4932 = vpack.c.b16 %v4832, %v4831
    %v4933 = vpack.c.b16 %v4834, %v4833
    %v4934 = vpack.c.b16 %v4836, %v4835
    %v4935 = vpack.c.b16 %v4838, %v4837
    %v4936 = vpack.c.b16 %v4840, %v4839
    %v4937 = vpack.c.b16 %v4842, %v4841
    %v4938 = vpack.c.b16 %v4844, %v4843
    %v4939 = vpack.c.b16 %v4846, %v4845
    %v4940 = vpack.c.b16 %v4848, %v4847
    %v4941 = vpack.c.b16 %v4850, %v4849
    %v4942 = vpack.c.b16 %v4852, %v4851
    %v4943 = vpack.c.b16 %v4854, %v4853
    %v4944 = vpack.c.b16 %v4856, %v4855
    %v4945 = vpack.c.b16 %v4858, %v4857
    %v4946 = vpack.c.b16 %v4860, %v4859
    %v4947 = vpack.c.b16 %v4862, %v4861
    %v4948 = vpack.c.b16 %v4864, %v4863
    %v4949 = vpack.c.b16 %v4866, %v4865
    %v4950 = vpack.c.b16 %v4868, %v4867
    %v4951 = vpack.c.b16 %v4870, %v4869
    %v4952 = vpack.c.b16 %v4872, %v4871
    %v4953 = vpack.c.b16 %v4874, %v4873
    %v4954 = vpack.c.b16 %v4876, %v4875
    %v4955 = vpack.c.b16 %v4878, %v4877
    %v4956 = vpack.c.b16 %v4880, %v4879
    %v4957 = vpack.c.b16 %v4882, %v4881
    %v4958 = vpack.c.b16 %v4884, %v4883
    %v4959 = vpack.c.b16 %v4886, %v4885
    %v4960 = vpack.c.b16 %v4888, %v4887
    %5033 = vmatprep.subr.bf16.mxu0 0
    %5034 = vmatpush1.bf16.msra.mxu0 %v4889
    %5035 = vmatprep.subr.bf16.mxu0 0
    %5036 = vmatpush1.bf16.msra.mxu0 %v4890
    %5037 = vmatprep.subr.bf16.mxu0 0
    %5038 = vmatpush1.bf16.msra.mxu0 %v4891
    %5039 = vmatprep.subr.bf16.mxu0 0
    %5040 = vmatpush1.bf16.msra.mxu0 %v4892
    %5041 = vmatprep.subr.bf16.mxu0 0
    %5042 = vmatpush1.bf16.msra.mxu0 %v4893
    %5043 = vmatprep.subr.bf16.mxu0 0
    %5044 = vmatpush1.bf16.msra.mxu0 %v4894
    %5045 = vmatprep.subr.bf16.mxu0 0
    %5046 = vmatpush1.bf16.msra.mxu0 %v4895
    %5047 = vmatprep.subr.bf16.mxu0 0
    %5048 = vmatpush1.bf16.msra.mxu0 %v4896
    %5049 = vmatprep.subr.bf16.mxu0 0
    %5050 = vmatpush1.bf16.msra.mxu0 %v4897
    %5051 = vmatprep.subr.bf16.mxu0 0
    %5052 = vmatpush1.bf16.msra.mxu0 %v4898
    %5053 = vmatprep.subr.bf16.mxu0 0
    %5054 = vmatpush1.bf16.msra.mxu0 %v4899
    %5055 = vmatprep.subr.bf16.mxu0 0
    %5056 = vmatpush1.bf16.msra.mxu0 %v4900
    %5057 = vmatprep.subr.bf16.mxu0 0
    %5058 = vmatpush1.bf16.msra.mxu0 %v4901
    %5059 = vmatprep.subr.bf16.mxu0 0
    %5060 = vmatpush1.bf16.msra.mxu0 %v4902
    %5061 = vmatprep.subr.bf16.mxu0 0
    %5062 = vmatpush1.bf16.msra.mxu0 %v4903
    %5063 = vmatprep.subr.bf16.mxu0 0
    %5064 = vmatpush1.bf16.msra.mxu0 %v4904
    %5065 = vmatprep.mubr.bf16.mxu0 %v4584
    %5066 = vmatmul.mubr.bf16.gmra.mrb[0].mxu0 %v4583
    %v5067 = vpop.f32.mrb[0].mxu0
    %v5068 = vadd.f32 0.0, %v5067
    %v5069 = vpop.f32.mrb[0].mxu0
    %v5070 = vpop.f32.mrb[0].mxu0
    %v5071 = vpop.f32.mrb[0].mxu0
    %5072 = vdwg.mxu0
    %5073 = vmatprep.subr.bf16.mxu0 0
    %5074 = vmatpush1.bf16.msra.mxu0 %v4905
    %5075 = vmatprep.subr.bf16.mxu0 0
    %5076 = vmatpush1.bf16.msra.mxu0 %v4906
    %5077 = vmatprep.subr.bf16.mxu0 0
    %5078 = vmatpush1.bf16.msra.mxu0 %v4907
    %5079 = vmatprep.subr.bf16.mxu0 0
    %5080 = vmatpush1.bf16.msra.mxu0 %v4908
    %5081 = vmatprep.subr.bf16.mxu0 0
    %5082 = vmatpush1.bf16.msra.mxu0 %v4909
    %5083 = vmatprep.subr.bf16.mxu0 0
    %5084 = vmatpush1.bf16.msra.mxu0 %v4910
    %5085 = vmatprep.subr.bf16.mxu0 0
    %5086 = vmatpush1.bf16.msra.mxu0 %v4911
    %5087 = vmatprep.subr.bf16.mxu0 0
    %5088 = vmatpush1.bf16.msra.mxu0 %v4912
    %5089 = vmatprep.subr.bf16.mxu0 0
    %5090 = vmatpush1.bf16.msra.mxu0 %v4913
    %5091 = vmatprep.subr.bf16.mxu0 0
    %5092 = vmatpush1.bf16.msra.mxu0 %v4914
    %5093 = vmatprep.subr.bf16.mxu0 0
    %5094 = vmatpush1.bf16.msra.mxu0 %v4915
    %5095 = vmatprep.subr.bf16.mxu0 0
    %5096 = vmatpush1.bf16.msra.mxu0 %v4916
    %5097 = vmatprep.subr.bf16.mxu0 0
    %5098 = vmatpush1.bf16.msra.mxu0 %v4917
    %5099 = vmatprep.subr.bf16.mxu0 0
    %5100 = vmatpush1.bf16.msra.mxu0 %v4918
    %5101 = vmatprep.subr.bf16.mxu0 0
    %5102 = vmatpush1.bf16.msra.mxu0 %v4919
    %5103 = vmatprep.subr.bf16.mxu0 0
    %5104 = vmatpush1.bf16.msra.mxu0 %v4920
    %5105 = vmatprep.mubr.bf16.mxu0 %v4586
    %5106 = vmatmul.mubr.bf16.gmra.mrb[0].mxu0 %v4585
    %v5107 = vpop.f32.mrb[0].mxu0
    %v5108 = vadd.f32 %v5068, %v5107
    %v5109 = vpop.f32.mrb[0].mxu0
    %v5110 = vpop.f32.mrb[0].mxu0
    %v5111 = vpop.f32.mrb[0].mxu0
    %5112 = vdwg.mxu0
    %5113 = vmatprep.subr.bf16.mxu0 0
    %5114 = vmatpush1.bf16.msra.mxu0 %v4921
    %5115 = vmatprep.subr.bf16.mxu0 0
    %5116 = vmatpush1.bf16.msra.mxu0 %v4922
    %5117 = vmatprep.subr.bf16.mxu0 0
    %5118 = vmatpush1.bf16.msra.mxu0 %v4923
    %5119 = vmatprep.subr.bf16.mxu0 0
    %5120 = vmatpush1.bf16.msra.mxu0 %v4924
    %5121 = vmatprep.subr.bf16.mxu0 0
    %5122 = vmatpush1.bf16.msra.mxu0 %v4925
    %5123 = vmatprep.subr.bf16.mxu0 0
    %5124 = vmatpush1.bf16.msra.mxu0 %v4926
    %5125 = vmatprep.subr.bf16.mxu0 0
    %5126 = vmatpush1.bf16.msra.mxu0 %v4927
    %5127 = vmatprep.subr.bf16.mxu0 0
    %5128 = vmatpush1.bf16.msra.mxu0 %v4928
    %5129 = vmatprep.subr.bf16.mxu0 0
    %5130 = vmatpush1.bf16.msra.mxu0 %v4929
    %5131 = vmatprep.subr.bf16.mxu0 0
    %5132 = vmatpush1.bf16.msra.mxu0 %v4930
    %5133 = vmatprep.subr.bf16.mxu0 0
    %5134 = vmatpush1.bf16.msra.mxu0 %v4931
    %5135 = vmatprep.subr.bf16.mxu0 0
    %5136 = vmatpush1.bf16.msra.mxu0 %v4932
    %5137 = vmatprep.subr.bf16.mxu0 0
    %5138 = vmatpush1.bf16.msra.mxu0 %v4933
    %5139 = vmatprep.subr.bf16.mxu0 0
    %5140 = vmatpush1.bf16.msra.mxu0 %v4934
    %5141 = vmatprep.subr.bf16.mxu0 0
    %5142 = vmatpush1.bf16.msra.mxu0 %v4935
    %5143 = vmatprep.subr.bf16.mxu0 0
    %5144 = vmatpush1.bf16.msra.mxu0 %v4936
    %5145 = vmatprep.mubr.bf16.mxu0 %v4588
    %5146 = vmatmul.mubr.bf16.gmra.mrb[0].mxu0 %v4587
    %v5147 = vpop.f32.mrb[0].mxu0
    %v5148 = vadd.f32 %v5108, %v5147
    %v5149 = vpop.f32.mrb[0].mxu0
    %v5150 = vpop.f32.mrb[0].mxu0
    %v5151 = vpop.f32.mrb[0].mxu0
    %5152 = vdwg.mxu0
    %5153 = vmatprep.subr.bf16.mxu0 0
    %5154 = vmatpush1.bf16.msra.mxu0 %v4937
    %5155 = vmatprep.subr.bf16.mxu0 0
    %5156 = vmatpush1.bf16.msra.mxu0 %v4938
    %5157 = vmatprep.subr.bf16.mxu0 0
    %5158 = vmatpush1.bf16.msra.mxu0 %v4939
    %5159 = vmatprep.subr.bf16.mxu0 0
    %5160 = vmatpush1.bf16.msra.mxu0 %v4940
    %5161 = vmatprep.subr.bf16.mxu0 0
    %5162 = vmatpush1.bf16.msra.mxu0 %v4941
    %5163 = vmatprep.subr.bf16.mxu0 0
    %5164 = vmatpush1.bf16.msra.mxu0 %v4942
    %5165 = vmatprep.subr.bf16.mxu0 0
    %5166 = vmatpush1.bf16.msra.mxu0 %v4943
    %5167 = vmatprep.subr.bf16.mxu0 0
    %5168 = vmatpush1.bf16.msra.mxu0 %v4944
    %5169 = vmatprep.subr.bf16.mxu0 0
    %5170 = vmatpush1.bf16.msra.mxu0 %v4945
    %5171 = vmatprep.subr.bf16.mxu0 0
    %5172 = vmatpush1.bf16.msra.mxu0 %v4946
    %5173 = vmatprep.subr.bf16.mxu0 0
    %5174 = vmatpush1.bf16.msra.mxu0 %v4947
    %5175 = vmatprep.subr.bf16.mxu0 0
    %5176 = vmatpush1.bf16.msra.mxu0 %v4948
    %5177 = vmatprep.subr.bf16.mxu0 0
    %5178 = vmatpush1.bf16.msra.mxu0 %v4949
    %5179 = vmatprep.subr.bf16.mxu0 0
    %5180 = vmatpush1.bf16.msra.mxu0 %v4950
    %5181 = vmatprep.subr.bf16.mxu0 0
    %5182 = vmatpush1.bf16.msra.mxu0 %v4951
    %5183 = vmatprep.subr.bf16.mxu0 0
    %5184 = vmatpush1.bf16.msra.mxu0 %v4952
    %5185 = vmatprep.mubr.bf16.mxu0 %v4590
    %5186 = vmatmul.mubr.bf16.gmra.mrb[0].mxu0 %v4589
    %v5187 = vpop.f32.mrb[0].mxu0
    %v5188 = vadd.f32 %v5148, %v5187
    %v5189 = vpop.f32.mrb[0].mxu0
    %v5190 = vpop.f32.mrb[0].mxu0
    %v5191 = vpop.f32.mrb[0].mxu0
    %5192 = vdwg.mxu0
    %5193 = vmatprep.subr.bf16.mxu0 0
    %5194 = vmatpush1.bf16.msra.mxu0 %v4953
    %5195 = vmatprep.subr.bf16.mxu0 0
    %5196 = vmatpush1.bf16.msra.mxu0 %v4954
    %5197 = vmatprep.subr.bf16.mxu0 0
    %5198 = vmatpush1.bf16.msra.mxu0 %v4955
    %5199 = vmatprep.subr.bf16.mxu0 0
    %5200 = vmatpush1.bf16.msra.mxu0 %v4956
    %5201 = vmatprep.subr.bf16.mxu0 0
    %5202 = vmatpush1.bf16.msra.mxu0 %v4957
    %5203 = vmatprep.subr.bf16.mxu0 0
    %5204 = vmatpush1.bf16.msra.mxu0 %v4958
    %5205 = vmatprep.subr.bf16.mxu0 0
    %5206 = vmatpush1.bf16.msra.mxu0 %v4959
    %5207 = vmatprep.subr.bf16.mxu0 0
    %5208 = vmatpush1.bf16.msra.mxu0 %v4960
    %5209 = vmatprep.subr.bf16.mxu0 0
    %5210 = vmatpush1.bf16.msra.mxu0 0
    %5211 = vmatprep.subr.bf16.mxu0 0
    %5212 = vmatpush1.bf16.msra.mxu0 0
    %5213 = vmatprep.subr.bf16.mxu0 0
    %5214 = vmatpush1.bf16.msra.mxu0 0
    %5215 = vmatprep.subr.bf16.mxu0 0
    %5216 = vmatpush1.bf16.msra.mxu0 0
    %5217 = vmatprep.subr.bf16.mxu0 0
    %5218 = vmatpush1.bf16.msra.mxu0 0
    %5219 = vmatprep.subr.bf16.mxu0 0
    %5220 = vmatpush1.bf16.msra.mxu0 0
    %5221 = vmatprep.subr.bf16.mxu0 0
    %5222 = vmatpush1.bf16.msra.mxu0 0
    %5223 = vmatprep.subr.bf16.mxu0 0
    %5224 = vmatpush1.bf16.msra.mxu0 0
    %5225 = vmatprep.mubr.bf16.mxu0 0
    %5226 = vmatmul.mubr.bf16.gmra.mrb[0].mxu0 %v4591
    %v5227 = vpop.f32.mrb[0].mxu0
    %v5228 = vadd.f32 %v5188, %v5227
    %v5229 = vpop.f32.mrb[0].mxu0
    %v5230 = vpop.f32.mrb[0].mxu0
    %v5231 = vpop.f32.mrb[0].mxu0
    %5232 = vdwg.mxu0
    %5233 = vst [vmem:[%s7] sm:$0xff] %v5228
    %v5234 = vld [vmem:[#allocation3 + $0x9] sm:$0x1]
    %v5235 = vpack.c.bf16 %v5234, %v5234
    %vm5236 = vcmask 1040384
    %vm5237 = vsmask.f32 256
    %vm5238 = vmand %vm5236, %vm5237
    %v5239 = vld [vmem:[#allocation7] sm:$0x1]
    %v5240 = vsel %vm5238, %v5235, %v5239
    %5241 = vst [vmem:[#allocation7] sm:$0x1] %v5240
    %v5242 = vld [vmem:[#allocation3 + $0xa] sm:$0x1]
    %v5243 = vpack.c.bf16 %v5242, %v5242
    %v5244 = vld [vmem:[#allocation7 + $0x4] sm:$0x1]
    %v5245 = vsel %vm5238, %v5243, %v5244
    %5246 = vst [vmem:[#allocation7 + $0x4] sm:$0x1] %v5245
    %v5247 = vld [vmem:[#allocation3 + $0x11] sm:$0x1]
    %v5248 = vpack.c.bf16 %v5247, %v5247
    %v5249 = vld [vmem:[#allocation7 + $0x8] sm:$0x1]
    %v5250 = vsel %vm5238, %v5248, %v5249
    %5251 = vst [vmem:[#allocation7 + $0x8] sm:$0x1] %v5250
    %v5252 = vld [vmem:[#allocation3 + $0x12] sm:$0x1]
    %v5253 = vpack.c.bf16 %v5252, %v5252
    %v5254 = vld [vmem:[#allocation7 + $0xc] sm:$0x1]
    %v5255 = vsel %vm5238, %v5253, %v5254
    %5256 = vst [vmem:[#allocation7 + $0xc] sm:$0x1] %v5255
    %v5257 = vld [vmem:[#allocation3 + $0x49] sm:$0x1]
    %v5258 = vpack.c.bf16 %v5257, %v5257
    %v5260 = vunpack.c.l.b16 %v5258
    %v5261 = vpack.c.b16 %v5260, %v5260
    %v5263 = vshll.u32 %v5261, 16
    %vm5266 = vsmask.f32 7938
    %vm5267 = vmand %vm5236, %vm5266
    %v5268 = vld [vmem:[#allocation7] sm:$0x1]
    %v5269 = vsel %vm5267, %v5263, %v5268
    %5270 = vst [vmem:[#allocation7] sm:$0x1] %v5269
    %v5271 = vld [vmem:[#allocation3 + $0x4a] sm:$0x1]
    %v5272 = vpack.c.bf16 %v5271, %v5271
    %v5274 = vunpack.c.l.b16 %v5272
    %v5275 = vpack.c.b16 %v5274, %v5274
    %v5277 = vshll.u32 %v5275, 16
    %v5280 = vld [vmem:[#allocation7 + $0x4] sm:$0x1]
    %v5281 = vsel %vm5267, %v5277, %v5280
    %5282 = vst [vmem:[#allocation7 + $0x4] sm:$0x1] %v5281
    %v5283 = vld [vmem:[#allocation3 + $0x51] sm:$0x1]
    %v5284 = vpack.c.bf16 %v5283, %v5283
    %v5286 = vunpack.c.l.b16 %v5284
    %v5287 = vpack.c.b16 %v5286, %v5286
    %v5289 = vshll.u32 %v5287, 16
    %v5292 = vld [vmem:[#allocation7 + $0x8] sm:$0x1]
    %v5293 = vsel %vm5267, %v5289, %v5292
    %5294 = vst [vmem:[#allocation7 + $0x8] sm:$0x1] %v5293
    %v5295 = vld [vmem:[#allocation3 + $0x52] sm:$0x1]
    %v5296 = vpack.c.bf16 %v5295, %v5295
    %v5298 = vunpack.c.l.b16 %v5296
    %v5299 = vpack.c.b16 %v5298, %v5298
    %v5301 = vshll.u32 %v5299, 16
    %v5304 = vld [vmem:[#allocation7 + $0xc] sm:$0x1]
    %v5305 = vsel %vm5267, %v5301, %v5304
    %5306 = vst [vmem:[#allocation7 + $0xc] sm:$0x1] %v5305
    %v5307 = vld [vmem:[#allocation7] sm:$0x11]
    %v5308 = vld [vmem:[#allocation7 + $0x8] sm:$0x11]
    %v5309 = vld [vmem:[%s6] sm:$0xf]
    %v5310 = vld [vmem:[%s6 + $0x4] sm:$0xf]
    %v5311 = vld [vmem:[%s6 + $0x8] sm:$0xf]
    %v5312 = vld [vmem:[%s6 + $0xc] sm:$0xf]
    %v5313 = vld [vmem:[%s6 + $0x10] sm:$0xf]
    %v5314 = vld [vmem:[%s6 + $0x14] sm:$0xf]
    %v5315 = vld [vmem:[%s6 + $0x18] sm:$0xf]
    %v5316 = vld [vmem:[%s6 + $0x1c] sm:$0xf]
    %v5317 = vld [vmem:[%s6 + $0x20] sm:$0xf]
    %v5318 = vld [vmem:[%s6 + $0x24] sm:$0xf]
    %v5319 = vld [vmem:[%s6 + $0x28] sm:$0xf]
    %v5320 = vld [vmem:[%s6 + $0x2c] sm:$0xf]
    %v5321 = vld [vmem:[%s6 + $0x30] sm:$0xf]
    %v5322 = vld [vmem:[%s6 + $0x34] sm:$0xf]
    %v5323 = vld [vmem:[%s6 + $0x38] sm:$0xf]
    %v5324 = vld [vmem:[%s6 + $0x3c] sm:$0xf]
    %v5325 = vld [vmem:[%s6 + $0x40] sm:$0xf]
    %v5326 = vld [vmem:[%s6 + $0x44] sm:$0xf]
    %v5327 = vld [vmem:[%s6 + $0x48] sm:$0xf]
    %v5328 = vld [vmem:[%s6 + $0x4c] sm:$0xf]
    %v5329 = vld [vmem:[%s6 + $0x50] sm:$0xf]
    %v5330 = vld [vmem:[%s6 + $0x54] sm:$0xf]
    %v5331 = vld [vmem:[%s6 + $0x58] sm:$0xf]
    %v5332 = vld [vmem:[%s6 + $0x5c] sm:$0xf]
    %v5333 = vld [vmem:[%s6 + $0x60] sm:$0xf]
    %v5334 = vld [vmem:[%s6 + $0x64] sm:$0xf]
    %v5335 = vld [vmem:[%s6 + $0x68] sm:$0xf]
    %v5336 = vld [vmem:[%s6 + $0x6c] sm:$0xf]
    %v5337 = vld [vmem:[%s6 + $0x70] sm:$0xf]
    %v5338 = vld [vmem:[%s6 + $0x74] sm:$0xf]
    %v5339 = vld [vmem:[%s6 + $0x78] sm:$0xf]
    %v5340 = vld [vmem:[%s6 + $0x7c] sm:$0xf]
    %v5341 = vld [vmem:[%s6 + $0x80] sm:$0xf]
    %v5342 = vld [vmem:[%s6 + $0x84] sm:$0xf]
    %v5343 = vld [vmem:[%s6 + $0x88] sm:$0xf]
    %v5344 = vld [vmem:[%s6 + $0x8c] sm:$0xf]
    %v5345 = vld [vmem:[%s6 + $0x90] sm:$0xf]
    %v5346 = vld [vmem:[%s6 + $0x94] sm:$0xf]
    %v5347 = vld [vmem:[%s6 + $0x98] sm:$0xf]
    %v5348 = vld [vmem:[%s6 + $0x9c] sm:$0xf]
    %v5349 = vld [vmem:[%s6 + $0xa0] sm:$0xf]
    %v5350 = vld [vmem:[%s6 + $0xa4] sm:$0xf]
    %v5351 = vld [vmem:[%s6 + $0xa8] sm:$0xf]
    %v5352 = vld [vmem:[%s6 + $0xac] sm:$0xf]
    %v5353 = vld [vmem:[%s6 + $0xb0] sm:$0xf]
    %v5354 = vld [vmem:[%s6 + $0xb4] sm:$0xf]
    %v5355 = vld [vmem:[%s6 + $0xb8] sm:$0xf]
    %v5356 = vld [vmem:[%s6 + $0xbc] sm:$0xf]
    %v5357 = vld [vmem:[%s6 + $0xc0] sm:$0xf]
    %v5358 = vld [vmem:[%s6 + $0xc4] sm:$0xf]
    %v5359 = vld [vmem:[%s6 + $0xc8] sm:$0xf]
    %v5360 = vld [vmem:[%s6 + $0xcc] sm:$0xf]
    %v5361 = vld [vmem:[%s6 + $0xd0] sm:$0xf]
    %v5362 = vld [vmem:[%s6 + $0xd4] sm:$0xf]
    %v5363 = vld [vmem:[%s6 + $0xd8] sm:$0xf]
    %v5364 = vld [vmem:[%s6 + $0xdc] sm:$0xf]
    %v5365 = vld [vmem:[%s6 + $0xe0] sm:$0xf]
    %v5366 = vld [vmem:[%s6 + $0xe4] sm:$0xf]
    %v5367 = vld [vmem:[%s6 + $0xe8] sm:$0xf]
    %v5368 = vld [vmem:[%s6 + $0xec] sm:$0xf]
    %v5369 = vld [vmem:[%s6 + $0xf0] sm:$0xf]
    %v5370 = vld [vmem:[%s6 + $0xf4] sm:$0xf]
    %v5371 = vld [vmem:[%s6 + $0xf8] sm:$0xf]
    %v5372 = vld [vmem:[%s6 + $0xfc] sm:$0xf]
    %v5375 = vunpack.c.l.b16 %v5307
    %v5376 = vunpack.c.h.b16 %v5307
    %v5377 = vunpack.c.l.b16 %v5308
    %v5378 = vunpack.c.h.b16 %v5308
    %v5379 = vpack.c.b16 %v5375, %v5375
    %v5380 = vpack.c.b16 %v5376, %v5376
    %v5381 = vpack.c.b16 %v5377, %v5377
    %v5382 = vpack.c.b16 %v5378, %v5378
    %v5451 = vunpack.c.l.b16 %v5309
    %v5452 = vunpack.c.l.b16 %v5310
    %v5453 = vunpack.c.l.b16 %v5311
    %v5454 = vunpack.c.l.b16 %v5312
    %v5455 = vunpack.c.l.b16 %v5313
    %v5456 = vunpack.c.l.b16 %v5314
    %v5457 = vunpack.c.l.b16 %v5315
    %v5458 = vunpack.c.l.b16 %v5316
    %v5459 = vunpack.c.l.b16 %v5317
    %v5460 = vunpack.c.l.b16 %v5318
    %v5461 = vunpack.c.l.b16 %v5319
    %v5462 = vunpack.c.l.b16 %v5320
    %v5463 = vunpack.c.l.b16 %v5321
    %v5464 = vunpack.c.l.b16 %v5322
    %v5465 = vunpack.c.l.b16 %v5323
    %v5466 = vunpack.c.l.b16 %v5324
    %v5467 = vunpack.c.l.b16 %v5325
    %v5468 = vunpack.c.l.b16 %v5326
    %v5469 = vunpack.c.l.b16 %v5327
    %v5470 = vunpack.c.l.b16 %v5328
    %v5471 = vunpack.c.l.b16 %v5329
    %v5472 = vunpack.c.l.b16 %v5330
    %v5473 = vunpack.c.l.b16 %v5331
    %v5474 = vunpack.c.l.b16 %v5332
    %v5475 = vunpack.c.l.b16 %v5333
    %v5476 = vunpack.c.l.b16 %v5334
    %v5477 = vunpack.c.l.b16 %v5335
    %v5478 = vunpack.c.l.b16 %v5336
    %v5479 = vunpack.c.l.b16 %v5337
    %v5480 = vunpack.c.l.b16 %v5338
    %v5481 = vunpack.c.l.b16 %v5339
    %v5482 = vunpack.c.l.b16 %v5340
    %v5483 = vunpack.c.l.b16 %v5341
    %v5484 = vunpack.c.l.b16 %v5342
    %v5485 = vunpack.c.l.b16 %v5343
    %v5486 = vunpack.c.l.b16 %v5344
    %v5487 = vunpack.c.l.b16 %v5345
    %v5488 = vunpack.c.l.b16 %v5346
    %v5489 = vunpack.c.l.b16 %v5347
    %v5490 = vunpack.c.l.b16 %v5348
    %v5491 = vunpack.c.l.b16 %v5349
    %v5492 = vunpack.c.l.b16 %v5350
    %v5493 = vunpack.c.l.b16 %v5351
    %v5494 = vunpack.c.l.b16 %v5352
    %v5495 = vunpack.c.l.b16 %v5353
    %v5496 = vunpack.c.l.b16 %v5354
    %v5497 = vunpack.c.l.b16 %v5355
    %v5498 = vunpack.c.l.b16 %v5356
    %v5499 = vunpack.c.l.b16 %v5357
    %v5500 = vunpack.c.l.b16 %v5358
    %v5501 = vunpack.c.l.b16 %v5359
    %v5502 = vunpack.c.l.b16 %v5360
    %v5503 = vunpack.c.l.b16 %v5361
    %v5504 = vunpack.c.l.b16 %v5362
    %v5505 = vunpack.c.l.b16 %v5363
    %v5506 = vunpack.c.l.b16 %v5364
    %v5507 = vunpack.c.l.b16 %v5365
    %v5508 = vunpack.c.l.b16 %v5366
    %v5509 = vunpack.c.l.b16 %v5367
    %v5510 = vunpack.c.l.b16 %v5368
    %v5511 = vunpack.c.l.b16 %v5369
    %v5512 = vunpack.c.l.b16 %v5370
    %v5513 = vunpack.c.l.b16 %v5371
    %v5514 = vunpack.c.l.b16 %v5372
    %v5515 = vpack.c.b16 %v5452, %v5451
    %v5516 = vpack.c.b16 %v5454, %v5453
    %v5517 = vpack.c.b16 %v5456, %v5455
    %v5518 = vpack.c.b16 %v5458, %v5457
    %v5519 = vpack.c.b16 %v5460, %v5459
    %v5520 = vpack.c.b16 %v5462, %v5461
    %v5521 = vpack.c.b16 %v5464, %v5463
    %v5522 = vpack.c.b16 %v5466, %v5465
    %v5523 = vpack.c.b16 %v5468, %v5467
    %v5524 = vpack.c.b16 %v5470, %v5469
    %v5525 = vpack.c.b16 %v5472, %v5471
    %v5526 = vpack.c.b16 %v5474, %v5473
    %v5527 = vpack.c.b16 %v5476, %v5475
    %v5528 = vpack.c.b16 %v5478, %v5477
    %v5529 = vpack.c.b16 %v5480, %v5479
    %v5530 = vpack.c.b16 %v5482, %v5481
    %v5531 = vpack.c.b16 %v5484, %v5483
    %v5532 = vpack.c.b16 %v5486, %v5485
    %v5533 = vpack.c.b16 %v5488, %v5487
    %v5534 = vpack.c.b16 %v5490, %v5489
    %v5535 = vpack.c.b16 %v5492, %v5491
    %v5536 = vpack.c.b16 %v5494, %v5493
    %v5537 = vpack.c.b16 %v5496, %v5495
    %v5538 = vpack.c.b16 %v5498, %v5497
    %v5539 = vpack.c.b16 %v5500, %v5499
    %v5540 = vpack.c.b16 %v5502, %v5501
    %v5541 = vpack.c.b16 %v5504, %v5503
    %v5542 = vpack.c.b16 %v5506, %v5505
    %v5543 = vpack.c.b16 %v5508, %v5507
    %v5544 = vpack.c.b16 %v5510, %v5509
    %v5545 = vpack.c.b16 %v5512, %v5511
    %v5546 = vpack.c.b16 %v5514, %v5513
    %5579 = vmatprep.subr.bf16.mxu0 0
    %5580 = vmatpush1.bf16.msra.mxu0 %v5515
    %5581 = vmatprep.subr.bf16.mxu0 0
    %5582 = vmatpush1.bf16.msra.mxu0 %v5516
    %5583 = vmatprep.subr.bf16.mxu0 0
    %5584 = vmatpush1.bf16.msra.mxu0 %v5517
    %5585 = vmatprep.subr.bf16.mxu0 0
    %5586 = vmatpush1.bf16.msra.mxu0 %v5518
    %5587 = vmatprep.subr.bf16.mxu0 0
    %5588 = vmatpush1.bf16.msra.mxu0 %v5519
    %5589 = vmatprep.subr.bf16.mxu0 0
    %5590 = vmatpush1.bf16.msra.mxu0 %v5520
    %5591 = vmatprep.subr.bf16.mxu0 0
    %5592 = vmatpush1.bf16.msra.mxu0 %v5521
    %5593 = vmatprep.subr.bf16.mxu0 0
    %5594 = vmatpush1.bf16.msra.mxu0 %v5522
    %5595 = vmatprep.subr.bf16.mxu0 0
    %5596 = vmatpush1.bf16.msra.mxu0 %v5523
    %5597 = vmatprep.subr.bf16.mxu0 0
    %5598 = vmatpush1.bf16.msra.mxu0 %v5524
    %5599 = vmatprep.subr.bf16.mxu0 0
    %5600 = vmatpush1.bf16.msra.mxu0 %v5525
    %5601 = vmatprep.subr.bf16.mxu0 0
    %5602 = vmatpush1.bf16.msra.mxu0 %v5526
    %5603 = vmatprep.subr.bf16.mxu0 0
    %5604 = vmatpush1.bf16.msra.mxu0 %v5527
    %5605 = vmatprep.subr.bf16.mxu0 0
    %5606 = vmatpush1.bf16.msra.mxu0 %v5528
    %5607 = vmatprep.subr.bf16.mxu0 0
    %5608 = vmatpush1.bf16.msra.mxu0 %v5529
    %5609 = vmatprep.subr.bf16.mxu0 0
    %5610 = vmatpush1.bf16.msra.mxu0 %v5530
    %5611 = vmatprep.mubr.bf16.mxu0 %v5380
    %5612 = vmatmul.mubr.bf16.gmra.mrb[0].mxu0 %v5379
    %v5613 = vpop.f32.mrb[0].mxu0
    %v5614 = vadd.f32 0.0, %v5613
    %v5615 = vpop.f32.mrb[0].mxu0
    %v5616 = vpop.f32.mrb[0].mxu0
    %v5617 = vpop.f32.mrb[0].mxu0
    %5618 = vdwg.mxu0
    %5619 = vmatprep.subr.bf16.mxu0 0
    %5620 = vmatpush1.bf16.msra.mxu0 %v5531
    %5621 = vmatprep.subr.bf16.mxu0 0
    %5622 = vmatpush1.bf16.msra.mxu0 %v5532
    %5623 = vmatprep.subr.bf16.mxu0 0
    %5624 = vmatpush1.bf16.msra.mxu0 %v5533
    %5625 = vmatprep.subr.bf16.mxu0 0
    %5626 = vmatpush1.bf16.msra.mxu0 %v5534
    %5627 = vmatprep.subr.bf16.mxu0 0
    %5628 = vmatpush1.bf16.msra.mxu0 %v5535
    %5629 = vmatprep.subr.bf16.mxu0 0
    %5630 = vmatpush1.bf16.msra.mxu0 %v5536
    %5631 = vmatprep.subr.bf16.mxu0 0
    %5632 = vmatpush1.bf16.msra.mxu0 %v5537
    %5633 = vmatprep.subr.bf16.mxu0 0
    %5634 = vmatpush1.bf16.msra.mxu0 %v5538
    %5635 = vmatprep.subr.bf16.mxu0 0
    %5636 = vmatpush1.bf16.msra.mxu0 %v5539
    %5637 = vmatprep.subr.bf16.mxu0 0
    %5638 = vmatpush1.bf16.msra.mxu0 %v5540
    %5639 = vmatprep.subr.bf16.mxu0 0
    %5640 = vmatpush1.bf16.msra.mxu0 %v5541
    %5641 = vmatprep.subr.bf16.mxu0 0
    %5642 = vmatpush1.bf16.msra.mxu0 %v5542
    %5643 = vmatprep.subr.bf16.mxu0 0
    %5644 = vmatpush1.bf16.msra.mxu0 %v5543
    %5645 = vmatprep.subr.bf16.mxu0 0
    %5646 = vmatpush1.bf16.msra.mxu0 %v5544
    %5647 = vmatprep.subr.bf16.mxu0 0
    %5648 = vmatpush1.bf16.msra.mxu0 %v5545
    %5649 = vmatprep.subr.bf16.mxu0 0
    %5650 = vmatpush1.bf16.msra.mxu0 %v5546
    %5651 = vmatprep.mubr.bf16.mxu0 %v5382
    %5652 = vmatmul.mubr.bf16.gmra.mrb[0].mxu0 %v5381
    %v5653 = vpop.f32.mrb[0].mxu0
    %v5654 = vadd.f32 %v5614, %v5653
    %v5655 = vpop.f32.mrb[0].mxu0
    %v5656 = vpop.f32.mrb[0].mxu0
    %v5657 = vpop.f32.mrb[0].mxu0
    %5658 = vdwg.mxu0
    %5659 = vst [vmem:[#allocation8] sm:$0x3] %v5654
    // Predicated region
    $region30: #{forward.1} parent=1 // pred_check
      _
    $region31: #{forward.1} parent=1 // pred_check_branch
      %5661 = sbr.rel (0) target = $region33
    $region32: #{forward.1} parent=1 // pred_region
      _
    $region33: #{forward.1} parent=1 // pred_fallthru
      _
    // Predicated region
    $region34: #{forward.1} parent=1 // pred_check
      _
    $region35: #{forward.1} parent=1 // pred_check_branch
      %5663 = sbr.rel (0) target = $region37
    $region36: #{forward.1} parent=1 // pred_region
      %s5665 = ssub.s32 32, 32
      %5666 = vsyncadd [#allocation9], %s5665
      %s5668 = sshll.u32 [#allocation8], 4
      %s5669 = int_to_ptr.vmem [resolvable:$true] %s5668
      %5671 = dma.vmem_to_hbm [thread:$0]  %s5669, 32, %s8, [#allocation9]
    $region37: #{forward.1} parent=1 // pred_fallthru
      _
    // Predicated region
    $region38: #{forward.1} parent=1 // pred_check
      _
    $region39: #{forward.1} parent=1 // pred_check_branch
      %5673 = sbr.rel (0) target = $region41
    $region40: #{forward.1} parent=1 // pred_region
      _
    $region41: #{forward.1} parent=1 // pred_fallthru
      _
    // Predicated region
    $region42: #{forward.1} parent=1 // pred_check
      _
    $region43: #{forward.1} parent=1 // pred_check_branch
      %5675 = sbr.rel (0) target = $region45
    $region44: #{forward.1} parent=1 // pred_region
      %5676 = dma.done [#allocation9], 32
    $region45: #{forward.1} parent=1 // pred_fallthru
      _
    %5677 = vsyncpa [#allocation9], 1

</llo_original>
